<compile_context>
chip_gen: v5e
topology: v5e:2x2
jax: 0.10.0
libtpu: 0.0.40
codegen_flags: <defaults>
</compile_context>

<pallas_src>
import jax
import jax.numpy as jnp
import numpy as np
from jax.experimental import pallas as pl
from jax.experimental.pallas import tpu as pltpu


def _vmem_limit_bytes():
    """Generation-aware VMEM limit (v7x: 64 MiB/TC; v5e/v6e: 128 MiB)."""
    try:
        cap = int(pltpu.get_tpu_info().vmem_capacity_bytes)
    except Exception:           # query unavailable -> assume smallest (v7x)
        cap = 64 * 1024 * 1024
    return min(cap * 3 // 4, 96 * 1024 * 1024)


def _step_vmem_bytes(H, W, Cin, Cmid, Cout, TH):
    """Rough per-grid-step VMEM estimate (double-buffered blocks + temps)."""
    Hm, Wm = TH + 2, W + 2
    x_block = 2 * (H + 4) * (W + 4) * Cin * 2            # bf16, 2 buffers
    o_block = 2 * TH * W * Cout * 4                      # f32, 2 buffers
    weights = 2 * 2 * 9 * (Cin * Cmid + Cmid * Cout)     # bf16, 2 buffers
    temps = (Hm * Wm * (2 * Cin + 6 * Cmid)              # taps + f32 acc + bf16 mid
             + TH * W * (2 * Cmid + 8 * Cout))           # taps + f32 acc + store
    return x_block + o_block + weights + temps


def _pick_row_tile(H, W, Cin, Cmid, Cout, budget):
    """Largest divisor of H whose per-step working set fits the budget."""
    for th in range(H, 0, -1):
        if H % th == 0 and _step_vmem_bytes(H, W, Cin, Cmid, Cout, th) <= budget:
            return th
    raise ValueError("input image too large for the resident-image kernel; "
                     "a halo-DMA row-tiled variant is required")


def _double_conv_kernel(x_ref, w1_ref, s1_ref, b1_ref, w2_ref, s2_ref, b2_ref,
                        o_ref):
    """Fused (conv3x3 "same" + folded BN + ReLU) x 2 for one (batch, row tile).

    x_ref : (H+4, W+4, Cin)   bf16 whole zero-padded image of this batch
    w?_ref: (3, 3, Ci, Co)    bf16 HWIO conv weights
    s?/b? : (1, Co)           f32 folded BN scale / bias
    o_ref : (TH, W, Cout)     f32 output row tile (batch dim squeezed)
    """
    r = pl.program_id(1)
    TH, W, Cout = o_ref.shape
    Cmid = w1_ref.shape[-1]
    Hm, Wm = TH + 2, W + 2                       # mid tile incl. 1-px halo
    H = pl.num_programs(1) * TH                  # full image height

    row0 = pl.multiple_of(r * TH, TH)
    xw = x_ref[pl.ds(row0, TH + 4), :, :]        # (TH+4, W+4, Cin), 2-px halo

    def conv3x3(src, out_h, out_w, w_ref):
        """3x3 conv as nine accumulated (M, Ci) x (Ci, Co) MXU matmuls."""
        w = w_ref[...]                           # (3, 3, Ci, Co) bf16
        ci = src.shape[-1]
        acc = None
        for dy in range(3):
            for dx in range(3):
                tap = src[dy:dy + out_h, dx:dx + out_w, :].reshape(
                    out_h * out_w, ci)
                p = jnp.dot(tap, w[dy, dx],
                            preferred_element_type=jnp.float32)
                acc = p if acc is None else acc + p
        return acc                               # (out_h*out_w, Co) f32

    # ---- layer 1: conv + BN-affine + ReLU on the 1-px-halo'd mid window ----
    y1 = conv3x3(xw, Hm, Wm, w1_ref)
    y1 = jnp.maximum(y1 * s1_ref[...] + b1_ref[...], 0.0)
    mid = y1.reshape(Hm, Wm, Cmid)

    # conv2's "same" zero padding applies to the *mid* activation, so halo
    # positions outside the real image must be zeroed (conv1 of the zero-
    # padded input plus BN bias + ReLU is nonzero there).  2-D mask pattern,
    # lane-broadcast by jnp.where.
    gr = jax.lax.broadcasted_iota(jnp.int32, (Hm, Wm, 1), 0) + (row0 - 1)
    gc = jax.lax.broadcasted_iota(jnp.int32, (Hm, Wm, 1), 1) - 1
    valid = (gr >= 0) & (gr < H) & (gc >= 0) & (gc < W)
    mid = jnp.where(valid, mid, 0.0).astype(jnp.bfloat16)

    # ---- layer 2: conv + BN-affine + ReLU ----------------------------------
    y2 = conv3x3(mid, TH, W, w2_ref)
    y2 = jnp.maximum(y2 * s2_ref[...] + b2_ref[...], 0.0)
    o_ref[...] = y2.reshape(TH, W, Cout).astype(o_ref.dtype)


def double_conv_pallas(x_nhwc, w1, s1, b1, w2, s2, b2):
    """Fused (conv3x3 "same" + folded-BN affine + ReLU) x 2, NHWC in/out."""
    N, H, W, Cin = x_nhwc.shape
    Cmid = w1.shape[-1]
    Cout = w2.shape[-1]

    vmem_limit = _vmem_limit_bytes()
    TH = _pick_row_tile(H, W, Cin, Cmid, Cout, vmem_limit // 2)
    R = H // TH

    # Single-pass preprocessing: bf16 cast + 2-px spatial zero pad (2 convs).
    # No channel padding anywhere.
    xp = jnp.pad(x_nhwc.astype(jnp.bfloat16), ((0, 0), (2, 2), (2, 2), (0, 0)))

    w1b = w1.astype(jnp.bfloat16)                 # (3, 3, Cin, Cmid) HWIO
    w2b = w2.astype(jnp.bfloat16)                 # (3, 3, Cmid, Cout) HWIO
    s1b = s1.reshape(1, -1).astype(jnp.float32)
    b1b = b1.reshape(1, -1).astype(jnp.float32)
    s2b = s2.reshape(1, -1).astype(jnp.float32)
    b2b = b2.reshape(1, -1).astype(jnp.float32)

    return pl.pallas_call(
        _double_conv_kernel,
        out_shape=jax.ShapeDtypeStruct((N, H, W, Cout), jnp.float32),
        grid=(N, R),
        in_specs=[
            # Whole padded image of batch n; identical block for every r, so
            # it is fetched once per batch and auto-pipelined across batches.
            pl.BlockSpec((None, H + 4, W + 4, Cin), lambda n, r: (n, 0, 0, 0)),
            pl.BlockSpec((3, 3, Cin, Cmid), lambda n, r: (0, 0, 0, 0)),
            pl.BlockSpec((1, Cmid), lambda n, r: (0, 0)),
            pl.BlockSpec((1, Cmid), lambda n, r: (0, 0)),
            pl.BlockSpec((3, 3, Cmid, Cout), lambda n, r: (0, 0, 0, 0)),
            pl.BlockSpec((1, Cout), lambda n, r: (0, 0)),
            pl.BlockSpec((1, Cout), lambda n, r: (0, 0)),
        ],
        out_specs=pl.BlockSpec((None, TH, W, Cout), lambda n, r: (n, r, 0, 0)),
        compiler_params=pltpu.CompilerParams(
            dimension_semantics=("parallel", "parallel"),
            vmem_limit_bytes=vmem_limit,
        ),
    )(xp, w1b, s1b, b1b, w2b, s2b, b2b)


def _fold_bn(conv_bias, gamma, beta, mean, var, eps=1e-3):
    s = gamma / jnp.sqrt(var + eps)
    t = (conv_bias - mean) * s + beta
    return s, t


def make_double_conv_params(key, in_channels, out_channels, mid_channels=None):
    if not mid_channels:
        mid_channels = out_channels
    keys = jax.random.split(key, 12)

    def layer_params(ks, cin, cout):
        w = 0.1 * jax.random.normal(ks[0], (3, 3, cin, cout), jnp.float32)
        b = 0.05 * jax.random.normal(ks[1], (cout,), jnp.float32)
        gamma = 1.0 + 0.1 * jax.random.normal(ks[2], (cout,), jnp.float32)
        beta = 0.1 * jax.random.normal(ks[3], (cout,), jnp.float32)
        mean = 0.1 * jax.random.normal(ks[4], (cout,), jnp.float32)
        var = jnp.abs(jax.random.normal(ks[5], (cout,), jnp.float32)) + 0.5
        return dict(w=w, b=b, gamma=gamma, beta=beta, mean=mean, var=var)

    p1 = layer_params(keys[0:6], in_channels, mid_channels)
    p2 = layer_params(keys[6:12], mid_channels, out_channels)
    return p1, p2


@jax.jit
def double_conv_forward(x_nchw, p1, p2):
    """Equivalent of DoubleConv.double_conv(x), eval-mode BN, NCHW in/out."""
    x = jnp.transpose(x_nchw, (0, 2, 3, 1))      # NCHW -> NHWC
    s1, t1 = _fold_bn(p1["b"], p1["gamma"], p1["beta"], p1["mean"], p1["var"])
    s2, t2 = _fold_bn(p2["b"], p2["gamma"], p2["beta"], p2["mean"], p2["var"])
    y = double_conv_pallas(x, p1["w"], s1, t1, p2["w"], s2, t2)
    return jnp.transpose(y, (0, 3, 1, 2))        # NHWC -> NCHW


def _reference(x_nchw, p1, p2):
    """Pure-JAX reference (same bf16 matmul inputs, f32 accumulation)."""
    x = jnp.transpose(x_nchw, (0, 2, 3, 1))

    def layer(x, p):
        y = jax.lax.conv_general_dilated(
            x.astype(jnp.bfloat16), p["w"].astype(jnp.bfloat16),
            window_strides=(1, 1), padding="SAME",
            dimension_numbers=("NHWC", "HWIO", "NHWC"),
            preferred_element_type=jnp.float32,
        ) + p["b"]
        y = (y - p["mean"]) / jnp.sqrt(p["var"] + 1e-3) * p["gamma"] + p["beta"]
        return jnp.maximum(y, 0.0)

    x = layer(x, p1)
    x = layer(x, p2)
    return jnp.transpose(x, (0, 3, 1, 2))


if __name__ == "__main__":
    key = jax.random.PRNGKey(0)
    kx, kp = jax.random.split(key)

    N, Cin, H, W = 2, 4, 16, 16
    Cout = 8  # mid_channels defaults to out_channels

    x = jax.random.normal(kx, (N, Cin, H, W), jnp.float32)
    p1, p2 = make_double_conv_params(kp, Cin, Cout)

    out = jax.block_until_ready(double_conv_forward(x, p1, p2))
    ref = jax.block_until_ready(_reference(x, p1, p2))

    assert out.shape == (N, Cout, H, W)
    np.testing.assert_allclose(np.asarray(out), np.asarray(ref),
                               rtol=2e-3, atol=2e-3)

    print("KERNEL_OK")
</pallas_src>

<mosaic_0001>
module attributes {stable_mosaic.version = 11 : i64} {
  func.func @_double_conv_kernel(%arg0: i32, %arg1: i32, %arg2: memref<1x20x20x4xbf16, #tpu.memory_space<vmem>>, %arg3: memref<3x3x4x8xbf16, #tpu.memory_space<vmem>>, %arg4: memref<1x8xf32, #tpu.memory_space<vmem>>, %arg5: memref<1x8xf32, #tpu.memory_space<vmem>>, %arg6: memref<3x3x8x8xbf16, #tpu.memory_space<vmem>>, %arg7: memref<1x8xf32, #tpu.memory_space<vmem>>, %arg8: memref<1x8xf32, #tpu.memory_space<vmem>>, %arg9: memref<1x16x16x8xf32, #tpu.memory_space<vmem>>) attributes {dimension_semantics = [#tpu.dimension_semantics<parallel>, #tpu.dimension_semantics<parallel>], iteration_bounds = array<i64: 2, 1>, scalar_prefetch = 0 : i64, scratch_operands = 0 : i64, tpu.core_type = #tpu.core_type<tc>, window_params = [{transform_indices = @transform_0, window_bounds = array<i64: 1, 20, 20, 4>}, {pipeline_mode = #tpu.pipeline_mode<synchronous>, transform_indices = @transform_1, window_bounds = array<i64: 3, 3, 4, 8>}, {pipeline_mode = #tpu.pipeline_mode<synchronous>, transform_indices = @transform_2, window_bounds = array<i64: 1, 8>}, {pipeline_mode = #tpu.pipeline_mode<synchronous>, transform_indices = @transform_3, window_bounds = array<i64: 1, 8>}, {pipeline_mode = #tpu.pipeline_mode<synchronous>, transform_indices = @transform_4, window_bounds = array<i64: 3, 3, 8, 8>}, {pipeline_mode = #tpu.pipeline_mode<synchronous>, transform_indices = @transform_5, window_bounds = array<i64: 1, 8>}, {pipeline_mode = #tpu.pipeline_mode<synchronous>, transform_indices = @transform_6, window_bounds = array<i64: 1, 8>}, {transform_indices = @transform_7, window_bounds = array<i64: 1, 16, 16, 8>}]} {
    %c16_i32 = arith.constant 16 : i32
    %0 = arith.muli %arg1, %c16_i32 : i32
    %1 = tpu.assume_multiple %0, 16 : i32
    %c0 = arith.constant 0 : index
    %2 = arith.index_cast %1 : i32 to index
    %c0_0 = arith.constant 0 : index
    %c0_1 = arith.constant 0 : index
    %3 = vector.load %arg2[%c0, %2, %c0_0, %c0_1] : memref<1x20x20x4xbf16, #tpu.memory_space<vmem>>, vector<1x20x20x4xbf16>
    %4 = vector.shape_cast %3 : vector<1x20x20x4xbf16> to vector<20x20x4xbf16>
    %c0_2 = arith.constant 0 : index
    %c0_3 = arith.constant 0 : index
    %c0_4 = arith.constant 0 : index
    %c0_5 = arith.constant 0 : index
    %5 = vector.load %arg3[%c0_2, %c0_3, %c0_4, %c0_5] : memref<3x3x4x8xbf16, #tpu.memory_space<vmem>>, vector<3x3x4x8xbf16>
    %6 = vector.extract_strided_slice %4 {offsets = [0, 0, 0], sizes = [18, 18, 4], strides = [1, 1, 1]} : vector<20x20x4xbf16> to vector<18x18x4xbf16>
    %7 = vector.shape_cast %6 : vector<18x18x4xbf16> to vector<324x4xbf16>
    %8 = vector.extract_strided_slice %5 {offsets = [0, 0, 0, 0], sizes = [1, 1, 4, 8], strides = [1, 1, 1, 1]} : vector<3x3x4x8xbf16> to vector<1x1x4x8xbf16>
    %9 = vector.shape_cast %8 : vector<1x1x4x8xbf16> to vector<4x8xbf16>
    %cst = arith.constant dense<0.000000e+00> : vector<324x8xf32>
    %10 = tpu.matmul %7, %9, %cst {dimension_numbers = #tpu.dot_dimension_numbers<[1], [0], [0], [1], [0, 0, 1, 1], [], []>} : vector<324x4xbf16>, vector<4x8xbf16>, vector<324x8xf32> -> vector<324x8xf32>
    %11 = vector.extract_strided_slice %4 {offsets = [0, 1, 0], sizes = [18, 18, 4], strides = [1, 1, 1]} : vector<20x20x4xbf16> to vector<18x18x4xbf16>
    %12 = vector.shape_cast %11 : vector<18x18x4xbf16> to vector<324x4xbf16>
    %13 = vector.extract_strided_slice %5 {offsets = [0, 1, 0, 0], sizes = [1, 1, 4, 8], strides = [1, 1, 1, 1]} : vector<3x3x4x8xbf16> to vector<1x1x4x8xbf16>
    %14 = vector.shape_cast %13 : vector<1x1x4x8xbf16> to vector<4x8xbf16>
    %cst_6 = arith.constant dense<0.000000e+00> : vector<324x8xf32>
    %15 = tpu.matmul %12, %14, %cst_6 {dimension_numbers = #tpu.dot_dimension_numbers<[1], [0], [0], [1], [0, 0, 1, 1], [], []>} : vector<324x4xbf16>, vector<4x8xbf16>, vector<324x8xf32> -> vector<324x8xf32>
    %16 = arith.addf %10, %15 : vector<324x8xf32>
    %17 = vector.extract_strided_slice %4 {offsets = [0, 2, 0], sizes = [18, 18, 4], strides = [1, 1, 1]} : vector<20x20x4xbf16> to vector<18x18x4xbf16>
    %18 = vector.shape_cast %17 : vector<18x18x4xbf16> to vector<324x4xbf16>
    %19 = vector.extract_strided_slice %5 {offsets = [0, 2, 0, 0], sizes = [1, 1, 4, 8], strides = [1, 1, 1, 1]} : vector<3x3x4x8xbf16> to vector<1x1x4x8xbf16>
    %20 = vector.shape_cast %19 : vector<1x1x4x8xbf16> to vector<4x8xbf16>
    %cst_7 = arith.constant dense<0.000000e+00> : vector<324x8xf32>
    %21 = tpu.matmul %18, %20, %cst_7 {dimension_numbers = #tpu.dot_dimension_numbers<[1], [0], [0], [1], [0, 0, 1, 1], [], []>} : vector<324x4xbf16>, vector<4x8xbf16>, vector<324x8xf32> -> vector<324x8xf32>
    %22 = arith.addf %16, %21 : vector<324x8xf32>
    %23 = vector.extract_strided_slice %4 {offsets = [1, 0, 0], sizes = [18, 18, 4], strides = [1, 1, 1]} : vector<20x20x4xbf16> to vector<18x18x4xbf16>
    %24 = vector.shape_cast %23 : vector<18x18x4xbf16> to vector<324x4xbf16>
    %25 = vector.extract_strided_slice %5 {offsets = [1, 0, 0, 0], sizes = [1, 1, 4, 8], strides = [1, 1, 1, 1]} : vector<3x3x4x8xbf16> to vector<1x1x4x8xbf16>
    %26 = vector.shape_cast %25 : vector<1x1x4x8xbf16> to vector<4x8xbf16>
    %cst_8 = arith.constant dense<0.000000e+00> : vector<324x8xf32>
    %27 = tpu.matmul %24, %26, %cst_8 {dimension_numbers = #tpu.dot_dimension_numbers<[1], [0], [0], [1], [0, 0, 1, 1], [], []>} : vector<324x4xbf16>, vector<4x8xbf16>, vector<324x8xf32> -> vector<324x8xf32>
    %28 = arith.addf %22, %27 : vector<324x8xf32>
    %29 = vector.extract_strided_slice %4 {offsets = [1, 1, 0], sizes = [18, 18, 4], strides = [1, 1, 1]} : vector<20x20x4xbf16> to vector<18x18x4xbf16>
    %30 = vector.shape_cast %29 : vector<18x18x4xbf16> to vector<324x4xbf16>
    %31 = vector.extract_strided_slice %5 {offsets = [1, 1, 0, 0], sizes = [1, 1, 4, 8], strides = [1, 1, 1, 1]} : vector<3x3x4x8xbf16> to vector<1x1x4x8xbf16>
    %32 = vector.shape_cast %31 : vector<1x1x4x8xbf16> to vector<4x8xbf16>
    %cst_9 = arith.constant dense<0.000000e+00> : vector<324x8xf32>
    %33 = tpu.matmul %30, %32, %cst_9 {dimension_numbers = #tpu.dot_dimension_numbers<[1], [0], [0], [1], [0, 0, 1, 1], [], []>} : vector<324x4xbf16>, vector<4x8xbf16>, vector<324x8xf32> -> vector<324x8xf32>
    %34 = arith.addf %28, %33 : vector<324x8xf32>
    %35 = vector.extract_strided_slice %4 {offsets = [1, 2, 0], sizes = [18, 18, 4], strides = [1, 1, 1]} : vector<20x20x4xbf16> to vector<18x18x4xbf16>
    %36 = vector.shape_cast %35 : vector<18x18x4xbf16> to vector<324x4xbf16>
    %37 = vector.extract_strided_slice %5 {offsets = [1, 2, 0, 0], sizes = [1, 1, 4, 8], strides = [1, 1, 1, 1]} : vector<3x3x4x8xbf16> to vector<1x1x4x8xbf16>
    %38 = vector.shape_cast %37 : vector<1x1x4x8xbf16> to vector<4x8xbf16>
    %cst_10 = arith.constant dense<0.000000e+00> : vector<324x8xf32>
    %39 = tpu.matmul %36, %38, %cst_10 {dimension_numbers = #tpu.dot_dimension_numbers<[1], [0], [0], [1], [0, 0, 1, 1], [], []>} : vector<324x4xbf16>, vector<4x8xbf16>, vector<324x8xf32> -> vector<324x8xf32>
    %40 = arith.addf %34, %39 : vector<324x8xf32>
    %41 = vector.extract_strided_slice %4 {offsets = [2, 0, 0], sizes = [18, 18, 4], strides = [1, 1, 1]} : vector<20x20x4xbf16> to vector<18x18x4xbf16>
    %42 = vector.shape_cast %41 : vector<18x18x4xbf16> to vector<324x4xbf16>
    %43 = vector.extract_strided_slice %5 {offsets = [2, 0, 0, 0], sizes = [1, 1, 4, 8], strides = [1, 1, 1, 1]} : vector<3x3x4x8xbf16> to vector<1x1x4x8xbf16>
    %44 = vector.shape_cast %43 : vector<1x1x4x8xbf16> to vector<4x8xbf16>
    %cst_11 = arith.constant dense<0.000000e+00> : vector<324x8xf32>
    %45 = tpu.matmul %42, %44, %cst_11 {dimension_numbers = #tpu.dot_dimension_numbers<[1], [0], [0], [1], [0, 0, 1, 1], [], []>} : vector<324x4xbf16>, vector<4x8xbf16>, vector<324x8xf32> -> vector<324x8xf32>
    %46 = arith.addf %40, %45 : vector<324x8xf32>
    %47 = vector.extract_strided_slice %4 {offsets = [2, 1, 0], sizes = [18, 18, 4], strides = [1, 1, 1]} : vector<20x20x4xbf16> to vector<18x18x4xbf16>
    %48 = vector.shape_cast %47 : vector<18x18x4xbf16> to vector<324x4xbf16>
    %49 = vector.extract_strided_slice %5 {offsets = [2, 1, 0, 0], sizes = [1, 1, 4, 8], strides = [1, 1, 1, 1]} : vector<3x3x4x8xbf16> to vector<1x1x4x8xbf16>
    %50 = vector.shape_cast %49 : vector<1x1x4x8xbf16> to vector<4x8xbf16>
    %cst_12 = arith.constant dense<0.000000e+00> : vector<324x8xf32>
    %51 = tpu.matmul %48, %50, %cst_12 {dimension_numbers = #tpu.dot_dimension_numbers<[1], [0], [0], [1], [0, 0, 1, 1], [], []>} : vector<324x4xbf16>, vector<4x8xbf16>, vector<324x8xf32> -> vector<324x8xf32>
    %52 = arith.addf %46, %51 : vector<324x8xf32>
    %53 = vector.extract_strided_slice %4 {offsets = [2, 2, 0], sizes = [18, 18, 4], strides = [1, 1, 1]} : vector<20x20x4xbf16> to vector<18x18x4xbf16>
    %54 = vector.shape_cast %53 : vector<18x18x4xbf16> to vector<324x4xbf16>
    %55 = vector.extract_strided_slice %5 {offsets = [2, 2, 0, 0], sizes = [1, 1, 4, 8], strides = [1, 1, 1, 1]} : vector<3x3x4x8xbf16> to vector<1x1x4x8xbf16>
    %56 = vector.shape_cast %55 : vector<1x1x4x8xbf16> to vector<4x8xbf16>
    %cst_13 = arith.constant dense<0.000000e+00> : vector<324x8xf32>
    %57 = tpu.matmul %54, %56, %cst_13 {dimension_numbers = #tpu.dot_dimension_numbers<[1], [0], [0], [1], [0, 0, 1, 1], [], []>} : vector<324x4xbf16>, vector<4x8xbf16>, vector<324x8xf32> -> vector<324x8xf32>
    %58 = arith.addf %52, %57 : vector<324x8xf32>
    %c0_14 = arith.constant 0 : index
    %c0_15 = arith.constant 0 : index
    %59 = vector.load %arg4[%c0_14, %c0_15] : memref<1x8xf32, #tpu.memory_space<vmem>>, vector<1x8xf32>
    %60 = vector.broadcast %59 : vector<1x8xf32> to vector<324x8xf32>
    %61 = arith.mulf %58, %60 : vector<324x8xf32>
    %c0_16 = arith.constant 0 : index
    %c0_17 = arith.constant 0 : index
    %62 = vector.load %arg5[%c0_16, %c0_17] : memref<1x8xf32, #tpu.memory_space<vmem>>, vector<1x8xf32>
    %63 = vector.broadcast %62 : vector<1x8xf32> to vector<324x8xf32>
    %64 = arith.addf %61, %63 : vector<324x8xf32>
    %cst_18 = arith.constant 0.000000e+00 : f32
    %65 = vector.broadcast %cst_18 : f32 to vector<324x8xf32>
    %66 = arith.maximumf %64, %65 : vector<324x8xf32>
    %67 = vector.shape_cast %66 : vector<324x8xf32> to vector<18x18x8xf32>
    %68 = tpu.iota {dimensions = array<i32: 0>} : vector<18x18x1xi32>
    %c1_i32 = arith.constant 1 : i32
    %69 = arith.subi %1, %c1_i32 : i32
    %70 = vector.broadcast %69 : i32 to vector<18x18x1xi32>
    %71 = arith.addi %68, %70 : vector<18x18x1xi32>
    %72 = tpu.iota {dimensions = array<i32: 1>} : vector<18x18x1xi32>
    %c1_i32_19 = arith.constant 1 : i32
    %73 = vector.broadcast %c1_i32_19 : i32 to vector<18x18x1xi32>
    %74 = arith.subi %72, %73 : vector<18x18x1xi32>
    %c0_i32 = arith.constant 0 : i32
    %75 = vector.broadcast %c0_i32 : i32 to vector<18x18x1xi32>
    %76 = arith.cmpi sge, %71, %75 : vector<18x18x1xi32>
    %c16_i32_20 = arith.constant 16 : i32
    %77 = vector.broadcast %c16_i32_20 : i32 to vector<18x18x1xi32>
    %78 = arith.cmpi slt, %71, %77 : vector<18x18x1xi32>
    %79 = arith.andi %76, %78 : vector<18x18x1xi1>
    %c0_i32_21 = arith.constant 0 : i32
    %80 = vector.broadcast %c0_i32_21 : i32 to vector<18x18x1xi32>
    %81 = arith.cmpi sge, %74, %80 : vector<18x18x1xi32>
    %82 = arith.andi %79, %81 : vector<18x18x1xi1>
    %c16_i32_22 = arith.constant 16 : i32
    %83 = vector.broadcast %c16_i32_22 : i32 to vector<18x18x1xi32>
    %84 = arith.cmpi slt, %74, %83 : vector<18x18x1xi32>
    %85 = arith.andi %82, %84 : vector<18x18x1xi1>
    %cst_23 = arith.constant 0.000000e+00 : f32
    %86 = vector.shape_cast %85 : vector<18x18x1xi1> to vector<18x18x1xi1>
    %87 = vector.broadcast %86 : vector<18x18x1xi1> to vector<18x18x8xi1>
    %88 = vector.broadcast %cst_23 : f32 to vector<18x18x8xf32>
    %89 = arith.select %87, %67, %88 : vector<18x18x8xi1>, vector<18x18x8xf32>
    %90 = arith.truncf %89 : vector<18x18x8xf32> to vector<18x18x8xbf16>
    %c0_24 = arith.constant 0 : index
    %c0_25 = arith.constant 0 : index
    %c0_26 = arith.constant 0 : index
    %c0_27 = arith.constant 0 : index
    %91 = vector.load %arg6[%c0_24, %c0_25, %c0_26, %c0_27] : memref<3x3x8x8xbf16, #tpu.memory_space<vmem>>, vector<3x3x8x8xbf16>
    %92 = vector.extract_strided_slice %90 {offsets = [0, 0, 0], sizes = [16, 16, 8], strides = [1, 1, 1]} : vector<18x18x8xbf16> to vector<16x16x8xbf16>
    %93 = vector.shape_cast %92 : vector<16x16x8xbf16> to vector<256x8xbf16>
    %94 = vector.extract_strided_slice %91 {offsets = [0, 0, 0, 0], sizes = [1, 1, 8, 8], strides = [1, 1, 1, 1]} : vector<3x3x8x8xbf16> to vector<1x1x8x8xbf16>
    %95 = vector.shape_cast %94 : vector<1x1x8x8xbf16> to vector<8x8xbf16>
    %cst_28 = arith.constant dense<0.000000e+00> : vector<256x8xf32>
    %96 = tpu.matmul %93, %95, %cst_28 {dimension_numbers = #tpu.dot_dimension_numbers<[1], [0], [0], [1], [0, 0, 1, 1], [], []>} : vector<256x8xbf16>, vector<8x8xbf16>, vector<256x8xf32> -> vector<256x8xf32>
    %97 = vector.extract_strided_slice %90 {offsets = [0, 1, 0], sizes = [16, 16, 8], strides = [1, 1, 1]} : vector<18x18x8xbf16> to vector<16x16x8xbf16>
    %98 = vector.shape_cast %97 : vector<16x16x8xbf16> to vector<256x8xbf16>
    %99 = vector.extract_strided_slice %91 {offsets = [0, 1, 0, 0], sizes = [1, 1, 8, 8], strides = [1, 1, 1, 1]} : vector<3x3x8x8xbf16> to vector<1x1x8x8xbf16>
    %100 = vector.shape_cast %99 : vector<1x1x8x8xbf16> to vector<8x8xbf16>
    %cst_29 = arith.constant dense<0.000000e+00> : vector<256x8xf32>
    %101 = tpu.matmul %98, %100, %cst_29 {dimension_numbers = #tpu.dot_dimension_numbers<[1], [0], [0], [1], [0, 0, 1, 1], [], []>} : vector<256x8xbf16>, vector<8x8xbf16>, vector<256x8xf32> -> vector<256x8xf32>
    %102 = arith.addf %96, %101 : vector<256x8xf32>
    %103 = vector.extract_strided_slice %90 {offsets = [0, 2, 0], sizes = [16, 16, 8], strides = [1, 1, 1]} : vector<18x18x8xbf16> to vector<16x16x8xbf16>
    %104 = vector.shape_cast %103 : vector<16x16x8xbf16> to vector<256x8xbf16>
    %105 = vector.extract_strided_slice %91 {offsets = [0, 2, 0, 0], sizes = [1, 1, 8, 8], strides = [1, 1, 1, 1]} : vector<3x3x8x8xbf16> to vector<1x1x8x8xbf16>
    %106 = vector.shape_cast %105 : vector<1x1x8x8xbf16> to vector<8x8xbf16>
    %cst_30 = arith.constant dense<0.000000e+00> : vector<256x8xf32>
    %107 = tpu.matmul %104, %106, %cst_30 {dimension_numbers = #tpu.dot_dimension_numbers<[1], [0], [0], [1], [0, 0, 1, 1], [], []>} : vector<256x8xbf16>, vector<8x8xbf16>, vector<256x8xf32> -> vector<256x8xf32>
    %108 = arith.addf %102, %107 : vector<256x8xf32>
    %109 = vector.extract_strided_slice %90 {offsets = [1, 0, 0], sizes = [16, 16, 8], strides = [1, 1, 1]} : vector<18x18x8xbf16> to vector<16x16x8xbf16>
    %110 = vector.shape_cast %109 : vector<16x16x8xbf16> to vector<256x8xbf16>
    %111 = vector.extract_strided_slice %91 {offsets = [1, 0, 0, 0], sizes = [1, 1, 8, 8], strides = [1, 1, 1, 1]} : vector<3x3x8x8xbf16> to vector<1x1x8x8xbf16>
    %112 = vector.shape_cast %111 : vector<1x1x8x8xbf16> to vector<8x8xbf16>
    %cst_31 = arith.constant dense<0.000000e+00> : vector<256x8xf32>
    %113 = tpu.matmul %110, %112, %cst_31 {dimension_numbers = #tpu.dot_dimension_numbers<[1], [0], [0], [1], [0, 0, 1, 1], [], []>} : vector<256x8xbf16>, vector<8x8xbf16>, vector<256x8xf32> -> vector<256x8xf32>
    %114 = arith.addf %108, %113 : vector<256x8xf32>
    %115 = vector.extract_strided_slice %90 {offsets = [1, 1, 0], sizes = [16, 16, 8], strides = [1, 1, 1]} : vector<18x18x8xbf16> to vector<16x16x8xbf16>
    %116 = vector.shape_cast %115 : vector<16x16x8xbf16> to vector<256x8xbf16>
    %117 = vector.extract_strided_slice %91 {offsets = [1, 1, 0, 0], sizes = [1, 1, 8, 8], strides = [1, 1, 1, 1]} : vector<3x3x8x8xbf16> to vector<1x1x8x8xbf16>
    %118 = vector.shape_cast %117 : vector<1x1x8x8xbf16> to vector<8x8xbf16>
    %cst_32 = arith.constant dense<0.000000e+00> : vector<256x8xf32>
    %119 = tpu.matmul %116, %118, %cst_32 {dimension_numbers = #tpu.dot_dimension_numbers<[1], [0], [0], [1], [0, 0, 1, 1], [], []>} : vector<256x8xbf16>, vector<8x8xbf16>, vector<256x8xf32> -> vector<256x8xf32>
    %120 = arith.addf %114, %119 : vector<256x8xf32>
    %121 = vector.extract_strided_slice %90 {offsets = [1, 2, 0], sizes = [16, 16, 8], strides = [1, 1, 1]} : vector<18x18x8xbf16> to vector<16x16x8xbf16>
    %122 = vector.shape_cast %121 : vector<16x16x8xbf16> to vector<256x8xbf16>
    %123 = vector.extract_strided_slice %91 {offsets = [1, 2, 0, 0], sizes = [1, 1, 8, 8], strides = [1, 1, 1, 1]} : vector<3x3x8x8xbf16> to vector<1x1x8x8xbf16>
    %124 = vector.shape_cast %123 : vector<1x1x8x8xbf16> to vector<8x8xbf16>
    %cst_33 = arith.constant dense<0.000000e+00> : vector<256x8xf32>
    %125 = tpu.matmul %122, %124, %cst_33 {dimension_numbers = #tpu.dot_dimension_numbers<[1], [0], [0], [1], [0, 0, 1, 1], [], []>} : vector<256x8xbf16>, vector<8x8xbf16>, vector<256x8xf32> -> vector<256x8xf32>
    %126 = arith.addf %120, %125 : vector<256x8xf32>
    %127 = vector.extract_strided_slice %90 {offsets = [2, 0, 0], sizes = [16, 16, 8], strides = [1, 1, 1]} : vector<18x18x8xbf16> to vector<16x16x8xbf16>
    %128 = vector.shape_cast %127 : vector<16x16x8xbf16> to vector<256x8xbf16>
    %129 = vector.extract_strided_slice %91 {offsets = [2, 0, 0, 0], sizes = [1, 1, 8, 8], strides = [1, 1, 1, 1]} : vector<3x3x8x8xbf16> to vector<1x1x8x8xbf16>
    %130 = vector.shape_cast %129 : vector<1x1x8x8xbf16> to vector<8x8xbf16>
    %cst_34 = arith.constant dense<0.000000e+00> : vector<256x8xf32>
    %131 = tpu.matmul %128, %130, %cst_34 {dimension_numbers = #tpu.dot_dimension_numbers<[1], [0], [0], [1], [0, 0, 1, 1], [], []>} : vector<256x8xbf16>, vector<8x8xbf16>, vector<256x8xf32> -> vector<256x8xf32>
    %132 = arith.addf %126, %131 : vector<256x8xf32>
    %133 = vector.extract_strided_slice %90 {offsets = [2, 1, 0], sizes = [16, 16, 8], strides = [1, 1, 1]} : vector<18x18x8xbf16> to vector<16x16x8xbf16>
    %134 = vector.shape_cast %133 : vector<16x16x8xbf16> to vector<256x8xbf16>
    %135 = vector.extract_strided_slice %91 {offsets = [2, 1, 0, 0], sizes = [1, 1, 8, 8], strides = [1, 1, 1, 1]} : vector<3x3x8x8xbf16> to vector<1x1x8x8xbf16>
    %136 = vector.shape_cast %135 : vector<1x1x8x8xbf16> to vector<8x8xbf16>
    %cst_35 = arith.constant dense<0.000000e+00> : vector<256x8xf32>
    %137 = tpu.matmul %134, %136, %cst_35 {dimension_numbers = #tpu.dot_dimension_numbers<[1], [0], [0], [1], [0, 0, 1, 1], [], []>} : vector<256x8xbf16>, vector<8x8xbf16>, vector<256x8xf32> -> vector<256x8xf32>
    %138 = arith.addf %132, %137 : vector<256x8xf32>
    %139 = vector.extract_strided_slice %90 {offsets = [2, 2, 0], sizes = [16, 16, 8], strides = [1, 1, 1]} : vector<18x18x8xbf16> to vector<16x16x8xbf16>
    %140 = vector.shape_cast %139 : vector<16x16x8xbf16> to vector<256x8xbf16>
    %141 = vector.extract_strided_slice %91 {offsets = [2, 2, 0, 0], sizes = [1, 1, 8, 8], strides = [1, 1, 1, 1]} : vector<3x3x8x8xbf16> to vector<1x1x8x8xbf16>
    %142 = vector.shape_cast %141 : vector<1x1x8x8xbf16> to vector<8x8xbf16>
    %cst_36 = arith.constant dense<0.000000e+00> : vector<256x8xf32>
    %143 = tpu.matmul %140, %142, %cst_36 {dimension_numbers = #tpu.dot_dimension_numbers<[1], [0], [0], [1], [0, 0, 1, 1], [], []>} : vector<256x8xbf16>, vector<8x8xbf16>, vector<256x8xf32> -> vector<256x8xf32>
    %144 = arith.addf %138, %143 : vector<256x8xf32>
    %c0_37 = arith.constant 0 : index
    %c0_38 = arith.constant 0 : index
    %145 = vector.load %arg7[%c0_37, %c0_38] : memref<1x8xf32, #tpu.memory_space<vmem>>, vector<1x8xf32>
    %146 = vector.broadcast %145 : vector<1x8xf32> to vector<256x8xf32>
    %147 = arith.mulf %144, %146 : vector<256x8xf32>
    %c0_39 = arith.constant 0 : index
    %c0_40 = arith.constant 0 : index
    %148 = vector.load %arg8[%c0_39, %c0_40] : memref<1x8xf32, #tpu.memory_space<vmem>>, vector<1x8xf32>
    %149 = vector.broadcast %148 : vector<1x8xf32> to vector<256x8xf32>
    %150 = arith.addf %147, %149 : vector<256x8xf32>
    %cst_41 = arith.constant 0.000000e+00 : f32
    %151 = vector.broadcast %cst_41 : f32 to vector<256x8xf32>
    %152 = arith.maximumf %150, %151 : vector<256x8xf32>
    %153 = vector.shape_cast %152 : vector<256x8xf32> to vector<16x16x8xf32>
    %c0_42 = arith.constant 0 : index
    %c0_43 = arith.constant 0 : index
    %c0_44 = arith.constant 0 : index
    %c0_45 = arith.constant 0 : index
    %154 = vector.load %arg9[%c0_42, %c0_43, %c0_44, %c0_45] : memref<1x16x16x8xf32, #tpu.memory_space<vmem>>, vector<1x16x16x8xf32>
    %155 = vector.shape_cast %154 : vector<1x16x16x8xf32> to vector<16x16x8xf32>
    %156 = vector.shape_cast %153 : vector<16x16x8xf32> to vector<1x16x16x8xf32>
    tpu.vector_store %arg9[%c0_42, %c0_43, %c0_44, %c0_45], %156 {strides = array<i32>} : memref<1x16x16x8xf32, #tpu.memory_space<vmem>>, vector<1x16x16x8xf32>,
    return
  }
  func.func @transform_0(%arg0: i32, %arg1: i32) -> (i32, i32, i32, i32) {
    %c0_i32 = arith.constant 0 : i32
    %c0_i32_0 = arith.constant 0 : i32
    %c0_i32_1 = arith.constant 0 : i32
    %c0_i32_2 = arith.constant 0 : i32
    return %arg0, %c0_i32, %c0_i32_0, %c0_i32_1 : i32, i32, i32, i32
  }
  func.func @transform_1(%arg0: i32, %arg1: i32) -> (i32, i32, i32, i32) {
    %c0_i32 = arith.constant 0 : i32
    %c0_i32_0 = arith.constant 0 : i32
    %c0_i32_1 = arith.constant 0 : i32
    %c0_i32_2 = arith.constant 0 : i32
    %c0_i32_3 = arith.constant 0 : i32
    return %c0_i32, %c0_i32_0, %c0_i32_1, %c0_i32_2 : i32, i32, i32, i32
  }
  func.func @transform_2(%arg0: i32, %arg1: i32) -> (i32, i32) {
    %c0_i32 = arith.constant 0 : i32
    %c0_i32_0 = arith.constant 0 : i32
    %c0_i32_1 = arith.constant 0 : i32
    return %c0_i32, %c0_i32_0 : i32, i32
  }
  func.func @transform_3(%arg0: i32, %arg1: i32) -> (i32, i32) {
    %c0_i32 = arith.constant 0 : i32
    %c0_i32_0 = arith.constant 0 : i32
    %c0_i32_1 = arith.constant 0 : i32
    return %c0_i32, %c0_i32_0 : i32, i32
  }
  func.func @transform_4(%arg0: i32, %arg1: i32) -> (i32, i32, i32, i32) {
    %c0_i32 = arith.constant 0 : i32
    %c0_i32_0 = arith.constant 0 : i32
    %c0_i32_1 = arith.constant 0 : i32
    %c0_i32_2 = arith.constant 0 : i32
    %c0_i32_3 = arith.constant 0 : i32
    return %c0_i32, %c0_i32_0, %c0_i32_1, %c0_i32_2 : i32, i32, i32, i32
  }
  func.func @transform_5(%arg0: i32, %arg1: i32) -> (i32, i32) {
    %c0_i32 = arith.constant 0 : i32
    %c0_i32_0 = arith.constant 0 : i32
    %c0_i32_1 = arith.constant 0 : i32
    return %c0_i32, %c0_i32_0 : i32, i32
  }
  func.func @transform_6(%arg0: i32, %arg1: i32) -> (i32, i32) {
    %c0_i32 = arith.constant 0 : i32
    %c0_i32_0 = arith.constant 0 : i32
    %c0_i32_1 = arith.constant 0 : i32
    return %c0_i32, %c0_i32_0 : i32, i32
  }
  func.func @transform_7(%arg0: i32, %arg1: i32) -> (i32, i32, i32, i32) {
    %c0_i32 = arith.constant 0 : i32
    %c0_i32_0 = arith.constant 0 : i32
    %c0_i32_1 = arith.constant 0 : i32
    return %arg0, %arg1, %c0_i32, %c0_i32_0 : i32, i32, i32, i32
  }
}

</mosaic_0001>

<llo_original>
// kernel: double_conv_forward.1
$region0: #{double_conv_forward.1}
  #allocation0 [shape = 'u32[]', space=smem, size = 0x4, offset = 0x4, fixed_abs, tag = 'smem constant byte address 0x4 - core index']
  #allocation1 [shape = 'u32[72,128]{1,0:T(1,128)}', space=vmem, size = 0x9000, scoped, tag = 'internal scratch']
  %s0 = inlined_call_operand.vmem [shape: bf16[2,20,20,4], index: 0, kind: input, shape index: {}]
  %s1 = inlined_call_operand.vmem [shape: bf16[3,3,4,8], index: 1, kind: input, shape index: {}]
  %s2 = inlined_call_operand.vmem [shape: f32[1,8], index: 2, kind: input, shape index: {}]
  %s3 = inlined_call_operand.vmem [shape: f32[1,8], index: 3, kind: input, shape index: {}]
  %s4 = inlined_call_operand.vmem [shape: bf16[3,3,8,8], index: 4, kind: input, shape index: {}]
  %s5 = inlined_call_operand.vmem [shape: f32[1,8], index: 5, kind: input, shape index: {}]
  %s6 = inlined_call_operand.vmem [shape: f32[1,8], index: 6, kind: input, shape index: {}]
  %s7 = inlined_call_operand.vmem [shape: f32[2,16,16,8], index: 7, kind: output, shape index: {}]
  %s8 = sld [smem:[#allocation0]]
  $region61: #{double_conv_forward.1} parent=0
    _
  %s10 = ssub.s32 1, %s8
  %s11 = scalar_select 0, %s10, %s8
  loop: start=0, step=1, limit=4
  $region2: #{double_conv_forward.1} parent=0 // loop_pre_header
    _
  $region3: #{double_conv_forward.1} parent=0 // loop_header
    %s13 = sphi 0, %s17
    %p14 = scmp.ge.s32.totalorder %s13, 4
    %s20 = sphi 0, %s32
    %s21 = sphi 0, %s28
    %s22 = sphi 0, %s20
    %s23 = sphi 0, %s21
    %s24 = sphi 0, %s22
    %s25 = sphi 0, %s23
    %s35 = sphi 0, %s37
    %s38 = sphi 0, %s35
    %s39 = sphi 0, %s38
    %s55 = sphi 0, %s39
    %s59 = sphi 0, %s59
    %s61 = sphi 0, %s59
    %s62 = sphi 0, %s61
    %s76 = sphi 0, %s62
    %s80 = sphi 0, %s80
    %s82 = sphi 0, %s80
    %s83 = sphi 0, %s82
    %s97 = sphi 0, %s83
    %s101 = sphi 0, %s101
    %s103 = sphi 0, %s101
    %s104 = sphi 0, %s103
    %s118 = sphi 0, %s104
    %s122 = sphi 0, %s122
    %s124 = sphi 0, %s122
    %s125 = sphi 0, %s124
    %s139 = sphi 0, %s125
    %s143 = sphi 0, %s143
    %s145 = sphi 0, %s143
    %s146 = sphi 0, %s145
    %s160 = sphi 0, %s146
    %s164 = sphi 0, %s164
    %s166 = sphi 0, %s164
    %s167 = sphi 0, %s166
    %s181 = sphi 0, %s167
    %s189 = sphi 0, %s191
    %s192 = sphi 0, %s189
    %s193 = sphi 0, %s192
    %s209 = sphi 0, %s193
  $region4: #{double_conv_forward.1} parent=0 // loop_header_branch
    %16 = sbr.rel (%p14) target = $region8
  $region5: #{double_conv_forward.1} parent=0 // loop_body
    %s18 = ssub.s32 %s13, 1
    %s19 = ssub.s32 %s13, 2
    %s26 = sadd.s32 1, %s21
    %p27 = scmp.ge.s32.totalorder %s26, 1
    %s28 = scalar_select %p27, 0, %s26
    %s29 = sadd.s32 1, %s20
    %s30 = scalar_select %p27, %s29, %s20
    %p31 = scmp.ge.s32.totalorder %s30, 2
    %s32 = scalar_select %p31, 0, %s30
    %s33 = ssub.s32 %s20, %s32
    %p34 = scmp.eq.s32.totalorder %s33, 0
    %s36 = sadd.s32 %s35, 1
    %s37 = scalar_select %p34, %s35, %s36
    %p40 = pneg %p34
    %p41 = scmp.eq.s32.totalorder %s13, 1
    %p42 = por %p40, %p41
    %p43 = scmp.ne.s32.totalorder %s35, %s38
    %p44 = scmp.eq.s32.totalorder %s13, 0
    %p45 = por %p43, %p44
    %p46 = scmp.ne.s32.totalorder %s35, %s38
    %p47 = scmp.eq.s32.totalorder %s18, 1
    %p48 = por %p46, %p47
    %p49 = scmp.ne.s32.totalorder %s38, %s39
    %p50 = scmp.eq.s32.totalorder %s18, 0
    %p51 = por %p49, %p50
    %p52 = scmp.ne.s32.totalorder %s38, %s39
    %p53 = scmp.eq.s32.totalorder %s19, 1
    %p54 = por %p52, %p53
    %p56 = scmp.ne.s32.totalorder %s39, %s55
    %p57 = scmp.eq.s32.totalorder %s19, 0
    %p58 = por %p56, %p57
    %s60 = sadd.s32 %s59, 1
    %p63 = scmp.eq.s32.totalorder %s13, 1
    %p64 = scmp.ne.s32.totalorder %s59, %s61
    %p65 = scmp.eq.s32.totalorder %s13, 0
    %p66 = por %p64, %p65
    %p67 = scmp.ne.s32.totalorder %s59, %s61
    %p68 = scmp.eq.s32.totalorder %s18, 1
    %p69 = por %p67, %p68
    %p70 = scmp.ne.s32.totalorder %s61, %s62
    %p71 = scmp.eq.s32.totalorder %s18, 0
    %p72 = por %p70, %p71
    %p73 = scmp.ne.s32.totalorder %s61, %s62
    %p74 = scmp.eq.s32.totalorder %s19, 1
    %p75 = por %p73, %p74
    %p77 = scmp.ne.s32.totalorder %s62, %s76
    %p78 = scmp.eq.s32.totalorder %s19, 0
    %p79 = por %p77, %p78
    %s81 = sadd.s32 %s80, 1
    %p84 = scmp.eq.s32.totalorder %s13, 1
    %p85 = scmp.ne.s32.totalorder %s80, %s82
    %p86 = scmp.eq.s32.totalorder %s13, 0
    %p87 = por %p85, %p86
    %p88 = scmp.ne.s32.totalorder %s80, %s82
    %p89 = scmp.eq.s32.totalorder %s18, 1
    %p90 = por %p88, %p89
    %p91 = scmp.ne.s32.totalorder %s82, %s83
    %p92 = scmp.eq.s32.totalorder %s18, 0
    %p93 = por %p91, %p92
    %p94 = scmp.ne.s32.totalorder %s82, %s83
    %p95 = scmp.eq.s32.totalorder %s19, 1
    %p96 = por %p94, %p95
    %p98 = scmp.ne.s32.totalorder %s83, %s97
    %p99 = scmp.eq.s32.totalorder %s19, 0
    %p100 = por %p98, %p99
    %s102 = sadd.s32 %s101, 1
    %p105 = scmp.eq.s32.totalorder %s13, 1
    %p106 = scmp.ne.s32.totalorder %s101, %s103
    %p107 = scmp.eq.s32.totalorder %s13, 0
    %p108 = por %p106, %p107
    %p109 = scmp.ne.s32.totalorder %s101, %s103
    %p110 = scmp.eq.s32.totalorder %s18, 1
    %p111 = por %p109, %p110
    %p112 = scmp.ne.s32.totalorder %s103, %s104
    %p113 = scmp.eq.s32.totalorder %s18, 0
    %p114 = por %p112, %p113
    %p115 = scmp.ne.s32.totalorder %s103, %s104
    %p116 = scmp.eq.s32.totalorder %s19, 1
    %p117 = por %p115, %p116
    %p119 = scmp.ne.s32.totalorder %s104, %s118
    %p120 = scmp.eq.s32.totalorder %s19, 0
    %p121 = por %p119, %p120
    %s123 = sadd.s32 %s122, 1
    %p126 = scmp.eq.s32.totalorder %s13, 1
    %p127 = scmp.ne.s32.totalorder %s122, %s124
    %p128 = scmp.eq.s32.totalorder %s13, 0
    %p129 = por %p127, %p128
    %p130 = scmp.ne.s32.totalorder %s122, %s124
    %p131 = scmp.eq.s32.totalorder %s18, 1
    %p132 = por %p130, %p131
    %p133 = scmp.ne.s32.totalorder %s124, %s125
    %p134 = scmp.eq.s32.totalorder %s18, 0
    %p135 = por %p133, %p134
    %p136 = scmp.ne.s32.totalorder %s124, %s125
    %p137 = scmp.eq.s32.totalorder %s19, 1
    %p138 = por %p136, %p137
    %p140 = scmp.ne.s32.totalorder %s125, %s139
    %p141 = scmp.eq.s32.totalorder %s19, 0
    %p142 = por %p140, %p141
    %s144 = sadd.s32 %s143, 1
    %p147 = scmp.eq.s32.totalorder %s13, 1
    %p148 = scmp.ne.s32.totalorder %s143, %s145
    %p149 = scmp.eq.s32.totalorder %s13, 0
    %p150 = por %p148, %p149
    %p151 = scmp.ne.s32.totalorder %s143, %s145
    %p152 = scmp.eq.s32.totalorder %s18, 1
    %p153 = por %p151, %p152
    %p154 = scmp.ne.s32.totalorder %s145, %s146
    %p155 = scmp.eq.s32.totalorder %s18, 0
    %p156 = por %p154, %p155
    %p157 = scmp.ne.s32.totalorder %s145, %s146
    %p158 = scmp.eq.s32.totalorder %s19, 1
    %p159 = por %p157, %p158
    %p161 = scmp.ne.s32.totalorder %s146, %s160
    %p162 = scmp.eq.s32.totalorder %s19, 0
    %p163 = por %p161, %p162
    %s165 = sadd.s32 %s164, 1
    %p168 = scmp.eq.s32.totalorder %s13, 1
    %p169 = scmp.ne.s32.totalorder %s164, %s166
    %p170 = scmp.eq.s32.totalorder %s13, 0
    %p171 = por %p169, %p170
    %p172 = scmp.ne.s32.totalorder %s164, %s166
    %p173 = scmp.eq.s32.totalorder %s18, 1
    %p174 = por %p172, %p173
    %p175 = scmp.ne.s32.totalorder %s166, %s167
    %p176 = scmp.eq.s32.totalorder %s18, 0
    %p177 = por %p175, %p176
    %p178 = scmp.ne.s32.totalorder %s166, %s167
    %p179 = scmp.eq.s32.totalorder %s19, 1
    %p180 = por %p178, %p179
    %p182 = scmp.ne.s32.totalorder %s167, %s181
    %p183 = scmp.eq.s32.totalorder %s19, 0
    %p184 = por %p182, %p183
    %s185 = ssub.s32 %s20, %s32
    %s186 = ssub.s32 %s21, %s28
    %s187 = sor.u32 %s185, %s186
    %p188 = scmp.eq.s32.totalorder %s187, 0
    %s190 = sadd.s32 %s189, 1
    %s191 = scalar_select %p188, %s189, %s190
    %p194 = pneg %p188
    %p195 = scmp.eq.s32.totalorder %s13, 1
    %p196 = por %p194, %p195
    %p197 = scmp.ne.s32.totalorder %s189, %s192
    %p198 = scmp.eq.s32.totalorder %s13, 0
    %p199 = por %p197, %p198
    %p200 = scmp.ne.s32.totalorder %s189, %s192
    %p201 = scmp.eq.s32.totalorder %s18, 1
    %p202 = por %p200, %p201
    %p203 = scmp.ne.s32.totalorder %s192, %s193
    %p204 = scmp.eq.s32.totalorder %s18, 0
    %p205 = por %p203, %p204
    %p206 = scmp.ne.s32.totalorder %s192, %s193
    %p207 = scmp.eq.s32.totalorder %s19, 1
    %p208 = por %p206, %p207
    %p210 = scmp.ne.s32.totalorder %s193, %s209
    %p211 = scmp.eq.s32.totalorder %s19, 0
    %p212 = por %p210, %p211
    %p213 = scmp.le.s32.totalorder 1, %s13
    %p214 = scmp.lt.s32.totalorder %s13, 3
    %p215 = pnand %p213, %p214
    %p216 = pneg %p215
    // Predicated region
    $region9: #{double_conv_forward.1} parent=5 // pred_check
      _
    $region10: #{double_conv_forward.1} parent=5 // pred_check_branch
      %218 = sbr.rel (%p215) target = $region12
    $region11: #{double_conv_forward.1} parent=5 // pred_region
      %s219 = ssub.s32 %s13, 1
      // Predicated region
      $region13: #{double_conv_forward.1} parent=11 // pred_check
        %p220 = pneg %p72
      $region14: #{double_conv_forward.1} parent=11 // pred_check_branch
        %222 = sbr.rel (%p220) target = $region16
      $region15: #{double_conv_forward.1} parent=11 // pred_region
        _
      $region16: #{double_conv_forward.1} parent=11 // pred_fallthru
        _
      // Predicated region
      $region17: #{double_conv_forward.1} parent=11 // pred_check
        %p223 = pneg %p93
      $region18: #{double_conv_forward.1} parent=11 // pred_check_branch
        %225 = sbr.rel (%p223) target = $region20
      $region19: #{double_conv_forward.1} parent=11 // pred_region
        _
      $region20: #{double_conv_forward.1} parent=11 // pred_fallthru
        _
      // Predicated region
      $region21: #{double_conv_forward.1} parent=11 // pred_check
        %p226 = pneg %p114
      $region22: #{double_conv_forward.1} parent=11 // pred_check_branch
        %228 = sbr.rel (%p226) target = $region24
      $region23: #{double_conv_forward.1} parent=11 // pred_region
        _
      $region24: #{double_conv_forward.1} parent=11 // pred_fallthru
        _
      // Predicated region
      $region25: #{double_conv_forward.1} parent=11 // pred_check
        %p229 = pneg %p135
      $region26: #{double_conv_forward.1} parent=11 // pred_check_branch
        %231 = sbr.rel (%p229) target = $region28
      $region27: #{double_conv_forward.1} parent=11 // pred_region
        _
      $region28: #{double_conv_forward.1} parent=11 // pred_fallthru
        _
      // Predicated region
      $region29: #{double_conv_forward.1} parent=11 // pred_check
        %p232 = pneg %p156
      $region30: #{double_conv_forward.1} parent=11 // pred_check_branch
        %234 = sbr.rel (%p232) target = $region32
      $region31: #{double_conv_forward.1} parent=11 // pred_region
        _
      $region32: #{double_conv_forward.1} parent=11 // pred_fallthru
        _
      // Predicated region
      $region33: #{double_conv_forward.1} parent=11 // pred_check
        %p235 = pneg %p177
      $region34: #{double_conv_forward.1} parent=11 // pred_check_branch
        %237 = sbr.rel (%p235) target = $region36
      $region35: #{double_conv_forward.1} parent=11 // pred_region
        _
      $region36: #{double_conv_forward.1} parent=11 // pred_fallthru
        _
    $region12: #{double_conv_forward.1} parent=5 // pred_fallthru
      _
    %p238 = scmp.lt.s32.totalorder %s13, 2
    // Predicated region
    $region37: #{double_conv_forward.1} parent=5 // pred_check
      %p239 = pneg %p238
    $region38: #{double_conv_forward.1} parent=5 // pred_check_branch
      %241 = sbr.rel (%p239) target = $region40
    $region39: #{double_conv_forward.1} parent=5 // pred_region
      // Predicated region
      $region41: #{double_conv_forward.1} parent=39 // pred_check
        %p242 = pneg %p45
      $region42: #{double_conv_forward.1} parent=39 // pred_check_branch
        %244 = sbr.rel (%p242) target = $region44
      $region43: #{double_conv_forward.1} parent=39 // pred_region
        %p245 = scmp.lt.s32.totalorder %s20, 1
        %s246 = scalar_select %p245, %s20, 1
        %s247 = smul.addr %s246, 60
        %s248 = smul.addr %s247, 4
        %s249 = scalar_lea.vmem %s0, %s248
      $region44: #{double_conv_forward.1} parent=39 // pred_fallthru
        _
    $region40: #{double_conv_forward.1} parent=5 // pred_fallthru
      _
    %p250 = scmp.le.s32.totalorder 1, %s13
    %p251 = scmp.lt.s32.totalorder %s13, 3
    %p252 = pnand %p250, %p251
    %p253 = pneg %p252
    // Predicated region
    $region45: #{double_conv_forward.1} parent=5 // pred_check
      _
    $region46: #{double_conv_forward.1} parent=5 // pred_check_branch
      %255 = sbr.rel (%p252) target = $region48
    $region47: #{double_conv_forward.1} parent=5 // pred_region
      %s256 = ssub.s32 %s13, 1
      %p257 = scmp.lt.s32.totalorder %s22, 1
      %s258 = scalar_select %p257, %s22, 1
      %s259 = smul.addr %s258, 60
      %s260 = smul.addr %s259, 4
      %s261 = scalar_lea.vmem %s0, %s260
      %p262 = pneg %p51
      %p263 = pneg %p48
      %p264 = pneg %p72
      %p265 = pneg %p69
      %p266 = pneg %p93
      %p267 = pneg %p90
      %p268 = pneg %p114
      %p269 = pneg %p111
      %p270 = pneg %p135
      %p271 = pneg %p132
      %p272 = pneg %p156
      %p273 = pneg %p153
      %p274 = pneg %p177
      %p275 = pneg %p174
      %p276 = pneg %p205
      %p277 = pneg %p202
      %s278 = smul.u32 16, %s23
      %p279 = scmp.lt.s32.totalorder %s22, 1
      %s280 = scalar_select %p279, %s22, 1
      %p281 = scmp.lt.s32.totalorder %s278, 15
      %s282 = scalar_select %p281, %s278, 15
      %s283 = smul.addr %s282, 2
      %s284 = smul.addr %s280, 32
      %s285 = sadd.s32 %s283, %s284
      %s286 = smul.addr %s285, 8
      %s287 = scalar_lea.vmem %s7, %s286
      %p288 = scmp.lt.s32.totalorder %s22, 1
      %s289 = scalar_select %p288, %s22, 1
      %s290 = smul.addr %s289, 60
      %s291 = smul.addr %s290, 4
      %s292 = scalar_lea.vmem %s0, %s291
      %s293 = smul.u32 16, %s23
      %p294 = scmp.lt.s32.totalorder %s22, 1
      %s295 = scalar_select %p294, %s22, 1
      %p296 = scmp.lt.s32.totalorder %s293, 15
      %s297 = scalar_select %p296, %s293, 15
      %s298 = smul.addr %s297, 2
      %s299 = smul.addr %s295, 32
      %s300 = sadd.s32 %s298, %s299
      %s301 = smul.addr %s300, 8
      %s302 = scalar_lea.vmem %s7, %s301
      %s303 = smul.u32 16, %s23
      %s305 = smul.u32 %s23, 16
      %s306 = smul.u32 %s305, 3
      %s307 = smul.addr %s306, 4
      %s308 = scalar_lea.vmem %s292, %s307
      %v309 = vld [vmem:[%s308] sm:$0xf]
      %v310 = vld [vmem:[%s308 + $0x4] sm:$0xf]
      %v311 = vld [vmem:[%s308 + $0x8] sm:$0x3]
      %v312 = vld [vmem:[%s308 + $0xc] sm:$0xf]
      %v313 = vld [vmem:[%s308 + $0x10] sm:$0xf]
      %v314 = vld [vmem:[%s308 + $0x14] sm:$0x3]
      %v315 = vld [vmem:[%s308 + $0x18] sm:$0xf]
      %v316 = vld [vmem:[%s308 + $0x1c] sm:$0xf]
      %v317 = vld [vmem:[%s308 + $0x20] sm:$0x3]
      %v318 = vld [vmem:[%s308 + $0x24] sm:$0xf]
      %v319 = vld [vmem:[%s308 + $0x28] sm:$0xf]
      %v320 = vld [vmem:[%s308 + $0x2c] sm:$0x3]
      %v321 = vld [vmem:[%s308 + $0x30] sm:$0xf]
      %v322 = vld [vmem:[%s308 + $0x34] sm:$0xf]
      %v323 = vld [vmem:[%s308 + $0x38] sm:$0x3]
      %v324 = vld [vmem:[%s308 + $0x3c] sm:$0xf]
      %v325 = vld [vmem:[%s308 + $0x40] sm:$0xf]
      %v326 = vld [vmem:[%s308 + $0x44] sm:$0x3]
      %v327 = vld [vmem:[%s308 + $0x48] sm:$0xf]
      %v328 = vld [vmem:[%s308 + $0x4c] sm:$0xf]
      %v329 = vld [vmem:[%s308 + $0x50] sm:$0x3]
      %v330 = vld [vmem:[%s308 + $0x54] sm:$0xf]
      %v331 = vld [vmem:[%s308 + $0x58] sm:$0xf]
      %v332 = vld [vmem:[%s308 + $0x5c] sm:$0x3]
      %v333 = vld [vmem:[%s308 + $0x60] sm:$0xf]
      %v334 = vld [vmem:[%s308 + $0x64] sm:$0xf]
      %v335 = vld [vmem:[%s308 + $0x68] sm:$0x3]
      %v336 = vld [vmem:[%s308 + $0x6c] sm:$0xf]
      %v337 = vld [vmem:[%s308 + $0x70] sm:$0xf]
      %v338 = vld [vmem:[%s308 + $0x74] sm:$0x3]
      %v339 = vld [vmem:[%s308 + $0x78] sm:$0xf]
      %v340 = vld [vmem:[%s308 + $0x7c] sm:$0xf]
      %v341 = vld [vmem:[%s308 + $0x80] sm:$0x3]
      %v342 = vld [vmem:[%s308 + $0x84] sm:$0xf]
      %v343 = vld [vmem:[%s308 + $0x88] sm:$0xf]
      %v344 = vld [vmem:[%s308 + $0x8c] sm:$0x3]
      %v345 = vld [vmem:[%s308 + $0x90] sm:$0xf]
      %v346 = vld [vmem:[%s308 + $0x94] sm:$0xf]
      %v347 = vld [vmem:[%s308 + $0x98] sm:$0x3]
      %v348 = vld [vmem:[%s308 + $0x9c] sm:$0xf]
      %v349 = vld [vmem:[%s308 + $0xa0] sm:$0xf]
      %v350 = vld [vmem:[%s308 + $0xa4] sm:$0x3]
      %v351 = vld [vmem:[%s308 + $0xa8] sm:$0xf]
      %v352 = vld [vmem:[%s308 + $0xac] sm:$0xf]
      %v353 = vld [vmem:[%s308 + $0xb0] sm:$0x3]
      %v354 = vld [vmem:[%s308 + $0xb4] sm:$0xf]
      %v355 = vld [vmem:[%s308 + $0xb8] sm:$0xf]
      %v356 = vld [vmem:[%s308 + $0xbc] sm:$0x3]
      %v357 = vld [vmem:[%s308 + $0xc0] sm:$0xf]
      %v358 = vld [vmem:[%s308 + $0xc4] sm:$0xf]
      %v359 = vld [vmem:[%s308 + $0xc8] sm:$0x3]
      %v360 = vld [vmem:[%s308 + $0xcc] sm:$0xf]
      %v361 = vld [vmem:[%s308 + $0xd0] sm:$0xf]
      %v362 = vld [vmem:[%s308 + $0xd4] sm:$0x3]
      %v363 = vld [vmem:[%s308 + $0xd8] sm:$0xf]
      %v364 = vld [vmem:[%s308 + $0xdc] sm:$0xf]
      %v365 = vld [vmem:[%s308 + $0xe0] sm:$0x3]
      %v366 = vld [vmem:[%s308 + $0xe4] sm:$0xf]
      %v367 = vld [vmem:[%s308 + $0xe8] sm:$0xf]
      %v368 = vld [vmem:[%s308 + $0xec] sm:$0x3]
      %v369 = vld [vmem:[%s1] sm:$0x3]
      %v370 = vld [vmem:[%s1 + $0x2] sm:$0x3]
      %v371 = vld [vmem:[%s1 + $0x4] sm:$0x3]
      %v372 = vld [vmem:[%s1 + $0x6] sm:$0x3]
      %v373 = vld [vmem:[%s1 + $0x8] sm:$0x3]
      %v374 = vld [vmem:[%s1 + $0xa] sm:$0x3]
      %v375 = vld [vmem:[%s1 + $0xc] sm:$0x3]
      %v376 = vld [vmem:[%s1 + $0xe] sm:$0x3]
      %v377 = vld [vmem:[%s1 + $0x10] sm:$0x3]
      %v432 = vrot.slane %v309, 3
      %v433 = vrot.slane %v310, 3
      %v434 = vrot.slane %v311, 3
      %v435 = vrot.slane %v312, 3
      %v436 = vrot.slane %v313, 3
      %v437 = vrot.slane %v314, 3
      %v438 = vrot.slane %v315, 3
      %v439 = vrot.slane %v316, 3
      %v440 = vrot.slane %v317, 3
      %v441 = vrot.slane %v318, 3
      %v442 = vrot.slane %v319, 3
      %v443 = vrot.slane %v320, 3
      %v444 = vrot.slane %v321, 3
      %v445 = vrot.slane %v322, 3
      %v446 = vrot.slane %v323, 3
      %v447 = vrot.slane %v324, 3
      %v448 = vrot.slane %v325, 3
      %v449 = vrot.slane %v326, 3
      %v450 = vrot.slane %v327, 3
      %v451 = vrot.slane %v328, 3
      %v452 = vrot.slane %v329, 3
      %v453 = vrot.slane %v330, 3
      %v454 = vrot.slane %v331, 3
      %v455 = vrot.slane %v332, 3
      %v456 = vrot.slane %v333, 3
      %v457 = vrot.slane %v334, 3
      %v458 = vrot.slane %v335, 3
      %v459 = vrot.slane %v336, 3
      %v460 = vrot.slane %v337, 3
      %v461 = vrot.slane %v338, 3
      %v462 = vrot.slane %v339, 3
      %v463 = vrot.slane %v340, 3
      %v464 = vrot.slane %v341, 3
      %v465 = vrot.slane %v342, 3
      %v466 = vrot.slane %v343, 3
      %v467 = vrot.slane %v344, 3
      %v468 = vrot.slane %v345, 3
      %v469 = vrot.slane %v346, 3
      %v470 = vrot.slane %v347, 3
      %v471 = vrot.slane %v348, 3
      %v472 = vrot.slane %v349, 3
      %v473 = vrot.slane %v350, 3
      %v474 = vrot.slane %v351, 3
      %v475 = vrot.slane %v352, 3
      %v476 = vrot.slane %v353, 3
      %v477 = vrot.slane %v354, 3
      %v478 = vrot.slane %v355, 3
      %v479 = vrot.slane %v356, 3
      %v480 = vrot.slane %v357, 3
      %v481 = vrot.slane %v358, 3
      %v482 = vrot.slane %v359, 3
      %v483 = vrot.slane %v360, 3
      %v484 = vrot.slane %v361, 3
      %v485 = vrot.slane %v362, 3
      %vm486 = vcmask 1040384
      %v489 = vsel %vm486, %v309, %v432
      %vm490 = vcmask 1041409
      %v491 = vsel %vm490, %v309, %v432
      %v493 = vrot.slane %v491, 1
      %vm494 = vcmask 1042434
      %v495 = vsel %vm494, %v309, %v432
      %v497 = vrot.slane %v495, 2
      %vm498 = vcmask 1043459
      %v499 = vsel %vm498, %v309, %v432
      %v501 = vrot.slane %v499, 3
      %v504 = vsel %vm486, %v310, %v433
      %v505 = vsel %vm490, %v310, %v433
      %v507 = vrot.slane %v505, 1
      %v508 = vsel %vm494, %v310, %v433
      %v510 = vrot.slane %v508, 2
      %v511 = vsel %vm498, %v310, %v433
      %v513 = vrot.slane %v511, 3
      %v516 = vsel %vm486, %v311, %v434
      %v519 = vsel %vm486, %v312, %v435
      %v520 = vsel %vm490, %v312, %v435
      %v522 = vrot.slane %v520, 1
      %v523 = vsel %vm494, %v312, %v435
      %v525 = vrot.slane %v523, 2
      %v526 = vsel %vm498, %v312, %v435
      %v528 = vrot.slane %v526, 3
      %v531 = vsel %vm486, %v313, %v436
      %v532 = vsel %vm490, %v313, %v436
      %v534 = vrot.slane %v532, 1
      %v535 = vsel %vm494, %v313, %v436
      %v537 = vrot.slane %v535, 2
      %v538 = vsel %vm498, %v313, %v436
      %v540 = vrot.slane %v538, 3
      %v543 = vsel %vm486, %v314, %v437
      %v546 = vsel %vm486, %v315, %v438
      %v547 = vsel %vm490, %v315, %v438
      %v549 = vrot.slane %v547, 1
      %v550 = vsel %vm494, %v315, %v438
      %v552 = vrot.slane %v550, 2
      %v553 = vsel %vm498, %v315, %v438
      %v555 = vrot.slane %v553, 3
      %v558 = vsel %vm486, %v316, %v439
      %v559 = vsel %vm490, %v316, %v439
      %v561 = vrot.slane %v559, 1
      %v562 = vsel %vm494, %v316, %v439
      %v564 = vrot.slane %v562, 2
      %v565 = vsel %vm498, %v316, %v439
      %v567 = vrot.slane %v565, 3
      %v570 = vsel %vm486, %v317, %v440
      %v573 = vsel %vm486, %v318, %v441
      %v574 = vsel %vm490, %v318, %v441
      %v576 = vrot.slane %v574, 1
      %v577 = vsel %vm494, %v318, %v441
      %v579 = vrot.slane %v577, 2
      %v580 = vsel %vm498, %v318, %v441
      %v582 = vrot.slane %v580, 3
      %v585 = vsel %vm486, %v319, %v442
      %v586 = vsel %vm490, %v319, %v442
      %v588 = vrot.slane %v586, 1
      %v589 = vsel %vm494, %v319, %v442
      %v591 = vrot.slane %v589, 2
      %v592 = vsel %vm498, %v319, %v442
      %v594 = vrot.slane %v592, 3
      %v597 = vsel %vm486, %v320, %v443
      %v600 = vsel %vm486, %v321, %v444
      %v601 = vsel %vm490, %v321, %v444
      %v603 = vrot.slane %v601, 1
      %v604 = vsel %vm494, %v321, %v444
      %v606 = vrot.slane %v604, 2
      %v607 = vsel %vm498, %v321, %v444
      %v609 = vrot.slane %v607, 3
      %v612 = vsel %vm486, %v322, %v445
      %v613 = vsel %vm490, %v322, %v445
      %v615 = vrot.slane %v613, 1
      %v616 = vsel %vm494, %v322, %v445
      %v618 = vrot.slane %v616, 2
      %v619 = vsel %vm498, %v322, %v445
      %v621 = vrot.slane %v619, 3
      %v624 = vsel %vm486, %v323, %v446
      %v627 = vsel %vm486, %v324, %v447
      %v628 = vsel %vm490, %v324, %v447
      %v630 = vrot.slane %v628, 1
      %v631 = vsel %vm494, %v324, %v447
      %v633 = vrot.slane %v631, 2
      %v634 = vsel %vm498, %v324, %v447
      %v636 = vrot.slane %v634, 3
      %v639 = vsel %vm486, %v325, %v448
      %v640 = vsel %vm490, %v325, %v448
      %v642 = vrot.slane %v640, 1
      %v643 = vsel %vm494, %v325, %v448
      %v645 = vrot.slane %v643, 2
      %v646 = vsel %vm498, %v325, %v448
      %v648 = vrot.slane %v646, 3
      %v651 = vsel %vm486, %v326, %v449
      %v654 = vsel %vm486, %v327, %v450
      %v655 = vsel %vm490, %v327, %v450
      %v657 = vrot.slane %v655, 1
      %v658 = vsel %vm494, %v327, %v450
      %v660 = vrot.slane %v658, 2
      %v661 = vsel %vm498, %v327, %v450
      %v663 = vrot.slane %v661, 3
      %v666 = vsel %vm486, %v328, %v451
      %v667 = vsel %vm490, %v328, %v451
      %v669 = vrot.slane %v667, 1
      %v670 = vsel %vm494, %v328, %v451
      %v672 = vrot.slane %v670, 2
      %v673 = vsel %vm498, %v328, %v451
      %v675 = vrot.slane %v673, 3
      %v678 = vsel %vm486, %v329, %v452
      %v681 = vsel %vm486, %v330, %v453
      %v682 = vsel %vm490, %v330, %v453
      %v684 = vrot.slane %v682, 1
      %v685 = vsel %vm494, %v330, %v453
      %v687 = vrot.slane %v685, 2
      %v688 = vsel %vm498, %v330, %v453
      %v690 = vrot.slane %v688, 3
      %v693 = vsel %vm486, %v331, %v454
      %v694 = vsel %vm490, %v331, %v454
      %v696 = vrot.slane %v694, 1
      %v697 = vsel %vm494, %v331, %v454
      %v699 = vrot.slane %v697, 2
      %v700 = vsel %vm498, %v331, %v454
      %v702 = vrot.slane %v700, 3
      %v705 = vsel %vm486, %v332, %v455
      %v708 = vsel %vm486, %v333, %v456
      %v709 = vsel %vm490, %v333, %v456
      %v711 = vrot.slane %v709, 1
      %v712 = vsel %vm494, %v333, %v456
      %v714 = vrot.slane %v712, 2
      %v715 = vsel %vm498, %v333, %v456
      %v717 = vrot.slane %v715, 3
      %v720 = vsel %vm486, %v334, %v457
      %v721 = vsel %vm490, %v334, %v457
      %v723 = vrot.slane %v721, 1
      %v724 = vsel %vm494, %v334, %v457
      %v726 = vrot.slane %v724, 2
      %v727 = vsel %vm498, %v334, %v457
      %v729 = vrot.slane %v727, 3
      %v732 = vsel %vm486, %v335, %v458
      %v735 = vsel %vm486, %v336, %v459
      %v736 = vsel %vm490, %v336, %v459
      %v738 = vrot.slane %v736, 1
      %v739 = vsel %vm494, %v336, %v459
      %v741 = vrot.slane %v739, 2
      %v742 = vsel %vm498, %v336, %v459
      %v744 = vrot.slane %v742, 3
      %v747 = vsel %vm486, %v337, %v460
      %v748 = vsel %vm490, %v337, %v460
      %v750 = vrot.slane %v748, 1
      %v751 = vsel %vm494, %v337, %v460
      %v753 = vrot.slane %v751, 2
      %v754 = vsel %vm498, %v337, %v460
      %v756 = vrot.slane %v754, 3
      %v759 = vsel %vm486, %v338, %v461
      %v762 = vsel %vm486, %v339, %v462
      %v763 = vsel %vm490, %v339, %v462
      %v765 = vrot.slane %v763, 1
      %v766 = vsel %vm494, %v339, %v462
      %v768 = vrot.slane %v766, 2
      %v769 = vsel %vm498, %v339, %v462
      %v771 = vrot.slane %v769, 3
      %v774 = vsel %vm486, %v340, %v463
      %v775 = vsel %vm490, %v340, %v463
      %v777 = vrot.slane %v775, 1
      %v778 = vsel %vm494, %v340, %v463
      %v780 = vrot.slane %v778, 2
      %v781 = vsel %vm498, %v340, %v463
      %v783 = vrot.slane %v781, 3
      %v786 = vsel %vm486, %v341, %v464
      %v789 = vsel %vm486, %v342, %v465
      %v790 = vsel %vm490, %v342, %v465
      %v792 = vrot.slane %v790, 1
      %v793 = vsel %vm494, %v342, %v465
      %v795 = vrot.slane %v793, 2
      %v796 = vsel %vm498, %v342, %v465
      %v798 = vrot.slane %v796, 3
      %v801 = vsel %vm486, %v343, %v466
      %v802 = vsel %vm490, %v343, %v466
      %v804 = vrot.slane %v802, 1
      %v805 = vsel %vm494, %v343, %v466
      %v807 = vrot.slane %v805, 2
      %v808 = vsel %vm498, %v343, %v466
      %v810 = vrot.slane %v808, 3
      %v813 = vsel %vm486, %v344, %v467
      %v816 = vsel %vm486, %v345, %v468
      %v817 = vsel %vm490, %v345, %v468
      %v819 = vrot.slane %v817, 1
      %v820 = vsel %vm494, %v345, %v468
      %v822 = vrot.slane %v820, 2
      %v823 = vsel %vm498, %v345, %v468
      %v825 = vrot.slane %v823, 3
      %v828 = vsel %vm486, %v346, %v469
      %v829 = vsel %vm490, %v346, %v469
      %v831 = vrot.slane %v829, 1
      %v832 = vsel %vm494, %v346, %v469
      %v834 = vrot.slane %v832, 2
      %v835 = vsel %vm498, %v346, %v469
      %v837 = vrot.slane %v835, 3
      %v840 = vsel %vm486, %v347, %v470
      %v843 = vsel %vm486, %v348, %v471
      %v844 = vsel %vm490, %v348, %v471
      %v846 = vrot.slane %v844, 1
      %v847 = vsel %vm494, %v348, %v471
      %v849 = vrot.slane %v847, 2
      %v850 = vsel %vm498, %v348, %v471
      %v852 = vrot.slane %v850, 3
      %v855 = vsel %vm486, %v349, %v472
      %v856 = vsel %vm490, %v349, %v472
      %v858 = vrot.slane %v856, 1
      %v859 = vsel %vm494, %v349, %v472
      %v861 = vrot.slane %v859, 2
      %v862 = vsel %vm498, %v349, %v472
      %v864 = vrot.slane %v862, 3
      %v867 = vsel %vm486, %v350, %v473
      %v870 = vsel %vm486, %v351, %v474
      %v871 = vsel %vm490, %v351, %v474
      %v873 = vrot.slane %v871, 1
      %v874 = vsel %vm494, %v351, %v474
      %v876 = vrot.slane %v874, 2
      %v877 = vsel %vm498, %v351, %v474
      %v879 = vrot.slane %v877, 3
      %v882 = vsel %vm486, %v352, %v475
      %v883 = vsel %vm490, %v352, %v475
      %v885 = vrot.slane %v883, 1
      %v886 = vsel %vm494, %v352, %v475
      %v888 = vrot.slane %v886, 2
      %v889 = vsel %vm498, %v352, %v475
      %v891 = vrot.slane %v889, 3
      %v894 = vsel %vm486, %v353, %v476
      %v897 = vsel %vm486, %v354, %v477
      %v898 = vsel %vm490, %v354, %v477
      %v900 = vrot.slane %v898, 1
      %v901 = vsel %vm494, %v354, %v477
      %v903 = vrot.slane %v901, 2
      %v904 = vsel %vm498, %v354, %v477
      %v906 = vrot.slane %v904, 3
      %v909 = vsel %vm486, %v355, %v478
      %v910 = vsel %vm490, %v355, %v478
      %v912 = vrot.slane %v910, 1
      %v913 = vsel %vm494, %v355, %v478
      %v915 = vrot.slane %v913, 2
      %v916 = vsel %vm498, %v355, %v478
      %v918 = vrot.slane %v916, 3
      %v921 = vsel %vm486, %v356, %v479
      %v924 = vsel %vm486, %v357, %v480
      %v925 = vsel %vm490, %v357, %v480
      %v927 = vrot.slane %v925, 1
      %v928 = vsel %vm494, %v357, %v480
      %v930 = vrot.slane %v928, 2
      %v931 = vsel %vm498, %v357, %v480
      %v933 = vrot.slane %v931, 3
      %v936 = vsel %vm486, %v358, %v481
      %v937 = vsel %vm490, %v358, %v481
      %v939 = vrot.slane %v937, 1
      %v940 = vsel %vm494, %v358, %v481
      %v942 = vrot.slane %v940, 2
      %v943 = vsel %vm498, %v358, %v481
      %v945 = vrot.slane %v943, 3
      %v948 = vsel %vm486, %v359, %v482
      %v951 = vsel %vm486, %v360, %v483
      %v952 = vsel %vm490, %v360, %v483
      %v954 = vrot.slane %v952, 1
      %v955 = vsel %vm494, %v360, %v483
      %v957 = vrot.slane %v955, 2
      %v958 = vsel %vm498, %v360, %v483
      %v960 = vrot.slane %v958, 3
      %v963 = vsel %vm486, %v361, %v484
      %v964 = vsel %vm490, %v361, %v484
      %v966 = vrot.slane %v964, 1
      %v967 = vsel %vm494, %v361, %v484
      %v969 = vrot.slane %v967, 2
      %v970 = vsel %vm498, %v361, %v484
      %v972 = vrot.slane %v970, 3
      %v975 = vsel %vm486, %v362, %v485
      %v976 = vsel %vm490, %v311, %v434
      %v978 = vrot.slane %v976, 1
      %v979 = vsel %vm490, %v314, %v437
      %v981 = vrot.slane %v979, 1
      %v982 = vsel %vm490, %v317, %v440
      %v984 = vrot.slane %v982, 1
      %v985 = vsel %vm490, %v320, %v443
      %v987 = vrot.slane %v985, 1
      %v988 = vsel %vm490, %v323, %v446
      %v990 = vrot.slane %v988, 1
      %v991 = vsel %vm490, %v326, %v449
      %v993 = vrot.slane %v991, 1
      %v994 = vsel %vm490, %v329, %v452
      %v996 = vrot.slane %v994, 1
      %v997 = vsel %vm490, %v332, %v455
      %v999 = vrot.slane %v997, 1
      %v1000 = vsel %vm490, %v335, %v458
      %v1002 = vrot.slane %v1000, 1
      %v1003 = vsel %vm490, %v338, %v461
      %v1005 = vrot.slane %v1003, 1
      %v1006 = vsel %vm490, %v341, %v464
      %v1008 = vrot.slane %v1006, 1
      %v1009 = vsel %vm490, %v344, %v467
      %v1011 = vrot.slane %v1009, 1
      %v1012 = vsel %vm490, %v347, %v470
      %v1014 = vrot.slane %v1012, 1
      %v1015 = vsel %vm490, %v350, %v473
      %v1017 = vrot.slane %v1015, 1
      %v1018 = vsel %vm490, %v353, %v476
      %v1020 = vrot.slane %v1018, 1
      %v1021 = vsel %vm490, %v356, %v479
      %v1023 = vrot.slane %v1021, 1
      %v1024 = vsel %vm490, %v359, %v482
      %v1026 = vrot.slane %v1024, 1
      %v1027 = vsel %vm490, %v362, %v485
      %v1029 = vrot.slane %v1027, 1
      %vm1030 = vsmask.f32 256
      %vm1031 = vsmask.f32 1284
      %vm1032 = vmor %vm1030, %vm1031
      %vm1033 = vsmask.f32 2312
      %vm1034 = vmor %vm1032, %vm1033
      %vm1035 = vsmask.f32 3340
      %vm1036 = vmor %vm1034, %vm1035
      %vm1037 = vsmask.f32 4368
      %vm1038 = vmor %vm1036, %vm1037
      %vm1039 = vsmask.f32 5396
      %vm1040 = vmor %vm1038, %vm1039
      %vm1041 = vsmask.f32 6424
      %vm1042 = vmor %vm1040, %vm1041
      %vm1043 = vsmask.f32 7452
      %vm1044 = vmor %vm1042, %vm1043
      %v1045 = vshrl.u32 %v489, 16
      %v1047 = vrot.slane %v1045, 7
      %v1048 = vrot.slane %v1047, 1
      %v1050 = vshll.u32 %v493, 16
      %v1052 = vsel %vm1044, %v1048, %v1050
      %v1053 = vshrl.u32 %v493, 16
      %v1055 = vrot.slane %v1053, 7
      %v1056 = vrot.slane %v1055, 1
      %v1058 = vshll.u32 %v497, 16
      %v1060 = vsel %vm1044, %v1056, %v1058
      %v1061 = vshrl.u32 %v497, 16
      %v1063 = vrot.slane %v1061, 7
      %v1064 = vrot.slane %v1063, 1
      %v1066 = vshll.u32 %v501, 16
      %v1068 = vsel %vm1044, %v1064, %v1066
      %v1069 = vshrl.u32 %v501, 16
      %v1071 = vrot.slane %v1069, 7
      %v1072 = vrot.slane %v1071, 1
      %v1073 = vshll.u32 %v504, 16
      %v1075 = vsel %vm1044, %v1072, %v1073
      %v1076 = vshrl.u32 %v504, 16
      %v1078 = vrot.slane %v1076, 7
      %v1079 = vrot.slane %v1078, 1
      %v1081 = vshll.u32 %v507, 16
      %v1083 = vsel %vm1044, %v1079, %v1081
      %v1084 = vshrl.u32 %v507, 16
      %v1086 = vrot.slane %v1084, 7
      %v1087 = vrot.slane %v1086, 1
      %v1089 = vshll.u32 %v510, 16
      %v1091 = vsel %vm1044, %v1087, %v1089
      %v1092 = vshrl.u32 %v510, 16
      %v1094 = vrot.slane %v1092, 7
      %v1095 = vrot.slane %v1094, 1
      %v1097 = vshll.u32 %v513, 16
      %v1099 = vsel %vm1044, %v1095, %v1097
      %v1100 = vshrl.u32 %v513, 16
      %v1102 = vrot.slane %v1100, 7
      %v1103 = vrot.slane %v1102, 1
      %v1104 = vshll.u32 %v516, 16
      %v1106 = vsel %vm1044, %v1103, %v1104
      %v1107 = vshrl.u32 %v516, 16
      %v1109 = vrot.slane %v1107, 7
      %v1110 = vrot.slane %v1109, 1
      %v1112 = vshll.u32 %v978, 16
      %v1114 = vsel %vm1044, %v1110, %v1112
      %v1115 = vshrl.u32 %v519, 16
      %v1117 = vrot.slane %v1115, 7
      %v1118 = vrot.slane %v1117, 1
      %v1120 = vshll.u32 %v522, 16
      %v1122 = vsel %vm1044, %v1118, %v1120
      %v1123 = vshrl.u32 %v522, 16
      %v1125 = vrot.slane %v1123, 7
      %v1126 = vrot.slane %v1125, 1
      %v1128 = vshll.u32 %v525, 16
      %v1130 = vsel %vm1044, %v1126, %v1128
      %v1131 = vshrl.u32 %v525, 16
      %v1133 = vrot.slane %v1131, 7
      %v1134 = vrot.slane %v1133, 1
      %v1136 = vshll.u32 %v528, 16
      %v1138 = vsel %vm1044, %v1134, %v1136
      %v1139 = vshrl.u32 %v528, 16
      %v1141 = vrot.slane %v1139, 7
      %v1142 = vrot.slane %v1141, 1
      %v1143 = vshll.u32 %v531, 16
      %v1145 = vsel %vm1044, %v1142, %v1143
      %v1146 = vshrl.u32 %v531, 16
      %v1148 = vrot.slane %v1146, 7
      %v1149 = vrot.slane %v1148, 1
      %v1151 = vshll.u32 %v534, 16
      %v1153 = vsel %vm1044, %v1149, %v1151
      %v1154 = vshrl.u32 %v534, 16
      %v1156 = vrot.slane %v1154, 7
      %v1157 = vrot.slane %v1156, 1
      %v1159 = vshll.u32 %v537, 16
      %v1161 = vsel %vm1044, %v1157, %v1159
      %v1162 = vshrl.u32 %v537, 16
      %v1164 = vrot.slane %v1162, 7
      %v1165 = vrot.slane %v1164, 1
      %v1167 = vshll.u32 %v540, 16
      %v1169 = vsel %vm1044, %v1165, %v1167
      %v1170 = vshrl.u32 %v540, 16
      %v1172 = vrot.slane %v1170, 7
      %v1173 = vrot.slane %v1172, 1
      %v1174 = vshll.u32 %v543, 16
      %v1176 = vsel %vm1044, %v1173, %v1174
      %v1177 = vshrl.u32 %v543, 16
      %v1179 = vrot.slane %v1177, 7
      %v1180 = vrot.slane %v1179, 1
      %v1182 = vshll.u32 %v981, 16
      %v1184 = vsel %vm1044, %v1180, %v1182
      %v1185 = vshrl.u32 %v546, 16
      %v1187 = vrot.slane %v1185, 7
      %v1188 = vrot.slane %v1187, 1
      %v1190 = vshll.u32 %v549, 16
      %v1192 = vsel %vm1044, %v1188, %v1190
      %v1193 = vshrl.u32 %v549, 16
      %v1195 = vrot.slane %v1193, 7
      %v1196 = vrot.slane %v1195, 1
      %v1198 = vshll.u32 %v552, 16
      %v1200 = vsel %vm1044, %v1196, %v1198
      %v1201 = vshrl.u32 %v552, 16
      %v1203 = vrot.slane %v1201, 7
      %v1204 = vrot.slane %v1203, 1
      %v1206 = vshll.u32 %v555, 16
      %v1208 = vsel %vm1044, %v1204, %v1206
      %v1209 = vshrl.u32 %v555, 16
      %v1211 = vrot.slane %v1209, 7
      %v1212 = vrot.slane %v1211, 1
      %v1213 = vshll.u32 %v558, 16
      %v1215 = vsel %vm1044, %v1212, %v1213
      %v1216 = vshrl.u32 %v558, 16
      %v1218 = vrot.slane %v1216, 7
      %v1219 = vrot.slane %v1218, 1
      %v1221 = vshll.u32 %v561, 16
      %v1223 = vsel %vm1044, %v1219, %v1221
      %v1224 = vshrl.u32 %v561, 16
      %v1226 = vrot.slane %v1224, 7
      %v1227 = vrot.slane %v1226, 1
      %v1229 = vshll.u32 %v564, 16
      %v1231 = vsel %vm1044, %v1227, %v1229
      %v1232 = vshrl.u32 %v564, 16
      %v1234 = vrot.slane %v1232, 7
      %v1235 = vrot.slane %v1234, 1
      %v1237 = vshll.u32 %v567, 16
      %v1239 = vsel %vm1044, %v1235, %v1237
      %v1240 = vshrl.u32 %v567, 16
      %v1242 = vrot.slane %v1240, 7
      %v1243 = vrot.slane %v1242, 1
      %v1244 = vshll.u32 %v570, 16
      %v1246 = vsel %vm1044, %v1243, %v1244
      %v1247 = vshrl.u32 %v570, 16
      %v1249 = vrot.slane %v1247, 7
      %v1250 = vrot.slane %v1249, 1
      %v1252 = vshll.u32 %v984, 16
      %v1254 = vsel %vm1044, %v1250, %v1252
      %v1255 = vshrl.u32 %v573, 16
      %v1257 = vrot.slane %v1255, 7
      %v1258 = vrot.slane %v1257, 1
      %v1260 = vshll.u32 %v576, 16
      %v1262 = vsel %vm1044, %v1258, %v1260
      %v1263 = vshrl.u32 %v576, 16
      %v1265 = vrot.slane %v1263, 7
      %v1266 = vrot.slane %v1265, 1
      %v1268 = vshll.u32 %v579, 16
      %v1270 = vsel %vm1044, %v1266, %v1268
      %v1271 = vshrl.u32 %v579, 16
      %v1273 = vrot.slane %v1271, 7
      %v1274 = vrot.slane %v1273, 1
      %v1276 = vshll.u32 %v582, 16
      %v1278 = vsel %vm1044, %v1274, %v1276
      %v1279 = vshrl.u32 %v582, 16
      %v1281 = vrot.slane %v1279, 7
      %v1282 = vrot.slane %v1281, 1
      %v1283 = vshll.u32 %v585, 16
      %v1285 = vsel %vm1044, %v1282, %v1283
      %v1286 = vshrl.u32 %v585, 16
      %v1288 = vrot.slane %v1286, 7
      %v1289 = vrot.slane %v1288, 1
      %v1291 = vshll.u32 %v588, 16
      %v1293 = vsel %vm1044, %v1289, %v1291
      %v1294 = vshrl.u32 %v588, 16
      %v1296 = vrot.slane %v1294, 7
      %v1297 = vrot.slane %v1296, 1
      %v1299 = vshll.u32 %v591, 16
      %v1301 = vsel %vm1044, %v1297, %v1299
      %v1302 = vshrl.u32 %v591, 16
      %v1304 = vrot.slane %v1302, 7
      %v1305 = vrot.slane %v1304, 1
      %v1307 = vshll.u32 %v594, 16
      %v1309 = vsel %vm1044, %v1305, %v1307
      %v1310 = vshrl.u32 %v594, 16
      %v1312 = vrot.slane %v1310, 7
      %v1313 = vrot.slane %v1312, 1
      %v1314 = vshll.u32 %v597, 16
      %v1316 = vsel %vm1044, %v1313, %v1314
      %v1317 = vshrl.u32 %v597, 16
      %v1319 = vrot.slane %v1317, 7
      %v1320 = vrot.slane %v1319, 1
      %v1322 = vshll.u32 %v987, 16
      %v1324 = vsel %vm1044, %v1320, %v1322
      %v1325 = vshrl.u32 %v600, 16
      %v1327 = vrot.slane %v1325, 7
      %v1328 = vrot.slane %v1327, 1
      %v1330 = vshll.u32 %v603, 16
      %v1332 = vsel %vm1044, %v1328, %v1330
      %v1333 = vshrl.u32 %v603, 16
      %v1335 = vrot.slane %v1333, 7
      %v1336 = vrot.slane %v1335, 1
      %v1338 = vshll.u32 %v606, 16
      %v1340 = vsel %vm1044, %v1336, %v1338
      %v1341 = vshrl.u32 %v606, 16
      %v1343 = vrot.slane %v1341, 7
      %v1344 = vrot.slane %v1343, 1
      %v1346 = vshll.u32 %v609, 16
      %v1348 = vsel %vm1044, %v1344, %v1346
      %v1349 = vshrl.u32 %v609, 16
      %v1351 = vrot.slane %v1349, 7
      %v1352 = vrot.slane %v1351, 1
      %v1353 = vshll.u32 %v612, 16
      %v1355 = vsel %vm1044, %v1352, %v1353
      %v1356 = vshrl.u32 %v612, 16
      %v1358 = vrot.slane %v1356, 7
      %v1359 = vrot.slane %v1358, 1
      %v1361 = vshll.u32 %v615, 16
      %v1363 = vsel %vm1044, %v1359, %v1361
      %v1364 = vshrl.u32 %v615, 16
      %v1366 = vrot.slane %v1364, 7
      %v1367 = vrot.slane %v1366, 1
      %v1369 = vshll.u32 %v618, 16
      %v1371 = vsel %vm1044, %v1367, %v1369
      %v1372 = vshrl.u32 %v618, 16
      %v1374 = vrot.slane %v1372, 7
      %v1375 = vrot.slane %v1374, 1
      %v1377 = vshll.u32 %v621, 16
      %v1379 = vsel %vm1044, %v1375, %v1377
      %v1380 = vshrl.u32 %v621, 16
      %v1382 = vrot.slane %v1380, 7
      %v1383 = vrot.slane %v1382, 1
      %v1384 = vshll.u32 %v624, 16
      %v1386 = vsel %vm1044, %v1383, %v1384
      %v1387 = vshrl.u32 %v624, 16
      %v1389 = vrot.slane %v1387, 7
      %v1390 = vrot.slane %v1389, 1
      %v1392 = vshll.u32 %v990, 16
      %v1394 = vsel %vm1044, %v1390, %v1392
      %v1395 = vshrl.u32 %v627, 16
      %v1397 = vrot.slane %v1395, 7
      %v1398 = vrot.slane %v1397, 1
      %v1400 = vshll.u32 %v630, 16
      %v1402 = vsel %vm1044, %v1398, %v1400
      %v1403 = vshrl.u32 %v630, 16
      %v1405 = vrot.slane %v1403, 7
      %v1406 = vrot.slane %v1405, 1
      %v1408 = vshll.u32 %v633, 16
      %v1410 = vsel %vm1044, %v1406, %v1408
      %v1411 = vshrl.u32 %v633, 16
      %v1413 = vrot.slane %v1411, 7
      %v1414 = vrot.slane %v1413, 1
      %v1416 = vshll.u32 %v636, 16
      %v1418 = vsel %vm1044, %v1414, %v1416
      %v1419 = vshrl.u32 %v636, 16
      %v1421 = vrot.slane %v1419, 7
      %v1422 = vrot.slane %v1421, 1
      %v1423 = vshll.u32 %v639, 16
      %v1425 = vsel %vm1044, %v1422, %v1423
      %v1426 = vshrl.u32 %v639, 16
      %v1428 = vrot.slane %v1426, 7
      %v1429 = vrot.slane %v1428, 1
      %v1431 = vshll.u32 %v642, 16
      %v1433 = vsel %vm1044, %v1429, %v1431
      %v1434 = vshrl.u32 %v642, 16
      %v1436 = vrot.slane %v1434, 7
      %v1437 = vrot.slane %v1436, 1
      %v1439 = vshll.u32 %v645, 16
      %v1441 = vsel %vm1044, %v1437, %v1439
      %v1442 = vshrl.u32 %v645, 16
      %v1444 = vrot.slane %v1442, 7
      %v1445 = vrot.slane %v1444, 1
      %v1447 = vshll.u32 %v648, 16
      %v1449 = vsel %vm1044, %v1445, %v1447
      %v1450 = vshrl.u32 %v648, 16
      %v1452 = vrot.slane %v1450, 7
      %v1453 = vrot.slane %v1452, 1
      %v1454 = vshll.u32 %v651, 16
      %v1456 = vsel %vm1044, %v1453, %v1454
      %v1457 = vshrl.u32 %v651, 16
      %v1459 = vrot.slane %v1457, 7
      %v1460 = vrot.slane %v1459, 1
      %v1462 = vshll.u32 %v993, 16
      %v1464 = vsel %vm1044, %v1460, %v1462
      %v1465 = vshrl.u32 %v654, 16
      %v1467 = vrot.slane %v1465, 7
      %v1468 = vrot.slane %v1467, 1
      %v1470 = vshll.u32 %v657, 16
      %v1472 = vsel %vm1044, %v1468, %v1470
      %v1473 = vshrl.u32 %v657, 16
      %v1475 = vrot.slane %v1473, 7
      %v1476 = vrot.slane %v1475, 1
      %v1478 = vshll.u32 %v660, 16
      %v1480 = vsel %vm1044, %v1476, %v1478
      %v1481 = vshrl.u32 %v660, 16
      %v1483 = vrot.slane %v1481, 7
      %v1484 = vrot.slane %v1483, 1
      %v1486 = vshll.u32 %v663, 16
      %v1488 = vsel %vm1044, %v1484, %v1486
      %v1489 = vshrl.u32 %v663, 16
      %v1491 = vrot.slane %v1489, 7
      %v1492 = vrot.slane %v1491, 1
      %v1493 = vshll.u32 %v666, 16
      %v1495 = vsel %vm1044, %v1492, %v1493
      %v1496 = vshrl.u32 %v666, 16
      %v1498 = vrot.slane %v1496, 7
      %v1499 = vrot.slane %v1498, 1
      %v1501 = vshll.u32 %v669, 16
      %v1503 = vsel %vm1044, %v1499, %v1501
      %v1504 = vshrl.u32 %v669, 16
      %v1506 = vrot.slane %v1504, 7
      %v1507 = vrot.slane %v1506, 1
      %v1509 = vshll.u32 %v672, 16
      %v1511 = vsel %vm1044, %v1507, %v1509
      %v1512 = vshrl.u32 %v672, 16
      %v1514 = vrot.slane %v1512, 7
      %v1515 = vrot.slane %v1514, 1
      %v1517 = vshll.u32 %v675, 16
      %v1519 = vsel %vm1044, %v1515, %v1517
      %v1520 = vshrl.u32 %v675, 16
      %v1522 = vrot.slane %v1520, 7
      %v1523 = vrot.slane %v1522, 1
      %v1524 = vshll.u32 %v678, 16
      %v1526 = vsel %vm1044, %v1523, %v1524
      %v1527 = vshrl.u32 %v678, 16
      %v1529 = vrot.slane %v1527, 7
      %v1530 = vrot.slane %v1529, 1
      %v1532 = vshll.u32 %v996, 16
      %v1534 = vsel %vm1044, %v1530, %v1532
      %v1535 = vshrl.u32 %v681, 16
      %v1537 = vrot.slane %v1535, 7
      %v1538 = vrot.slane %v1537, 1
      %v1540 = vshll.u32 %v684, 16
      %v1542 = vsel %vm1044, %v1538, %v1540
      %v1543 = vshrl.u32 %v684, 16
      %v1545 = vrot.slane %v1543, 7
      %v1546 = vrot.slane %v1545, 1
      %v1548 = vshll.u32 %v687, 16
      %v1550 = vsel %vm1044, %v1546, %v1548
      %v1551 = vshrl.u32 %v687, 16
      %v1553 = vrot.slane %v1551, 7
      %v1554 = vrot.slane %v1553, 1
      %v1556 = vshll.u32 %v690, 16
      %v1558 = vsel %vm1044, %v1554, %v1556
      %v1559 = vshrl.u32 %v690, 16
      %v1561 = vrot.slane %v1559, 7
      %v1562 = vrot.slane %v1561, 1
      %v1563 = vshll.u32 %v693, 16
      %v1565 = vsel %vm1044, %v1562, %v1563
      %v1566 = vshrl.u32 %v693, 16
      %v1568 = vrot.slane %v1566, 7
      %v1569 = vrot.slane %v1568, 1
      %v1571 = vshll.u32 %v696, 16
      %v1573 = vsel %vm1044, %v1569, %v1571
      %v1574 = vshrl.u32 %v696, 16
      %v1576 = vrot.slane %v1574, 7
      %v1577 = vrot.slane %v1576, 1
      %v1579 = vshll.u32 %v699, 16
      %v1581 = vsel %vm1044, %v1577, %v1579
      %v1582 = vshrl.u32 %v699, 16
      %v1584 = vrot.slane %v1582, 7
      %v1585 = vrot.slane %v1584, 1
      %v1587 = vshll.u32 %v702, 16
      %v1589 = vsel %vm1044, %v1585, %v1587
      %v1590 = vshrl.u32 %v702, 16
      %v1592 = vrot.slane %v1590, 7
      %v1593 = vrot.slane %v1592, 1
      %v1594 = vshll.u32 %v705, 16
      %v1596 = vsel %vm1044, %v1593, %v1594
      %v1597 = vshrl.u32 %v705, 16
      %v1599 = vrot.slane %v1597, 7
      %v1600 = vrot.slane %v1599, 1
      %v1602 = vshll.u32 %v999, 16
      %v1604 = vsel %vm1044, %v1600, %v1602
      %v1605 = vshrl.u32 %v708, 16
      %v1607 = vrot.slane %v1605, 7
      %v1608 = vrot.slane %v1607, 1
      %v1610 = vshll.u32 %v711, 16
      %v1612 = vsel %vm1044, %v1608, %v1610
      %v1613 = vshrl.u32 %v711, 16
      %v1615 = vrot.slane %v1613, 7
      %v1616 = vrot.slane %v1615, 1
      %v1618 = vshll.u32 %v714, 16
      %v1620 = vsel %vm1044, %v1616, %v1618
      %v1621 = vshrl.u32 %v714, 16
      %v1623 = vrot.slane %v1621, 7
      %v1624 = vrot.slane %v1623, 1
      %v1626 = vshll.u32 %v717, 16
      %v1628 = vsel %vm1044, %v1624, %v1626
      %v1629 = vshrl.u32 %v717, 16
      %v1631 = vrot.slane %v1629, 7
      %v1632 = vrot.slane %v1631, 1
      %v1633 = vshll.u32 %v720, 16
      %v1635 = vsel %vm1044, %v1632, %v1633
      %v1636 = vshrl.u32 %v720, 16
      %v1638 = vrot.slane %v1636, 7
      %v1639 = vrot.slane %v1638, 1
      %v1641 = vshll.u32 %v723, 16
      %v1643 = vsel %vm1044, %v1639, %v1641
      %v1644 = vshrl.u32 %v723, 16
      %v1646 = vrot.slane %v1644, 7
      %v1647 = vrot.slane %v1646, 1
      %v1649 = vshll.u32 %v726, 16
      %v1651 = vsel %vm1044, %v1647, %v1649
      %v1652 = vshrl.u32 %v726, 16
      %v1654 = vrot.slane %v1652, 7
      %v1655 = vrot.slane %v1654, 1
      %v1657 = vshll.u32 %v729, 16
      %v1659 = vsel %vm1044, %v1655, %v1657
      %v1660 = vshrl.u32 %v729, 16
      %v1662 = vrot.slane %v1660, 7
      %v1663 = vrot.slane %v1662, 1
      %v1664 = vshll.u32 %v732, 16
      %v1666 = vsel %vm1044, %v1663, %v1664
      %v1667 = vshrl.u32 %v732, 16
      %v1669 = vrot.slane %v1667, 7
      %v1670 = vrot.slane %v1669, 1
      %v1672 = vshll.u32 %v1002, 16
      %v1674 = vsel %vm1044, %v1670, %v1672
      %v1675 = vshrl.u32 %v735, 16
      %v1677 = vrot.slane %v1675, 7
      %v1678 = vrot.slane %v1677, 1
      %v1680 = vshll.u32 %v738, 16
      %v1682 = vsel %vm1044, %v1678, %v1680
      %v1683 = vshrl.u32 %v738, 16
      %v1685 = vrot.slane %v1683, 7
      %v1686 = vrot.slane %v1685, 1
      %v1688 = vshll.u32 %v741, 16
      %v1690 = vsel %vm1044, %v1686, %v1688
      %v1691 = vshrl.u32 %v741, 16
      %v1693 = vrot.slane %v1691, 7
      %v1694 = vrot.slane %v1693, 1
      %v1696 = vshll.u32 %v744, 16
      %v1698 = vsel %vm1044, %v1694, %v1696
      %v1699 = vshrl.u32 %v744, 16
      %v1701 = vrot.slane %v1699, 7
      %v1702 = vrot.slane %v1701, 1
      %v1703 = vshll.u32 %v747, 16
      %v1705 = vsel %vm1044, %v1702, %v1703
      %v1706 = vshrl.u32 %v747, 16
      %v1708 = vrot.slane %v1706, 7
      %v1709 = vrot.slane %v1708, 1
      %v1711 = vshll.u32 %v750, 16
      %v1713 = vsel %vm1044, %v1709, %v1711
      %v1714 = vshrl.u32 %v750, 16
      %v1716 = vrot.slane %v1714, 7
      %v1717 = vrot.slane %v1716, 1
      %v1719 = vshll.u32 %v753, 16
      %v1721 = vsel %vm1044, %v1717, %v1719
      %v1722 = vshrl.u32 %v753, 16
      %v1724 = vrot.slane %v1722, 7
      %v1725 = vrot.slane %v1724, 1
      %v1727 = vshll.u32 %v756, 16
      %v1729 = vsel %vm1044, %v1725, %v1727
      %v1730 = vshrl.u32 %v756, 16
      %v1732 = vrot.slane %v1730, 7
      %v1733 = vrot.slane %v1732, 1
      %v1734 = vshll.u32 %v759, 16
      %v1736 = vsel %vm1044, %v1733, %v1734
      %v1737 = vshrl.u32 %v759, 16
      %v1739 = vrot.slane %v1737, 7
      %v1740 = vrot.slane %v1739, 1
      %v1742 = vshll.u32 %v1005, 16
      %v1744 = vsel %vm1044, %v1740, %v1742
      %v1745 = vshrl.u32 %v762, 16
      %v1747 = vrot.slane %v1745, 7
      %v1748 = vrot.slane %v1747, 1
      %v1750 = vshll.u32 %v765, 16
      %v1752 = vsel %vm1044, %v1748, %v1750
      %v1753 = vshrl.u32 %v765, 16
      %v1755 = vrot.slane %v1753, 7
      %v1756 = vrot.slane %v1755, 1
      %v1758 = vshll.u32 %v768, 16
      %v1760 = vsel %vm1044, %v1756, %v1758
      %v1761 = vshrl.u32 %v768, 16
      %v1763 = vrot.slane %v1761, 7
      %v1764 = vrot.slane %v1763, 1
      %v1766 = vshll.u32 %v771, 16
      %v1768 = vsel %vm1044, %v1764, %v1766
      %v1769 = vshrl.u32 %v771, 16
      %v1771 = vrot.slane %v1769, 7
      %v1772 = vrot.slane %v1771, 1
      %v1773 = vshll.u32 %v774, 16
      %v1775 = vsel %vm1044, %v1772, %v1773
      %v1776 = vshrl.u32 %v774, 16
      %v1778 = vrot.slane %v1776, 7
      %v1779 = vrot.slane %v1778, 1
      %v1781 = vshll.u32 %v777, 16
      %v1783 = vsel %vm1044, %v1779, %v1781
      %v1784 = vshrl.u32 %v777, 16
      %v1786 = vrot.slane %v1784, 7
      %v1787 = vrot.slane %v1786, 1
      %v1789 = vshll.u32 %v780, 16
      %v1791 = vsel %vm1044, %v1787, %v1789
      %v1792 = vshrl.u32 %v780, 16
      %v1794 = vrot.slane %v1792, 7
      %v1795 = vrot.slane %v1794, 1
      %v1797 = vshll.u32 %v783, 16
      %v1799 = vsel %vm1044, %v1795, %v1797
      %v1800 = vshrl.u32 %v783, 16
      %v1802 = vrot.slane %v1800, 7
      %v1803 = vrot.slane %v1802, 1
      %v1804 = vshll.u32 %v786, 16
      %v1806 = vsel %vm1044, %v1803, %v1804
      %v1807 = vshrl.u32 %v786, 16
      %v1809 = vrot.slane %v1807, 7
      %v1810 = vrot.slane %v1809, 1
      %v1812 = vshll.u32 %v1008, 16
      %v1814 = vsel %vm1044, %v1810, %v1812
      %v1815 = vshrl.u32 %v789, 16
      %v1817 = vrot.slane %v1815, 7
      %v1818 = vrot.slane %v1817, 1
      %v1820 = vshll.u32 %v792, 16
      %v1822 = vsel %vm1044, %v1818, %v1820
      %v1823 = vshrl.u32 %v792, 16
      %v1825 = vrot.slane %v1823, 7
      %v1826 = vrot.slane %v1825, 1
      %v1828 = vshll.u32 %v795, 16
      %v1830 = vsel %vm1044, %v1826, %v1828
      %v1831 = vshrl.u32 %v795, 16
      %v1833 = vrot.slane %v1831, 7
      %v1834 = vrot.slane %v1833, 1
      %v1836 = vshll.u32 %v798, 16
      %v1838 = vsel %vm1044, %v1834, %v1836
      %v1839 = vshrl.u32 %v798, 16
      %v1841 = vrot.slane %v1839, 7
      %v1842 = vrot.slane %v1841, 1
      %v1843 = vshll.u32 %v801, 16
      %v1845 = vsel %vm1044, %v1842, %v1843
      %v1846 = vshrl.u32 %v801, 16
      %v1848 = vrot.slane %v1846, 7
      %v1849 = vrot.slane %v1848, 1
      %v1851 = vshll.u32 %v804, 16
      %v1853 = vsel %vm1044, %v1849, %v1851
      %v1854 = vshrl.u32 %v804, 16
      %v1856 = vrot.slane %v1854, 7
      %v1857 = vrot.slane %v1856, 1
      %v1859 = vshll.u32 %v807, 16
      %v1861 = vsel %vm1044, %v1857, %v1859
      %v1862 = vshrl.u32 %v807, 16
      %v1864 = vrot.slane %v1862, 7
      %v1865 = vrot.slane %v1864, 1
      %v1867 = vshll.u32 %v810, 16
      %v1869 = vsel %vm1044, %v1865, %v1867
      %v1870 = vshrl.u32 %v810, 16
      %v1872 = vrot.slane %v1870, 7
      %v1873 = vrot.slane %v1872, 1
      %v1874 = vshll.u32 %v813, 16
      %v1876 = vsel %vm1044, %v1873, %v1874
      %v1877 = vshrl.u32 %v813, 16
      %v1879 = vrot.slane %v1877, 7
      %v1880 = vrot.slane %v1879, 1
      %v1882 = vshll.u32 %v1011, 16
      %v1884 = vsel %vm1044, %v1880, %v1882
      %v1885 = vshrl.u32 %v816, 16
      %v1887 = vrot.slane %v1885, 7
      %v1888 = vrot.slane %v1887, 1
      %v1890 = vshll.u32 %v819, 16
      %v1892 = vsel %vm1044, %v1888, %v1890
      %v1893 = vshrl.u32 %v819, 16
      %v1895 = vrot.slane %v1893, 7
      %v1896 = vrot.slane %v1895, 1
      %v1898 = vshll.u32 %v822, 16
      %v1900 = vsel %vm1044, %v1896, %v1898
      %v1901 = vshrl.u32 %v822, 16
      %v1903 = vrot.slane %v1901, 7
      %v1904 = vrot.slane %v1903, 1
      %v1906 = vshll.u32 %v825, 16
      %v1908 = vsel %vm1044, %v1904, %v1906
      %v1909 = vshrl.u32 %v825, 16
      %v1911 = vrot.slane %v1909, 7
      %v1912 = vrot.slane %v1911, 1
      %v1913 = vshll.u32 %v828, 16
      %v1915 = vsel %vm1044, %v1912, %v1913
      %v1916 = vshrl.u32 %v828, 16
      %v1918 = vrot.slane %v1916, 7
      %v1919 = vrot.slane %v1918, 1
      %v1921 = vshll.u32 %v831, 16
      %v1923 = vsel %vm1044, %v1919, %v1921
      %v1924 = vshrl.u32 %v831, 16
      %v1926 = vrot.slane %v1924, 7
      %v1927 = vrot.slane %v1926, 1
      %v1929 = vshll.u32 %v834, 16
      %v1931 = vsel %vm1044, %v1927, %v1929
      %v1932 = vshrl.u32 %v834, 16
      %v1934 = vrot.slane %v1932, 7
      %v1935 = vrot.slane %v1934, 1
      %v1937 = vshll.u32 %v837, 16
      %v1939 = vsel %vm1044, %v1935, %v1937
      %v1940 = vshrl.u32 %v837, 16
      %v1942 = vrot.slane %v1940, 7
      %v1943 = vrot.slane %v1942, 1
      %v1944 = vshll.u32 %v840, 16
      %v1946 = vsel %vm1044, %v1943, %v1944
      %v1947 = vshrl.u32 %v840, 16
      %v1949 = vrot.slane %v1947, 7
      %v1950 = vrot.slane %v1949, 1
      %v1952 = vshll.u32 %v1014, 16
      %v1954 = vsel %vm1044, %v1950, %v1952
      %v1955 = vshrl.u32 %v843, 16
      %v1957 = vrot.slane %v1955, 7
      %v1958 = vrot.slane %v1957, 1
      %v1960 = vshll.u32 %v846, 16
      %v1962 = vsel %vm1044, %v1958, %v1960
      %v1963 = vshrl.u32 %v846, 16
      %v1965 = vrot.slane %v1963, 7
      %v1966 = vrot.slane %v1965, 1
      %v1968 = vshll.u32 %v849, 16
      %v1970 = vsel %vm1044, %v1966, %v1968
      %v1971 = vshrl.u32 %v849, 16
      %v1973 = vrot.slane %v1971, 7
      %v1974 = vrot.slane %v1973, 1
      %v1976 = vshll.u32 %v852, 16
      %v1978 = vsel %vm1044, %v1974, %v1976
      %v1979 = vshrl.u32 %v852, 16
      %v1981 = vrot.slane %v1979, 7
      %v1982 = vrot.slane %v1981, 1
      %v1983 = vshll.u32 %v855, 16
      %v1985 = vsel %vm1044, %v1982, %v1983
      %v1986 = vshrl.u32 %v855, 16
      %v1988 = vrot.slane %v1986, 7
      %v1989 = vrot.slane %v1988, 1
      %v1991 = vshll.u32 %v858, 16
      %v1993 = vsel %vm1044, %v1989, %v1991
      %v1994 = vshrl.u32 %v858, 16
      %v1996 = vrot.slane %v1994, 7
      %v1997 = vrot.slane %v1996, 1
      %v1999 = vshll.u32 %v861, 16
      %v2001 = vsel %vm1044, %v1997, %v1999
      %v2002 = vshrl.u32 %v861, 16
      %v2004 = vrot.slane %v2002, 7
      %v2005 = vrot.slane %v2004, 1
      %v2007 = vshll.u32 %v864, 16
      %v2009 = vsel %vm1044, %v2005, %v2007
      %v2010 = vshrl.u32 %v864, 16
      %v2012 = vrot.slane %v2010, 7
      %v2013 = vrot.slane %v2012, 1
      %v2014 = vshll.u32 %v867, 16
      %v2016 = vsel %vm1044, %v2013, %v2014
      %v2017 = vshrl.u32 %v867, 16
      %v2019 = vrot.slane %v2017, 7
      %v2020 = vrot.slane %v2019, 1
      %v2022 = vshll.u32 %v1017, 16
      %v2024 = vsel %vm1044, %v2020, %v2022
      %v2025 = vshrl.u32 %v870, 16
      %v2027 = vrot.slane %v2025, 7
      %v2028 = vrot.slane %v2027, 1
      %v2030 = vshll.u32 %v873, 16
      %v2032 = vsel %vm1044, %v2028, %v2030
      %v2033 = vshrl.u32 %v873, 16
      %v2035 = vrot.slane %v2033, 7
      %v2036 = vrot.slane %v2035, 1
      %v2038 = vshll.u32 %v876, 16
      %v2040 = vsel %vm1044, %v2036, %v2038
      %v2041 = vshrl.u32 %v876, 16
      %v2043 = vrot.slane %v2041, 7
      %v2044 = vrot.slane %v2043, 1
      %v2046 = vshll.u32 %v879, 16
      %v2048 = vsel %vm1044, %v2044, %v2046
      %v2049 = vshrl.u32 %v879, 16
      %v2051 = vrot.slane %v2049, 7
      %v2052 = vrot.slane %v2051, 1
      %v2053 = vshll.u32 %v882, 16
      %v2055 = vsel %vm1044, %v2052, %v2053
      %v2056 = vshrl.u32 %v882, 16
      %v2058 = vrot.slane %v2056, 7
      %v2059 = vrot.slane %v2058, 1
      %v2061 = vshll.u32 %v885, 16
      %v2063 = vsel %vm1044, %v2059, %v2061
      %v2064 = vshrl.u32 %v885, 16
      %v2066 = vrot.slane %v2064, 7
      %v2067 = vrot.slane %v2066, 1
      %v2069 = vshll.u32 %v888, 16
      %v2071 = vsel %vm1044, %v2067, %v2069
      %v2072 = vshrl.u32 %v888, 16
      %v2074 = vrot.slane %v2072, 7
      %v2075 = vrot.slane %v2074, 1
      %v2077 = vshll.u32 %v891, 16
      %v2079 = vsel %vm1044, %v2075, %v2077
      %v2080 = vshrl.u32 %v891, 16
      %v2082 = vrot.slane %v2080, 7
      %v2083 = vrot.slane %v2082, 1
      %v2084 = vshll.u32 %v894, 16
      %v2086 = vsel %vm1044, %v2083, %v2084
      %v2087 = vshrl.u32 %v894, 16
      %v2089 = vrot.slane %v2087, 7
      %v2090 = vrot.slane %v2089, 1
      %v2092 = vshll.u32 %v1020, 16
      %v2094 = vsel %vm1044, %v2090, %v2092
      %v2095 = vshrl.u32 %v897, 16
      %v2097 = vrot.slane %v2095, 7
      %v2098 = vrot.slane %v2097, 1
      %v2100 = vshll.u32 %v900, 16
      %v2102 = vsel %vm1044, %v2098, %v2100
      %v2103 = vshrl.u32 %v900, 16
      %v2105 = vrot.slane %v2103, 7
      %v2106 = vrot.slane %v2105, 1
      %v2108 = vshll.u32 %v903, 16
      %v2110 = vsel %vm1044, %v2106, %v2108
      %v2111 = vshrl.u32 %v903, 16
      %v2113 = vrot.slane %v2111, 7
      %v2114 = vrot.slane %v2113, 1
      %v2116 = vshll.u32 %v906, 16
      %v2118 = vsel %vm1044, %v2114, %v2116
      %v2119 = vshrl.u32 %v906, 16
      %v2121 = vrot.slane %v2119, 7
      %v2122 = vrot.slane %v2121, 1
      %v2123 = vshll.u32 %v909, 16
      %v2125 = vsel %vm1044, %v2122, %v2123
      %v2126 = vshrl.u32 %v909, 16
      %v2128 = vrot.slane %v2126, 7
      %v2129 = vrot.slane %v2128, 1
      %v2131 = vshll.u32 %v912, 16
      %v2133 = vsel %vm1044, %v2129, %v2131
      %v2134 = vshrl.u32 %v912, 16
      %v2136 = vrot.slane %v2134, 7
      %v2137 = vrot.slane %v2136, 1
      %v2139 = vshll.u32 %v915, 16
      %v2141 = vsel %vm1044, %v2137, %v2139
      %v2142 = vshrl.u32 %v915, 16
      %v2144 = vrot.slane %v2142, 7
      %v2145 = vrot.slane %v2144, 1
      %v2147 = vshll.u32 %v918, 16
      %v2149 = vsel %vm1044, %v2145, %v2147
      %v2150 = vshrl.u32 %v918, 16
      %v2152 = vrot.slane %v2150, 7
      %v2153 = vrot.slane %v2152, 1
      %v2154 = vshll.u32 %v921, 16
      %v2156 = vsel %vm1044, %v2153, %v2154
      %v2157 = vshrl.u32 %v921, 16
      %v2159 = vrot.slane %v2157, 7
      %v2160 = vrot.slane %v2159, 1
      %v2162 = vshll.u32 %v1023, 16
      %v2164 = vsel %vm1044, %v2160, %v2162
      %v2165 = vshrl.u32 %v924, 16
      %v2167 = vrot.slane %v2165, 7
      %v2168 = vrot.slane %v2167, 1
      %v2170 = vshll.u32 %v927, 16
      %v2172 = vsel %vm1044, %v2168, %v2170
      %v2173 = vshrl.u32 %v927, 16
      %v2175 = vrot.slane %v2173, 7
      %v2176 = vrot.slane %v2175, 1
      %v2178 = vshll.u32 %v930, 16
      %v2180 = vsel %vm1044, %v2176, %v2178
      %v2181 = vshrl.u32 %v930, 16
      %v2183 = vrot.slane %v2181, 7
      %v2184 = vrot.slane %v2183, 1
      %v2186 = vshll.u32 %v933, 16
      %v2188 = vsel %vm1044, %v2184, %v2186
      %v2189 = vshrl.u32 %v933, 16
      %v2191 = vrot.slane %v2189, 7
      %v2192 = vrot.slane %v2191, 1
      %v2193 = vshll.u32 %v936, 16
      %v2195 = vsel %vm1044, %v2192, %v2193
      %v2196 = vshrl.u32 %v936, 16
      %v2198 = vrot.slane %v2196, 7
      %v2199 = vrot.slane %v2198, 1
      %v2201 = vshll.u32 %v939, 16
      %v2203 = vsel %vm1044, %v2199, %v2201
      %v2204 = vshrl.u32 %v939, 16
      %v2206 = vrot.slane %v2204, 7
      %v2207 = vrot.slane %v2206, 1
      %v2209 = vshll.u32 %v942, 16
      %v2211 = vsel %vm1044, %v2207, %v2209
      %v2212 = vshrl.u32 %v942, 16
      %v2214 = vrot.slane %v2212, 7
      %v2215 = vrot.slane %v2214, 1
      %v2217 = vshll.u32 %v945, 16
      %v2219 = vsel %vm1044, %v2215, %v2217
      %v2220 = vshrl.u32 %v945, 16
      %v2222 = vrot.slane %v2220, 7
      %v2223 = vrot.slane %v2222, 1
      %v2224 = vshll.u32 %v948, 16
      %v2226 = vsel %vm1044, %v2223, %v2224
      %v2227 = vshrl.u32 %v948, 16
      %v2229 = vrot.slane %v2227, 7
      %v2230 = vrot.slane %v2229, 1
      %v2232 = vshll.u32 %v1026, 16
      %v2234 = vsel %vm1044, %v2230, %v2232
      %v2235 = vshrl.u32 %v951, 16
      %v2237 = vrot.slane %v2235, 7
      %v2238 = vrot.slane %v2237, 1
      %v2240 = vshll.u32 %v954, 16
      %v2242 = vsel %vm1044, %v2238, %v2240
      %v2243 = vshrl.u32 %v954, 16
      %v2245 = vrot.slane %v2243, 7
      %v2246 = vrot.slane %v2245, 1
      %v2248 = vshll.u32 %v957, 16
      %v2250 = vsel %vm1044, %v2246, %v2248
      %v2251 = vshrl.u32 %v957, 16
      %v2253 = vrot.slane %v2251, 7
      %v2254 = vrot.slane %v2253, 1
      %v2256 = vshll.u32 %v960, 16
      %v2258 = vsel %vm1044, %v2254, %v2256
      %v2259 = vshrl.u32 %v960, 16
      %v2261 = vrot.slane %v2259, 7
      %v2262 = vrot.slane %v2261, 1
      %v2263 = vshll.u32 %v963, 16
      %v2265 = vsel %vm1044, %v2262, %v2263
      %v2266 = vshrl.u32 %v963, 16
      %v2268 = vrot.slane %v2266, 7
      %v2269 = vrot.slane %v2268, 1
      %v2271 = vshll.u32 %v966, 16
      %v2273 = vsel %vm1044, %v2269, %v2271
      %v2274 = vshrl.u32 %v966, 16
      %v2276 = vrot.slane %v2274, 7
      %v2277 = vrot.slane %v2276, 1
      %v2279 = vshll.u32 %v969, 16
      %v2281 = vsel %vm1044, %v2277, %v2279
      %v2282 = vshrl.u32 %v969, 16
      %v2284 = vrot.slane %v2282, 7
      %v2285 = vrot.slane %v2284, 1
      %v2287 = vshll.u32 %v972, 16
      %v2289 = vsel %vm1044, %v2285, %v2287
      %v2290 = vshrl.u32 %v972, 16
      %v2292 = vrot.slane %v2290, 7
      %v2293 = vrot.slane %v2292, 1
      %v2294 = vshll.u32 %v975, 16
      %v2296 = vsel %vm1044, %v2293, %v2294
      %v2297 = vshrl.u32 %v975, 16
      %v2299 = vrot.slane %v2297, 7
      %v2300 = vrot.slane %v2299, 1
      %v2302 = vshll.u32 %v1029, 16
      %v2304 = vsel %vm1044, %v2300, %v2302
      %2306 = vst [vmem:[#allocation1] ss:$9 sm:$0xff] %v1052
      %s2308 = scalar_lea.vmem [#allocation1], 1
      %2309 = vst [vmem:[%s2308] ss:$9 sm:$0xff] %v1060
      %s2311 = scalar_lea.vmem [#allocation1], 2
      %2312 = vst [vmem:[%s2311] ss:$9 sm:$0xff] %v1068
      %s2314 = scalar_lea.vmem [#allocation1], 3
      %2315 = vst [vmem:[%s2314] ss:$9 sm:$0xff] %v1075
      %s2317 = scalar_lea.vmem [#allocation1], 4
      %2318 = vst [vmem:[%s2317] ss:$9 sm:$0xff] %v1083
      %s2320 = scalar_lea.vmem [#allocation1], 5
      %2321 = vst [vmem:[%s2320] ss:$9 sm:$0xff] %v1091
      %s2323 = scalar_lea.vmem [#allocation1], 6
      %2324 = vst [vmem:[%s2323] ss:$9 sm:$0xff] %v1099
      %s2326 = scalar_lea.vmem [#allocation1], 7
      %2327 = vst [vmem:[%s2326] ss:$9 sm:$0xff] %v1106
      %v2328 = vld [vmem:[#allocation1] sm:$0xff]
      %2330 = vst [vmem:[#allocation1] ss:$9 sm:$0xff] %v1114
      %2332 = vst [vmem:[%s2308] ss:$9 sm:$0xff] %v1122
      %2334 = vst [vmem:[%s2311] ss:$9 sm:$0xff] %v1130
      %2336 = vst [vmem:[%s2314] ss:$9 sm:$0xff] %v1138
      %2338 = vst [vmem:[%s2317] ss:$9 sm:$0xff] %v1145
      %2340 = vst [vmem:[%s2320] ss:$9 sm:$0xff] %v1153
      %2342 = vst [vmem:[%s2323] ss:$9 sm:$0xff] %v1161
      %2344 = vst [vmem:[%s2326] ss:$9 sm:$0xff] %v1169
      %v2345 = vld [vmem:[#allocation1] sm:$0xff]
      %2347 = vst [vmem:[#allocation1] ss:$9 sm:$0xff] %v1176
      %2349 = vst [vmem:[%s2308] ss:$9 sm:$0xff] %v1184
      %2351 = vst [vmem:[%s2311] ss:$9 sm:$0xff] %v1192
      %2353 = vst [vmem:[%s2314] ss:$9 sm:$0xff] %v1200
      %2355 = vst [vmem:[%s2317] ss:$9 sm:$0xff] %v1208
      %2357 = vst [vmem:[%s2320] ss:$9 sm:$0xff] %v1215
      %2359 = vst [vmem:[%s2323] ss:$9 sm:$0xff] %v1223
      %2361 = vst [vmem:[%s2326] ss:$9 sm:$0xff] %v1231
      %v2362 = vld [vmem:[#allocation1] sm:$0xff]
      %2364 = vst [vmem:[#allocation1] ss:$9 sm:$0xff] %v1239
      %2366 = vst [vmem:[%s2308] ss:$9 sm:$0xff] %v1246
      %2368 = vst [vmem:[%s2311] ss:$9 sm:$0xff] %v1254
      %2370 = vst [vmem:[%s2314] ss:$9 sm:$0xff] %v1262
      %2372 = vst [vmem:[%s2317] ss:$9 sm:$0xff] %v1270
      %2374 = vst [vmem:[%s2320] ss:$9 sm:$0xff] %v1278
      %2376 = vst [vmem:[%s2323] ss:$9 sm:$0xff] %v1285
      %2378 = vst [vmem:[%s2326] ss:$9 sm:$0xff] %v1293
      %v2379 = vld [vmem:[#allocation1] sm:$0xff]
      %2381 = vst [vmem:[#allocation1] ss:$9 sm:$0xff] %v1301
      %2383 = vst [vmem:[%s2308] ss:$9 sm:$0xff] %v1309
      %2385 = vst [vmem:[%s2311] ss:$9 sm:$0xff] %v1316
      %2387 = vst [vmem:[%s2314] ss:$9 sm:$0xff] %v1324
      %2389 = vst [vmem:[%s2317] ss:$9 sm:$0xff] %v1332
      %2391 = vst [vmem:[%s2320] ss:$9 sm:$0xff] %v1340
      %2393 = vst [vmem:[%s2323] ss:$9 sm:$0xff] %v1348
      %2395 = vst [vmem:[%s2326] ss:$9 sm:$0xff] %v1355
      %v2396 = vld [vmem:[#allocation1] sm:$0xff]
      %2398 = vst [vmem:[#allocation1] ss:$9 sm:$0xff] %v1363
      %2400 = vst [vmem:[%s2308] ss:$9 sm:$0xff] %v1371
      %2402 = vst [vmem:[%s2311] ss:$9 sm:$0xff] %v1379
      %2404 = vst [vmem:[%s2314] ss:$9 sm:$0xff] %v1386
      %2406 = vst [vmem:[%s2317] ss:$9 sm:$0xff] %v1394
      %2408 = vst [vmem:[%s2320] ss:$9 sm:$0xff] %v1402
      %2410 = vst [vmem:[%s2323] ss:$9 sm:$0xff] %v1410
      %2412 = vst [vmem:[%s2326] ss:$9 sm:$0xff] %v1418
      %v2413 = vld [vmem:[#allocation1] sm:$0xff]
      %2415 = vst [vmem:[#allocation1] ss:$9 sm:$0xff] %v1425
      %2417 = vst [vmem:[%s2308] ss:$9 sm:$0xff] %v1433
      %2419 = vst [vmem:[%s2311] ss:$9 sm:$0xff] %v1441
      %2421 = vst [vmem:[%s2314] ss:$9 sm:$0xff] %v1449
      %2423 = vst [vmem:[%s2317] ss:$9 sm:$0xff] %v1456
      %2425 = vst [vmem:[%s2320] ss:$9 sm:$0xff] %v1464
      %2427 = vst [vmem:[%s2323] ss:$9 sm:$0xff] %v1472
      %2429 = vst [vmem:[%s2326] ss:$9 sm:$0xff] %v1480
      %v2430 = vld [vmem:[#allocation1] sm:$0xff]
      %2432 = vst [vmem:[#allocation1] ss:$9 sm:$0xff] %v1488
      %2434 = vst [vmem:[%s2308] ss:$9 sm:$0xff] %v1495
      %2436 = vst [vmem:[%s2311] ss:$9 sm:$0xff] %v1503
      %2438 = vst [vmem:[%s2314] ss:$9 sm:$0xff] %v1511
      %2440 = vst [vmem:[%s2317] ss:$9 sm:$0xff] %v1519
      %2442 = vst [vmem:[%s2320] ss:$9 sm:$0xff] %v1526
      %2444 = vst [vmem:[%s2323] ss:$9 sm:$0xff] %v1534
      %2446 = vst [vmem:[%s2326] ss:$9 sm:$0xff] %v1542
      %v2447 = vld [vmem:[#allocation1] sm:$0xff]
      %2449 = vst [vmem:[#allocation1] ss:$9 sm:$0xff] %v1550
      %2451 = vst [vmem:[%s2308] ss:$9 sm:$0xff] %v1558
      %2453 = vst [vmem:[%s2311] ss:$9 sm:$0xff] %v1565
      %2455 = vst [vmem:[%s2314] ss:$9 sm:$0xff] %v1573
      %2457 = vst [vmem:[%s2317] ss:$9 sm:$0xff] %v1581
      %2459 = vst [vmem:[%s2320] ss:$9 sm:$0xff] %v1589
      %2461 = vst [vmem:[%s2323] ss:$9 sm:$0xff] %v1596
      %2463 = vst [vmem:[%s2326] ss:$9 sm:$0xff] %v1604
      %v2464 = vld [vmem:[#allocation1] sm:$0xff]
      %2466 = vst [vmem:[#allocation1] ss:$9 sm:$0xff] %v1612
      %2468 = vst [vmem:[%s2308] ss:$9 sm:$0xff] %v1620
      %2470 = vst [vmem:[%s2311] ss:$9 sm:$0xff] %v1628
      %2472 = vst [vmem:[%s2314] ss:$9 sm:$0xff] %v1635
      %2474 = vst [vmem:[%s2317] ss:$9 sm:$0xff] %v1643
      %2476 = vst [vmem:[%s2320] ss:$9 sm:$0xff] %v1651
      %2478 = vst [vmem:[%s2323] ss:$9 sm:$0xff] %v1659
      %2480 = vst [vmem:[%s2326] ss:$9 sm:$0xff] %v1666
      %v2481 = vld [vmem:[#allocation1] sm:$0xff]
      %2483 = vst [vmem:[#allocation1] ss:$9 sm:$0xff] %v1674
      %2485 = vst [vmem:[%s2308] ss:$9 sm:$0xff] %v1682
      %2487 = vst [vmem:[%s2311] ss:$9 sm:$0xff] %v1690
      %2489 = vst [vmem:[%s2314] ss:$9 sm:$0xff] %v1698
      %2491 = vst [vmem:[%s2317] ss:$9 sm:$0xff] %v1705
      %2493 = vst [vmem:[%s2320] ss:$9 sm:$0xff] %v1713
      %2495 = vst [vmem:[%s2323] ss:$9 sm:$0xff] %v1721
      %2497 = vst [vmem:[%s2326] ss:$9 sm:$0xff] %v1729
      %v2498 = vld [vmem:[#allocation1] sm:$0xff]
      %2500 = vst [vmem:[#allocation1] ss:$9 sm:$0xff] %v1736
      %2502 = vst [vmem:[%s2308] ss:$9 sm:$0xff] %v1744
      %2504 = vst [vmem:[%s2311] ss:$9 sm:$0xff] %v1752
      %2506 = vst [vmem:[%s2314] ss:$9 sm:$0xff] %v1760
      %2508 = vst [vmem:[%s2317] ss:$9 sm:$0xff] %v1768
      %2510 = vst [vmem:[%s2320] ss:$9 sm:$0xff] %v1775
      %2512 = vst [vmem:[%s2323] ss:$9 sm:$0xff] %v1783
      %2514 = vst [vmem:[%s2326] ss:$9 sm:$0xff] %v1791
      %v2515 = vld [vmem:[#allocation1] sm:$0xff]
      %2517 = vst [vmem:[#allocation1] ss:$9 sm:$0xff] %v1799
      %2519 = vst [vmem:[%s2308] ss:$9 sm:$0xff] %v1806
      %2521 = vst [vmem:[%s2311] ss:$9 sm:$0xff] %v1814
      %2523 = vst [vmem:[%s2314] ss:$9 sm:$0xff] %v1822
      %2525 = vst [vmem:[%s2317] ss:$9 sm:$0xff] %v1830
      %2527 = vst [vmem:[%s2320] ss:$9 sm:$0xff] %v1838
      %2529 = vst [vmem:[%s2323] ss:$9 sm:$0xff] %v1845
      %2531 = vst [vmem:[%s2326] ss:$9 sm:$0xff] %v1853
      %v2532 = vld [vmem:[#allocation1] sm:$0xff]
      %2534 = vst [vmem:[#allocation1] ss:$9 sm:$0xff] %v1861
      %2536 = vst [vmem:[%s2308] ss:$9 sm:$0xff] %v1869
      %2538 = vst [vmem:[%s2311] ss:$9 sm:$0xff] %v1876
      %2540 = vst [vmem:[%s2314] ss:$9 sm:$0xff] %v1884
      %2542 = vst [vmem:[%s2317] ss:$9 sm:$0xff] %v1892
      %2544 = vst [vmem:[%s2320] ss:$9 sm:$0xff] %v1900
      %2546 = vst [vmem:[%s2323] ss:$9 sm:$0xff] %v1908
      %2548 = vst [vmem:[%s2326] ss:$9 sm:$0xff] %v1915
      %v2549 = vld [vmem:[#allocation1] sm:$0xff]
      %2551 = vst [vmem:[#allocation1] ss:$9 sm:$0xff] %v1923
      %2553 = vst [vmem:[%s2308] ss:$9 sm:$0xff] %v1931
      %2555 = vst [vmem:[%s2311] ss:$9 sm:$0xff] %v1939
      %2557 = vst [vmem:[%s2314] ss:$9 sm:$0xff] %v1946
      %2559 = vst [vmem:[%s2317] ss:$9 sm:$0xff] %v1954
      %2561 = vst [vmem:[%s2320] ss:$9 sm:$0xff] %v1962
      %2563 = vst [vmem:[%s2323] ss:$9 sm:$0xff] %v1970
      %2565 = vst [vmem:[%s2326] ss:$9 sm:$0xff] %v1978
      %v2566 = vld [vmem:[#allocation1] sm:$0xff]
      %2568 = vst [vmem:[#allocation1] ss:$9 sm:$0xff] %v1985
      %2570 = vst [vmem:[%s2308] ss:$9 sm:$0xff] %v1993
      %2572 = vst [vmem:[%s2311] ss:$9 sm:$0xff] %v2001
      %2574 = vst [vmem:[%s2314] ss:$9 sm:$0xff] %v2009
      %2576 = vst [vmem:[%s2317] ss:$9 sm:$0xff] %v2016
      %2578 = vst [vmem:[%s2320] ss:$9 sm:$0xff] %v2024
      %2580 = vst [vmem:[%s2323] ss:$9 sm:$0xff] %v2032
      %2582 = vst [vmem:[%s2326] ss:$9 sm:$0xff] %v2040
      %v2583 = vld [vmem:[#allocation1] sm:$0xff]
      %2585 = vst [vmem:[#allocation1] ss:$9 sm:$0xff] %v2048
      %2587 = vst [vmem:[%s2308] ss:$9 sm:$0xff] %v2055
      %2589 = vst [vmem:[%s2311] ss:$9 sm:$0xff] %v2063
      %2591 = vst [vmem:[%s2314] ss:$9 sm:$0xff] %v2071
      %2593 = vst [vmem:[%s2317] ss:$9 sm:$0xff] %v2079
      %2595 = vst [vmem:[%s2320] ss:$9 sm:$0xff] %v2086
      %2597 = vst [vmem:[%s2323] ss:$9 sm:$0xff] %v2094
      %2599 = vst [vmem:[%s2326] ss:$9 sm:$0xff] %v2102
      %v2600 = vld [vmem:[#allocation1] sm:$0xff]
      %2602 = vst [vmem:[#allocation1] ss:$9 sm:$0xff] %v2110
      %2604 = vst [vmem:[%s2308] ss:$9 sm:$0xff] %v2118
      %2606 = vst [vmem:[%s2311] ss:$9 sm:$0xff] %v2125
      %2608 = vst [vmem:[%s2314] ss:$9 sm:$0xff] %v2133
      %2610 = vst [vmem:[%s2317] ss:$9 sm:$0xff] %v2141
      %2612 = vst [vmem:[%s2320] ss:$9 sm:$0xff] %v2149
      %2614 = vst [vmem:[%s2323] ss:$9 sm:$0xff] %v2156
      %2616 = vst [vmem:[%s2326] ss:$9 sm:$0xff] %v2164
      %v2617 = vld [vmem:[#allocation1] sm:$0xff]
      %2619 = vst [vmem:[#allocation1] ss:$9 sm:$0xff] %v2172
      %2621 = vst [vmem:[%s2308] ss:$9 sm:$0xff] %v2180
      %2623 = vst [vmem:[%s2311] ss:$9 sm:$0xff] %v2188
      %2625 = vst [vmem:[%s2314] ss:$9 sm:$0xff] %v2195
      %2627 = vst [vmem:[%s2317] ss:$9 sm:$0xff] %v2203
      %2629 = vst [vmem:[%s2320] ss:$9 sm:$0xff] %v2211
      %2631 = vst [vmem:[%s2323] ss:$9 sm:$0xff] %v2219
      %2633 = vst [vmem:[%s2326] ss:$9 sm:$0xff] %v2226
      %v2634 = vld [vmem:[#allocation1] sm:$0xff]
      %2636 = vst [vmem:[#allocation1] ss:$9 sm:$0xff] %v2234
      %2638 = vst [vmem:[%s2308] ss:$9 sm:$0xff] %v2242
      %2640 = vst [vmem:[%s2311] ss:$9 sm:$0xff] %v2250
      %2642 = vst [vmem:[%s2314] ss:$9 sm:$0xff] %v2258
      %2644 = vst [vmem:[%s2317] ss:$9 sm:$0xff] %v2265
      %2646 = vst [vmem:[%s2320] ss:$9 sm:$0xff] %v2273
      %2648 = vst [vmem:[%s2323] ss:$9 sm:$0xff] %v2281
      %2650 = vst [vmem:[%s2326] ss:$9 sm:$0xff] %v2289
      %v2651 = vld [vmem:[#allocation1] sm:$0xff]
      %2653 = vst [vmem:[#allocation1] ss:$9 sm:$0xff] %v2296
      %2655 = vst [vmem:[%s2308] ss:$9 sm:$0xff] %v2304
      %v2656 = vld [vmem:[#allocation1] sm:$0xff]
      %vm2657 = vcmask 31744
      %v2658 = vsel %vm2657, %v2328, 0
      %v2660 = vsel %vm2657, %v2345, 0
      %v2662 = vsel %vm2657, %v2362, 0
      %v2664 = vsel %vm2657, %v2379, 0
      %v2666 = vsel %vm2657, %v2396, 0
      %v2668 = vsel %vm2657, %v2413, 0
      %v2670 = vsel %vm2657, %v2430, 0
      %v2672 = vsel %vm2657, %v2447, 0
      %v2674 = vsel %vm2657, %v2464, 0
      %v2676 = vsel %vm2657, %v2481, 0
      %v2678 = vsel %vm2657, %v2498, 0
      %v2680 = vsel %vm2657, %v2515, 0
      %v2682 = vsel %vm2657, %v2532, 0
      %v2684 = vsel %vm2657, %v2549, 0
      %v2686 = vsel %vm2657, %v2566, 0
      %v2688 = vsel %vm2657, %v2583, 0
      %v2690 = vsel %vm2657, %v2600, 0
      %v2692 = vsel %vm2657, %v2617, 0
      %v2694 = vsel %vm2657, %v2634, 0
      %v2696 = vsel %vm2657, %v2651, 0
      %v2698 = vsel %vm2657, %v2656, 0
      %vm2700 = vcmask 1041408
      %v2702 = vsel %vm2700, %v370, 0
      %2704 = vmatpush.bf16.msra.mxu0 0
      %2705 = vmatpush.bf16.msra.mxu0 0
      %2706 = vmatpush.bf16.msra.mxu0 0
      %2707 = vmatpush.bf16.msra.mxu0 0
      %2708 = vmatpush.bf16.msra.mxu0 0
      %2709 = vmatpush.bf16.msra.mxu0 0
      %2710 = vmatpush.bf16.msra.mxu0 0
      %2711 = vmatpush.bf16.msra.mxu0 %v2702
      %2712 = vmatmul.bf16.gmra.mxu0 %v2658
      %v2713 = vpop.f32.mrf.mxu0
      %v2714 = vadd.f32 0.0, %v2713
      %v2715 = vpop.f32.mrf.mxu0
      %v2716 = vadd.f32 0.0, %v2715
      %2717 = vmatmul.bf16.gmra.mxu0 %v2660
      %v2718 = vpop.f32.mrf.mxu0
      %v2719 = vadd.f32 0.0, %v2718
      %v2720 = vpop.f32.mrf.mxu0
      %v2721 = vadd.f32 0.0, %v2720
      %2722 = vmatmul.bf16.gmra.mxu0 %v2662
      %v2723 = vpop.f32.mrf.mxu0
      %v2724 = vadd.f32 0.0, %v2723
      %v2725 = vpop.f32.mrf.mxu0
      %v2726 = vadd.f32 0.0, %v2725
      %2727 = vmatmul.bf16.gmra.mxu0 %v2664
      %v2728 = vpop.f32.mrf.mxu0
      %v2729 = vadd.f32 0.0, %v2728
      %v2730 = vpop.f32.mrf.mxu0
      %v2731 = vadd.f32 0.0, %v2730
      %2732 = vmatmul.bf16.gmra.mxu0 %v2666
      %v2733 = vpop.f32.mrf.mxu0
      %v2734 = vadd.f32 0.0, %v2733
      %v2735 = vpop.f32.mrf.mxu0
      %v2736 = vadd.f32 0.0, %v2735
      %2737 = vmatmul.bf16.gmra.mxu0 %v2668
      %v2738 = vpop.f32.mrf.mxu0
      %v2739 = vadd.f32 0.0, %v2738
      %v2740 = vpop.f32.mrf.mxu0
      %v2741 = vadd.f32 0.0, %v2740
      %2742 = vmatmul.bf16.gmra.mxu0 %v2670
      %v2743 = vpop.f32.mrf.mxu0
      %v2744 = vadd.f32 0.0, %v2743
      %v2745 = vpop.f32.mrf.mxu0
      %v2746 = vadd.f32 0.0, %v2745
      %2747 = vmatmul.bf16.gmra.mxu0 %v2672
      %v2748 = vpop.f32.mrf.mxu0
      %v2749 = vadd.f32 0.0, %v2748
      %v2750 = vpop.f32.mrf.mxu0
      %v2751 = vadd.f32 0.0, %v2750
      %2752 = vmatmul.bf16.gmra.mxu0 %v2674
      %v2753 = vpop.f32.mrf.mxu0
      %v2754 = vadd.f32 0.0, %v2753
      %v2755 = vpop.f32.mrf.mxu0
      %v2756 = vadd.f32 0.0, %v2755
      %2757 = vmatmul.bf16.gmra.mxu0 %v2676
      %v2758 = vpop.f32.mrf.mxu0
      %v2759 = vadd.f32 0.0, %v2758
      %v2760 = vpop.f32.mrf.mxu0
      %v2761 = vadd.f32 0.0, %v2760
      %2762 = vmatmul.bf16.gmra.mxu0 %v2678
      %v2763 = vpop.f32.mrf.mxu0
      %v2764 = vadd.f32 0.0, %v2763
      %v2765 = vpop.f32.mrf.mxu0
      %v2766 = vadd.f32 0.0, %v2765
      %2767 = vmatmul.bf16.gmra.mxu0 %v2680
      %v2768 = vpop.f32.mrf.mxu0
      %v2769 = vadd.f32 0.0, %v2768
      %v2770 = vpop.f32.mrf.mxu0
      %v2771 = vadd.f32 0.0, %v2770
      %2772 = vmatmul.bf16.gmra.mxu0 %v2682
      %v2773 = vpop.f32.mrf.mxu0
      %v2774 = vadd.f32 0.0, %v2773
      %v2775 = vpop.f32.mrf.mxu0
      %v2776 = vadd.f32 0.0, %v2775
      %2777 = vmatmul.bf16.gmra.mxu0 %v2684
      %v2778 = vpop.f32.mrf.mxu0
      %v2779 = vadd.f32 0.0, %v2778
      %v2780 = vpop.f32.mrf.mxu0
      %v2781 = vadd.f32 0.0, %v2780
      %2782 = vmatmul.bf16.gmra.mxu0 %v2686
      %v2783 = vpop.f32.mrf.mxu0
      %v2784 = vadd.f32 0.0, %v2783
      %v2785 = vpop.f32.mrf.mxu0
      %v2786 = vadd.f32 0.0, %v2785
      %2787 = vmatmul.bf16.gmra.mxu0 %v2688
      %v2788 = vpop.f32.mrf.mxu0
      %v2789 = vadd.f32 0.0, %v2788
      %v2790 = vpop.f32.mrf.mxu0
      %v2791 = vadd.f32 0.0, %v2790
      %2792 = vmatmul.bf16.gmra.mxu0 %v2690
      %v2793 = vpop.f32.mrf.mxu0
      %v2794 = vadd.f32 0.0, %v2793
      %v2795 = vpop.f32.mrf.mxu0
      %v2796 = vadd.f32 0.0, %v2795
      %2797 = vmatmul.bf16.gmra.mxu0 %v2692
      %v2798 = vpop.f32.mrf.mxu0
      %v2799 = vadd.f32 0.0, %v2798
      %v2800 = vpop.f32.mrf.mxu0
      %v2801 = vadd.f32 0.0, %v2800
      %2802 = vmatmul.bf16.gmra.mxu0 %v2694
      %v2803 = vpop.f32.mrf.mxu0
      %v2804 = vadd.f32 0.0, %v2803
      %v2805 = vpop.f32.mrf.mxu0
      %v2806 = vadd.f32 0.0, %v2805
      %2807 = vmatmul.bf16.gmra.mxu0 %v2696
      %v2808 = vpop.f32.mrf.mxu0
      %v2809 = vadd.f32 0.0, %v2808
      %v2810 = vpop.f32.mrf.mxu0
      %v2811 = vadd.f32 0.0, %v2810
      %2812 = vmatmul.bf16.gmra.mxu0 %v2698
      %v2813 = vpop.f32.mrf.mxu0
      %v2814 = vadd.f32 0.0, %v2813
      %v2815 = vpop.f32.mrf.mxu0
      %2816 = vdwg.mxu0
      %2817 = vst [vmem:[#allocation1] ss:$9 sm:$0xff] %v489
      %s2818 = scalar_lea.vmem [#allocation1], 1
      %2819 = vst [vmem:[%s2818] ss:$9 sm:$0xff] %v493
      %s2820 = scalar_lea.vmem [#allocation1], 2
      %2821 = vst [vmem:[%s2820] ss:$9 sm:$0xff] %v497
      %s2822 = scalar_lea.vmem [#allocation1], 3
      %2823 = vst [vmem:[%s2822] ss:$9 sm:$0xff] %v501
      %s2824 = scalar_lea.vmem [#allocation1], 4
      %2825 = vst [vmem:[%s2824] ss:$9 sm:$0xff] %v504
      %s2826 = scalar_lea.vmem [#allocation1], 5
      %2827 = vst [vmem:[%s2826] ss:$9 sm:$0xff] %v507
      %s2828 = scalar_lea.vmem [#allocation1], 6
      %2829 = vst [vmem:[%s2828] ss:$9 sm:$0xff] %v510
      %s2830 = scalar_lea.vmem [#allocation1], 7
      %2831 = vst [vmem:[%s2830] ss:$9 sm:$0xff] %v513
      %v2832 = vld [vmem:[#allocation1] sm:$0xff]
      %2833 = vst [vmem:[#allocation1] ss:$9 sm:$0xff] %v516
      %2834 = vst [vmem:[%s2818] ss:$9 sm:$0xff] %v519
      %2835 = vst [vmem:[%s2820] ss:$9 sm:$0xff] %v522
      %2836 = vst [vmem:[%s2822] ss:$9 sm:$0xff] %v525
      %2837 = vst [vmem:[%s2824] ss:$9 sm:$0xff] %v528
      %2838 = vst [vmem:[%s2826] ss:$9 sm:$0xff] %v531
      %2839 = vst [vmem:[%s2828] ss:$9 sm:$0xff] %v534
      %2840 = vst [vmem:[%s2830] ss:$9 sm:$0xff] %v537
      %v2841 = vld [vmem:[#allocation1] sm:$0xff]
      %2842 = vst [vmem:[#allocation1] ss:$9 sm:$0xff] %v540
      %2843 = vst [vmem:[%s2818] ss:$9 sm:$0xff] %v543
      %2844 = vst [vmem:[%s2820] ss:$9 sm:$0xff] %v546
      %2845 = vst [vmem:[%s2822] ss:$9 sm:$0xff] %v549
      %2846 = vst [vmem:[%s2824] ss:$9 sm:$0xff] %v552
      %2847 = vst [vmem:[%s2826] ss:$9 sm:$0xff] %v555
      %2848 = vst [vmem:[%s2828] ss:$9 sm:$0xff] %v558
      %2849 = vst [vmem:[%s2830] ss:$9 sm:$0xff] %v561
      %v2850 = vld [vmem:[#allocation1] sm:$0xff]
      %2851 = vst [vmem:[#allocation1] ss:$9 sm:$0xff] %v564
      %2852 = vst [vmem:[%s2818] ss:$9 sm:$0xff] %v567
      %2853 = vst [vmem:[%s2820] ss:$9 sm:$0xff] %v570
      %2854 = vst [vmem:[%s2822] ss:$9 sm:$0xff] %v573
      %2855 = vst [vmem:[%s2824] ss:$9 sm:$0xff] %v576
      %2856 = vst [vmem:[%s2826] ss:$9 sm:$0xff] %v579
      %2857 = vst [vmem:[%s2828] ss:$9 sm:$0xff] %v582
      %2858 = vst [vmem:[%s2830] ss:$9 sm:$0xff] %v585
      %v2859 = vld [vmem:[#allocation1] sm:$0xff]
      %2860 = vst [vmem:[#allocation1] ss:$9 sm:$0xff] %v588
      %2861 = vst [vmem:[%s2818] ss:$9 sm:$0xff] %v591
      %2862 = vst [vmem:[%s2820] ss:$9 sm:$0xff] %v594
      %2863 = vst [vmem:[%s2822] ss:$9 sm:$0xff] %v597
      %2864 = vst [vmem:[%s2824] ss:$9 sm:$0xff] %v600
      %2865 = vst [vmem:[%s2826] ss:$9 sm:$0xff] %v603
      %2866 = vst [vmem:[%s2828] ss:$9 sm:$0xff] %v606
      %2867 = vst [vmem:[%s2830] ss:$9 sm:$0xff] %v609
      %v2868 = vld [vmem:[#allocation1] sm:$0xff]
      %2869 = vst [vmem:[#allocation1] ss:$9 sm:$0xff] %v612
      %2870 = vst [vmem:[%s2818] ss:$9 sm:$0xff] %v615
      %2871 = vst [vmem:[%s2820] ss:$9 sm:$0xff] %v618
      %2872 = vst [vmem:[%s2822] ss:$9 sm:$0xff] %v621
      %2873 = vst [vmem:[%s2824] ss:$9 sm:$0xff] %v624
      %2874 = vst [vmem:[%s2826] ss:$9 sm:$0xff] %v627
      %2875 = vst [vmem:[%s2828] ss:$9 sm:$0xff] %v630
      %2876 = vst [vmem:[%s2830] ss:$9 sm:$0xff] %v633
      %v2877 = vld [vmem:[#allocation1] sm:$0xff]
      %2878 = vst [vmem:[#allocation1] ss:$9 sm:$0xff] %v636
      %2879 = vst [vmem:[%s2818] ss:$9 sm:$0xff] %v639
      %2880 = vst [vmem:[%s2820] ss:$9 sm:$0xff] %v642
      %2881 = vst [vmem:[%s2822] ss:$9 sm:$0xff] %v645
      %2882 = vst [vmem:[%s2824] ss:$9 sm:$0xff] %v648
      %2883 = vst [vmem:[%s2826] ss:$9 sm:$0xff] %v651
      %2884 = vst [vmem:[%s2828] ss:$9 sm:$0xff] %v654
      %2885 = vst [vmem:[%s2830] ss:$9 sm:$0xff] %v657
      %v2886 = vld [vmem:[#allocation1] sm:$0xff]
      %2887 = vst [vmem:[#allocation1] ss:$9 sm:$0xff] %v660
      %2888 = vst [vmem:[%s2818] ss:$9 sm:$0xff] %v663
      %2889 = vst [vmem:[%s2820] ss:$9 sm:$0xff] %v666
      %2890 = vst [vmem:[%s2822] ss:$9 sm:$0xff] %v669
      %2891 = vst [vmem:[%s2824] ss:$9 sm:$0xff] %v672
      %2892 = vst [vmem:[%s2826] ss:$9 sm:$0xff] %v675
      %2893 = vst [vmem:[%s2828] ss:$9 sm:$0xff] %v678
      %2894 = vst [vmem:[%s2830] ss:$9 sm:$0xff] %v681
      %v2895 = vld [vmem:[#allocation1] sm:$0xff]
      %2896 = vst [vmem:[#allocation1] ss:$9 sm:$0xff] %v684
      %2897 = vst [vmem:[%s2818] ss:$9 sm:$0xff] %v687
      %2898 = vst [vmem:[%s2820] ss:$9 sm:$0xff] %v690
      %2899 = vst [vmem:[%s2822] ss:$9 sm:$0xff] %v693
      %2900 = vst [vmem:[%s2824] ss:$9 sm:$0xff] %v696
      %2901 = vst [vmem:[%s2826] ss:$9 sm:$0xff] %v699
      %2902 = vst [vmem:[%s2828] ss:$9 sm:$0xff] %v702
      %2903 = vst [vmem:[%s2830] ss:$9 sm:$0xff] %v705
      %v2904 = vld [vmem:[#allocation1] sm:$0xff]
      %2905 = vst [vmem:[#allocation1] ss:$9 sm:$0xff] %v708
      %2906 = vst [vmem:[%s2818] ss:$9 sm:$0xff] %v711
      %2907 = vst [vmem:[%s2820] ss:$9 sm:$0xff] %v714
      %2908 = vst [vmem:[%s2822] ss:$9 sm:$0xff] %v717
      %2909 = vst [vmem:[%s2824] ss:$9 sm:$0xff] %v720
      %2910 = vst [vmem:[%s2826] ss:$9 sm:$0xff] %v723
      %2911 = vst [vmem:[%s2828] ss:$9 sm:$0xff] %v726
      %2912 = vst [vmem:[%s2830] ss:$9 sm:$0xff] %v729
      %v2913 = vld [vmem:[#allocation1] sm:$0xff]
      %2914 = vst [vmem:[#allocation1] ss:$9 sm:$0xff] %v732
      %2915 = vst [vmem:[%s2818] ss:$9 sm:$0xff] %v735
      %2916 = vst [vmem:[%s2820] ss:$9 sm:$0xff] %v738
      %2917 = vst [vmem:[%s2822] ss:$9 sm:$0xff] %v741
      %2918 = vst [vmem:[%s2824] ss:$9 sm:$0xff] %v744
      %2919 = vst [vmem:[%s2826] ss:$9 sm:$0xff] %v747
      %2920 = vst [vmem:[%s2828] ss:$9 sm:$0xff] %v750
      %2921 = vst [vmem:[%s2830] ss:$9 sm:$0xff] %v753
      %v2922 = vld [vmem:[#allocation1] sm:$0xff]
      %2923 = vst [vmem:[#allocation1] ss:$9 sm:$0xff] %v756
      %2924 = vst [vmem:[%s2818] ss:$9 sm:$0xff] %v759
      %2925 = vst [vmem:[%s2820] ss:$9 sm:$0xff] %v762
      %2926 = vst [vmem:[%s2822] ss:$9 sm:$0xff] %v765
      %2927 = vst [vmem:[%s2824] ss:$9 sm:$0xff] %v768
      %2928 = vst [vmem:[%s2826] ss:$9 sm:$0xff] %v771
      %2929 = vst [vmem:[%s2828] ss:$9 sm:$0xff] %v774
      %2930 = vst [vmem:[%s2830] ss:$9 sm:$0xff] %v777
      %v2931 = vld [vmem:[#allocation1] sm:$0xff]
      %2932 = vst [vmem:[#allocation1] ss:$9 sm:$0xff] %v780
      %2933 = vst [vmem:[%s2818] ss:$9 sm:$0xff] %v783
      %2934 = vst [vmem:[%s2820] ss:$9 sm:$0xff] %v786
      %2935 = vst [vmem:[%s2822] ss:$9 sm:$0xff] %v789
      %2936 = vst [vmem:[%s2824] ss:$9 sm:$0xff] %v792
      %2937 = vst [vmem:[%s2826] ss:$9 sm:$0xff] %v795
      %2938 = vst [vmem:[%s2828] ss:$9 sm:$0xff] %v798
      %2939 = vst [vmem:[%s2830] ss:$9 sm:$0xff] %v801
      %v2940 = vld [vmem:[#allocation1] sm:$0xff]
      %2941 = vst [vmem:[#allocation1] ss:$9 sm:$0xff] %v804
      %2942 = vst [vmem:[%s2818] ss:$9 sm:$0xff] %v807
      %2943 = vst [vmem:[%s2820] ss:$9 sm:$0xff] %v810
      %2944 = vst [vmem:[%s2822] ss:$9 sm:$0xff] %v813
      %2945 = vst [vmem:[%s2824] ss:$9 sm:$0xff] %v816
      %2946 = vst [vmem:[%s2826] ss:$9 sm:$0xff] %v819
      %2947 = vst [vmem:[%s2828] ss:$9 sm:$0xff] %v822
      %2948 = vst [vmem:[%s2830] ss:$9 sm:$0xff] %v825
      %v2949 = vld [vmem:[#allocation1] sm:$0xff]
      %2950 = vst [vmem:[#allocation1] ss:$9 sm:$0xff] %v828
      %2951 = vst [vmem:[%s2818] ss:$9 sm:$0xff] %v831
      %2952 = vst [vmem:[%s2820] ss:$9 sm:$0xff] %v834
      %2953 = vst [vmem:[%s2822] ss:$9 sm:$0xff] %v837
      %2954 = vst [vmem:[%s2824] ss:$9 sm:$0xff] %v840
      %2955 = vst [vmem:[%s2826] ss:$9 sm:$0xff] %v843
      %2956 = vst [vmem:[%s2828] ss:$9 sm:$0xff] %v846
      %2957 = vst [vmem:[%s2830] ss:$9 sm:$0xff] %v849
      %v2958 = vld [vmem:[#allocation1] sm:$0xff]
      %2959 = vst [vmem:[#allocation1] ss:$9 sm:$0xff] %v852
      %2960 = vst [vmem:[%s2818] ss:$9 sm:$0xff] %v855
      %2961 = vst [vmem:[%s2820] ss:$9 sm:$0xff] %v858
      %2962 = vst [vmem:[%s2822] ss:$9 sm:$0xff] %v861
      %2963 = vst [vmem:[%s2824] ss:$9 sm:$0xff] %v864
      %2964 = vst [vmem:[%s2826] ss:$9 sm:$0xff] %v867
      %2965 = vst [vmem:[%s2828] ss:$9 sm:$0xff] %v870
      %2966 = vst [vmem:[%s2830] ss:$9 sm:$0xff] %v873
      %v2967 = vld [vmem:[#allocation1] sm:$0xff]
      %2968 = vst [vmem:[#allocation1] ss:$9 sm:$0xff] %v876
      %2969 = vst [vmem:[%s2818] ss:$9 sm:$0xff] %v879
      %2970 = vst [vmem:[%s2820] ss:$9 sm:$0xff] %v882
      %2971 = vst [vmem:[%s2822] ss:$9 sm:$0xff] %v885
      %2972 = vst [vmem:[%s2824] ss:$9 sm:$0xff] %v888
      %2973 = vst [vmem:[%s2826] ss:$9 sm:$0xff] %v891
      %2974 = vst [vmem:[%s2828] ss:$9 sm:$0xff] %v894
      %2975 = vst [vmem:[%s2830] ss:$9 sm:$0xff] %v897
      %v2976 = vld [vmem:[#allocation1] sm:$0xff]
      %2977 = vst [vmem:[#allocation1] ss:$9 sm:$0xff] %v900
      %2978 = vst [vmem:[%s2818] ss:$9 sm:$0xff] %v903
      %2979 = vst [vmem:[%s2820] ss:$9 sm:$0xff] %v906
      %2980 = vst [vmem:[%s2822] ss:$9 sm:$0xff] %v909
      %2981 = vst [vmem:[%s2824] ss:$9 sm:$0xff] %v912
      %2982 = vst [vmem:[%s2826] ss:$9 sm:$0xff] %v915
      %2983 = vst [vmem:[%s2828] ss:$9 sm:$0xff] %v918
      %2984 = vst [vmem:[%s2830] ss:$9 sm:$0xff] %v921
      %v2985 = vld [vmem:[#allocation1] sm:$0xff]
      %2986 = vst [vmem:[#allocation1] ss:$9 sm:$0xff] %v924
      %2987 = vst [vmem:[%s2818] ss:$9 sm:$0xff] %v927
      %2988 = vst [vmem:[%s2820] ss:$9 sm:$0xff] %v930
      %2989 = vst [vmem:[%s2822] ss:$9 sm:$0xff] %v933
      %2990 = vst [vmem:[%s2824] ss:$9 sm:$0xff] %v936
      %2991 = vst [vmem:[%s2826] ss:$9 sm:$0xff] %v939
      %2992 = vst [vmem:[%s2828] ss:$9 sm:$0xff] %v942
      %2993 = vst [vmem:[%s2830] ss:$9 sm:$0xff] %v945
      %v2994 = vld [vmem:[#allocation1] sm:$0xff]
      %2995 = vst [vmem:[#allocation1] ss:$9 sm:$0xff] %v948
      %2996 = vst [vmem:[%s2818] ss:$9 sm:$0xff] %v951
      %2997 = vst [vmem:[%s2820] ss:$9 sm:$0xff] %v954
      %2998 = vst [vmem:[%s2822] ss:$9 sm:$0xff] %v957
      %2999 = vst [vmem:[%s2824] ss:$9 sm:$0xff] %v960
      %3000 = vst [vmem:[%s2826] ss:$9 sm:$0xff] %v963
      %3001 = vst [vmem:[%s2828] ss:$9 sm:$0xff] %v966
      %3002 = vst [vmem:[%s2830] ss:$9 sm:$0xff] %v969
      %v3003 = vld [vmem:[#allocation1] sm:$0xff]
      %3004 = vst [vmem:[#allocation1] ss:$9 sm:$0xff] %v972
      %3005 = vst [vmem:[%s2818] ss:$9 sm:$0xff] %v975
      %v3006 = vld [vmem:[#allocation1] sm:$0xff]
      %v3007 = vsel %vm2657, %v2832, 0
      %v3009 = vsel %vm2657, %v2841, 0
      %v3011 = vsel %vm2657, %v2850, 0
      %v3013 = vsel %vm2657, %v2859, 0
      %v3015 = vsel %vm2657, %v2868, 0
      %v3017 = vsel %vm2657, %v2877, 0
      %v3019 = vsel %vm2657, %v2886, 0
      %v3021 = vsel %vm2657, %v2895, 0
      %v3023 = vsel %vm2657, %v2904, 0
      %v3025 = vsel %vm2657, %v2913, 0
      %v3027 = vsel %vm2657, %v2922, 0
      %v3029 = vsel %vm2657, %v2931, 0
      %v3031 = vsel %vm2657, %v2940, 0
      %v3033 = vsel %vm2657, %v2949, 0
      %v3035 = vsel %vm2657, %v2958, 0
      %v3037 = vsel %vm2657, %v2967, 0
      %v3039 = vsel %vm2657, %v2976, 0
      %v3041 = vsel %vm2657, %v2985, 0
      %v3043 = vsel %vm2657, %v2994, 0
      %v3045 = vsel %vm2657, %v3003, 0
      %v3047 = vsel %vm2657, %v3006, 0
      %v3050 = vsel %vm2700, %v369, 0
      %3052 = vmatpush.bf16.msra.mxu0 0
      %3053 = vmatpush.bf16.msra.mxu0 0
      %3054 = vmatpush.bf16.msra.mxu0 0
      %3055 = vmatpush.bf16.msra.mxu0 0
      %3056 = vmatpush.bf16.msra.mxu0 0
      %3057 = vmatpush.bf16.msra.mxu0 0
      %3058 = vmatpush.bf16.msra.mxu0 0
      %3059 = vmatpush.bf16.msra.mxu0 %v3050
      %3060 = vmatmul.bf16.gmra.mxu0 %v3007
      %v3061 = vpop.f32.mrf.mxu0
      %v3062 = vadd.f32 %v2714, %v3061
      %v3063 = vpop.f32.mrf.mxu0
      %v3064 = vadd.f32 %v2716, %v3063
      %3065 = vmatmul.bf16.gmra.mxu0 %v3009
      %v3066 = vpop.f32.mrf.mxu0
      %v3067 = vadd.f32 %v2719, %v3066
      %v3068 = vpop.f32.mrf.mxu0
      %v3069 = vadd.f32 %v2721, %v3068
      %3070 = vmatmul.bf16.gmra.mxu0 %v3011
      %v3071 = vpop.f32.mrf.mxu0
      %v3072 = vadd.f32 %v2724, %v3071
      %v3073 = vpop.f32.mrf.mxu0
      %v3074 = vadd.f32 %v2726, %v3073
      %3075 = vmatmul.bf16.gmra.mxu0 %v3013
      %v3076 = vpop.f32.mrf.mxu0
      %v3077 = vadd.f32 %v2729, %v3076
      %v3078 = vpop.f32.mrf.mxu0
      %v3079 = vadd.f32 %v2731, %v3078
      %3080 = vmatmul.bf16.gmra.mxu0 %v3015
      %v3081 = vpop.f32.mrf.mxu0
      %v3082 = vadd.f32 %v2734, %v3081
      %v3083 = vpop.f32.mrf.mxu0
      %v3084 = vadd.f32 %v2736, %v3083
      %3085 = vmatmul.bf16.gmra.mxu0 %v3017
      %v3086 = vpop.f32.mrf.mxu0
      %v3087 = vadd.f32 %v2739, %v3086
      %v3088 = vpop.f32.mrf.mxu0
      %v3089 = vadd.f32 %v2741, %v3088
      %3090 = vmatmul.bf16.gmra.mxu0 %v3019
      %v3091 = vpop.f32.mrf.mxu0
      %v3092 = vadd.f32 %v2744, %v3091
      %v3093 = vpop.f32.mrf.mxu0
      %v3094 = vadd.f32 %v2746, %v3093
      %3095 = vmatmul.bf16.gmra.mxu0 %v3021
      %v3096 = vpop.f32.mrf.mxu0
      %v3097 = vadd.f32 %v2749, %v3096
      %v3098 = vpop.f32.mrf.mxu0
      %v3099 = vadd.f32 %v2751, %v3098
      %3100 = vmatmul.bf16.gmra.mxu0 %v3023
      %v3101 = vpop.f32.mrf.mxu0
      %v3102 = vadd.f32 %v2754, %v3101
      %v3103 = vpop.f32.mrf.mxu0
      %v3104 = vadd.f32 %v2756, %v3103
      %3105 = vmatmul.bf16.gmra.mxu0 %v3025
      %v3106 = vpop.f32.mrf.mxu0
      %v3107 = vadd.f32 %v2759, %v3106
      %v3108 = vpop.f32.mrf.mxu0
      %v3109 = vadd.f32 %v2761, %v3108
      %3110 = vmatmul.bf16.gmra.mxu0 %v3027
      %v3111 = vpop.f32.mrf.mxu0
      %v3112 = vadd.f32 %v2764, %v3111
      %v3113 = vpop.f32.mrf.mxu0
      %v3114 = vadd.f32 %v2766, %v3113
      %3115 = vmatmul.bf16.gmra.mxu0 %v3029
      %v3116 = vpop.f32.mrf.mxu0
      %v3117 = vadd.f32 %v2769, %v3116
      %v3118 = vpop.f32.mrf.mxu0
      %v3119 = vadd.f32 %v2771, %v3118
      %3120 = vmatmul.bf16.gmra.mxu0 %v3031
      %v3121 = vpop.f32.mrf.mxu0
      %v3122 = vadd.f32 %v2774, %v3121
      %v3123 = vpop.f32.mrf.mxu0
      %v3124 = vadd.f32 %v2776, %v3123
      %3125 = vmatmul.bf16.gmra.mxu0 %v3033
      %v3126 = vpop.f32.mrf.mxu0
      %v3127 = vadd.f32 %v2779, %v3126
      %v3128 = vpop.f32.mrf.mxu0
      %v3129 = vadd.f32 %v2781, %v3128
      %3130 = vmatmul.bf16.gmra.mxu0 %v3035
      %v3131 = vpop.f32.mrf.mxu0
      %v3132 = vadd.f32 %v2784, %v3131
      %v3133 = vpop.f32.mrf.mxu0
      %v3134 = vadd.f32 %v2786, %v3133
      %3135 = vmatmul.bf16.gmra.mxu0 %v3037
      %v3136 = vpop.f32.mrf.mxu0
      %v3137 = vadd.f32 %v2789, %v3136
      %v3138 = vpop.f32.mrf.mxu0
      %v3139 = vadd.f32 %v2791, %v3138
      %3140 = vmatmul.bf16.gmra.mxu0 %v3039
      %v3141 = vpop.f32.mrf.mxu0
      %v3142 = vadd.f32 %v2794, %v3141
      %v3143 = vpop.f32.mrf.mxu0
      %v3144 = vadd.f32 %v2796, %v3143
      %3145 = vmatmul.bf16.gmra.mxu0 %v3041
      %v3146 = vpop.f32.mrf.mxu0
      %v3147 = vadd.f32 %v2799, %v3146
      %v3148 = vpop.f32.mrf.mxu0
      %v3149 = vadd.f32 %v2801, %v3148
      %3150 = vmatmul.bf16.gmra.mxu0 %v3043
      %v3151 = vpop.f32.mrf.mxu0
      %v3152 = vadd.f32 %v2804, %v3151
      %v3153 = vpop.f32.mrf.mxu0
      %v3154 = vadd.f32 %v2806, %v3153
      %3155 = vmatmul.bf16.gmra.mxu0 %v3045
      %v3156 = vpop.f32.mrf.mxu0
      %v3157 = vadd.f32 %v2809, %v3156
      %v3158 = vpop.f32.mrf.mxu0
      %v3159 = vadd.f32 %v2811, %v3158
      %3160 = vmatmul.bf16.gmra.mxu0 %v3047
      %v3161 = vpop.f32.mrf.mxu0
      %v3162 = vadd.f32 %v2814, %v3161
      %v3163 = vpop.f32.mrf.mxu0
      %3164 = vdwg.mxu0
      %3165 = vst [vmem:[#allocation1] sm:$0xff] %v309
      %3166 = vst [vmem:[#allocation1 + $0x20] sm:$0xff] %v310
      %s3167 = scalar_lea.vmem [#allocation1], 1
      %v3168 = vld [vmem:[%s3167] ss:$4 sm:$0xff]
      %s3169 = scalar_lea.vmem [#allocation1], 2
      %v3170 = vld [vmem:[%s3169] ss:$4 sm:$0xff]
      %s3171 = scalar_lea.vmem [#allocation1], 3
      %v3172 = vld [vmem:[%s3171] ss:$4 sm:$0xff]
      %s3173 = scalar_lea.vmem [#allocation1], 32
      %v3174 = vld [vmem:[%s3173] ss:$4 sm:$0xff]
      %s3175 = scalar_lea.vmem [#allocation1], 33
      %v3176 = vld [vmem:[%s3175] ss:$4 sm:$0xff]
      %s3177 = scalar_lea.vmem [#allocation1], 34
      %v3178 = vld [vmem:[%s3177] ss:$4 sm:$0xff]
      %s3179 = scalar_lea.vmem [#allocation1], 35
      %v3180 = vld [vmem:[%s3179] ss:$4 sm:$0xff]
      %3181 = vst [vmem:[#allocation1] sm:$0xff] %v311
      %v3182 = vld [vmem:[#allocation1] ss:$4 sm:$0xff]
      %v3183 = vld [vmem:[%s3167] ss:$4 sm:$0xff]
      %3184 = vst [vmem:[#allocation1 + $0x20] sm:$0xff] %v312
      %v3185 = vld [vmem:[%s3175] ss:$4 sm:$0xff]
      %v3186 = vld [vmem:[%s3177] ss:$4 sm:$0xff]
      %v3187 = vld [vmem:[%s3179] ss:$4 sm:$0xff]
      %3188 = vst [vmem:[#allocation1] sm:$0xff] %v313
      %3189 = vst [vmem:[#allocation1 + $0x20] sm:$0xff] %v314
      %v3190 = vld [vmem:[#allocation1] ss:$4 sm:$0xff]
      %v3191 = vld [vmem:[%s3167] ss:$4 sm:$0xff]
      %v3192 = vld [vmem:[%s3169] ss:$4 sm:$0xff]
      %v3193 = vld [vmem:[%s3171] ss:$4 sm:$0xff]
      %v3194 = vld [vmem:[%s3173] ss:$4 sm:$0xff]
      %v3195 = vld [vmem:[%s3175] ss:$4 sm:$0xff]
      %3196 = vst [vmem:[#allocation1] sm:$0xff] %v315
      %3197 = vst [vmem:[#allocation1 + $0x20] sm:$0xff] %v316
      %v3198 = vld [vmem:[%s3167] ss:$4 sm:$0xff]
      %v3199 = vld [vmem:[%s3169] ss:$4 sm:$0xff]
      %v3200 = vld [vmem:[%s3171] ss:$4 sm:$0xff]
      %v3201 = vld [vmem:[%s3173] ss:$4 sm:$0xff]
      %v3202 = vld [vmem:[%s3175] ss:$4 sm:$0xff]
      %v3203 = vld [vmem:[%s3177] ss:$4 sm:$0xff]
      %v3204 = vld [vmem:[%s3179] ss:$4 sm:$0xff]
      %3205 = vst [vmem:[#allocation1] sm:$0xff] %v317
      %v3206 = vld [vmem:[#allocation1] ss:$4 sm:$0xff]
      %v3207 = vld [vmem:[%s3167] ss:$4 sm:$0xff]
      %3208 = vst [vmem:[#allocation1 + $0x20] sm:$0xff] %v318
      %v3209 = vld [vmem:[%s3175] ss:$4 sm:$0xff]
      %v3210 = vld [vmem:[%s3177] ss:$4 sm:$0xff]
      %v3211 = vld [vmem:[%s3179] ss:$4 sm:$0xff]
      %3212 = vst [vmem:[#allocation1] sm:$0xff] %v319
      %3213 = vst [vmem:[#allocation1 + $0x20] sm:$0xff] %v320
      %v3214 = vld [vmem:[#allocation1] ss:$4 sm:$0xff]
      %v3215 = vld [vmem:[%s3167] ss:$4 sm:$0xff]
      %v3216 = vld [vmem:[%s3169] ss:$4 sm:$0xff]
      %v3217 = vld [vmem:[%s3171] ss:$4 sm:$0xff]
      %v3218 = vld [vmem:[%s3173] ss:$4 sm:$0xff]
      %v3219 = vld [vmem:[%s3175] ss:$4 sm:$0xff]
      %3220 = vst [vmem:[#allocation1] sm:$0xff] %v321
      %3221 = vst [vmem:[#allocation1 + $0x20] sm:$0xff] %v322
      %v3222 = vld [vmem:[%s3167] ss:$4 sm:$0xff]
      %v3223 = vld [vmem:[%s3169] ss:$4 sm:$0xff]
      %v3224 = vld [vmem:[%s3171] ss:$4 sm:$0xff]
      %v3225 = vld [vmem:[%s3173] ss:$4 sm:$0xff]
      %v3226 = vld [vmem:[%s3175] ss:$4 sm:$0xff]
      %v3227 = vld [vmem:[%s3177] ss:$4 sm:$0xff]
      %v3228 = vld [vmem:[%s3179] ss:$4 sm:$0xff]
      %3229 = vst [vmem:[#allocation1] sm:$0xff] %v323
      %v3230 = vld [vmem:[#allocation1] ss:$4 sm:$0xff]
      %v3231 = vld [vmem:[%s3167] ss:$4 sm:$0xff]
      %3232 = vst [vmem:[#allocation1 + $0x20] sm:$0xff] %v324
      %v3233 = vld [vmem:[%s3175] ss:$4 sm:$0xff]
      %v3234 = vld [vmem:[%s3177] ss:$4 sm:$0xff]
      %v3235 = vld [vmem:[%s3179] ss:$4 sm:$0xff]
      %3236 = vst [vmem:[#allocation1] sm:$0xff] %v325
      %3237 = vst [vmem:[#allocation1 + $0x20] sm:$0xff] %v326
      %v3238 = vld [vmem:[#allocation1] ss:$4 sm:$0xff]
      %v3239 = vld [vmem:[%s3167] ss:$4 sm:$0xff]
      %v3240 = vld [vmem:[%s3169] ss:$4 sm:$0xff]
      %v3241 = vld [vmem:[%s3171] ss:$4 sm:$0xff]
      %v3242 = vld [vmem:[%s3173] ss:$4 sm:$0xff]
      %v3243 = vld [vmem:[%s3175] ss:$4 sm:$0xff]
      %3244 = vst [vmem:[#allocation1] sm:$0xff] %v327
      %3245 = vst [vmem:[#allocation1 + $0x20] sm:$0xff] %v328
      %v3246 = vld [vmem:[%s3167] ss:$4 sm:$0xff]
      %v3247 = vld [vmem:[%s3169] ss:$4 sm:$0xff]
      %v3248 = vld [vmem:[%s3171] ss:$4 sm:$0xff]
      %v3249 = vld [vmem:[%s3173] ss:$4 sm:$0xff]
      %v3250 = vld [vmem:[%s3175] ss:$4 sm:$0xff]
      %v3251 = vld [vmem:[%s3177] ss:$4 sm:$0xff]
      %v3252 = vld [vmem:[%s3179] ss:$4 sm:$0xff]
      %3253 = vst [vmem:[#allocation1] sm:$0xff] %v329
      %v3254 = vld [vmem:[#allocation1] ss:$4 sm:$0xff]
      %v3255 = vld [vmem:[%s3167] ss:$4 sm:$0xff]
      %3256 = vst [vmem:[#allocation1 + $0x20] sm:$0xff] %v330
      %v3257 = vld [vmem:[%s3175] ss:$4 sm:$0xff]
      %v3258 = vld [vmem:[%s3177] ss:$4 sm:$0xff]
      %v3259 = vld [vmem:[%s3179] ss:$4 sm:$0xff]
      %3260 = vst [vmem:[#allocation1] sm:$0xff] %v331
      %3261 = vst [vmem:[#allocation1 + $0x20] sm:$0xff] %v332
      %v3262 = vld [vmem:[#allocation1] ss:$4 sm:$0xff]
      %v3263 = vld [vmem:[%s3167] ss:$4 sm:$0xff]
      %v3264 = vld [vmem:[%s3169] ss:$4 sm:$0xff]
      %v3265 = vld [vmem:[%s3171] ss:$4 sm:$0xff]
      %v3266 = vld [vmem:[%s3173] ss:$4 sm:$0xff]
      %v3267 = vld [vmem:[%s3175] ss:$4 sm:$0xff]
      %3268 = vst [vmem:[#allocation1] sm:$0xff] %v333
      %3269 = vst [vmem:[#allocation1 + $0x20] sm:$0xff] %v334
      %v3270 = vld [vmem:[%s3167] ss:$4 sm:$0xff]
      %v3271 = vld [vmem:[%s3169] ss:$4 sm:$0xff]
      %v3272 = vld [vmem:[%s3171] ss:$4 sm:$0xff]
      %v3273 = vld [vmem:[%s3173] ss:$4 sm:$0xff]
      %v3274 = vld [vmem:[%s3175] ss:$4 sm:$0xff]
      %v3275 = vld [vmem:[%s3177] ss:$4 sm:$0xff]
      %v3276 = vld [vmem:[%s3179] ss:$4 sm:$0xff]
      %3277 = vst [vmem:[#allocation1] sm:$0xff] %v335
      %v3278 = vld [vmem:[#allocation1] ss:$4 sm:$0xff]
      %v3279 = vld [vmem:[%s3167] ss:$4 sm:$0xff]
      %3280 = vst [vmem:[#allocation1 + $0x20] sm:$0xff] %v336
      %v3281 = vld [vmem:[%s3175] ss:$4 sm:$0xff]
      %v3282 = vld [vmem:[%s3177] ss:$4 sm:$0xff]
      %v3283 = vld [vmem:[%s3179] ss:$4 sm:$0xff]
      %3284 = vst [vmem:[#allocation1] sm:$0xff] %v337
      %3285 = vst [vmem:[#allocation1 + $0x20] sm:$0xff] %v338
      %v3286 = vld [vmem:[#allocation1] ss:$4 sm:$0xff]
      %v3287 = vld [vmem:[%s3167] ss:$4 sm:$0xff]
      %v3288 = vld [vmem:[%s3169] ss:$4 sm:$0xff]
      %v3289 = vld [vmem:[%s3171] ss:$4 sm:$0xff]
      %v3290 = vld [vmem:[%s3173] ss:$4 sm:$0xff]
      %v3291 = vld [vmem:[%s3175] ss:$4 sm:$0xff]
      %3292 = vst [vmem:[#allocation1] sm:$0xff] %v339
      %3293 = vst [vmem:[#allocation1 + $0x20] sm:$0xff] %v340
      %v3294 = vld [vmem:[%s3167] ss:$4 sm:$0xff]
      %v3295 = vld [vmem:[%s3169] ss:$4 sm:$0xff]
      %v3296 = vld [vmem:[%s3171] ss:$4 sm:$0xff]
      %v3297 = vld [vmem:[%s3173] ss:$4 sm:$0xff]
      %v3298 = vld [vmem:[%s3175] ss:$4 sm:$0xff]
      %v3299 = vld [vmem:[%s3177] ss:$4 sm:$0xff]
      %v3300 = vld [vmem:[%s3179] ss:$4 sm:$0xff]
      %3301 = vst [vmem:[#allocation1] sm:$0xff] %v341
      %v3302 = vld [vmem:[#allocation1] ss:$4 sm:$0xff]
      %v3303 = vld [vmem:[%s3167] ss:$4 sm:$0xff]
      %3304 = vst [vmem:[#allocation1 + $0x20] sm:$0xff] %v342
      %v3305 = vld [vmem:[%s3175] ss:$4 sm:$0xff]
      %v3306 = vld [vmem:[%s3177] ss:$4 sm:$0xff]
      %v3307 = vld [vmem:[%s3179] ss:$4 sm:$0xff]
      %3308 = vst [vmem:[#allocation1] sm:$0xff] %v343
      %3309 = vst [vmem:[#allocation1 + $0x20] sm:$0xff] %v344
      %v3310 = vld [vmem:[#allocation1] ss:$4 sm:$0xff]
      %v3311 = vld [vmem:[%s3167] ss:$4 sm:$0xff]
      %v3312 = vld [vmem:[%s3169] ss:$4 sm:$0xff]
      %v3313 = vld [vmem:[%s3171] ss:$4 sm:$0xff]
      %v3314 = vld [vmem:[%s3173] ss:$4 sm:$0xff]
      %v3315 = vld [vmem:[%s3175] ss:$4 sm:$0xff]
      %3316 = vst [vmem:[#allocation1] sm:$0xff] %v345
      %3317 = vst [vmem:[#allocation1 + $0x20] sm:$0xff] %v346
      %v3318 = vld [vmem:[%s3167] ss:$4 sm:$0xff]
      %v3319 = vld [vmem:[%s3169] ss:$4 sm:$0xff]
      %v3320 = vld [vmem:[%s3171] ss:$4 sm:$0xff]
      %v3321 = vld [vmem:[%s3173] ss:$4 sm:$0xff]
      %v3322 = vld [vmem:[%s3175] ss:$4 sm:$0xff]
      %v3323 = vld [vmem:[%s3177] ss:$4 sm:$0xff]
      %v3324 = vld [vmem:[%s3179] ss:$4 sm:$0xff]
      %3325 = vst [vmem:[#allocation1] sm:$0xff] %v347
      %v3326 = vld [vmem:[#allocation1] ss:$4 sm:$0xff]
      %v3327 = vld [vmem:[%s3167] ss:$4 sm:$0xff]
      %3328 = vst [vmem:[#allocation1 + $0x20] sm:$0xff] %v348
      %v3329 = vld [vmem:[%s3175] ss:$4 sm:$0xff]
      %v3330 = vld [vmem:[%s3177] ss:$4 sm:$0xff]
      %v3331 = vld [vmem:[%s3179] ss:$4 sm:$0xff]
      %3332 = vst [vmem:[#allocation1] sm:$0xff] %v349
      %3333 = vst [vmem:[#allocation1 + $0x20] sm:$0xff] %v350
      %v3334 = vld [vmem:[#allocation1] ss:$4 sm:$0xff]
      %v3335 = vld [vmem:[%s3167] ss:$4 sm:$0xff]
      %v3336 = vld [vmem:[%s3169] ss:$4 sm:$0xff]
      %v3337 = vld [vmem:[%s3171] ss:$4 sm:$0xff]
      %v3338 = vld [vmem:[%s3173] ss:$4 sm:$0xff]
      %v3339 = vld [vmem:[%s3175] ss:$4 sm:$0xff]
      %3340 = vst [vmem:[#allocation1] sm:$0xff] %v351
      %3341 = vst [vmem:[#allocation1 + $0x20] sm:$0xff] %v352
      %v3342 = vld [vmem:[%s3167] ss:$4 sm:$0xff]
      %v3343 = vld [vmem:[%s3169] ss:$4 sm:$0xff]
      %v3344 = vld [vmem:[%s3171] ss:$4 sm:$0xff]
      %v3345 = vld [vmem:[%s3173] ss:$4 sm:$0xff]
      %v3346 = vld [vmem:[%s3175] ss:$4 sm:$0xff]
      %v3347 = vld [vmem:[%s3177] ss:$4 sm:$0xff]
      %v3348 = vld [vmem:[%s3179] ss:$4 sm:$0xff]
      %3349 = vst [vmem:[#allocation1] sm:$0xff] %v353
      %v3350 = vld [vmem:[#allocation1] ss:$4 sm:$0xff]
      %v3351 = vld [vmem:[%s3167] ss:$4 sm:$0xff]
      %3352 = vst [vmem:[#allocation1 + $0x20] sm:$0xff] %v354
      %v3353 = vld [vmem:[%s3175] ss:$4 sm:$0xff]
      %v3354 = vld [vmem:[%s3177] ss:$4 sm:$0xff]
      %v3355 = vld [vmem:[%s3179] ss:$4 sm:$0xff]
      %3356 = vst [vmem:[#allocation1] sm:$0xff] %v355
      %3357 = vst [vmem:[#allocation1 + $0x20] sm:$0xff] %v356
      %v3358 = vld [vmem:[#allocation1] ss:$4 sm:$0xff]
      %v3359 = vld [vmem:[%s3167] ss:$4 sm:$0xff]
      %v3360 = vld [vmem:[%s3169] ss:$4 sm:$0xff]
      %v3361 = vld [vmem:[%s3171] ss:$4 sm:$0xff]
      %v3362 = vld [vmem:[%s3173] ss:$4 sm:$0xff]
      %v3363 = vld [vmem:[%s3175] ss:$4 sm:$0xff]
      %3364 = vst [vmem:[#allocation1] sm:$0xff] %v357
      %3365 = vst [vmem:[#allocation1 + $0x20] sm:$0xff] %v358
      %v3366 = vld [vmem:[%s3167] ss:$4 sm:$0xff]
      %v3367 = vld [vmem:[%s3169] ss:$4 sm:$0xff]
      %v3368 = vld [vmem:[%s3171] ss:$4 sm:$0xff]
      %v3369 = vld [vmem:[%s3173] ss:$4 sm:$0xff]
      %v3370 = vld [vmem:[%s3175] ss:$4 sm:$0xff]
      %v3371 = vld [vmem:[%s3177] ss:$4 sm:$0xff]
      %v3372 = vld [vmem:[%s3179] ss:$4 sm:$0xff]
      %3373 = vst [vmem:[#allocation1] sm:$0xff] %v359
      %v3374 = vld [vmem:[#allocation1] ss:$4 sm:$0xff]
      %v3375 = vld [vmem:[%s3167] ss:$4 sm:$0xff]
      %3376 = vst [vmem:[#allocation1 + $0x20] sm:$0xff] %v360
      %v3377 = vld [vmem:[%s3175] ss:$4 sm:$0xff]
      %v3378 = vld [vmem:[%s3177] ss:$4 sm:$0xff]
      %v3379 = vld [vmem:[%s3179] ss:$4 sm:$0xff]
      %3380 = vst [vmem:[#allocation1] sm:$0xff] %v361
      %3381 = vst [vmem:[#allocation1 + $0x20] sm:$0xff] %v362
      %v3382 = vld [vmem:[#allocation1] ss:$4 sm:$0xff]
      %v3383 = vld [vmem:[%s3167] ss:$4 sm:$0xff]
      %v3384 = vld [vmem:[%s3169] ss:$4 sm:$0xff]
      %v3385 = vld [vmem:[%s3171] ss:$4 sm:$0xff]
      %v3386 = vld [vmem:[%s3173] ss:$4 sm:$0xff]
      %v3387 = vld [vmem:[%s3175] ss:$4 sm:$0xff]
      %3388 = vst [vmem:[#allocation1] ss:$9 sm:$0xff] %v3168
      %s3389 = scalar_lea.vmem [#allocation1], 1
      %3390 = vst [vmem:[%s3389] ss:$9 sm:$0xff] %v3170
      %s3391 = scalar_lea.vmem [#allocation1], 2
      %3392 = vst [vmem:[%s3391] ss:$9 sm:$0xff] %v3172
      %s3393 = scalar_lea.vmem [#allocation1], 3
      %3394 = vst [vmem:[%s3393] ss:$9 sm:$0xff] %v3174
      %s3395 = scalar_lea.vmem [#allocation1], 4
      %3396 = vst [vmem:[%s3395] ss:$9 sm:$0xff] %v3176
      %s3397 = scalar_lea.vmem [#allocation1], 5
      %3398 = vst [vmem:[%s3397] ss:$9 sm:$0xff] %v3178
      %s3399 = scalar_lea.vmem [#allocation1], 6
      %3400 = vst [vmem:[%s3399] ss:$9 sm:$0xff] %v3180
      %s3401 = scalar_lea.vmem [#allocation1], 7
      %3402 = vst [vmem:[%s3401] ss:$9 sm:$0xff] %v3182
      %v3403 = vld [vmem:[#allocation1] sm:$0xff]
      %3404 = vst [vmem:[#allocation1] ss:$9 sm:$0xff] %v3183
      %3405 = vst [vmem:[%s3389] ss:$9 sm:$0xff] %v3185
      %3406 = vst [vmem:[%s3391] ss:$9 sm:$0xff] %v3186
      %3407 = vst [vmem:[%s3393] ss:$9 sm:$0xff] %v3187
      %3408 = vst [vmem:[%s3395] ss:$9 sm:$0xff] %v3190
      %3409 = vst [vmem:[%s3397] ss:$9 sm:$0xff] %v3191
      %3410 = vst [vmem:[%s3399] ss:$9 sm:$0xff] %v3192
      %3411 = vst [vmem:[%s3401] ss:$9 sm:$0xff] %v3193
      %v3412 = vld [vmem:[#allocation1] sm:$0xff]
      %3413 = vst [vmem:[#allocation1] ss:$9 sm:$0xff] %v3194
      %3414 = vst [vmem:[%s3389] ss:$9 sm:$0xff] %v3195
      %3415 = vst [vmem:[%s3391] ss:$9 sm:$0xff] %v3198
      %3416 = vst [vmem:[%s3393] ss:$9 sm:$0xff] %v3199
      %3417 = vst [vmem:[%s3395] ss:$9 sm:$0xff] %v3200
      %3418 = vst [vmem:[%s3397] ss:$9 sm:$0xff] %v3201
      %3419 = vst [vmem:[%s3399] ss:$9 sm:$0xff] %v3202
      %3420 = vst [vmem:[%s3401] ss:$9 sm:$0xff] %v3203
      %v3421 = vld [vmem:[#allocation1] sm:$0xff]
      %3422 = vst [vmem:[#allocation1] ss:$9 sm:$0xff] %v3204
      %3423 = vst [vmem:[%s3389] ss:$9 sm:$0xff] %v3206
      %3424 = vst [vmem:[%s3391] ss:$9 sm:$0xff] %v3207
      %3425 = vst [vmem:[%s3393] ss:$9 sm:$0xff] %v3209
      %3426 = vst [vmem:[%s3395] ss:$9 sm:$0xff] %v3210
      %3427 = vst [vmem:[%s3397] ss:$9 sm:$0xff] %v3211
      %3428 = vst [vmem:[%s3399] ss:$9 sm:$0xff] %v3214
      %3429 = vst [vmem:[%s3401] ss:$9 sm:$0xff] %v3215
      %v3430 = vld [vmem:[#allocation1] sm:$0xff]
      %3431 = vst [vmem:[#allocation1] ss:$9 sm:$0xff] %v3216
      %3432 = vst [vmem:[%s3389] ss:$9 sm:$0xff] %v3217
      %3433 = vst [vmem:[%s3391] ss:$9 sm:$0xff] %v3218
      %3434 = vst [vmem:[%s3393] ss:$9 sm:$0xff] %v3219
      %3435 = vst [vmem:[%s3395] ss:$9 sm:$0xff] %v3222
      %3436 = vst [vmem:[%s3397] ss:$9 sm:$0xff] %v3223
      %3437 = vst [vmem:[%s3399] ss:$9 sm:$0xff] %v3224
      %3438 = vst [vmem:[%s3401] ss:$9 sm:$0xff] %v3225
      %v3439 = vld [vmem:[#allocation1] sm:$0xff]
      %3440 = vst [vmem:[#allocation1] ss:$9 sm:$0xff] %v3226
      %3441 = vst [vmem:[%s3389] ss:$9 sm:$0xff] %v3227
      %3442 = vst [vmem:[%s3391] ss:$9 sm:$0xff] %v3228
      %3443 = vst [vmem:[%s3393] ss:$9 sm:$0xff] %v3230
      %3444 = vst [vmem:[%s3395] ss:$9 sm:$0xff] %v3231
      %3445 = vst [vmem:[%s3397] ss:$9 sm:$0xff] %v3233
      %3446 = vst [vmem:[%s3399] ss:$9 sm:$0xff] %v3234
      %3447 = vst [vmem:[%s3401] ss:$9 sm:$0xff] %v3235
      %v3448 = vld [vmem:[#allocation1] sm:$0xff]
      %3449 = vst [vmem:[#allocation1] ss:$9 sm:$0xff] %v3238
      %3450 = vst [vmem:[%s3389] ss:$9 sm:$0xff] %v3239
      %3451 = vst [vmem:[%s3391] ss:$9 sm:$0xff] %v3240
      %3452 = vst [vmem:[%s3393] ss:$9 sm:$0xff] %v3241
      %3453 = vst [vmem:[%s3395] ss:$9 sm:$0xff] %v3242
      %3454 = vst [vmem:[%s3397] ss:$9 sm:$0xff] %v3243
      %3455 = vst [vmem:[%s3399] ss:$9 sm:$0xff] %v3246
      %3456 = vst [vmem:[%s3401] ss:$9 sm:$0xff] %v3247
      %v3457 = vld [vmem:[#allocation1] sm:$0xff]
      %3458 = vst [vmem:[#allocation1] ss:$9 sm:$0xff] %v3248
      %3459 = vst [vmem:[%s3389] ss:$9 sm:$0xff] %v3249
      %3460 = vst [vmem:[%s3391] ss:$9 sm:$0xff] %v3250
      %3461 = vst [vmem:[%s3393] ss:$9 sm:$0xff] %v3251
      %3462 = vst [vmem:[%s3395] ss:$9 sm:$0xff] %v3252
      %3463 = vst [vmem:[%s3397] ss:$9 sm:$0xff] %v3254
      %3464 = vst [vmem:[%s3399] ss:$9 sm:$0xff] %v3255
      %3465 = vst [vmem:[%s3401] ss:$9 sm:$0xff] %v3257
      %v3466 = vld [vmem:[#allocation1] sm:$0xff]
      %3467 = vst [vmem:[#allocation1] ss:$9 sm:$0xff] %v3258
      %3468 = vst [vmem:[%s3389] ss:$9 sm:$0xff] %v3259
      %3469 = vst [vmem:[%s3391] ss:$9 sm:$0xff] %v3262
      %3470 = vst [vmem:[%s3393] ss:$9 sm:$0xff] %v3263
      %3471 = vst [vmem:[%s3395] ss:$9 sm:$0xff] %v3264
      %3472 = vst [vmem:[%s3397] ss:$9 sm:$0xff] %v3265
      %3473 = vst [vmem:[%s3399] ss:$9 sm:$0xff] %v3266
      %3474 = vst [vmem:[%s3401] ss:$9 sm:$0xff] %v3267
      %v3475 = vld [vmem:[#allocation1] sm:$0xff]
      %3476 = vst [vmem:[#allocation1] ss:$9 sm:$0xff] %v3270
      %3477 = vst [vmem:[%s3389] ss:$9 sm:$0xff] %v3271
      %3478 = vst [vmem:[%s3391] ss:$9 sm:$0xff] %v3272
      %3479 = vst [vmem:[%s3393] ss:$9 sm:$0xff] %v3273
      %3480 = vst [vmem:[%s3395] ss:$9 sm:$0xff] %v3274
      %3481 = vst [vmem:[%s3397] ss:$9 sm:$0xff] %v3275
      %3482 = vst [vmem:[%s3399] ss:$9 sm:$0xff] %v3276
      %3483 = vst [vmem:[%s3401] ss:$9 sm:$0xff] %v3278
      %v3484 = vld [vmem:[#allocation1] sm:$0xff]
      %3485 = vst [vmem:[#allocation1] ss:$9 sm:$0xff] %v3279
      %3486 = vst [vmem:[%s3389] ss:$9 sm:$0xff] %v3281
      %3487 = vst [vmem:[%s3391] ss:$9 sm:$0xff] %v3282
      %3488 = vst [vmem:[%s3393] ss:$9 sm:$0xff] %v3283
      %3489 = vst [vmem:[%s3395] ss:$9 sm:$0xff] %v3286
      %3490 = vst [vmem:[%s3397] ss:$9 sm:$0xff] %v3287
      %3491 = vst [vmem:[%s3399] ss:$9 sm:$0xff] %v3288
      %3492 = vst [vmem:[%s3401] ss:$9 sm:$0xff] %v3289
      %v3493 = vld [vmem:[#allocation1] sm:$0xff]
      %3494 = vst [vmem:[#allocation1] ss:$9 sm:$0xff] %v3290
      %3495 = vst [vmem:[%s3389] ss:$9 sm:$0xff] %v3291
      %3496 = vst [vmem:[%s3391] ss:$9 sm:$0xff] %v3294
      %3497 = vst [vmem:[%s3393] ss:$9 sm:$0xff] %v3295
      %3498 = vst [vmem:[%s3395] ss:$9 sm:$0xff] %v3296
      %3499 = vst [vmem:[%s3397] ss:$9 sm:$0xff] %v3297
      %3500 = vst [vmem:[%s3399] ss:$9 sm:$0xff] %v3298
      %3501 = vst [vmem:[%s3401] ss:$9 sm:$0xff] %v3299
      %v3502 = vld [vmem:[#allocation1] sm:$0xff]
      %3503 = vst [vmem:[#allocation1] ss:$9 sm:$0xff] %v3300
      %3504 = vst [vmem:[%s3389] ss:$9 sm:$0xff] %v3302
      %3505 = vst [vmem:[%s3391] ss:$9 sm:$0xff] %v3303
      %3506 = vst [vmem:[%s3393] ss:$9 sm:$0xff] %v3305
      %3507 = vst [vmem:[%s3395] ss:$9 sm:$0xff] %v3306
      %3508 = vst [vmem:[%s3397] ss:$9 sm:$0xff] %v3307
      %3509 = vst [vmem:[%s3399] ss:$9 sm:$0xff] %v3310
      %3510 = vst [vmem:[%s3401] ss:$9 sm:$0xff] %v3311
      %v3511 = vld [vmem:[#allocation1] sm:$0xff]
      %3512 = vst [vmem:[#allocation1] ss:$9 sm:$0xff] %v3312
      %3513 = vst [vmem:[%s3389] ss:$9 sm:$0xff] %v3313
      %3514 = vst [vmem:[%s3391] ss:$9 sm:$0xff] %v3314
      %3515 = vst [vmem:[%s3393] ss:$9 sm:$0xff] %v3315
      %3516 = vst [vmem:[%s3395] ss:$9 sm:$0xff] %v3318
      %3517 = vst [vmem:[%s3397] ss:$9 sm:$0xff] %v3319
      %3518 = vst [vmem:[%s3399] ss:$9 sm:$0xff] %v3320
      %3519 = vst [vmem:[%s3401] ss:$9 sm:$0xff] %v3321
      %v3520 = vld [vmem:[#allocation1] sm:$0xff]
      %3521 = vst [vmem:[#allocation1] ss:$9 sm:$0xff] %v3322
      %3522 = vst [vmem:[%s3389] ss:$9 sm:$0xff] %v3323
      %3523 = vst [vmem:[%s3391] ss:$9 sm:$0xff] %v3324
      %3524 = vst [vmem:[%s3393] ss:$9 sm:$0xff] %v3326
      %3525 = vst [vmem:[%s3395] ss:$9 sm:$0xff] %v3327
      %3526 = vst [vmem:[%s3397] ss:$9 sm:$0xff] %v3329
      %3527 = vst [vmem:[%s3399] ss:$9 sm:$0xff] %v3330
      %3528 = vst [vmem:[%s3401] ss:$9 sm:$0xff] %v3331
      %v3529 = vld [vmem:[#allocation1] sm:$0xff]
      %3530 = vst [vmem:[#allocation1] ss:$9 sm:$0xff] %v3334
      %3531 = vst [vmem:[%s3389] ss:$9 sm:$0xff] %v3335
      %3532 = vst [vmem:[%s3391] ss:$9 sm:$0xff] %v3336
      %3533 = vst [vmem:[%s3393] ss:$9 sm:$0xff] %v3337
      %3534 = vst [vmem:[%s3395] ss:$9 sm:$0xff] %v3338
      %3535 = vst [vmem:[%s3397] ss:$9 sm:$0xff] %v3339
      %3536 = vst [vmem:[%s3399] ss:$9 sm:$0xff] %v3342
      %3537 = vst [vmem:[%s3401] ss:$9 sm:$0xff] %v3343
      %v3538 = vld [vmem:[#allocation1] sm:$0xff]
      %3539 = vst [vmem:[#allocation1] ss:$9 sm:$0xff] %v3344
      %3540 = vst [vmem:[%s3389] ss:$9 sm:$0xff] %v3345
      %3541 = vst [vmem:[%s3391] ss:$9 sm:$0xff] %v3346
      %3542 = vst [vmem:[%s3393] ss:$9 sm:$0xff] %v3347
      %3543 = vst [vmem:[%s3395] ss:$9 sm:$0xff] %v3348
      %3544 = vst [vmem:[%s3397] ss:$9 sm:$0xff] %v3350
      %3545 = vst [vmem:[%s3399] ss:$9 sm:$0xff] %v3351
      %3546 = vst [vmem:[%s3401] ss:$9 sm:$0xff] %v3353
      %v3547 = vld [vmem:[#allocation1] sm:$0xff]
      %3548 = vst [vmem:[#allocation1] ss:$9 sm:$0xff] %v3354
      %3549 = vst [vmem:[%s3389] ss:$9 sm:$0xff] %v3355
      %3550 = vst [vmem:[%s3391] ss:$9 sm:$0xff] %v3358
      %3551 = vst [vmem:[%s3393] ss:$9 sm:$0xff] %v3359
      %3552 = vst [vmem:[%s3395] ss:$9 sm:$0xff] %v3360
      %3553 = vst [vmem:[%s3397] ss:$9 sm:$0xff] %v3361
      %3554 = vst [vmem:[%s3399] ss:$9 sm:$0xff] %v3362
      %3555 = vst [vmem:[%s3401] ss:$9 sm:$0xff] %v3363
      %v3556 = vld [vmem:[#allocation1] sm:$0xff]
      %3557 = vst [vmem:[#allocation1] ss:$9 sm:$0xff] %v3366
      %3558 = vst [vmem:[%s3389] ss:$9 sm:$0xff] %v3367
      %3559 = vst [vmem:[%s3391] ss:$9 sm:$0xff] %v3368
      %3560 = vst [vmem:[%s3393] ss:$9 sm:$0xff] %v3369
      %3561 = vst [vmem:[%s3395] ss:$9 sm:$0xff] %v3370
      %3562 = vst [vmem:[%s3397] ss:$9 sm:$0xff] %v3371
      %3563 = vst [vmem:[%s3399] ss:$9 sm:$0xff] %v3372
      %3564 = vst [vmem:[%s3401] ss:$9 sm:$0xff] %v3374
      %v3565 = vld [vmem:[#allocation1] sm:$0xff]
      %3566 = vst [vmem:[#allocation1] ss:$9 sm:$0xff] %v3375
      %3567 = vst [vmem:[%s3389] ss:$9 sm:$0xff] %v3377
      %3568 = vst [vmem:[%s3391] ss:$9 sm:$0xff] %v3378
      %3569 = vst [vmem:[%s3393] ss:$9 sm:$0xff] %v3379
      %3570 = vst [vmem:[%s3395] ss:$9 sm:$0xff] %v3382
      %3571 = vst [vmem:[%s3397] ss:$9 sm:$0xff] %v3383
      %3572 = vst [vmem:[%s3399] ss:$9 sm:$0xff] %v3384
      %3573 = vst [vmem:[%s3401] ss:$9 sm:$0xff] %v3385
      %v3574 = vld [vmem:[#allocation1] sm:$0xff]
      %3575 = vst [vmem:[#allocation1] ss:$9 sm:$0xff] %v3386
      %3576 = vst [vmem:[%s3389] ss:$9 sm:$0xff] %v3387
      %v3577 = vld [vmem:[#allocation1] sm:$0xff]
      %v3578 = vsel %vm2657, %v3403, 0
      %v3580 = vsel %vm2657, %v3412, 0
      %v3582 = vsel %vm2657, %v3421, 0
      %v3584 = vsel %vm2657, %v3430, 0
      %v3586 = vsel %vm2657, %v3439, 0
      %v3588 = vsel %vm2657, %v3448, 0
      %v3590 = vsel %vm2657, %v3457, 0
      %v3592 = vsel %vm2657, %v3466, 0
      %v3594 = vsel %vm2657, %v3475, 0
      %v3596 = vsel %vm2657, %v3484, 0
      %v3598 = vsel %vm2657, %v3493, 0
      %v3600 = vsel %vm2657, %v3502, 0
      %v3602 = vsel %vm2657, %v3511, 0
      %v3604 = vsel %vm2657, %v3520, 0
      %v3606 = vsel %vm2657, %v3529, 0
      %v3608 = vsel %vm2657, %v3538, 0
      %v3610 = vsel %vm2657, %v3547, 0
      %v3612 = vsel %vm2657, %v3556, 0
      %v3614 = vsel %vm2657, %v3565, 0
      %v3616 = vsel %vm2657, %v3574, 0
      %v3618 = vsel %vm2657, %v3577, 0
      %v3621 = vsel %vm2700, %v371, 0
      %3623 = vmatpush.bf16.msra.mxu0 0
      %3624 = vmatpush.bf16.msra.mxu0 0
      %3625 = vmatpush.bf16.msra.mxu0 0
      %3626 = vmatpush.bf16.msra.mxu0 0
      %3627 = vmatpush.bf16.msra.mxu0 0
      %3628 = vmatpush.bf16.msra.mxu0 0
      %3629 = vmatpush.bf16.msra.mxu0 0
      %3630 = vmatpush.bf16.msra.mxu0 %v3621
      %3631 = vmatmul.bf16.gmra.mxu0 %v3578
      %v3632 = vpop.f32.mrf.mxu0
      %v3633 = vadd.f32 0.0, %v3632
      %v3634 = vpop.f32.mrf.mxu0
      %v3635 = vadd.f32 0.0, %v3634
      %3636 = vmatmul.bf16.gmra.mxu0 %v3580
      %v3637 = vpop.f32.mrf.mxu0
      %v3638 = vadd.f32 0.0, %v3637
      %v3639 = vpop.f32.mrf.mxu0
      %v3640 = vadd.f32 0.0, %v3639
      %3641 = vmatmul.bf16.gmra.mxu0 %v3582
      %v3642 = vpop.f32.mrf.mxu0
      %v3643 = vadd.f32 0.0, %v3642
      %v3644 = vpop.f32.mrf.mxu0
      %v3645 = vadd.f32 0.0, %v3644
      %3646 = vmatmul.bf16.gmra.mxu0 %v3584
      %v3647 = vpop.f32.mrf.mxu0
      %v3648 = vadd.f32 0.0, %v3647
      %v3649 = vpop.f32.mrf.mxu0
      %v3650 = vadd.f32 0.0, %v3649
      %3651 = vmatmul.bf16.gmra.mxu0 %v3586
      %v3652 = vpop.f32.mrf.mxu0
      %v3653 = vadd.f32 0.0, %v3652
      %v3654 = vpop.f32.mrf.mxu0
      %v3655 = vadd.f32 0.0, %v3654
      %3656 = vmatmul.bf16.gmra.mxu0 %v3588
      %v3657 = vpop.f32.mrf.mxu0
      %v3658 = vadd.f32 0.0, %v3657
      %v3659 = vpop.f32.mrf.mxu0
      %v3660 = vadd.f32 0.0, %v3659
      %3661 = vmatmul.bf16.gmra.mxu0 %v3590
      %v3662 = vpop.f32.mrf.mxu0
      %v3663 = vadd.f32 0.0, %v3662
      %v3664 = vpop.f32.mrf.mxu0
      %v3665 = vadd.f32 0.0, %v3664
      %3666 = vmatmul.bf16.gmra.mxu0 %v3592
      %v3667 = vpop.f32.mrf.mxu0
      %v3668 = vadd.f32 0.0, %v3667
      %v3669 = vpop.f32.mrf.mxu0
      %v3670 = vadd.f32 0.0, %v3669
      %3671 = vmatmul.bf16.gmra.mxu0 %v3594
      %v3672 = vpop.f32.mrf.mxu0
      %v3673 = vadd.f32 0.0, %v3672
      %v3674 = vpop.f32.mrf.mxu0
      %v3675 = vadd.f32 0.0, %v3674
      %3676 = vmatmul.bf16.gmra.mxu0 %v3596
      %v3677 = vpop.f32.mrf.mxu0
      %v3678 = vadd.f32 0.0, %v3677
      %v3679 = vpop.f32.mrf.mxu0
      %v3680 = vadd.f32 0.0, %v3679
      %3681 = vmatmul.bf16.gmra.mxu0 %v3598
      %v3682 = vpop.f32.mrf.mxu0
      %v3683 = vadd.f32 0.0, %v3682
      %v3684 = vpop.f32.mrf.mxu0
      %v3685 = vadd.f32 0.0, %v3684
      %3686 = vmatmul.bf16.gmra.mxu0 %v3600
      %v3687 = vpop.f32.mrf.mxu0
      %v3688 = vadd.f32 0.0, %v3687
      %v3689 = vpop.f32.mrf.mxu0
      %v3690 = vadd.f32 0.0, %v3689
      %3691 = vmatmul.bf16.gmra.mxu0 %v3602
      %v3692 = vpop.f32.mrf.mxu0
      %v3693 = vadd.f32 0.0, %v3692
      %v3694 = vpop.f32.mrf.mxu0
      %v3695 = vadd.f32 0.0, %v3694
      %3696 = vmatmul.bf16.gmra.mxu0 %v3604
      %v3697 = vpop.f32.mrf.mxu0
      %v3698 = vadd.f32 0.0, %v3697
      %v3699 = vpop.f32.mrf.mxu0
      %v3700 = vadd.f32 0.0, %v3699
      %3701 = vmatmul.bf16.gmra.mxu0 %v3606
      %v3702 = vpop.f32.mrf.mxu0
      %v3703 = vadd.f32 0.0, %v3702
      %v3704 = vpop.f32.mrf.mxu0
      %v3705 = vadd.f32 0.0, %v3704
      %3706 = vmatmul.bf16.gmra.mxu0 %v3608
      %v3707 = vpop.f32.mrf.mxu0
      %v3708 = vadd.f32 0.0, %v3707
      %v3709 = vpop.f32.mrf.mxu0
      %v3710 = vadd.f32 0.0, %v3709
      %3711 = vmatmul.bf16.gmra.mxu0 %v3610
      %v3712 = vpop.f32.mrf.mxu0
      %v3713 = vadd.f32 0.0, %v3712
      %v3714 = vpop.f32.mrf.mxu0
      %v3715 = vadd.f32 0.0, %v3714
      %3716 = vmatmul.bf16.gmra.mxu0 %v3612
      %v3717 = vpop.f32.mrf.mxu0
      %v3718 = vadd.f32 0.0, %v3717
      %v3719 = vpop.f32.mrf.mxu0
      %v3720 = vadd.f32 0.0, %v3719
      %3721 = vmatmul.bf16.gmra.mxu0 %v3614
      %v3722 = vpop.f32.mrf.mxu0
      %v3723 = vadd.f32 0.0, %v3722
      %v3724 = vpop.f32.mrf.mxu0
      %v3725 = vadd.f32 0.0, %v3724
      %3726 = vmatmul.bf16.gmra.mxu0 %v3616
      %v3727 = vpop.f32.mrf.mxu0
      %v3728 = vadd.f32 0.0, %v3727
      %v3729 = vpop.f32.mrf.mxu0
      %v3730 = vadd.f32 0.0, %v3729
      %3731 = vmatmul.bf16.gmra.mxu0 %v3618
      %v3732 = vpop.f32.mrf.mxu0
      %v3733 = vadd.f32 0.0, %v3732
      %v3734 = vpop.f32.mrf.mxu0
      %3735 = vdwg.mxu0
      %v3736 = vadd.f32 %v3062, %v3633
      %v3737 = vadd.f32 %v3064, %v3635
      %v3738 = vadd.f32 %v3067, %v3638
      %v3739 = vadd.f32 %v3069, %v3640
      %v3740 = vadd.f32 %v3072, %v3643
      %v3741 = vadd.f32 %v3074, %v3645
      %v3742 = vadd.f32 %v3077, %v3648
      %v3743 = vadd.f32 %v3079, %v3650
      %v3744 = vadd.f32 %v3082, %v3653
      %v3745 = vadd.f32 %v3084, %v3655
      %v3746 = vadd.f32 %v3087, %v3658
      %v3747 = vadd.f32 %v3089, %v3660
      %v3748 = vadd.f32 %v3092, %v3663
      %v3749 = vadd.f32 %v3094, %v3665
      %v3750 = vadd.f32 %v3097, %v3668
      %v3751 = vadd.f32 %v3099, %v3670
      %v3752 = vadd.f32 %v3102, %v3673
      %v3753 = vadd.f32 %v3104, %v3675
      %v3754 = vadd.f32 %v3107, %v3678
      %v3755 = vadd.f32 %v3109, %v3680
      %v3756 = vadd.f32 %v3112, %v3683
      %v3757 = vadd.f32 %v3114, %v3685
      %v3758 = vadd.f32 %v3117, %v3688
      %v3759 = vadd.f32 %v3119, %v3690
      %v3760 = vadd.f32 %v3122, %v3693
      %v3761 = vadd.f32 %v3124, %v3695
      %v3762 = vadd.f32 %v3127, %v3698
      %v3763 = vadd.f32 %v3129, %v3700
      %v3764 = vadd.f32 %v3132, %v3703
      %v3765 = vadd.f32 %v3134, %v3705
      %v3766 = vadd.f32 %v3137, %v3708
      %v3767 = vadd.f32 %v3139, %v3710
      %v3768 = vadd.f32 %v3142, %v3713
      %v3769 = vadd.f32 %v3144, %v3715
      %v3770 = vadd.f32 %v3147, %v3718
      %v3771 = vadd.f32 %v3149, %v3720
      %v3772 = vadd.f32 %v3152, %v3723
      %v3773 = vadd.f32 %v3154, %v3725
      %v3774 = vadd.f32 %v3157, %v3728
      %v3775 = vadd.f32 %v3159, %v3730
      %v3776 = vadd.f32 %v3162, %v3733
      %v3780 = vrot.slane %v363, 3
      %v3781 = vrot.slane %v364, 3
      %v3782 = vrot.slane %v365, 3
      %v3785 = vsel %vm486, %v363, %v3780
      %v3786 = vsel %vm490, %v363, %v3780
      %v3788 = vrot.slane %v3786, 1
      %v3789 = vsel %vm494, %v363, %v3780
      %v3791 = vrot.slane %v3789, 2
      %v3792 = vsel %vm498, %v363, %v3780
      %v3794 = vrot.slane %v3792, 3
      %v3797 = vsel %vm486, %v364, %v3781
      %v3798 = vsel %vm490, %v364, %v3781
      %v3800 = vrot.slane %v3798, 1
      %v3801 = vsel %vm494, %v364, %v3781
      %v3803 = vrot.slane %v3801, 2
      %v3804 = vsel %vm498, %v364, %v3781
      %v3806 = vrot.slane %v3804, 3
      %v3809 = vsel %vm486, %v365, %v3782
      %3810 = vst [vmem:[#allocation1] ss:$9 sm:$0xff] %v519
      %s3811 = scalar_lea.vmem [#allocation1], 1
      %3812 = vst [vmem:[%s3811] ss:$9 sm:$0xff] %v522
      %s3813 = scalar_lea.vmem [#allocation1], 2
      %3814 = vst [vmem:[%s3813] ss:$9 sm:$0xff] %v525
      %s3815 = scalar_lea.vmem [#allocation1], 3
      %3816 = vst [vmem:[%s3815] ss:$9 sm:$0xff] %v528
      %s3817 = scalar_lea.vmem [#allocation1], 4
      %3818 = vst [vmem:[%s3817] ss:$9 sm:$0xff] %v531
      %s3819 = scalar_lea.vmem [#allocation1], 5
      %3820 = vst [vmem:[%s3819] ss:$9 sm:$0xff] %v534
      %s3821 = scalar_lea.vmem [#allocation1], 6
      %3822 = vst [vmem:[%s3821] ss:$9 sm:$0xff] %v537
      %s3823 = scalar_lea.vmem [#allocation1], 7
      %3824 = vst [vmem:[%s3823] ss:$9 sm:$0xff] %v540
      %v3825 = vld [vmem:[#allocation1] sm:$0xff]
      %3826 = vst [vmem:[#allocation1] ss:$9 sm:$0xff] %v543
      %3827 = vst [vmem:[%s3811] ss:$9 sm:$0xff] %v546
      %3828 = vst [vmem:[%s3813] ss:$9 sm:$0xff] %v549
      %3829 = vst [vmem:[%s3815] ss:$9 sm:$0xff] %v552
      %3830 = vst [vmem:[%s3817] ss:$9 sm:$0xff] %v555
      %3831 = vst [vmem:[%s3819] ss:$9 sm:$0xff] %v558
      %3832 = vst [vmem:[%s3821] ss:$9 sm:$0xff] %v561
      %3833 = vst [vmem:[%s3823] ss:$9 sm:$0xff] %v564
      %v3834 = vld [vmem:[#allocation1] sm:$0xff]
      %3835 = vst [vmem:[#allocation1] ss:$9 sm:$0xff] %v567
      %3836 = vst [vmem:[%s3811] ss:$9 sm:$0xff] %v570
      %3837 = vst [vmem:[%s3813] ss:$9 sm:$0xff] %v573
      %3838 = vst [vmem:[%s3815] ss:$9 sm:$0xff] %v576
      %3839 = vst [vmem:[%s3817] ss:$9 sm:$0xff] %v579
      %3840 = vst [vmem:[%s3819] ss:$9 sm:$0xff] %v582
      %3841 = vst [vmem:[%s3821] ss:$9 sm:$0xff] %v585
      %3842 = vst [vmem:[%s3823] ss:$9 sm:$0xff] %v588
      %v3843 = vld [vmem:[#allocation1] sm:$0xff]
      %3844 = vst [vmem:[#allocation1] ss:$9 sm:$0xff] %v591
      %3845 = vst [vmem:[%s3811] ss:$9 sm:$0xff] %v594
      %3846 = vst [vmem:[%s3813] ss:$9 sm:$0xff] %v597
      %3847 = vst [vmem:[%s3815] ss:$9 sm:$0xff] %v600
      %3848 = vst [vmem:[%s3817] ss:$9 sm:$0xff] %v603
      %3849 = vst [vmem:[%s3819] ss:$9 sm:$0xff] %v606
      %3850 = vst [vmem:[%s3821] ss:$9 sm:$0xff] %v609
      %3851 = vst [vmem:[%s3823] ss:$9 sm:$0xff] %v612
      %v3852 = vld [vmem:[#allocation1] sm:$0xff]
      %3853 = vst [vmem:[#allocation1] ss:$9 sm:$0xff] %v615
      %3854 = vst [vmem:[%s3811] ss:$9 sm:$0xff] %v618
      %3855 = vst [vmem:[%s3813] ss:$9 sm:$0xff] %v621
      %3856 = vst [vmem:[%s3815] ss:$9 sm:$0xff] %v624
      %3857 = vst [vmem:[%s3817] ss:$9 sm:$0xff] %v627
      %3858 = vst [vmem:[%s3819] ss:$9 sm:$0xff] %v630
      %3859 = vst [vmem:[%s3821] ss:$9 sm:$0xff] %v633
      %3860 = vst [vmem:[%s3823] ss:$9 sm:$0xff] %v636
      %v3861 = vld [vmem:[#allocation1] sm:$0xff]
      %3862 = vst [vmem:[#allocation1] ss:$9 sm:$0xff] %v639
      %3863 = vst [vmem:[%s3811] ss:$9 sm:$0xff] %v642
      %3864 = vst [vmem:[%s3813] ss:$9 sm:$0xff] %v645
      %3865 = vst [vmem:[%s3815] ss:$9 sm:$0xff] %v648
      %3866 = vst [vmem:[%s3817] ss:$9 sm:$0xff] %v651
      %3867 = vst [vmem:[%s3819] ss:$9 sm:$0xff] %v654
      %3868 = vst [vmem:[%s3821] ss:$9 sm:$0xff] %v657
      %3869 = vst [vmem:[%s3823] ss:$9 sm:$0xff] %v660
      %v3870 = vld [vmem:[#allocation1] sm:$0xff]
      %3871 = vst [vmem:[#allocation1] ss:$9 sm:$0xff] %v663
      %3872 = vst [vmem:[%s3811] ss:$9 sm:$0xff] %v666
      %3873 = vst [vmem:[%s3813] ss:$9 sm:$0xff] %v669
      %3874 = vst [vmem:[%s3815] ss:$9 sm:$0xff] %v672
      %3875 = vst [vmem:[%s3817] ss:$9 sm:$0xff] %v675
      %3876 = vst [vmem:[%s3819] ss:$9 sm:$0xff] %v678
      %3877 = vst [vmem:[%s3821] ss:$9 sm:$0xff] %v681
      %3878 = vst [vmem:[%s3823] ss:$9 sm:$0xff] %v684
      %v3879 = vld [vmem:[#allocation1] sm:$0xff]
      %3880 = vst [vmem:[#allocation1] ss:$9 sm:$0xff] %v687
      %3881 = vst [vmem:[%s3811] ss:$9 sm:$0xff] %v690
      %3882 = vst [vmem:[%s3813] ss:$9 sm:$0xff] %v693
      %3883 = vst [vmem:[%s3815] ss:$9 sm:$0xff] %v696
      %3884 = vst [vmem:[%s3817] ss:$9 sm:$0xff] %v699
      %3885 = vst [vmem:[%s3819] ss:$9 sm:$0xff] %v702
      %3886 = vst [vmem:[%s3821] ss:$9 sm:$0xff] %v705
      %3887 = vst [vmem:[%s3823] ss:$9 sm:$0xff] %v708
      %v3888 = vld [vmem:[#allocation1] sm:$0xff]
      %3889 = vst [vmem:[#allocation1] ss:$9 sm:$0xff] %v711
      %3890 = vst [vmem:[%s3811] ss:$9 sm:$0xff] %v714
      %3891 = vst [vmem:[%s3813] ss:$9 sm:$0xff] %v717
      %3892 = vst [vmem:[%s3815] ss:$9 sm:$0xff] %v720
      %3893 = vst [vmem:[%s3817] ss:$9 sm:$0xff] %v723
      %3894 = vst [vmem:[%s3819] ss:$9 sm:$0xff] %v726
      %3895 = vst [vmem:[%s3821] ss:$9 sm:$0xff] %v729
      %3896 = vst [vmem:[%s3823] ss:$9 sm:$0xff] %v732
      %v3897 = vld [vmem:[#allocation1] sm:$0xff]
      %3898 = vst [vmem:[#allocation1] ss:$9 sm:$0xff] %v735
      %3899 = vst [vmem:[%s3811] ss:$9 sm:$0xff] %v738
      %3900 = vst [vmem:[%s3813] ss:$9 sm:$0xff] %v741
      %3901 = vst [vmem:[%s3815] ss:$9 sm:$0xff] %v744
      %3902 = vst [vmem:[%s3817] ss:$9 sm:$0xff] %v747
      %3903 = vst [vmem:[%s3819] ss:$9 sm:$0xff] %v750
      %3904 = vst [vmem:[%s3821] ss:$9 sm:$0xff] %v753
      %3905 = vst [vmem:[%s3823] ss:$9 sm:$0xff] %v756
      %v3906 = vld [vmem:[#allocation1] sm:$0xff]
      %3907 = vst [vmem:[#allocation1] ss:$9 sm:$0xff] %v759
      %3908 = vst [vmem:[%s3811] ss:$9 sm:$0xff] %v762
      %3909 = vst [vmem:[%s3813] ss:$9 sm:$0xff] %v765
      %3910 = vst [vmem:[%s3815] ss:$9 sm:$0xff] %v768
      %3911 = vst [vmem:[%s3817] ss:$9 sm:$0xff] %v771
      %3912 = vst [vmem:[%s3819] ss:$9 sm:$0xff] %v774
      %3913 = vst [vmem:[%s3821] ss:$9 sm:$0xff] %v777
      %3914 = vst [vmem:[%s3823] ss:$9 sm:$0xff] %v780
      %v3915 = vld [vmem:[#allocation1] sm:$0xff]
      %3916 = vst [vmem:[#allocation1] ss:$9 sm:$0xff] %v783
      %3917 = vst [vmem:[%s3811] ss:$9 sm:$0xff] %v786
      %3918 = vst [vmem:[%s3813] ss:$9 sm:$0xff] %v789
      %3919 = vst [vmem:[%s3815] ss:$9 sm:$0xff] %v792
      %3920 = vst [vmem:[%s3817] ss:$9 sm:$0xff] %v795
      %3921 = vst [vmem:[%s3819] ss:$9 sm:$0xff] %v798
      %3922 = vst [vmem:[%s3821] ss:$9 sm:$0xff] %v801
      %3923 = vst [vmem:[%s3823] ss:$9 sm:$0xff] %v804
      %v3924 = vld [vmem:[#allocation1] sm:$0xff]
      %3925 = vst [vmem:[#allocation1] ss:$9 sm:$0xff] %v807
      %3926 = vst [vmem:[%s3811] ss:$9 sm:$0xff] %v810
      %3927 = vst [vmem:[%s3813] ss:$9 sm:$0xff] %v813
      %3928 = vst [vmem:[%s3815] ss:$9 sm:$0xff] %v816
      %3929 = vst [vmem:[%s3817] ss:$9 sm:$0xff] %v819
      %3930 = vst [vmem:[%s3819] ss:$9 sm:$0xff] %v822
      %3931 = vst [vmem:[%s3821] ss:$9 sm:$0xff] %v825
      %3932 = vst [vmem:[%s3823] ss:$9 sm:$0xff] %v828
      %v3933 = vld [vmem:[#allocation1] sm:$0xff]
      %3934 = vst [vmem:[#allocation1] ss:$9 sm:$0xff] %v831
      %3935 = vst [vmem:[%s3811] ss:$9 sm:$0xff] %v834
      %3936 = vst [vmem:[%s3813] ss:$9 sm:$0xff] %v837
      %3937 = vst [vmem:[%s3815] ss:$9 sm:$0xff] %v840
      %3938 = vst [vmem:[%s3817] ss:$9 sm:$0xff] %v843
      %3939 = vst [vmem:[%s3819] ss:$9 sm:$0xff] %v846
      %3940 = vst [vmem:[%s3821] ss:$9 sm:$0xff] %v849
      %3941 = vst [vmem:[%s3823] ss:$9 sm:$0xff] %v852
      %v3942 = vld [vmem:[#allocation1] sm:$0xff]
      %3943 = vst [vmem:[#allocation1] ss:$9 sm:$0xff] %v855
      %3944 = vst [vmem:[%s3811] ss:$9 sm:$0xff] %v858
      %3945 = vst [vmem:[%s3813] ss:$9 sm:$0xff] %v861
      %3946 = vst [vmem:[%s3815] ss:$9 sm:$0xff] %v864
      %3947 = vst [vmem:[%s3817] ss:$9 sm:$0xff] %v867
      %3948 = vst [vmem:[%s3819] ss:$9 sm:$0xff] %v870
      %3949 = vst [vmem:[%s3821] ss:$9 sm:$0xff] %v873
      %3950 = vst [vmem:[%s3823] ss:$9 sm:$0xff] %v876
      %v3951 = vld [vmem:[#allocation1] sm:$0xff]
      %3952 = vst [vmem:[#allocation1] ss:$9 sm:$0xff] %v879
      %3953 = vst [vmem:[%s3811] ss:$9 sm:$0xff] %v882
      %3954 = vst [vmem:[%s3813] ss:$9 sm:$0xff] %v885
      %3955 = vst [vmem:[%s3815] ss:$9 sm:$0xff] %v888
      %3956 = vst [vmem:[%s3817] ss:$9 sm:$0xff] %v891
      %3957 = vst [vmem:[%s3819] ss:$9 sm:$0xff] %v894
      %3958 = vst [vmem:[%s3821] ss:$9 sm:$0xff] %v897
      %3959 = vst [vmem:[%s3823] ss:$9 sm:$0xff] %v900
      %v3960 = vld [vmem:[#allocation1] sm:$0xff]
      %3961 = vst [vmem:[#allocation1] ss:$9 sm:$0xff] %v903
      %3962 = vst [vmem:[%s3811] ss:$9 sm:$0xff] %v906
      %3963 = vst [vmem:[%s3813] ss:$9 sm:$0xff] %v909
      %3964 = vst [vmem:[%s3815] ss:$9 sm:$0xff] %v912
      %3965 = vst [vmem:[%s3817] ss:$9 sm:$0xff] %v915
      %3966 = vst [vmem:[%s3819] ss:$9 sm:$0xff] %v918
      %3967 = vst [vmem:[%s3821] ss:$9 sm:$0xff] %v921
      %3968 = vst [vmem:[%s3823] ss:$9 sm:$0xff] %v924
      %v3969 = vld [vmem:[#allocation1] sm:$0xff]
      %3970 = vst [vmem:[#allocation1] ss:$9 sm:$0xff] %v927
      %3971 = vst [vmem:[%s3811] ss:$9 sm:$0xff] %v930
      %3972 = vst [vmem:[%s3813] ss:$9 sm:$0xff] %v933
      %3973 = vst [vmem:[%s3815] ss:$9 sm:$0xff] %v936
      %3974 = vst [vmem:[%s3817] ss:$9 sm:$0xff] %v939
      %3975 = vst [vmem:[%s3819] ss:$9 sm:$0xff] %v942
      %3976 = vst [vmem:[%s3821] ss:$9 sm:$0xff] %v945
      %3977 = vst [vmem:[%s3823] ss:$9 sm:$0xff] %v948
      %v3978 = vld [vmem:[#allocation1] sm:$0xff]
      %3979 = vst [vmem:[#allocation1] ss:$9 sm:$0xff] %v951
      %3980 = vst [vmem:[%s3811] ss:$9 sm:$0xff] %v954
      %3981 = vst [vmem:[%s3813] ss:$9 sm:$0xff] %v957
      %3982 = vst [vmem:[%s3815] ss:$9 sm:$0xff] %v960
      %3983 = vst [vmem:[%s3817] ss:$9 sm:$0xff] %v963
      %3984 = vst [vmem:[%s3819] ss:$9 sm:$0xff] %v966
      %3985 = vst [vmem:[%s3821] ss:$9 sm:$0xff] %v969
      %3986 = vst [vmem:[%s3823] ss:$9 sm:$0xff] %v972
      %v3987 = vld [vmem:[#allocation1] sm:$0xff]
      %3988 = vst [vmem:[#allocation1] ss:$9 sm:$0xff] %v975
      %3989 = vst [vmem:[%s3811] ss:$9 sm:$0xff] %v3785
      %3991 = vst [vmem:[%s3813] ss:$9 sm:$0xff] %v3788
      %3993 = vst [vmem:[%s3815] ss:$9 sm:$0xff] %v3791
      %3995 = vst [vmem:[%s3817] ss:$9 sm:$0xff] %v3794
      %3996 = vst [vmem:[%s3819] ss:$9 sm:$0xff] %v3797
      %3998 = vst [vmem:[%s3821] ss:$9 sm:$0xff] %v3800
      %4000 = vst [vmem:[%s3823] ss:$9 sm:$0xff] %v3803
      %v4001 = vld [vmem:[#allocation1] sm:$0xff]
      %4003 = vst [vmem:[#allocation1] ss:$9 sm:$0xff] %v3806
      %4004 = vst [vmem:[%s3811] ss:$9 sm:$0xff] %v3809
      %v4005 = vld [vmem:[#allocation1] sm:$0xff]
      %v4006 = vsel %vm2657, %v3825, 0
      %v4008 = vsel %vm2657, %v3834, 0
      %v4010 = vsel %vm2657, %v3843, 0
      %v4012 = vsel %vm2657, %v3852, 0
      %v4014 = vsel %vm2657, %v3861, 0
      %v4016 = vsel %vm2657, %v3870, 0
      %v4018 = vsel %vm2657, %v3879, 0
      %v4020 = vsel %vm2657, %v3888, 0
      %v4022 = vsel %vm2657, %v3897, 0
      %v4024 = vsel %vm2657, %v3906, 0
      %v4026 = vsel %vm2657, %v3915, 0
      %v4028 = vsel %vm2657, %v3924, 0
      %v4030 = vsel %vm2657, %v3933, 0
      %v4032 = vsel %vm2657, %v3942, 0
      %v4034 = vsel %vm2657, %v3951, 0
      %v4036 = vsel %vm2657, %v3960, 0
      %v4038 = vsel %vm2657, %v3969, 0
      %v4040 = vsel %vm2657, %v3978, 0
      %v4042 = vsel %vm2657, %v3987, 0
      %v4044 = vsel %vm2657, %v4001, 0
      %v4046 = vsel %vm2657, %v4005, 0
      %v4049 = vsel %vm2700, %v372, 0
      %4051 = vmatpush.bf16.msra.mxu0 0
      %4052 = vmatpush.bf16.msra.mxu0 0
      %4053 = vmatpush.bf16.msra.mxu0 0
      %4054 = vmatpush.bf16.msra.mxu0 0
      %4055 = vmatpush.bf16.msra.mxu0 0
      %4056 = vmatpush.bf16.msra.mxu0 0
      %4057 = vmatpush.bf16.msra.mxu0 0
      %4058 = vmatpush.bf16.msra.mxu0 %v4049
      %4059 = vmatmul.bf16.gmra.mxu0 %v4006
      %v4060 = vpop.f32.mrf.mxu0
      %v4061 = vadd.f32 0.0, %v4060
      %v4062 = vpop.f32.mrf.mxu0
      %v4063 = vadd.f32 0.0, %v4062
      %4064 = vmatmul.bf16.gmra.mxu0 %v4008
      %v4065 = vpop.f32.mrf.mxu0
      %v4066 = vadd.f32 0.0, %v4065
      %v4067 = vpop.f32.mrf.mxu0
      %v4068 = vadd.f32 0.0, %v4067
      %4069 = vmatmul.bf16.gmra.mxu0 %v4010
      %v4070 = vpop.f32.mrf.mxu0
      %v4071 = vadd.f32 0.0, %v4070
      %v4072 = vpop.f32.mrf.mxu0
      %v4073 = vadd.f32 0.0, %v4072
      %4074 = vmatmul.bf16.gmra.mxu0 %v4012
      %v4075 = vpop.f32.mrf.mxu0
      %v4076 = vadd.f32 0.0, %v4075
      %v4077 = vpop.f32.mrf.mxu0
      %v4078 = vadd.f32 0.0, %v4077
      %4079 = vmatmul.bf16.gmra.mxu0 %v4014
      %v4080 = vpop.f32.mrf.mxu0
      %v4081 = vadd.f32 0.0, %v4080
      %v4082 = vpop.f32.mrf.mxu0
      %v4083 = vadd.f32 0.0, %v4082
      %4084 = vmatmul.bf16.gmra.mxu0 %v4016
      %v4085 = vpop.f32.mrf.mxu0
      %v4086 = vadd.f32 0.0, %v4085
      %v4087 = vpop.f32.mrf.mxu0
      %v4088 = vadd.f32 0.0, %v4087
      %4089 = vmatmul.bf16.gmra.mxu0 %v4018
      %v4090 = vpop.f32.mrf.mxu0
      %v4091 = vadd.f32 0.0, %v4090
      %v4092 = vpop.f32.mrf.mxu0
      %v4093 = vadd.f32 0.0, %v4092
      %4094 = vmatmul.bf16.gmra.mxu0 %v4020
      %v4095 = vpop.f32.mrf.mxu0
      %v4096 = vadd.f32 0.0, %v4095
      %v4097 = vpop.f32.mrf.mxu0
      %v4098 = vadd.f32 0.0, %v4097
      %4099 = vmatmul.bf16.gmra.mxu0 %v4022
      %v4100 = vpop.f32.mrf.mxu0
      %v4101 = vadd.f32 0.0, %v4100
      %v4102 = vpop.f32.mrf.mxu0
      %v4103 = vadd.f32 0.0, %v4102
      %4104 = vmatmul.bf16.gmra.mxu0 %v4024
      %v4105 = vpop.f32.mrf.mxu0
      %v4106 = vadd.f32 0.0, %v4105
      %v4107 = vpop.f32.mrf.mxu0
      %v4108 = vadd.f32 0.0, %v4107
      %4109 = vmatmul.bf16.gmra.mxu0 %v4026
      %v4110 = vpop.f32.mrf.mxu0
      %v4111 = vadd.f32 0.0, %v4110
      %v4112 = vpop.f32.mrf.mxu0
      %v4113 = vadd.f32 0.0, %v4112
      %4114 = vmatmul.bf16.gmra.mxu0 %v4028
      %v4115 = vpop.f32.mrf.mxu0
      %v4116 = vadd.f32 0.0, %v4115
      %v4117 = vpop.f32.mrf.mxu0
      %v4118 = vadd.f32 0.0, %v4117
      %4119 = vmatmul.bf16.gmra.mxu0 %v4030
      %v4120 = vpop.f32.mrf.mxu0
      %v4121 = vadd.f32 0.0, %v4120
      %v4122 = vpop.f32.mrf.mxu0
      %v4123 = vadd.f32 0.0, %v4122
      %4124 = vmatmul.bf16.gmra.mxu0 %v4032
      %v4125 = vpop.f32.mrf.mxu0
      %v4126 = vadd.f32 0.0, %v4125
      %v4127 = vpop.f32.mrf.mxu0
      %v4128 = vadd.f32 0.0, %v4127
      %4129 = vmatmul.bf16.gmra.mxu0 %v4034
      %v4130 = vpop.f32.mrf.mxu0
      %v4131 = vadd.f32 0.0, %v4130
      %v4132 = vpop.f32.mrf.mxu0
      %v4133 = vadd.f32 0.0, %v4132
      %4134 = vmatmul.bf16.gmra.mxu0 %v4036
      %v4135 = vpop.f32.mrf.mxu0
      %v4136 = vadd.f32 0.0, %v4135
      %v4137 = vpop.f32.mrf.mxu0
      %v4138 = vadd.f32 0.0, %v4137
      %4139 = vmatmul.bf16.gmra.mxu0 %v4038
      %v4140 = vpop.f32.mrf.mxu0
      %v4141 = vadd.f32 0.0, %v4140
      %v4142 = vpop.f32.mrf.mxu0
      %v4143 = vadd.f32 0.0, %v4142
      %4144 = vmatmul.bf16.gmra.mxu0 %v4040
      %v4145 = vpop.f32.mrf.mxu0
      %v4146 = vadd.f32 0.0, %v4145
      %v4147 = vpop.f32.mrf.mxu0
      %v4148 = vadd.f32 0.0, %v4147
      %4149 = vmatmul.bf16.gmra.mxu0 %v4042
      %v4150 = vpop.f32.mrf.mxu0
      %v4151 = vadd.f32 0.0, %v4150
      %v4152 = vpop.f32.mrf.mxu0
      %v4153 = vadd.f32 0.0, %v4152
      %4154 = vmatmul.bf16.gmra.mxu0 %v4044
      %v4155 = vpop.f32.mrf.mxu0
      %v4156 = vadd.f32 0.0, %v4155
      %v4157 = vpop.f32.mrf.mxu0
      %v4158 = vadd.f32 0.0, %v4157
      %4159 = vmatmul.bf16.gmra.mxu0 %v4046
      %v4160 = vpop.f32.mrf.mxu0
      %v4161 = vadd.f32 0.0, %v4160
      %v4162 = vpop.f32.mrf.mxu0
      %4163 = vdwg.mxu0
      %v4164 = vadd.f32 %v3736, %v4061
      %v4165 = vadd.f32 %v3737, %v4063
      %v4166 = vadd.f32 %v3738, %v4066
      %v4167 = vadd.f32 %v3739, %v4068
      %v4168 = vadd.f32 %v3740, %v4071
      %v4169 = vadd.f32 %v3741, %v4073
      %v4170 = vadd.f32 %v3742, %v4076
      %v4171 = vadd.f32 %v3743, %v4078
      %v4172 = vadd.f32 %v3744, %v4081
      %v4173 = vadd.f32 %v3745, %v4083
      %v4174 = vadd.f32 %v3746, %v4086
      %v4175 = vadd.f32 %v3747, %v4088
      %v4176 = vadd.f32 %v3748, %v4091
      %v4177 = vadd.f32 %v3749, %v4093
      %v4178 = vadd.f32 %v3750, %v4096
      %v4179 = vadd.f32 %v3751, %v4098
      %v4180 = vadd.f32 %v3752, %v4101
      %v4181 = vadd.f32 %v3753, %v4103
      %v4182 = vadd.f32 %v3754, %v4106
      %v4183 = vadd.f32 %v3755, %v4108
      %v4184 = vadd.f32 %v3756, %v4111
      %v4185 = vadd.f32 %v3757, %v4113
      %v4186 = vadd.f32 %v3758, %v4116
      %v4187 = vadd.f32 %v3759, %v4118
      %v4188 = vadd.f32 %v3760, %v4121
      %v4189 = vadd.f32 %v3761, %v4123
      %v4190 = vadd.f32 %v3762, %v4126
      %v4191 = vadd.f32 %v3763, %v4128
      %v4192 = vadd.f32 %v3764, %v4131
      %v4193 = vadd.f32 %v3765, %v4133
      %v4194 = vadd.f32 %v3766, %v4136
      %v4195 = vadd.f32 %v3767, %v4138
      %v4196 = vadd.f32 %v3768, %v4141
      %v4197 = vadd.f32 %v3769, %v4143
      %v4198 = vadd.f32 %v3770, %v4146
      %v4199 = vadd.f32 %v3771, %v4148
      %v4200 = vadd.f32 %v3772, %v4151
      %v4201 = vadd.f32 %v3773, %v4153
      %v4202 = vadd.f32 %v3774, %v4156
      %v4203 = vadd.f32 %v3775, %v4158
      %v4204 = vadd.f32 %v3776, %v4161
      %v4205 = vsel %vm490, %v365, %v3782
      %v4207 = vrot.slane %v4205, 1
      %v4208 = vshrl.u32 %v3785, 16
      %v4210 = vrot.slane %v4208, 7
      %v4211 = vrot.slane %v4210, 1
      %v4212 = vshll.u32 %v3788, 16
      %v4214 = vsel %vm1044, %v4211, %v4212
      %v4215 = vshrl.u32 %v3788, 16
      %v4217 = vrot.slane %v4215, 7
      %v4218 = vrot.slane %v4217, 1
      %v4219 = vshll.u32 %v3791, 16
      %v4221 = vsel %vm1044, %v4218, %v4219
      %v4222 = vshrl.u32 %v3791, 16
      %v4224 = vrot.slane %v4222, 7
      %v4225 = vrot.slane %v4224, 1
      %v4226 = vshll.u32 %v3794, 16
      %v4228 = vsel %vm1044, %v4225, %v4226
      %v4229 = vshrl.u32 %v3794, 16
      %v4231 = vrot.slane %v4229, 7
      %v4232 = vrot.slane %v4231, 1
      %v4233 = vshll.u32 %v3797, 16
      %v4235 = vsel %vm1044, %v4232, %v4233
      %v4236 = vshrl.u32 %v3797, 16
      %v4238 = vrot.slane %v4236, 7
      %v4239 = vrot.slane %v4238, 1
      %v4240 = vshll.u32 %v3800, 16
      %v4242 = vsel %vm1044, %v4239, %v4240
      %v4243 = vshrl.u32 %v3800, 16
      %v4245 = vrot.slane %v4243, 7
      %v4246 = vrot.slane %v4245, 1
      %v4247 = vshll.u32 %v3803, 16
      %v4249 = vsel %vm1044, %v4246, %v4247
      %v4250 = vshrl.u32 %v3803, 16
      %v4252 = vrot.slane %v4250, 7
      %v4253 = vrot.slane %v4252, 1
      %v4254 = vshll.u32 %v3806, 16
      %v4256 = vsel %vm1044, %v4253, %v4254
      %v4257 = vshrl.u32 %v3806, 16
      %v4259 = vrot.slane %v4257, 7
      %v4260 = vrot.slane %v4259, 1
      %v4261 = vshll.u32 %v3809, 16
      %v4263 = vsel %vm1044, %v4260, %v4261
      %v4264 = vshrl.u32 %v3809, 16
      %v4266 = vrot.slane %v4264, 7
      %v4267 = vrot.slane %v4266, 1
      %v4269 = vshll.u32 %v4207, 16
      %v4271 = vsel %vm1044, %v4267, %v4269
      %4272 = vst [vmem:[#allocation1] ss:$9 sm:$0xff] %v1122
      %s4273 = scalar_lea.vmem [#allocation1], 1
      %4274 = vst [vmem:[%s4273] ss:$9 sm:$0xff] %v1130
      %s4275 = scalar_lea.vmem [#allocation1], 2
      %4276 = vst [vmem:[%s4275] ss:$9 sm:$0xff] %v1138
      %s4277 = scalar_lea.vmem [#allocation1], 3
      %4278 = vst [vmem:[%s4277] ss:$9 sm:$0xff] %v1145
      %s4279 = scalar_lea.vmem [#allocation1], 4
      %4280 = vst [vmem:[%s4279] ss:$9 sm:$0xff] %v1153
      %s4281 = scalar_lea.vmem [#allocation1], 5
      %4282 = vst [vmem:[%s4281] ss:$9 sm:$0xff] %v1161
      %s4283 = scalar_lea.vmem [#allocation1], 6
      %4284 = vst [vmem:[%s4283] ss:$9 sm:$0xff] %v1169
      %s4285 = scalar_lea.vmem [#allocation1], 7
      %4286 = vst [vmem:[%s4285] ss:$9 sm:$0xff] %v1176
      %v4287 = vld [vmem:[#allocation1] sm:$0xff]
      %4288 = vst [vmem:[#allocation1] ss:$9 sm:$0xff] %v1184
      %4289 = vst [vmem:[%s4273] ss:$9 sm:$0xff] %v1192
      %4290 = vst [vmem:[%s4275] ss:$9 sm:$0xff] %v1200
      %4291 = vst [vmem:[%s4277] ss:$9 sm:$0xff] %v1208
      %4292 = vst [vmem:[%s4279] ss:$9 sm:$0xff] %v1215
      %4293 = vst [vmem:[%s4281] ss:$9 sm:$0xff] %v1223
      %4294 = vst [vmem:[%s4283] ss:$9 sm:$0xff] %v1231
      %4295 = vst [vmem:[%s4285] ss:$9 sm:$0xff] %v1239
      %v4296 = vld [vmem:[#allocation1] sm:$0xff]
      %4297 = vst [vmem:[#allocation1] ss:$9 sm:$0xff] %v1246
      %4298 = vst [vmem:[%s4273] ss:$9 sm:$0xff] %v1254
      %4299 = vst [vmem:[%s4275] ss:$9 sm:$0xff] %v1262
      %4300 = vst [vmem:[%s4277] ss:$9 sm:$0xff] %v1270
      %4301 = vst [vmem:[%s4279] ss:$9 sm:$0xff] %v1278
      %4302 = vst [vmem:[%s4281] ss:$9 sm:$0xff] %v1285
      %4303 = vst [vmem:[%s4283] ss:$9 sm:$0xff] %v1293
      %4304 = vst [vmem:[%s4285] ss:$9 sm:$0xff] %v1301
      %v4305 = vld [vmem:[#allocation1] sm:$0xff]
      %4306 = vst [vmem:[#allocation1] ss:$9 sm:$0xff] %v1309
      %4307 = vst [vmem:[%s4273] ss:$9 sm:$0xff] %v1316
      %4308 = vst [vmem:[%s4275] ss:$9 sm:$0xff] %v1324
      %4309 = vst [vmem:[%s4277] ss:$9 sm:$0xff] %v1332
      %4310 = vst [vmem:[%s4279] ss:$9 sm:$0xff] %v1340
      %4311 = vst [vmem:[%s4281] ss:$9 sm:$0xff] %v1348
      %4312 = vst [vmem:[%s4283] ss:$9 sm:$0xff] %v1355
      %4313 = vst [vmem:[%s4285] ss:$9 sm:$0xff] %v1363
      %v4314 = vld [vmem:[#allocation1] sm:$0xff]
      %4315 = vst [vmem:[#allocation1] ss:$9 sm:$0xff] %v1371
      %4316 = vst [vmem:[%s4273] ss:$9 sm:$0xff] %v1379
      %4317 = vst [vmem:[%s4275] ss:$9 sm:$0xff] %v1386
      %4318 = vst [vmem:[%s4277] ss:$9 sm:$0xff] %v1394
      %4319 = vst [vmem:[%s4279] ss:$9 sm:$0xff] %v1402
      %4320 = vst [vmem:[%s4281] ss:$9 sm:$0xff] %v1410
      %4321 = vst [vmem:[%s4283] ss:$9 sm:$0xff] %v1418
      %4322 = vst [vmem:[%s4285] ss:$9 sm:$0xff] %v1425
      %v4323 = vld [vmem:[#allocation1] sm:$0xff]
      %4324 = vst [vmem:[#allocation1] ss:$9 sm:$0xff] %v1433
      %4325 = vst [vmem:[%s4273] ss:$9 sm:$0xff] %v1441
      %4326 = vst [vmem:[%s4275] ss:$9 sm:$0xff] %v1449
      %4327 = vst [vmem:[%s4277] ss:$9 sm:$0xff] %v1456
      %4328 = vst [vmem:[%s4279] ss:$9 sm:$0xff] %v1464
      %4329 = vst [vmem:[%s4281] ss:$9 sm:$0xff] %v1472
      %4330 = vst [vmem:[%s4283] ss:$9 sm:$0xff] %v1480
      %4331 = vst [vmem:[%s4285] ss:$9 sm:$0xff] %v1488
      %v4332 = vld [vmem:[#allocation1] sm:$0xff]
      %4333 = vst [vmem:[#allocation1] ss:$9 sm:$0xff] %v1495
      %4334 = vst [vmem:[%s4273] ss:$9 sm:$0xff] %v1503
      %4335 = vst [vmem:[%s4275] ss:$9 sm:$0xff] %v1511
      %4336 = vst [vmem:[%s4277] ss:$9 sm:$0xff] %v1519
      %4337 = vst [vmem:[%s4279] ss:$9 sm:$0xff] %v1526
      %4338 = vst [vmem:[%s4281] ss:$9 sm:$0xff] %v1534
      %4339 = vst [vmem:[%s4283] ss:$9 sm:$0xff] %v1542
      %4340 = vst [vmem:[%s4285] ss:$9 sm:$0xff] %v1550
      %v4341 = vld [vmem:[#allocation1] sm:$0xff]
      %4342 = vst [vmem:[#allocation1] ss:$9 sm:$0xff] %v1558
      %4343 = vst [vmem:[%s4273] ss:$9 sm:$0xff] %v1565
      %4344 = vst [vmem:[%s4275] ss:$9 sm:$0xff] %v1573
      %4345 = vst [vmem:[%s4277] ss:$9 sm:$0xff] %v1581
      %4346 = vst [vmem:[%s4279] ss:$9 sm:$0xff] %v1589
      %4347 = vst [vmem:[%s4281] ss:$9 sm:$0xff] %v1596
      %4348 = vst [vmem:[%s4283] ss:$9 sm:$0xff] %v1604
      %4349 = vst [vmem:[%s4285] ss:$9 sm:$0xff] %v1612
      %v4350 = vld [vmem:[#allocation1] sm:$0xff]
      %4351 = vst [vmem:[#allocation1] ss:$9 sm:$0xff] %v1620
      %4352 = vst [vmem:[%s4273] ss:$9 sm:$0xff] %v1628
      %4353 = vst [vmem:[%s4275] ss:$9 sm:$0xff] %v1635
      %4354 = vst [vmem:[%s4277] ss:$9 sm:$0xff] %v1643
      %4355 = vst [vmem:[%s4279] ss:$9 sm:$0xff] %v1651
      %4356 = vst [vmem:[%s4281] ss:$9 sm:$0xff] %v1659
      %4357 = vst [vmem:[%s4283] ss:$9 sm:$0xff] %v1666
      %4358 = vst [vmem:[%s4285] ss:$9 sm:$0xff] %v1674
      %v4359 = vld [vmem:[#allocation1] sm:$0xff]
      %4360 = vst [vmem:[#allocation1] ss:$9 sm:$0xff] %v1682
      %4361 = vst [vmem:[%s4273] ss:$9 sm:$0xff] %v1690
      %4362 = vst [vmem:[%s4275] ss:$9 sm:$0xff] %v1698
      %4363 = vst [vmem:[%s4277] ss:$9 sm:$0xff] %v1705
      %4364 = vst [vmem:[%s4279] ss:$9 sm:$0xff] %v1713
      %4365 = vst [vmem:[%s4281] ss:$9 sm:$0xff] %v1721
      %4366 = vst [vmem:[%s4283] ss:$9 sm:$0xff] %v1729
      %4367 = vst [vmem:[%s4285] ss:$9 sm:$0xff] %v1736
      %v4368 = vld [vmem:[#allocation1] sm:$0xff]
      %4369 = vst [vmem:[#allocation1] ss:$9 sm:$0xff] %v1744
      %4370 = vst [vmem:[%s4273] ss:$9 sm:$0xff] %v1752
      %4371 = vst [vmem:[%s4275] ss:$9 sm:$0xff] %v1760
      %4372 = vst [vmem:[%s4277] ss:$9 sm:$0xff] %v1768
      %4373 = vst [vmem:[%s4279] ss:$9 sm:$0xff] %v1775
      %4374 = vst [vmem:[%s4281] ss:$9 sm:$0xff] %v1783
      %4375 = vst [vmem:[%s4283] ss:$9 sm:$0xff] %v1791
      %4376 = vst [vmem:[%s4285] ss:$9 sm:$0xff] %v1799
      %v4377 = vld [vmem:[#allocation1] sm:$0xff]
      %4378 = vst [vmem:[#allocation1] ss:$9 sm:$0xff] %v1806
      %4379 = vst [vmem:[%s4273] ss:$9 sm:$0xff] %v1814
      %4380 = vst [vmem:[%s4275] ss:$9 sm:$0xff] %v1822
      %4381 = vst [vmem:[%s4277] ss:$9 sm:$0xff] %v1830
      %4382 = vst [vmem:[%s4279] ss:$9 sm:$0xff] %v1838
      %4383 = vst [vmem:[%s4281] ss:$9 sm:$0xff] %v1845
      %4384 = vst [vmem:[%s4283] ss:$9 sm:$0xff] %v1853
      %4385 = vst [vmem:[%s4285] ss:$9 sm:$0xff] %v1861
      %v4386 = vld [vmem:[#allocation1] sm:$0xff]
      %4387 = vst [vmem:[#allocation1] ss:$9 sm:$0xff] %v1869
      %4388 = vst [vmem:[%s4273] ss:$9 sm:$0xff] %v1876
      %4389 = vst [vmem:[%s4275] ss:$9 sm:$0xff] %v1884
      %4390 = vst [vmem:[%s4277] ss:$9 sm:$0xff] %v1892
      %4391 = vst [vmem:[%s4279] ss:$9 sm:$0xff] %v1900
      %4392 = vst [vmem:[%s4281] ss:$9 sm:$0xff] %v1908
      %4393 = vst [vmem:[%s4283] ss:$9 sm:$0xff] %v1915
      %4394 = vst [vmem:[%s4285] ss:$9 sm:$0xff] %v1923
      %v4395 = vld [vmem:[#allocation1] sm:$0xff]
      %4396 = vst [vmem:[#allocation1] ss:$9 sm:$0xff] %v1931
      %4397 = vst [vmem:[%s4273] ss:$9 sm:$0xff] %v1939
      %4398 = vst [vmem:[%s4275] ss:$9 sm:$0xff] %v1946
      %4399 = vst [vmem:[%s4277] ss:$9 sm:$0xff] %v1954
      %4400 = vst [vmem:[%s4279] ss:$9 sm:$0xff] %v1962
      %4401 = vst [vmem:[%s4281] ss:$9 sm:$0xff] %v1970
      %4402 = vst [vmem:[%s4283] ss:$9 sm:$0xff] %v1978
      %4403 = vst [vmem:[%s4285] ss:$9 sm:$0xff] %v1985
      %v4404 = vld [vmem:[#allocation1] sm:$0xff]
      %4405 = vst [vmem:[#allocation1] ss:$9 sm:$0xff] %v1993
      %4406 = vst [vmem:[%s4273] ss:$9 sm:$0xff] %v2001
      %4407 = vst [vmem:[%s4275] ss:$9 sm:$0xff] %v2009
      %4408 = vst [vmem:[%s4277] ss:$9 sm:$0xff] %v2016
      %4409 = vst [vmem:[%s4279] ss:$9 sm:$0xff] %v2024
      %4410 = vst [vmem:[%s4281] ss:$9 sm:$0xff] %v2032
      %4411 = vst [vmem:[%s4283] ss:$9 sm:$0xff] %v2040
      %4412 = vst [vmem:[%s4285] ss:$9 sm:$0xff] %v2048
      %v4413 = vld [vmem:[#allocation1] sm:$0xff]
      %4414 = vst [vmem:[#allocation1] ss:$9 sm:$0xff] %v2055
      %4415 = vst [vmem:[%s4273] ss:$9 sm:$0xff] %v2063
      %4416 = vst [vmem:[%s4275] ss:$9 sm:$0xff] %v2071
      %4417 = vst [vmem:[%s4277] ss:$9 sm:$0xff] %v2079
      %4418 = vst [vmem:[%s4279] ss:$9 sm:$0xff] %v2086
      %4419 = vst [vmem:[%s4281] ss:$9 sm:$0xff] %v2094
      %4420 = vst [vmem:[%s4283] ss:$9 sm:$0xff] %v2102
      %4421 = vst [vmem:[%s4285] ss:$9 sm:$0xff] %v2110
      %v4422 = vld [vmem:[#allocation1] sm:$0xff]
      %4423 = vst [vmem:[#allocation1] ss:$9 sm:$0xff] %v2118
      %4424 = vst [vmem:[%s4273] ss:$9 sm:$0xff] %v2125
      %4425 = vst [vmem:[%s4275] ss:$9 sm:$0xff] %v2133
      %4426 = vst [vmem:[%s4277] ss:$9 sm:$0xff] %v2141
      %4427 = vst [vmem:[%s4279] ss:$9 sm:$0xff] %v2149
      %4428 = vst [vmem:[%s4281] ss:$9 sm:$0xff] %v2156
      %4429 = vst [vmem:[%s4283] ss:$9 sm:$0xff] %v2164
      %4430 = vst [vmem:[%s4285] ss:$9 sm:$0xff] %v2172
      %v4431 = vld [vmem:[#allocation1] sm:$0xff]
      %4432 = vst [vmem:[#allocation1] ss:$9 sm:$0xff] %v2180
      %4433 = vst [vmem:[%s4273] ss:$9 sm:$0xff] %v2188
      %4434 = vst [vmem:[%s4275] ss:$9 sm:$0xff] %v2195
      %4435 = vst [vmem:[%s4277] ss:$9 sm:$0xff] %v2203
      %4436 = vst [vmem:[%s4279] ss:$9 sm:$0xff] %v2211
      %4437 = vst [vmem:[%s4281] ss:$9 sm:$0xff] %v2219
      %4438 = vst [vmem:[%s4283] ss:$9 sm:$0xff] %v2226
      %4439 = vst [vmem:[%s4285] ss:$9 sm:$0xff] %v2234
      %v4440 = vld [vmem:[#allocation1] sm:$0xff]
      %4441 = vst [vmem:[#allocation1] ss:$9 sm:$0xff] %v2242
      %4442 = vst [vmem:[%s4273] ss:$9 sm:$0xff] %v2250
      %4443 = vst [vmem:[%s4275] ss:$9 sm:$0xff] %v2258
      %4444 = vst [vmem:[%s4277] ss:$9 sm:$0xff] %v2265
      %4445 = vst [vmem:[%s4279] ss:$9 sm:$0xff] %v2273
      %4446 = vst [vmem:[%s4281] ss:$9 sm:$0xff] %v2281
      %4447 = vst [vmem:[%s4283] ss:$9 sm:$0xff] %v2289
      %4448 = vst [vmem:[%s4285] ss:$9 sm:$0xff] %v2296
      %v4449 = vld [vmem:[#allocation1] sm:$0xff]
      %4450 = vst [vmem:[#allocation1] ss:$9 sm:$0xff] %v2304
      %4452 = vst [vmem:[%s4273] ss:$9 sm:$0xff] %v4214
      %4454 = vst [vmem:[%s4275] ss:$9 sm:$0xff] %v4221
      %4456 = vst [vmem:[%s4277] ss:$9 sm:$0xff] %v4228
      %4458 = vst [vmem:[%s4279] ss:$9 sm:$0xff] %v4235
      %4460 = vst [vmem:[%s4281] ss:$9 sm:$0xff] %v4242
      %4462 = vst [vmem:[%s4283] ss:$9 sm:$0xff] %v4249
      %4464 = vst [vmem:[%s4285] ss:$9 sm:$0xff] %v4256
      %v4465 = vld [vmem:[#allocation1] sm:$0xff]
      %4467 = vst [vmem:[#allocation1] ss:$9 sm:$0xff] %v4263
      %4469 = vst [vmem:[%s4273] ss:$9 sm:$0xff] %v4271
      %v4470 = vld [vmem:[#allocation1] sm:$0xff]
      %v4471 = vsel %vm2657, %v4287, 0
      %v4473 = vsel %vm2657, %v4296, 0
      %v4475 = vsel %vm2657, %v4305, 0
      %v4477 = vsel %vm2657, %v4314, 0
      %v4479 = vsel %vm2657, %v4323, 0
      %v4481 = vsel %vm2657, %v4332, 0
      %v4483 = vsel %vm2657, %v4341, 0
      %v4485 = vsel %vm2657, %v4350, 0
      %v4487 = vsel %vm2657, %v4359, 0
      %v4489 = vsel %vm2657, %v4368, 0
      %v4491 = vsel %vm2657, %v4377, 0
      %v4493 = vsel %vm2657, %v4386, 0
      %v4495 = vsel %vm2657, %v4395, 0
      %v4497 = vsel %vm2657, %v4404, 0
      %v4499 = vsel %vm2657, %v4413, 0
      %v4501 = vsel %vm2657, %v4422, 0
      %v4503 = vsel %vm2657, %v4431, 0
      %v4505 = vsel %vm2657, %v4440, 0
      %v4507 = vsel %vm2657, %v4449, 0
      %v4509 = vsel %vm2657, %v4465, 0
      %v4511 = vsel %vm2657, %v4470, 0
      %v4514 = vsel %vm2700, %v373, 0
      %4516 = vmatpush.bf16.msra.mxu0 0
      %4517 = vmatpush.bf16.msra.mxu0 0
      %4518 = vmatpush.bf16.msra.mxu0 0
      %4519 = vmatpush.bf16.msra.mxu0 0
      %4520 = vmatpush.bf16.msra.mxu0 0
      %4521 = vmatpush.bf16.msra.mxu0 0
      %4522 = vmatpush.bf16.msra.mxu0 0
      %4523 = vmatpush.bf16.msra.mxu0 %v4514
      %4524 = vmatmul.bf16.gmra.mxu0 %v4471
      %v4525 = vpop.f32.mrf.mxu0
      %v4526 = vadd.f32 0.0, %v4525
      %v4527 = vpop.f32.mrf.mxu0
      %v4528 = vadd.f32 0.0, %v4527
      %4529 = vmatmul.bf16.gmra.mxu0 %v4473
      %v4530 = vpop.f32.mrf.mxu0
      %v4531 = vadd.f32 0.0, %v4530
      %v4532 = vpop.f32.mrf.mxu0
      %v4533 = vadd.f32 0.0, %v4532
      %4534 = vmatmul.bf16.gmra.mxu0 %v4475
      %v4535 = vpop.f32.mrf.mxu0
      %v4536 = vadd.f32 0.0, %v4535
      %v4537 = vpop.f32.mrf.mxu0
      %v4538 = vadd.f32 0.0, %v4537
      %4539 = vmatmul.bf16.gmra.mxu0 %v4477
      %v4540 = vpop.f32.mrf.mxu0
      %v4541 = vadd.f32 0.0, %v4540
      %v4542 = vpop.f32.mrf.mxu0
      %v4543 = vadd.f32 0.0, %v4542
      %4544 = vmatmul.bf16.gmra.mxu0 %v4479
      %v4545 = vpop.f32.mrf.mxu0
      %v4546 = vadd.f32 0.0, %v4545
      %v4547 = vpop.f32.mrf.mxu0
      %v4548 = vadd.f32 0.0, %v4547
      %4549 = vmatmul.bf16.gmra.mxu0 %v4481
      %v4550 = vpop.f32.mrf.mxu0
      %v4551 = vadd.f32 0.0, %v4550
      %v4552 = vpop.f32.mrf.mxu0
      %v4553 = vadd.f32 0.0, %v4552
      %4554 = vmatmul.bf16.gmra.mxu0 %v4483
      %v4555 = vpop.f32.mrf.mxu0
      %v4556 = vadd.f32 0.0, %v4555
      %v4557 = vpop.f32.mrf.mxu0
      %v4558 = vadd.f32 0.0, %v4557
      %4559 = vmatmul.bf16.gmra.mxu0 %v4485
      %v4560 = vpop.f32.mrf.mxu0
      %v4561 = vadd.f32 0.0, %v4560
      %v4562 = vpop.f32.mrf.mxu0
      %v4563 = vadd.f32 0.0, %v4562
      %4564 = vmatmul.bf16.gmra.mxu0 %v4487
      %v4565 = vpop.f32.mrf.mxu0
      %v4566 = vadd.f32 0.0, %v4565
      %v4567 = vpop.f32.mrf.mxu0
      %v4568 = vadd.f32 0.0, %v4567
      %4569 = vmatmul.bf16.gmra.mxu0 %v4489
      %v4570 = vpop.f32.mrf.mxu0
      %v4571 = vadd.f32 0.0, %v4570
      %v4572 = vpop.f32.mrf.mxu0
      %v4573 = vadd.f32 0.0, %v4572
      %4574 = vmatmul.bf16.gmra.mxu0 %v4491
      %v4575 = vpop.f32.mrf.mxu0
      %v4576 = vadd.f32 0.0, %v4575
      %v4577 = vpop.f32.mrf.mxu0
      %v4578 = vadd.f32 0.0, %v4577
      %4579 = vmatmul.bf16.gmra.mxu0 %v4493
      %v4580 = vpop.f32.mrf.mxu0
      %v4581 = vadd.f32 0.0, %v4580
      %v4582 = vpop.f32.mrf.mxu0
      %v4583 = vadd.f32 0.0, %v4582
      %4584 = vmatmul.bf16.gmra.mxu0 %v4495
      %v4585 = vpop.f32.mrf.mxu0
      %v4586 = vadd.f32 0.0, %v4585
      %v4587 = vpop.f32.mrf.mxu0
      %v4588 = vadd.f32 0.0, %v4587
      %4589 = vmatmul.bf16.gmra.mxu0 %v4497
      %v4590 = vpop.f32.mrf.mxu0
      %v4591 = vadd.f32 0.0, %v4590
      %v4592 = vpop.f32.mrf.mxu0
      %v4593 = vadd.f32 0.0, %v4592
      %4594 = vmatmul.bf16.gmra.mxu0 %v4499
      %v4595 = vpop.f32.mrf.mxu0
      %v4596 = vadd.f32 0.0, %v4595
      %v4597 = vpop.f32.mrf.mxu0
      %v4598 = vadd.f32 0.0, %v4597
      %4599 = vmatmul.bf16.gmra.mxu0 %v4501
      %v4600 = vpop.f32.mrf.mxu0
      %v4601 = vadd.f32 0.0, %v4600
      %v4602 = vpop.f32.mrf.mxu0
      %v4603 = vadd.f32 0.0, %v4602
      %4604 = vmatmul.bf16.gmra.mxu0 %v4503
      %v4605 = vpop.f32.mrf.mxu0
      %v4606 = vadd.f32 0.0, %v4605
      %v4607 = vpop.f32.mrf.mxu0
      %v4608 = vadd.f32 0.0, %v4607
      %4609 = vmatmul.bf16.gmra.mxu0 %v4505
      %v4610 = vpop.f32.mrf.mxu0
      %v4611 = vadd.f32 0.0, %v4610
      %v4612 = vpop.f32.mrf.mxu0
      %v4613 = vadd.f32 0.0, %v4612
      %4614 = vmatmul.bf16.gmra.mxu0 %v4507
      %v4615 = vpop.f32.mrf.mxu0
      %v4616 = vadd.f32 0.0, %v4615
      %v4617 = vpop.f32.mrf.mxu0
      %v4618 = vadd.f32 0.0, %v4617
      %4619 = vmatmul.bf16.gmra.mxu0 %v4509
      %v4620 = vpop.f32.mrf.mxu0
      %v4621 = vadd.f32 0.0, %v4620
      %v4622 = vpop.f32.mrf.mxu0
      %v4623 = vadd.f32 0.0, %v4622
      %4624 = vmatmul.bf16.gmra.mxu0 %v4511
      %v4625 = vpop.f32.mrf.mxu0
      %v4626 = vadd.f32 0.0, %v4625
      %v4627 = vpop.f32.mrf.mxu0
      %4628 = vdwg.mxu0
      %v4629 = vadd.f32 %v4164, %v4526
      %v4630 = vadd.f32 %v4165, %v4528
      %v4631 = vadd.f32 %v4166, %v4531
      %v4632 = vadd.f32 %v4167, %v4533
      %v4633 = vadd.f32 %v4168, %v4536
      %v4634 = vadd.f32 %v4169, %v4538
      %v4635 = vadd.f32 %v4170, %v4541
      %v4636 = vadd.f32 %v4171, %v4543
      %v4637 = vadd.f32 %v4172, %v4546
      %v4638 = vadd.f32 %v4173, %v4548
      %v4639 = vadd.f32 %v4174, %v4551
      %v4640 = vadd.f32 %v4175, %v4553
      %v4641 = vadd.f32 %v4176, %v4556
      %v4642 = vadd.f32 %v4177, %v4558
      %v4643 = vadd.f32 %v4178, %v4561
      %v4644 = vadd.f32 %v4179, %v4563
      %v4645 = vadd.f32 %v4180, %v4566
      %v4646 = vadd.f32 %v4181, %v4568
      %v4647 = vadd.f32 %v4182, %v4571
      %v4648 = vadd.f32 %v4183, %v4573
      %v4649 = vadd.f32 %v4184, %v4576
      %v4650 = vadd.f32 %v4185, %v4578
      %v4651 = vadd.f32 %v4186, %v4581
      %v4652 = vadd.f32 %v4187, %v4583
      %v4653 = vadd.f32 %v4188, %v4586
      %v4654 = vadd.f32 %v4189, %v4588
      %v4655 = vadd.f32 %v4190, %v4591
      %v4656 = vadd.f32 %v4191, %v4593
      %v4657 = vadd.f32 %v4192, %v4596
      %v4658 = vadd.f32 %v4193, %v4598
      %v4659 = vadd.f32 %v4194, %v4601
      %v4660 = vadd.f32 %v4195, %v4603
      %v4661 = vadd.f32 %v4196, %v4606
      %v4662 = vadd.f32 %v4197, %v4608
      %v4663 = vadd.f32 %v4198, %v4611
      %v4664 = vadd.f32 %v4199, %v4613
      %v4665 = vadd.f32 %v4200, %v4616
      %v4666 = vadd.f32 %v4201, %v4618
      %v4667 = vadd.f32 %v4202, %v4621
      %v4668 = vadd.f32 %v4203, %v4623
      %v4669 = vadd.f32 %v4204, %v4626
      %4670 = vst [vmem:[#allocation1] sm:$0xff] %v312
      %4671 = vst [vmem:[#allocation1 + $0x20] sm:$0xff] %v313
      %s4672 = scalar_lea.vmem [#allocation1], 1
      %v4673 = vld [vmem:[%s4672] ss:$4 sm:$0xff]
      %s4674 = scalar_lea.vmem [#allocation1], 2
      %v4675 = vld [vmem:[%s4674] ss:$4 sm:$0xff]
      %s4676 = scalar_lea.vmem [#allocation1], 3
      %v4677 = vld [vmem:[%s4676] ss:$4 sm:$0xff]
      %s4678 = scalar_lea.vmem [#allocation1], 32
      %v4679 = vld [vmem:[%s4678] ss:$4 sm:$0xff]
      %s4680 = scalar_lea.vmem [#allocation1], 33
      %v4681 = vld [vmem:[%s4680] ss:$4 sm:$0xff]
      %s4682 = scalar_lea.vmem [#allocation1], 34
      %v4683 = vld [vmem:[%s4682] ss:$4 sm:$0xff]
      %s4684 = scalar_lea.vmem [#allocation1], 35
      %v4685 = vld [vmem:[%s4684] ss:$4 sm:$0xff]
      %4686 = vst [vmem:[#allocation1] sm:$0xff] %v314
      %v4687 = vld [vmem:[#allocation1] ss:$4 sm:$0xff]
      %v4688 = vld [vmem:[%s4672] ss:$4 sm:$0xff]
      %4689 = vst [vmem:[#allocation1 + $0x20] sm:$0xff] %v315
      %v4690 = vld [vmem:[%s4680] ss:$4 sm:$0xff]
      %v4691 = vld [vmem:[%s4682] ss:$4 sm:$0xff]
      %v4692 = vld [vmem:[%s4684] ss:$4 sm:$0xff]
      %4693 = vst [vmem:[#allocation1] sm:$0xff] %v316
      %4694 = vst [vmem:[#allocation1 + $0x20] sm:$0xff] %v317
      %v4695 = vld [vmem:[#allocation1] ss:$4 sm:$0xff]
      %v4696 = vld [vmem:[%s4672] ss:$4 sm:$0xff]
      %v4697 = vld [vmem:[%s4674] ss:$4 sm:$0xff]
      %v4698 = vld [vmem:[%s4676] ss:$4 sm:$0xff]
      %v4699 = vld [vmem:[%s4678] ss:$4 sm:$0xff]
      %v4700 = vld [vmem:[%s4680] ss:$4 sm:$0xff]
      %4701 = vst [vmem:[#allocation1] sm:$0xff] %v318
      %4702 = vst [vmem:[#allocation1 + $0x20] sm:$0xff] %v319
      %v4703 = vld [vmem:[%s4672] ss:$4 sm:$0xff]
      %v4704 = vld [vmem:[%s4674] ss:$4 sm:$0xff]
      %v4705 = vld [vmem:[%s4676] ss:$4 sm:$0xff]
      %v4706 = vld [vmem:[%s4678] ss:$4 sm:$0xff]
      %v4707 = vld [vmem:[%s4680] ss:$4 sm:$0xff]
      %v4708 = vld [vmem:[%s4682] ss:$4 sm:$0xff]
      %v4709 = vld [vmem:[%s4684] ss:$4 sm:$0xff]
      %4710 = vst [vmem:[#allocation1] sm:$0xff] %v320
      %v4711 = vld [vmem:[#allocation1] ss:$4 sm:$0xff]
      %v4712 = vld [vmem:[%s4672] ss:$4 sm:$0xff]
      %4713 = vst [vmem:[#allocation1 + $0x20] sm:$0xff] %v321
      %v4714 = vld [vmem:[%s4680] ss:$4 sm:$0xff]
      %v4715 = vld [vmem:[%s4682] ss:$4 sm:$0xff]
      %v4716 = vld [vmem:[%s4684] ss:$4 sm:$0xff]
      %4717 = vst [vmem:[#allocation1] sm:$0xff] %v322
      %4718 = vst [vmem:[#allocation1 + $0x20] sm:$0xff] %v323
      %v4719 = vld [vmem:[#allocation1] ss:$4 sm:$0xff]
      %v4720 = vld [vmem:[%s4672] ss:$4 sm:$0xff]
      %v4721 = vld [vmem:[%s4674] ss:$4 sm:$0xff]
      %v4722 = vld [vmem:[%s4676] ss:$4 sm:$0xff]
      %v4723 = vld [vmem:[%s4678] ss:$4 sm:$0xff]
      %v4724 = vld [vmem:[%s4680] ss:$4 sm:$0xff]
      %4725 = vst [vmem:[#allocation1] sm:$0xff] %v324
      %4726 = vst [vmem:[#allocation1 + $0x20] sm:$0xff] %v325
      %v4727 = vld [vmem:[%s4672] ss:$4 sm:$0xff]
      %v4728 = vld [vmem:[%s4674] ss:$4 sm:$0xff]
      %v4729 = vld [vmem:[%s4676] ss:$4 sm:$0xff]
      %v4730 = vld [vmem:[%s4678] ss:$4 sm:$0xff]
      %v4731 = vld [vmem:[%s4680] ss:$4 sm:$0xff]
      %v4732 = vld [vmem:[%s4682] ss:$4 sm:$0xff]
      %v4733 = vld [vmem:[%s4684] ss:$4 sm:$0xff]
      %4734 = vst [vmem:[#allocation1] sm:$0xff] %v326
      %v4735 = vld [vmem:[#allocation1] ss:$4 sm:$0xff]
      %v4736 = vld [vmem:[%s4672] ss:$4 sm:$0xff]
      %4737 = vst [vmem:[#allocation1 + $0x20] sm:$0xff] %v327
      %v4738 = vld [vmem:[%s4680] ss:$4 sm:$0xff]
      %v4739 = vld [vmem:[%s4682] ss:$4 sm:$0xff]
      %v4740 = vld [vmem:[%s4684] ss:$4 sm:$0xff]
      %4741 = vst [vmem:[#allocation1] sm:$0xff] %v328
      %4742 = vst [vmem:[#allocation1 + $0x20] sm:$0xff] %v329
      %v4743 = vld [vmem:[#allocation1] ss:$4 sm:$0xff]
      %v4744 = vld [vmem:[%s4672] ss:$4 sm:$0xff]
      %v4745 = vld [vmem:[%s4674] ss:$4 sm:$0xff]
      %v4746 = vld [vmem:[%s4676] ss:$4 sm:$0xff]
      %v4747 = vld [vmem:[%s4678] ss:$4 sm:$0xff]
      %v4748 = vld [vmem:[%s4680] ss:$4 sm:$0xff]
      %4749 = vst [vmem:[#allocation1] sm:$0xff] %v330
      %4750 = vst [vmem:[#allocation1 + $0x20] sm:$0xff] %v331
      %v4751 = vld [vmem:[%s4672] ss:$4 sm:$0xff]
      %v4752 = vld [vmem:[%s4674] ss:$4 sm:$0xff]
      %v4753 = vld [vmem:[%s4676] ss:$4 sm:$0xff]
      %v4754 = vld [vmem:[%s4678] ss:$4 sm:$0xff]
      %v4755 = vld [vmem:[%s4680] ss:$4 sm:$0xff]
      %v4756 = vld [vmem:[%s4682] ss:$4 sm:$0xff]
      %v4757 = vld [vmem:[%s4684] ss:$4 sm:$0xff]
      %4758 = vst [vmem:[#allocation1] sm:$0xff] %v332
      %v4759 = vld [vmem:[#allocation1] ss:$4 sm:$0xff]
      %v4760 = vld [vmem:[%s4672] ss:$4 sm:$0xff]
      %4761 = vst [vmem:[#allocation1 + $0x20] sm:$0xff] %v333
      %v4762 = vld [vmem:[%s4680] ss:$4 sm:$0xff]
      %v4763 = vld [vmem:[%s4682] ss:$4 sm:$0xff]
      %v4764 = vld [vmem:[%s4684] ss:$4 sm:$0xff]
      %4765 = vst [vmem:[#allocation1] sm:$0xff] %v334
      %4766 = vst [vmem:[#allocation1 + $0x20] sm:$0xff] %v335
      %v4767 = vld [vmem:[#allocation1] ss:$4 sm:$0xff]
      %v4768 = vld [vmem:[%s4672] ss:$4 sm:$0xff]
      %v4769 = vld [vmem:[%s4674] ss:$4 sm:$0xff]
      %v4770 = vld [vmem:[%s4676] ss:$4 sm:$0xff]
      %v4771 = vld [vmem:[%s4678] ss:$4 sm:$0xff]
      %v4772 = vld [vmem:[%s4680] ss:$4 sm:$0xff]
      %4773 = vst [vmem:[#allocation1] sm:$0xff] %v336
      %4774 = vst [vmem:[#allocation1 + $0x20] sm:$0xff] %v337
      %v4775 = vld [vmem:[%s4672] ss:$4 sm:$0xff]
      %v4776 = vld [vmem:[%s4674] ss:$4 sm:$0xff]
      %v4777 = vld [vmem:[%s4676] ss:$4 sm:$0xff]
      %v4778 = vld [vmem:[%s4678] ss:$4 sm:$0xff]
      %v4779 = vld [vmem:[%s4680] ss:$4 sm:$0xff]
      %v4780 = vld [vmem:[%s4682] ss:$4 sm:$0xff]
      %v4781 = vld [vmem:[%s4684] ss:$4 sm:$0xff]
      %4782 = vst [vmem:[#allocation1] sm:$0xff] %v338
      %v4783 = vld [vmem:[#allocation1] ss:$4 sm:$0xff]
      %v4784 = vld [vmem:[%s4672] ss:$4 sm:$0xff]
      %4785 = vst [vmem:[#allocation1 + $0x20] sm:$0xff] %v339
      %v4786 = vld [vmem:[%s4680] ss:$4 sm:$0xff]
      %v4787 = vld [vmem:[%s4682] ss:$4 sm:$0xff]
      %v4788 = vld [vmem:[%s4684] ss:$4 sm:$0xff]
      %4789 = vst [vmem:[#allocation1] sm:$0xff] %v340
      %4790 = vst [vmem:[#allocation1 + $0x20] sm:$0xff] %v341
      %v4791 = vld [vmem:[#allocation1] ss:$4 sm:$0xff]
      %v4792 = vld [vmem:[%s4672] ss:$4 sm:$0xff]
      %v4793 = vld [vmem:[%s4674] ss:$4 sm:$0xff]
      %v4794 = vld [vmem:[%s4676] ss:$4 sm:$0xff]
      %v4795 = vld [vmem:[%s4678] ss:$4 sm:$0xff]
      %v4796 = vld [vmem:[%s4680] ss:$4 sm:$0xff]
      %4797 = vst [vmem:[#allocation1] sm:$0xff] %v342
      %4798 = vst [vmem:[#allocation1 + $0x20] sm:$0xff] %v343
      %v4799 = vld [vmem:[%s4672] ss:$4 sm:$0xff]
      %v4800 = vld [vmem:[%s4674] ss:$4 sm:$0xff]
      %v4801 = vld [vmem:[%s4676] ss:$4 sm:$0xff]
      %v4802 = vld [vmem:[%s4678] ss:$4 sm:$0xff]
      %v4803 = vld [vmem:[%s4680] ss:$4 sm:$0xff]
      %v4804 = vld [vmem:[%s4682] ss:$4 sm:$0xff]
      %v4805 = vld [vmem:[%s4684] ss:$4 sm:$0xff]
      %4806 = vst [vmem:[#allocation1] sm:$0xff] %v344
      %v4807 = vld [vmem:[#allocation1] ss:$4 sm:$0xff]
      %v4808 = vld [vmem:[%s4672] ss:$4 sm:$0xff]
      %4809 = vst [vmem:[#allocation1 + $0x20] sm:$0xff] %v345
      %v4810 = vld [vmem:[%s4680] ss:$4 sm:$0xff]
      %v4811 = vld [vmem:[%s4682] ss:$4 sm:$0xff]
      %v4812 = vld [vmem:[%s4684] ss:$4 sm:$0xff]
      %4813 = vst [vmem:[#allocation1] sm:$0xff] %v346
      %4814 = vst [vmem:[#allocation1 + $0x20] sm:$0xff] %v347
      %v4815 = vld [vmem:[#allocation1] ss:$4 sm:$0xff]
      %v4816 = vld [vmem:[%s4672] ss:$4 sm:$0xff]
      %v4817 = vld [vmem:[%s4674] ss:$4 sm:$0xff]
      %v4818 = vld [vmem:[%s4676] ss:$4 sm:$0xff]
      %v4819 = vld [vmem:[%s4678] ss:$4 sm:$0xff]
      %v4820 = vld [vmem:[%s4680] ss:$4 sm:$0xff]
      %4821 = vst [vmem:[#allocation1] sm:$0xff] %v348
      %4822 = vst [vmem:[#allocation1 + $0x20] sm:$0xff] %v349
      %v4823 = vld [vmem:[%s4672] ss:$4 sm:$0xff]
      %v4824 = vld [vmem:[%s4674] ss:$4 sm:$0xff]
      %v4825 = vld [vmem:[%s4676] ss:$4 sm:$0xff]
      %v4826 = vld [vmem:[%s4678] ss:$4 sm:$0xff]
      %v4827 = vld [vmem:[%s4680] ss:$4 sm:$0xff]
      %v4828 = vld [vmem:[%s4682] ss:$4 sm:$0xff]
      %v4829 = vld [vmem:[%s4684] ss:$4 sm:$0xff]
      %4830 = vst [vmem:[#allocation1] sm:$0xff] %v350
      %v4831 = vld [vmem:[#allocation1] ss:$4 sm:$0xff]
      %v4832 = vld [vmem:[%s4672] ss:$4 sm:$0xff]
      %4833 = vst [vmem:[#allocation1 + $0x20] sm:$0xff] %v351
      %v4834 = vld [vmem:[%s4680] ss:$4 sm:$0xff]
      %v4835 = vld [vmem:[%s4682] ss:$4 sm:$0xff]
      %v4836 = vld [vmem:[%s4684] ss:$4 sm:$0xff]
      %4837 = vst [vmem:[#allocation1] sm:$0xff] %v352
      %4838 = vst [vmem:[#allocation1 + $0x20] sm:$0xff] %v353
      %v4839 = vld [vmem:[#allocation1] ss:$4 sm:$0xff]
      %v4840 = vld [vmem:[%s4672] ss:$4 sm:$0xff]
      %v4841 = vld [vmem:[%s4674] ss:$4 sm:$0xff]
      %v4842 = vld [vmem:[%s4676] ss:$4 sm:$0xff]
      %v4843 = vld [vmem:[%s4678] ss:$4 sm:$0xff]
      %v4844 = vld [vmem:[%s4680] ss:$4 sm:$0xff]
      %4845 = vst [vmem:[#allocation1] sm:$0xff] %v354
      %4846 = vst [vmem:[#allocation1 + $0x20] sm:$0xff] %v355
      %v4847 = vld [vmem:[%s4672] ss:$4 sm:$0xff]
      %v4848 = vld [vmem:[%s4674] ss:$4 sm:$0xff]
      %v4849 = vld [vmem:[%s4676] ss:$4 sm:$0xff]
      %v4850 = vld [vmem:[%s4678] ss:$4 sm:$0xff]
      %v4851 = vld [vmem:[%s4680] ss:$4 sm:$0xff]
      %v4852 = vld [vmem:[%s4682] ss:$4 sm:$0xff]
      %v4853 = vld [vmem:[%s4684] ss:$4 sm:$0xff]
      %4854 = vst [vmem:[#allocation1] sm:$0xff] %v356
      %v4855 = vld [vmem:[#allocation1] ss:$4 sm:$0xff]
      %v4856 = vld [vmem:[%s4672] ss:$4 sm:$0xff]
      %4857 = vst [vmem:[#allocation1 + $0x20] sm:$0xff] %v357
      %v4858 = vld [vmem:[%s4680] ss:$4 sm:$0xff]
      %v4859 = vld [vmem:[%s4682] ss:$4 sm:$0xff]
      %v4860 = vld [vmem:[%s4684] ss:$4 sm:$0xff]
      %4861 = vst [vmem:[#allocation1] sm:$0xff] %v358
      %4862 = vst [vmem:[#allocation1 + $0x20] sm:$0xff] %v359
      %v4863 = vld [vmem:[#allocation1] ss:$4 sm:$0xff]
      %v4864 = vld [vmem:[%s4672] ss:$4 sm:$0xff]
      %v4865 = vld [vmem:[%s4674] ss:$4 sm:$0xff]
      %v4866 = vld [vmem:[%s4676] ss:$4 sm:$0xff]
      %v4867 = vld [vmem:[%s4678] ss:$4 sm:$0xff]
      %v4868 = vld [vmem:[%s4680] ss:$4 sm:$0xff]
      %4869 = vst [vmem:[#allocation1] sm:$0xff] %v360
      %4870 = vst [vmem:[#allocation1 + $0x20] sm:$0xff] %v361
      %v4871 = vld [vmem:[%s4672] ss:$4 sm:$0xff]
      %v4872 = vld [vmem:[%s4674] ss:$4 sm:$0xff]
      %v4873 = vld [vmem:[%s4676] ss:$4 sm:$0xff]
      %v4874 = vld [vmem:[%s4678] ss:$4 sm:$0xff]
      %v4875 = vld [vmem:[%s4680] ss:$4 sm:$0xff]
      %v4876 = vld [vmem:[%s4682] ss:$4 sm:$0xff]
      %v4877 = vld [vmem:[%s4684] ss:$4 sm:$0xff]
      %4878 = vst [vmem:[#allocation1] sm:$0xff] %v362
      %v4879 = vld [vmem:[#allocation1] ss:$4 sm:$0xff]
      %v4880 = vld [vmem:[%s4672] ss:$4 sm:$0xff]
      %4881 = vst [vmem:[#allocation1 + $0x20] sm:$0xff] %v363
      %v4882 = vld [vmem:[%s4680] ss:$4 sm:$0xff]
      %v4883 = vld [vmem:[%s4682] ss:$4 sm:$0xff]
      %v4884 = vld [vmem:[%s4684] ss:$4 sm:$0xff]
      %4885 = vst [vmem:[#allocation1] sm:$0xff] %v364
      %4886 = vst [vmem:[#allocation1 + $0x20] sm:$0xff] %v365
      %v4887 = vld [vmem:[#allocation1] ss:$4 sm:$0xff]
      %v4888 = vld [vmem:[%s4672] ss:$4 sm:$0xff]
      %v4889 = vld [vmem:[%s4674] ss:$4 sm:$0xff]
      %v4890 = vld [vmem:[%s4676] ss:$4 sm:$0xff]
      %v4891 = vld [vmem:[%s4678] ss:$4 sm:$0xff]
      %v4892 = vld [vmem:[%s4680] ss:$4 sm:$0xff]
      %4893 = vst [vmem:[#allocation1] ss:$9 sm:$0xff] %v4673
      %s4894 = scalar_lea.vmem [#allocation1], 1
      %4895 = vst [vmem:[%s4894] ss:$9 sm:$0xff] %v4675
      %s4896 = scalar_lea.vmem [#allocation1], 2
      %4897 = vst [vmem:[%s4896] ss:$9 sm:$0xff] %v4677
      %s4898 = scalar_lea.vmem [#allocation1], 3
      %4899 = vst [vmem:[%s4898] ss:$9 sm:$0xff] %v4679
      %s4900 = scalar_lea.vmem [#allocation1], 4
      %4901 = vst [vmem:[%s4900] ss:$9 sm:$0xff] %v4681
      %s4902 = scalar_lea.vmem [#allocation1], 5
      %4903 = vst [vmem:[%s4902] ss:$9 sm:$0xff] %v4683
      %s4904 = scalar_lea.vmem [#allocation1], 6
      %4905 = vst [vmem:[%s4904] ss:$9 sm:$0xff] %v4685
      %s4906 = scalar_lea.vmem [#allocation1], 7
      %4907 = vst [vmem:[%s4906] ss:$9 sm:$0xff] %v4687
      %v4908 = vld [vmem:[#allocation1] sm:$0xff]
      %4909 = vst [vmem:[#allocation1] ss:$9 sm:$0xff] %v4688
      %4910 = vst [vmem:[%s4894] ss:$9 sm:$0xff] %v4690
      %4911 = vst [vmem:[%s4896] ss:$9 sm:$0xff] %v4691
      %4912 = vst [vmem:[%s4898] ss:$9 sm:$0xff] %v4692
      %4913 = vst [vmem:[%s4900] ss:$9 sm:$0xff] %v4695
      %4914 = vst [vmem:[%s4902] ss:$9 sm:$0xff] %v4696
      %4915 = vst [vmem:[%s4904] ss:$9 sm:$0xff] %v4697
      %4916 = vst [vmem:[%s4906] ss:$9 sm:$0xff] %v4698
      %v4917 = vld [vmem:[#allocation1] sm:$0xff]
      %4918 = vst [vmem:[#allocation1] ss:$9 sm:$0xff] %v4699
      %4919 = vst [vmem:[%s4894] ss:$9 sm:$0xff] %v4700
      %4920 = vst [vmem:[%s4896] ss:$9 sm:$0xff] %v4703
      %4921 = vst [vmem:[%s4898] ss:$9 sm:$0xff] %v4704
      %4922 = vst [vmem:[%s4900] ss:$9 sm:$0xff] %v4705
      %4923 = vst [vmem:[%s4902] ss:$9 sm:$0xff] %v4706
      %4924 = vst [vmem:[%s4904] ss:$9 sm:$0xff] %v4707
      %4925 = vst [vmem:[%s4906] ss:$9 sm:$0xff] %v4708
      %v4926 = vld [vmem:[#allocation1] sm:$0xff]
      %4927 = vst [vmem:[#allocation1] ss:$9 sm:$0xff] %v4709
      %4928 = vst [vmem:[%s4894] ss:$9 sm:$0xff] %v4711
      %4929 = vst [vmem:[%s4896] ss:$9 sm:$0xff] %v4712
      %4930 = vst [vmem:[%s4898] ss:$9 sm:$0xff] %v4714
      %4931 = vst [vmem:[%s4900] ss:$9 sm:$0xff] %v4715
      %4932 = vst [vmem:[%s4902] ss:$9 sm:$0xff] %v4716
      %4933 = vst [vmem:[%s4904] ss:$9 sm:$0xff] %v4719
      %4934 = vst [vmem:[%s4906] ss:$9 sm:$0xff] %v4720
      %v4935 = vld [vmem:[#allocation1] sm:$0xff]
      %4936 = vst [vmem:[#allocation1] ss:$9 sm:$0xff] %v4721
      %4937 = vst [vmem:[%s4894] ss:$9 sm:$0xff] %v4722
      %4938 = vst [vmem:[%s4896] ss:$9 sm:$0xff] %v4723
      %4939 = vst [vmem:[%s4898] ss:$9 sm:$0xff] %v4724
      %4940 = vst [vmem:[%s4900] ss:$9 sm:$0xff] %v4727
      %4941 = vst [vmem:[%s4902] ss:$9 sm:$0xff] %v4728
      %4942 = vst [vmem:[%s4904] ss:$9 sm:$0xff] %v4729
      %4943 = vst [vmem:[%s4906] ss:$9 sm:$0xff] %v4730
      %v4944 = vld [vmem:[#allocation1] sm:$0xff]
      %4945 = vst [vmem:[#allocation1] ss:$9 sm:$0xff] %v4731
      %4946 = vst [vmem:[%s4894] ss:$9 sm:$0xff] %v4732
      %4947 = vst [vmem:[%s4896] ss:$9 sm:$0xff] %v4733
      %4948 = vst [vmem:[%s4898] ss:$9 sm:$0xff] %v4735
      %4949 = vst [vmem:[%s4900] ss:$9 sm:$0xff] %v4736
      %4950 = vst [vmem:[%s4902] ss:$9 sm:$0xff] %v4738
      %4951 = vst [vmem:[%s4904] ss:$9 sm:$0xff] %v4739
      %4952 = vst [vmem:[%s4906] ss:$9 sm:$0xff] %v4740
      %v4953 = vld [vmem:[#allocation1] sm:$0xff]
      %4954 = vst [vmem:[#allocation1] ss:$9 sm:$0xff] %v4743
      %4955 = vst [vmem:[%s4894] ss:$9 sm:$0xff] %v4744
      %4956 = vst [vmem:[%s4896] ss:$9 sm:$0xff] %v4745
      %4957 = vst [vmem:[%s4898] ss:$9 sm:$0xff] %v4746
      %4958 = vst [vmem:[%s4900] ss:$9 sm:$0xff] %v4747
      %4959 = vst [vmem:[%s4902] ss:$9 sm:$0xff] %v4748
      %4960 = vst [vmem:[%s4904] ss:$9 sm:$0xff] %v4751
      %4961 = vst [vmem:[%s4906] ss:$9 sm:$0xff] %v4752
      %v4962 = vld [vmem:[#allocation1] sm:$0xff]
      %4963 = vst [vmem:[#allocation1] ss:$9 sm:$0xff] %v4753
      %4964 = vst [vmem:[%s4894] ss:$9 sm:$0xff] %v4754
      %4965 = vst [vmem:[%s4896] ss:$9 sm:$0xff] %v4755
      %4966 = vst [vmem:[%s4898] ss:$9 sm:$0xff] %v4756
      %4967 = vst [vmem:[%s4900] ss:$9 sm:$0xff] %v4757
      %4968 = vst [vmem:[%s4902] ss:$9 sm:$0xff] %v4759
      %4969 = vst [vmem:[%s4904] ss:$9 sm:$0xff] %v4760
      %4970 = vst [vmem:[%s4906] ss:$9 sm:$0xff] %v4762
      %v4971 = vld [vmem:[#allocation1] sm:$0xff]
      %4972 = vst [vmem:[#allocation1] ss:$9 sm:$0xff] %v4763
      %4973 = vst [vmem:[%s4894] ss:$9 sm:$0xff] %v4764
      %4974 = vst [vmem:[%s4896] ss:$9 sm:$0xff] %v4767
      %4975 = vst [vmem:[%s4898] ss:$9 sm:$0xff] %v4768
      %4976 = vst [vmem:[%s4900] ss:$9 sm:$0xff] %v4769
      %4977 = vst [vmem:[%s4902] ss:$9 sm:$0xff] %v4770
      %4978 = vst [vmem:[%s4904] ss:$9 sm:$0xff] %v4771
      %4979 = vst [vmem:[%s4906] ss:$9 sm:$0xff] %v4772
      %v4980 = vld [vmem:[#allocation1] sm:$0xff]
      %4981 = vst [vmem:[#allocation1] ss:$9 sm:$0xff] %v4775
      %4982 = vst [vmem:[%s4894] ss:$9 sm:$0xff] %v4776
      %4983 = vst [vmem:[%s4896] ss:$9 sm:$0xff] %v4777
      %4984 = vst [vmem:[%s4898] ss:$9 sm:$0xff] %v4778
      %4985 = vst [vmem:[%s4900] ss:$9 sm:$0xff] %v4779
      %4986 = vst [vmem:[%s4902] ss:$9 sm:$0xff] %v4780
      %4987 = vst [vmem:[%s4904] ss:$9 sm:$0xff] %v4781
      %4988 = vst [vmem:[%s4906] ss:$9 sm:$0xff] %v4783
      %v4989 = vld [vmem:[#allocation1] sm:$0xff]
      %4990 = vst [vmem:[#allocation1] ss:$9 sm:$0xff] %v4784
      %4991 = vst [vmem:[%s4894] ss:$9 sm:$0xff] %v4786
      %4992 = vst [vmem:[%s4896] ss:$9 sm:$0xff] %v4787
      %4993 = vst [vmem:[%s4898] ss:$9 sm:$0xff] %v4788
      %4994 = vst [vmem:[%s4900] ss:$9 sm:$0xff] %v4791
      %4995 = vst [vmem:[%s4902] ss:$9 sm:$0xff] %v4792
      %4996 = vst [vmem:[%s4904] ss:$9 sm:$0xff] %v4793
      %4997 = vst [vmem:[%s4906] ss:$9 sm:$0xff] %v4794
      %v4998 = vld [vmem:[#allocation1] sm:$0xff]
      %4999 = vst [vmem:[#allocation1] ss:$9 sm:$0xff] %v4795
      %5000 = vst [vmem:[%s4894] ss:$9 sm:$0xff] %v4796
      %5001 = vst [vmem:[%s4896] ss:$9 sm:$0xff] %v4799
      %5002 = vst [vmem:[%s4898] ss:$9 sm:$0xff] %v4800
      %5003 = vst [vmem:[%s4900] ss:$9 sm:$0xff] %v4801
      %5004 = vst [vmem:[%s4902] ss:$9 sm:$0xff] %v4802
      %5005 = vst [vmem:[%s4904] ss:$9 sm:$0xff] %v4803
      %5006 = vst [vmem:[%s4906] ss:$9 sm:$0xff] %v4804
      %v5007 = vld [vmem:[#allocation1] sm:$0xff]
      %5008 = vst [vmem:[#allocation1] ss:$9 sm:$0xff] %v4805
      %5009 = vst [vmem:[%s4894] ss:$9 sm:$0xff] %v4807
      %5010 = vst [vmem:[%s4896] ss:$9 sm:$0xff] %v4808
      %5011 = vst [vmem:[%s4898] ss:$9 sm:$0xff] %v4810
      %5012 = vst [vmem:[%s4900] ss:$9 sm:$0xff] %v4811
      %5013 = vst [vmem:[%s4902] ss:$9 sm:$0xff] %v4812
      %5014 = vst [vmem:[%s4904] ss:$9 sm:$0xff] %v4815
      %5015 = vst [vmem:[%s4906] ss:$9 sm:$0xff] %v4816
      %v5016 = vld [vmem:[#allocation1] sm:$0xff]
      %5017 = vst [vmem:[#allocation1] ss:$9 sm:$0xff] %v4817
      %5018 = vst [vmem:[%s4894] ss:$9 sm:$0xff] %v4818
      %5019 = vst [vmem:[%s4896] ss:$9 sm:$0xff] %v4819
      %5020 = vst [vmem:[%s4898] ss:$9 sm:$0xff] %v4820
      %5021 = vst [vmem:[%s4900] ss:$9 sm:$0xff] %v4823
      %5022 = vst [vmem:[%s4902] ss:$9 sm:$0xff] %v4824
      %5023 = vst [vmem:[%s4904] ss:$9 sm:$0xff] %v4825
      %5024 = vst [vmem:[%s4906] ss:$9 sm:$0xff] %v4826
      %v5025 = vld [vmem:[#allocation1] sm:$0xff]
      %5026 = vst [vmem:[#allocation1] ss:$9 sm:$0xff] %v4827
      %5027 = vst [vmem:[%s4894] ss:$9 sm:$0xff] %v4828
      %5028 = vst [vmem:[%s4896] ss:$9 sm:$0xff] %v4829
      %5029 = vst [vmem:[%s4898] ss:$9 sm:$0xff] %v4831
      %5030 = vst [vmem:[%s4900] ss:$9 sm:$0xff] %v4832
      %5031 = vst [vmem:[%s4902] ss:$9 sm:$0xff] %v4834
      %5032 = vst [vmem:[%s4904] ss:$9 sm:$0xff] %v4835
      %5033 = vst [vmem:[%s4906] ss:$9 sm:$0xff] %v4836
      %v5034 = vld [vmem:[#allocation1] sm:$0xff]
      %5035 = vst [vmem:[#allocation1] ss:$9 sm:$0xff] %v4839
      %5036 = vst [vmem:[%s4894] ss:$9 sm:$0xff] %v4840
      %5037 = vst [vmem:[%s4896] ss:$9 sm:$0xff] %v4841
      %5038 = vst [vmem:[%s4898] ss:$9 sm:$0xff] %v4842
      %5039 = vst [vmem:[%s4900] ss:$9 sm:$0xff] %v4843
      %5040 = vst [vmem:[%s4902] ss:$9 sm:$0xff] %v4844
      %5041 = vst [vmem:[%s4904] ss:$9 sm:$0xff] %v4847
      %5042 = vst [vmem:[%s4906] ss:$9 sm:$0xff] %v4848
      %v5043 = vld [vmem:[#allocation1] sm:$0xff]
      %5044 = vst [vmem:[#allocation1] ss:$9 sm:$0xff] %v4849
      %5045 = vst [vmem:[%s4894] ss:$9 sm:$0xff] %v4850
      %5046 = vst [vmem:[%s4896] ss:$9 sm:$0xff] %v4851
      %5047 = vst [vmem:[%s4898] ss:$9 sm:$0xff] %v4852
      %5048 = vst [vmem:[%s4900] ss:$9 sm:$0xff] %v4853
      %5049 = vst [vmem:[%s4902] ss:$9 sm:$0xff] %v4855
      %5050 = vst [vmem:[%s4904] ss:$9 sm:$0xff] %v4856
      %5051 = vst [vmem:[%s4906] ss:$9 sm:$0xff] %v4858
      %v5052 = vld [vmem:[#allocation1] sm:$0xff]
      %5053 = vst [vmem:[#allocation1] ss:$9 sm:$0xff] %v4859
      %5054 = vst [vmem:[%s4894] ss:$9 sm:$0xff] %v4860
      %5055 = vst [vmem:[%s4896] ss:$9 sm:$0xff] %v4863
      %5056 = vst [vmem:[%s4898] ss:$9 sm:$0xff] %v4864
      %5057 = vst [vmem:[%s4900] ss:$9 sm:$0xff] %v4865
      %5058 = vst [vmem:[%s4902] ss:$9 sm:$0xff] %v4866
      %5059 = vst [vmem:[%s4904] ss:$9 sm:$0xff] %v4867
      %5060 = vst [vmem:[%s4906] ss:$9 sm:$0xff] %v4868
      %v5061 = vld [vmem:[#allocation1] sm:$0xff]
      %5062 = vst [vmem:[#allocation1] ss:$9 sm:$0xff] %v4871
      %5063 = vst [vmem:[%s4894] ss:$9 sm:$0xff] %v4872
      %5064 = vst [vmem:[%s4896] ss:$9 sm:$0xff] %v4873
      %5065 = vst [vmem:[%s4898] ss:$9 sm:$0xff] %v4874
      %5066 = vst [vmem:[%s4900] ss:$9 sm:$0xff] %v4875
      %5067 = vst [vmem:[%s4902] ss:$9 sm:$0xff] %v4876
      %5068 = vst [vmem:[%s4904] ss:$9 sm:$0xff] %v4877
      %5069 = vst [vmem:[%s4906] ss:$9 sm:$0xff] %v4879
      %v5070 = vld [vmem:[#allocation1] sm:$0xff]
      %5071 = vst [vmem:[#allocation1] ss:$9 sm:$0xff] %v4880
      %5072 = vst [vmem:[%s4894] ss:$9 sm:$0xff] %v4882
      %5073 = vst [vmem:[%s4896] ss:$9 sm:$0xff] %v4883
      %5074 = vst [vmem:[%s4898] ss:$9 sm:$0xff] %v4884
      %5075 = vst [vmem:[%s4900] ss:$9 sm:$0xff] %v4887
      %5076 = vst [vmem:[%s4902] ss:$9 sm:$0xff] %v4888
      %5077 = vst [vmem:[%s4904] ss:$9 sm:$0xff] %v4889
      %5078 = vst [vmem:[%s4906] ss:$9 sm:$0xff] %v4890
      %v5079 = vld [vmem:[#allocation1] sm:$0xff]
      %5080 = vst [vmem:[#allocation1] ss:$9 sm:$0xff] %v4891
      %5081 = vst [vmem:[%s4894] ss:$9 sm:$0xff] %v4892
      %v5082 = vld [vmem:[#allocation1] sm:$0xff]
      %v5083 = vsel %vm2657, %v4908, 0
      %v5085 = vsel %vm2657, %v4917, 0
      %v5087 = vsel %vm2657, %v4926, 0
      %v5089 = vsel %vm2657, %v4935, 0
      %v5091 = vsel %vm2657, %v4944, 0
      %v5093 = vsel %vm2657, %v4953, 0
      %v5095 = vsel %vm2657, %v4962, 0
      %v5097 = vsel %vm2657, %v4971, 0
      %v5099 = vsel %vm2657, %v4980, 0
      %v5101 = vsel %vm2657, %v4989, 0
      %v5103 = vsel %vm2657, %v4998, 0
      %v5105 = vsel %vm2657, %v5007, 0
      %v5107 = vsel %vm2657, %v5016, 0
      %v5109 = vsel %vm2657, %v5025, 0
      %v5111 = vsel %vm2657, %v5034, 0
      %v5113 = vsel %vm2657, %v5043, 0
      %v5115 = vsel %vm2657, %v5052, 0
      %v5117 = vsel %vm2657, %v5061, 0
      %v5119 = vsel %vm2657, %v5070, 0
      %v5121 = vsel %vm2657, %v5079, 0
      %v5123 = vsel %vm2657, %v5082, 0
      %v5126 = vsel %vm2700, %v374, 0
      %5128 = vmatpush.bf16.msra.mxu0 0
      %5129 = vmatpush.bf16.msra.mxu0 0
      %5130 = vmatpush.bf16.msra.mxu0 0
      %5131 = vmatpush.bf16.msra.mxu0 0
      %5132 = vmatpush.bf16.msra.mxu0 0
      %5133 = vmatpush.bf16.msra.mxu0 0
      %5134 = vmatpush.bf16.msra.mxu0 0
      %5135 = vmatpush.bf16.msra.mxu0 %v5126
      %5136 = vmatmul.bf16.gmra.mxu0 %v5083
      %v5137 = vpop.f32.mrf.mxu0
      %v5138 = vadd.f32 0.0, %v5137
      %v5139 = vpop.f32.mrf.mxu0
      %v5140 = vadd.f32 0.0, %v5139
      %5141 = vmatmul.bf16.gmra.mxu0 %v5085
      %v5142 = vpop.f32.mrf.mxu0
      %v5143 = vadd.f32 0.0, %v5142
      %v5144 = vpop.f32.mrf.mxu0
      %v5145 = vadd.f32 0.0, %v5144
      %5146 = vmatmul.bf16.gmra.mxu0 %v5087
      %v5147 = vpop.f32.mrf.mxu0
      %v5148 = vadd.f32 0.0, %v5147
      %v5149 = vpop.f32.mrf.mxu0
      %v5150 = vadd.f32 0.0, %v5149
      %5151 = vmatmul.bf16.gmra.mxu0 %v5089
      %v5152 = vpop.f32.mrf.mxu0
      %v5153 = vadd.f32 0.0, %v5152
      %v5154 = vpop.f32.mrf.mxu0
      %v5155 = vadd.f32 0.0, %v5154
      %5156 = vmatmul.bf16.gmra.mxu0 %v5091
      %v5157 = vpop.f32.mrf.mxu0
      %v5158 = vadd.f32 0.0, %v5157
      %v5159 = vpop.f32.mrf.mxu0
      %v5160 = vadd.f32 0.0, %v5159
      %5161 = vmatmul.bf16.gmra.mxu0 %v5093
      %v5162 = vpop.f32.mrf.mxu0
      %v5163 = vadd.f32 0.0, %v5162
      %v5164 = vpop.f32.mrf.mxu0
      %v5165 = vadd.f32 0.0, %v5164
      %5166 = vmatmul.bf16.gmra.mxu0 %v5095
      %v5167 = vpop.f32.mrf.mxu0
      %v5168 = vadd.f32 0.0, %v5167
      %v5169 = vpop.f32.mrf.mxu0
      %v5170 = vadd.f32 0.0, %v5169
      %5171 = vmatmul.bf16.gmra.mxu0 %v5097
      %v5172 = vpop.f32.mrf.mxu0
      %v5173 = vadd.f32 0.0, %v5172
      %v5174 = vpop.f32.mrf.mxu0
      %v5175 = vadd.f32 0.0, %v5174
      %5176 = vmatmul.bf16.gmra.mxu0 %v5099
      %v5177 = vpop.f32.mrf.mxu0
      %v5178 = vadd.f32 0.0, %v5177
      %v5179 = vpop.f32.mrf.mxu0
      %v5180 = vadd.f32 0.0, %v5179
      %5181 = vmatmul.bf16.gmra.mxu0 %v5101
      %v5182 = vpop.f32.mrf.mxu0
      %v5183 = vadd.f32 0.0, %v5182
      %v5184 = vpop.f32.mrf.mxu0
      %v5185 = vadd.f32 0.0, %v5184
      %5186 = vmatmul.bf16.gmra.mxu0 %v5103
      %v5187 = vpop.f32.mrf.mxu0
      %v5188 = vadd.f32 0.0, %v5187
      %v5189 = vpop.f32.mrf.mxu0
      %v5190 = vadd.f32 0.0, %v5189
      %5191 = vmatmul.bf16.gmra.mxu0 %v5105
      %v5192 = vpop.f32.mrf.mxu0
      %v5193 = vadd.f32 0.0, %v5192
      %v5194 = vpop.f32.mrf.mxu0
      %v5195 = vadd.f32 0.0, %v5194
      %5196 = vmatmul.bf16.gmra.mxu0 %v5107
      %v5197 = vpop.f32.mrf.mxu0
      %v5198 = vadd.f32 0.0, %v5197
      %v5199 = vpop.f32.mrf.mxu0
      %v5200 = vadd.f32 0.0, %v5199
      %5201 = vmatmul.bf16.gmra.mxu0 %v5109
      %v5202 = vpop.f32.mrf.mxu0
      %v5203 = vadd.f32 0.0, %v5202
      %v5204 = vpop.f32.mrf.mxu0
      %v5205 = vadd.f32 0.0, %v5204
      %5206 = vmatmul.bf16.gmra.mxu0 %v5111
      %v5207 = vpop.f32.mrf.mxu0
      %v5208 = vadd.f32 0.0, %v5207
      %v5209 = vpop.f32.mrf.mxu0
      %v5210 = vadd.f32 0.0, %v5209
      %5211 = vmatmul.bf16.gmra.mxu0 %v5113
      %v5212 = vpop.f32.mrf.mxu0
      %v5213 = vadd.f32 0.0, %v5212
      %v5214 = vpop.f32.mrf.mxu0
      %v5215 = vadd.f32 0.0, %v5214
      %5216 = vmatmul.bf16.gmra.mxu0 %v5115
      %v5217 = vpop.f32.mrf.mxu0
      %v5218 = vadd.f32 0.0, %v5217
      %v5219 = vpop.f32.mrf.mxu0
      %v5220 = vadd.f32 0.0, %v5219
      %5221 = vmatmul.bf16.gmra.mxu0 %v5117
      %v5222 = vpop.f32.mrf.mxu0
      %v5223 = vadd.f32 0.0, %v5222
      %v5224 = vpop.f32.mrf.mxu0
      %v5225 = vadd.f32 0.0, %v5224
      %5226 = vmatmul.bf16.gmra.mxu0 %v5119
      %v5227 = vpop.f32.mrf.mxu0
      %v5228 = vadd.f32 0.0, %v5227
      %v5229 = vpop.f32.mrf.mxu0
      %v5230 = vadd.f32 0.0, %v5229
      %5231 = vmatmul.bf16.gmra.mxu0 %v5121
      %v5232 = vpop.f32.mrf.mxu0
      %v5233 = vadd.f32 0.0, %v5232
      %v5234 = vpop.f32.mrf.mxu0
      %v5235 = vadd.f32 0.0, %v5234
      %5236 = vmatmul.bf16.gmra.mxu0 %v5123
      %v5237 = vpop.f32.mrf.mxu0
      %v5238 = vadd.f32 0.0, %v5237
      %v5239 = vpop.f32.mrf.mxu0
      %5240 = vdwg.mxu0
      %v5241 = vadd.f32 %v4629, %v5138
      %v5242 = vadd.f32 %v4630, %v5140
      %v5243 = vadd.f32 %v4631, %v5143
      %v5244 = vadd.f32 %v4632, %v5145
      %v5245 = vadd.f32 %v4633, %v5148
      %v5246 = vadd.f32 %v4634, %v5150
      %v5247 = vadd.f32 %v4635, %v5153
      %v5248 = vadd.f32 %v4636, %v5155
      %v5249 = vadd.f32 %v4637, %v5158
      %v5250 = vadd.f32 %v4638, %v5160
      %v5251 = vadd.f32 %v4639, %v5163
      %v5252 = vadd.f32 %v4640, %v5165
      %v5253 = vadd.f32 %v4641, %v5168
      %v5254 = vadd.f32 %v4642, %v5170
      %v5255 = vadd.f32 %v4643, %v5173
      %v5256 = vadd.f32 %v4644, %v5175
      %v5257 = vadd.f32 %v4645, %v5178
      %v5258 = vadd.f32 %v4646, %v5180
      %v5259 = vadd.f32 %v4647, %v5183
      %v5260 = vadd.f32 %v4648, %v5185
      %v5261 = vadd.f32 %v4649, %v5188
      %v5262 = vadd.f32 %v4650, %v5190
      %v5263 = vadd.f32 %v4651, %v5193
      %v5264 = vadd.f32 %v4652, %v5195
      %v5265 = vadd.f32 %v4653, %v5198
      %v5266 = vadd.f32 %v4654, %v5200
      %v5267 = vadd.f32 %v4655, %v5203
      %v5268 = vadd.f32 %v4656, %v5205
      %v5269 = vadd.f32 %v4657, %v5208
      %v5270 = vadd.f32 %v4658, %v5210
      %v5271 = vadd.f32 %v4659, %v5213
      %v5272 = vadd.f32 %v4660, %v5215
      %v5273 = vadd.f32 %v4661, %v5218
      %v5274 = vadd.f32 %v4662, %v5220
      %v5275 = vadd.f32 %v4663, %v5223
      %v5276 = vadd.f32 %v4664, %v5225
      %v5277 = vadd.f32 %v4665, %v5228
      %v5278 = vadd.f32 %v4666, %v5230
      %v5279 = vadd.f32 %v4667, %v5233
      %v5280 = vadd.f32 %v4668, %v5235
      %v5281 = vadd.f32 %v4669, %v5238
      %v5285 = vrot.slane %v366, 3
      %v5286 = vrot.slane %v367, 3
      %v5287 = vrot.slane %v368, 3
      %v5290 = vsel %vm486, %v366, %v5285
      %v5291 = vsel %vm490, %v366, %v5285
      %v5293 = vrot.slane %v5291, 1
      %v5294 = vsel %vm494, %v366, %v5285
      %v5296 = vrot.slane %v5294, 2
      %v5297 = vsel %vm498, %v366, %v5285
      %v5299 = vrot.slane %v5297, 3
      %v5302 = vsel %vm486, %v367, %v5286
      %v5303 = vsel %vm490, %v367, %v5286
      %v5305 = vrot.slane %v5303, 1
      %v5306 = vsel %vm494, %v367, %v5286
      %v5308 = vrot.slane %v5306, 2
      %v5309 = vsel %vm498, %v367, %v5286
      %v5311 = vrot.slane %v5309, 3
      %v5314 = vsel %vm486, %v368, %v5287
      %5315 = vst [vmem:[#allocation1] ss:$9 sm:$0xff] %v546
      %s5316 = scalar_lea.vmem [#allocation1], 1
      %5317 = vst [vmem:[%s5316] ss:$9 sm:$0xff] %v549
      %s5318 = scalar_lea.vmem [#allocation1], 2
      %5319 = vst [vmem:[%s5318] ss:$9 sm:$0xff] %v552
      %s5320 = scalar_lea.vmem [#allocation1], 3
      %5321 = vst [vmem:[%s5320] ss:$9 sm:$0xff] %v555
      %s5322 = scalar_lea.vmem [#allocation1], 4
      %5323 = vst [vmem:[%s5322] ss:$9 sm:$0xff] %v558
      %s5324 = scalar_lea.vmem [#allocation1], 5
      %5325 = vst [vmem:[%s5324] ss:$9 sm:$0xff] %v561
      %s5326 = scalar_lea.vmem [#allocation1], 6
      %5327 = vst [vmem:[%s5326] ss:$9 sm:$0xff] %v564
      %s5328 = scalar_lea.vmem [#allocation1], 7
      %5329 = vst [vmem:[%s5328] ss:$9 sm:$0xff] %v567
      %v5330 = vld [vmem:[#allocation1] sm:$0xff]
      %5331 = vst [vmem:[#allocation1] ss:$9 sm:$0xff] %v570
      %5332 = vst [vmem:[%s5316] ss:$9 sm:$0xff] %v573
      %5333 = vst [vmem:[%s5318] ss:$9 sm:$0xff] %v576
      %5334 = vst [vmem:[%s5320] ss:$9 sm:$0xff] %v579
      %5335 = vst [vmem:[%s5322] ss:$9 sm:$0xff] %v582
      %5336 = vst [vmem:[%s5324] ss:$9 sm:$0xff] %v585
      %5337 = vst [vmem:[%s5326] ss:$9 sm:$0xff] %v588
      %5338 = vst [vmem:[%s5328] ss:$9 sm:$0xff] %v591
      %v5339 = vld [vmem:[#allocation1] sm:$0xff]
      %5340 = vst [vmem:[#allocation1] ss:$9 sm:$0xff] %v594
      %5341 = vst [vmem:[%s5316] ss:$9 sm:$0xff] %v597
      %5342 = vst [vmem:[%s5318] ss:$9 sm:$0xff] %v600
      %5343 = vst [vmem:[%s5320] ss:$9 sm:$0xff] %v603
      %5344 = vst [vmem:[%s5322] ss:$9 sm:$0xff] %v606
      %5345 = vst [vmem:[%s5324] ss:$9 sm:$0xff] %v609
      %5346 = vst [vmem:[%s5326] ss:$9 sm:$0xff] %v612
      %5347 = vst [vmem:[%s5328] ss:$9 sm:$0xff] %v615
      %v5348 = vld [vmem:[#allocation1] sm:$0xff]
      %5349 = vst [vmem:[#allocation1] ss:$9 sm:$0xff] %v618
      %5350 = vst [vmem:[%s5316] ss:$9 sm:$0xff] %v621
      %5351 = vst [vmem:[%s5318] ss:$9 sm:$0xff] %v624
      %5352 = vst [vmem:[%s5320] ss:$9 sm:$0xff] %v627
      %5353 = vst [vmem:[%s5322] ss:$9 sm:$0xff] %v630
      %5354 = vst [vmem:[%s5324] ss:$9 sm:$0xff] %v633
      %5355 = vst [vmem:[%s5326] ss:$9 sm:$0xff] %v636
      %5356 = vst [vmem:[%s5328] ss:$9 sm:$0xff] %v639
      %v5357 = vld [vmem:[#allocation1] sm:$0xff]
      %5358 = vst [vmem:[#allocation1] ss:$9 sm:$0xff] %v642
      %5359 = vst [vmem:[%s5316] ss:$9 sm:$0xff] %v645
      %5360 = vst [vmem:[%s5318] ss:$9 sm:$0xff] %v648
      %5361 = vst [vmem:[%s5320] ss:$9 sm:$0xff] %v651
      %5362 = vst [vmem:[%s5322] ss:$9 sm:$0xff] %v654
      %5363 = vst [vmem:[%s5324] ss:$9 sm:$0xff] %v657
      %5364 = vst [vmem:[%s5326] ss:$9 sm:$0xff] %v660
      %5365 = vst [vmem:[%s5328] ss:$9 sm:$0xff] %v663
      %v5366 = vld [vmem:[#allocation1] sm:$0xff]
      %5367 = vst [vmem:[#allocation1] ss:$9 sm:$0xff] %v666
      %5368 = vst [vmem:[%s5316] ss:$9 sm:$0xff] %v669
      %5369 = vst [vmem:[%s5318] ss:$9 sm:$0xff] %v672
      %5370 = vst [vmem:[%s5320] ss:$9 sm:$0xff] %v675
      %5371 = vst [vmem:[%s5322] ss:$9 sm:$0xff] %v678
      %5372 = vst [vmem:[%s5324] ss:$9 sm:$0xff] %v681
      %5373 = vst [vmem:[%s5326] ss:$9 sm:$0xff] %v684
      %5374 = vst [vmem:[%s5328] ss:$9 sm:$0xff] %v687
      %v5375 = vld [vmem:[#allocation1] sm:$0xff]
      %5376 = vst [vmem:[#allocation1] ss:$9 sm:$0xff] %v690
      %5377 = vst [vmem:[%s5316] ss:$9 sm:$0xff] %v693
      %5378 = vst [vmem:[%s5318] ss:$9 sm:$0xff] %v696
      %5379 = vst [vmem:[%s5320] ss:$9 sm:$0xff] %v699
      %5380 = vst [vmem:[%s5322] ss:$9 sm:$0xff] %v702
      %5381 = vst [vmem:[%s5324] ss:$9 sm:$0xff] %v705
      %5382 = vst [vmem:[%s5326] ss:$9 sm:$0xff] %v708
      %5383 = vst [vmem:[%s5328] ss:$9 sm:$0xff] %v711
      %v5384 = vld [vmem:[#allocation1] sm:$0xff]
      %5385 = vst [vmem:[#allocation1] ss:$9 sm:$0xff] %v714
      %5386 = vst [vmem:[%s5316] ss:$9 sm:$0xff] %v717
      %5387 = vst [vmem:[%s5318] ss:$9 sm:$0xff] %v720
      %5388 = vst [vmem:[%s5320] ss:$9 sm:$0xff] %v723
      %5389 = vst [vmem:[%s5322] ss:$9 sm:$0xff] %v726
      %5390 = vst [vmem:[%s5324] ss:$9 sm:$0xff] %v729
      %5391 = vst [vmem:[%s5326] ss:$9 sm:$0xff] %v732
      %5392 = vst [vmem:[%s5328] ss:$9 sm:$0xff] %v735
      %v5393 = vld [vmem:[#allocation1] sm:$0xff]
      %5394 = vst [vmem:[#allocation1] ss:$9 sm:$0xff] %v738
      %5395 = vst [vmem:[%s5316] ss:$9 sm:$0xff] %v741
      %5396 = vst [vmem:[%s5318] ss:$9 sm:$0xff] %v744
      %5397 = vst [vmem:[%s5320] ss:$9 sm:$0xff] %v747
      %5398 = vst [vmem:[%s5322] ss:$9 sm:$0xff] %v750
      %5399 = vst [vmem:[%s5324] ss:$9 sm:$0xff] %v753
      %5400 = vst [vmem:[%s5326] ss:$9 sm:$0xff] %v756
      %5401 = vst [vmem:[%s5328] ss:$9 sm:$0xff] %v759
      %v5402 = vld [vmem:[#allocation1] sm:$0xff]
      %5403 = vst [vmem:[#allocation1] ss:$9 sm:$0xff] %v762
      %5404 = vst [vmem:[%s5316] ss:$9 sm:$0xff] %v765
      %5405 = vst [vmem:[%s5318] ss:$9 sm:$0xff] %v768
      %5406 = vst [vmem:[%s5320] ss:$9 sm:$0xff] %v771
      %5407 = vst [vmem:[%s5322] ss:$9 sm:$0xff] %v774
      %5408 = vst [vmem:[%s5324] ss:$9 sm:$0xff] %v777
      %5409 = vst [vmem:[%s5326] ss:$9 sm:$0xff] %v780
      %5410 = vst [vmem:[%s5328] ss:$9 sm:$0xff] %v783
      %v5411 = vld [vmem:[#allocation1] sm:$0xff]
      %5412 = vst [vmem:[#allocation1] ss:$9 sm:$0xff] %v786
      %5413 = vst [vmem:[%s5316] ss:$9 sm:$0xff] %v789
      %5414 = vst [vmem:[%s5318] ss:$9 sm:$0xff] %v792
      %5415 = vst [vmem:[%s5320] ss:$9 sm:$0xff] %v795
      %5416 = vst [vmem:[%s5322] ss:$9 sm:$0xff] %v798
      %5417 = vst [vmem:[%s5324] ss:$9 sm:$0xff] %v801
      %5418 = vst [vmem:[%s5326] ss:$9 sm:$0xff] %v804
      %5419 = vst [vmem:[%s5328] ss:$9 sm:$0xff] %v807
      %v5420 = vld [vmem:[#allocation1] sm:$0xff]
      %5421 = vst [vmem:[#allocation1] ss:$9 sm:$0xff] %v810
      %5422 = vst [vmem:[%s5316] ss:$9 sm:$0xff] %v813
      %5423 = vst [vmem:[%s5318] ss:$9 sm:$0xff] %v816
      %5424 = vst [vmem:[%s5320] ss:$9 sm:$0xff] %v819
      %5425 = vst [vmem:[%s5322] ss:$9 sm:$0xff] %v822
      %5426 = vst [vmem:[%s5324] ss:$9 sm:$0xff] %v825
      %5427 = vst [vmem:[%s5326] ss:$9 sm:$0xff] %v828
      %5428 = vst [vmem:[%s5328] ss:$9 sm:$0xff] %v831
      %v5429 = vld [vmem:[#allocation1] sm:$0xff]
      %5430 = vst [vmem:[#allocation1] ss:$9 sm:$0xff] %v834
      %5431 = vst [vmem:[%s5316] ss:$9 sm:$0xff] %v837
      %5432 = vst [vmem:[%s5318] ss:$9 sm:$0xff] %v840
      %5433 = vst [vmem:[%s5320] ss:$9 sm:$0xff] %v843
      %5434 = vst [vmem:[%s5322] ss:$9 sm:$0xff] %v846
      %5435 = vst [vmem:[%s5324] ss:$9 sm:$0xff] %v849
      %5436 = vst [vmem:[%s5326] ss:$9 sm:$0xff] %v852
      %5437 = vst [vmem:[%s5328] ss:$9 sm:$0xff] %v855
      %v5438 = vld [vmem:[#allocation1] sm:$0xff]
      %5439 = vst [vmem:[#allocation1] ss:$9 sm:$0xff] %v858
      %5440 = vst [vmem:[%s5316] ss:$9 sm:$0xff] %v861
      %5441 = vst [vmem:[%s5318] ss:$9 sm:$0xff] %v864
      %5442 = vst [vmem:[%s5320] ss:$9 sm:$0xff] %v867
      %5443 = vst [vmem:[%s5322] ss:$9 sm:$0xff] %v870
      %5444 = vst [vmem:[%s5324] ss:$9 sm:$0xff] %v873
      %5445 = vst [vmem:[%s5326] ss:$9 sm:$0xff] %v876
      %5446 = vst [vmem:[%s5328] ss:$9 sm:$0xff] %v879
      %v5447 = vld [vmem:[#allocation1] sm:$0xff]
      %5448 = vst [vmem:[#allocation1] ss:$9 sm:$0xff] %v882
      %5449 = vst [vmem:[%s5316] ss:$9 sm:$0xff] %v885
      %5450 = vst [vmem:[%s5318] ss:$9 sm:$0xff] %v888
      %5451 = vst [vmem:[%s5320] ss:$9 sm:$0xff] %v891
      %5452 = vst [vmem:[%s5322] ss:$9 sm:$0xff] %v894
      %5453 = vst [vmem:[%s5324] ss:$9 sm:$0xff] %v897
      %5454 = vst [vmem:[%s5326] ss:$9 sm:$0xff] %v900
      %5455 = vst [vmem:[%s5328] ss:$9 sm:$0xff] %v903
      %v5456 = vld [vmem:[#allocation1] sm:$0xff]
      %5457 = vst [vmem:[#allocation1] ss:$9 sm:$0xff] %v906
      %5458 = vst [vmem:[%s5316] ss:$9 sm:$0xff] %v909
      %5459 = vst [vmem:[%s5318] ss:$9 sm:$0xff] %v912
      %5460 = vst [vmem:[%s5320] ss:$9 sm:$0xff] %v915
      %5461 = vst [vmem:[%s5322] ss:$9 sm:$0xff] %v918
      %5462 = vst [vmem:[%s5324] ss:$9 sm:$0xff] %v921
      %5463 = vst [vmem:[%s5326] ss:$9 sm:$0xff] %v924
      %5464 = vst [vmem:[%s5328] ss:$9 sm:$0xff] %v927
      %v5465 = vld [vmem:[#allocation1] sm:$0xff]
      %5466 = vst [vmem:[#allocation1] ss:$9 sm:$0xff] %v930
      %5467 = vst [vmem:[%s5316] ss:$9 sm:$0xff] %v933
      %5468 = vst [vmem:[%s5318] ss:$9 sm:$0xff] %v936
      %5469 = vst [vmem:[%s5320] ss:$9 sm:$0xff] %v939
      %5470 = vst [vmem:[%s5322] ss:$9 sm:$0xff] %v942
      %5471 = vst [vmem:[%s5324] ss:$9 sm:$0xff] %v945
      %5472 = vst [vmem:[%s5326] ss:$9 sm:$0xff] %v948
      %5473 = vst [vmem:[%s5328] ss:$9 sm:$0xff] %v951
      %v5474 = vld [vmem:[#allocation1] sm:$0xff]
      %5475 = vst [vmem:[#allocation1] ss:$9 sm:$0xff] %v954
      %5476 = vst [vmem:[%s5316] ss:$9 sm:$0xff] %v957
      %5477 = vst [vmem:[%s5318] ss:$9 sm:$0xff] %v960
      %5478 = vst [vmem:[%s5320] ss:$9 sm:$0xff] %v963
      %5479 = vst [vmem:[%s5322] ss:$9 sm:$0xff] %v966
      %5480 = vst [vmem:[%s5324] ss:$9 sm:$0xff] %v969
      %5481 = vst [vmem:[%s5326] ss:$9 sm:$0xff] %v972
      %5482 = vst [vmem:[%s5328] ss:$9 sm:$0xff] %v975
      %v5483 = vld [vmem:[#allocation1] sm:$0xff]
      %5484 = vst [vmem:[#allocation1] ss:$9 sm:$0xff] %v3785
      %5485 = vst [vmem:[%s5316] ss:$9 sm:$0xff] %v3788
      %5486 = vst [vmem:[%s5318] ss:$9 sm:$0xff] %v3791
      %5487 = vst [vmem:[%s5320] ss:$9 sm:$0xff] %v3794
      %5488 = vst [vmem:[%s5322] ss:$9 sm:$0xff] %v3797
      %5489 = vst [vmem:[%s5324] ss:$9 sm:$0xff] %v3800
      %5490 = vst [vmem:[%s5326] ss:$9 sm:$0xff] %v3803
      %5491 = vst [vmem:[%s5328] ss:$9 sm:$0xff] %v3806
      %v5492 = vld [vmem:[#allocation1] sm:$0xff]
      %5493 = vst [vmem:[#allocation1] ss:$9 sm:$0xff] %v3809
      %5494 = vst [vmem:[%s5316] ss:$9 sm:$0xff] %v5290
      %5496 = vst [vmem:[%s5318] ss:$9 sm:$0xff] %v5293
      %5498 = vst [vmem:[%s5320] ss:$9 sm:$0xff] %v5296
      %5500 = vst [vmem:[%s5322] ss:$9 sm:$0xff] %v5299
      %5501 = vst [vmem:[%s5324] ss:$9 sm:$0xff] %v5302
      %5503 = vst [vmem:[%s5326] ss:$9 sm:$0xff] %v5305
      %5505 = vst [vmem:[%s5328] ss:$9 sm:$0xff] %v5308
      %v5506 = vld [vmem:[#allocation1] sm:$0xff]
      %5508 = vst [vmem:[#allocation1] ss:$9 sm:$0xff] %v5311
      %5509 = vst [vmem:[%s5316] ss:$9 sm:$0xff] %v5314
      %v5510 = vld [vmem:[#allocation1] sm:$0xff]
      %v5511 = vsel %vm2657, %v5330, 0
      %v5513 = vsel %vm2657, %v5339, 0
      %v5515 = vsel %vm2657, %v5348, 0
      %v5517 = vsel %vm2657, %v5357, 0
      %v5519 = vsel %vm2657, %v5366, 0
      %v5521 = vsel %vm2657, %v5375, 0
      %v5523 = vsel %vm2657, %v5384, 0
      %v5525 = vsel %vm2657, %v5393, 0
      %v5527 = vsel %vm2657, %v5402, 0
      %v5529 = vsel %vm2657, %v5411, 0
      %v5531 = vsel %vm2657, %v5420, 0
      %v5533 = vsel %vm2657, %v5429, 0
      %v5535 = vsel %vm2657, %v5438, 0
      %v5537 = vsel %vm2657, %v5447, 0
      %v5539 = vsel %vm2657, %v5456, 0
      %v5541 = vsel %vm2657, %v5465, 0
      %v5543 = vsel %vm2657, %v5474, 0
      %v5545 = vsel %vm2657, %v5483, 0
      %v5547 = vsel %vm2657, %v5492, 0
      %v5549 = vsel %vm2657, %v5506, 0
      %v5551 = vsel %vm2657, %v5510, 0
      %v5554 = vsel %vm2700, %v375, 0
      %5556 = vmatpush.bf16.msra.mxu0 0
      %5557 = vmatpush.bf16.msra.mxu0 0
      %5558 = vmatpush.bf16.msra.mxu0 0
      %5559 = vmatpush.bf16.msra.mxu0 0
      %5560 = vmatpush.bf16.msra.mxu0 0
      %5561 = vmatpush.bf16.msra.mxu0 0
      %5562 = vmatpush.bf16.msra.mxu0 0
      %5563 = vmatpush.bf16.msra.mxu0 %v5554
      %5564 = vmatmul.bf16.gmra.mxu0 %v5511
      %v5565 = vpop.f32.mrf.mxu0
      %v5566 = vadd.f32 0.0, %v5565
      %v5567 = vpop.f32.mrf.mxu0
      %v5568 = vadd.f32 0.0, %v5567
      %5569 = vmatmul.bf16.gmra.mxu0 %v5513
      %v5570 = vpop.f32.mrf.mxu0
      %v5571 = vadd.f32 0.0, %v5570
      %v5572 = vpop.f32.mrf.mxu0
      %v5573 = vadd.f32 0.0, %v5572
      %5574 = vmatmul.bf16.gmra.mxu0 %v5515
      %v5575 = vpop.f32.mrf.mxu0
      %v5576 = vadd.f32 0.0, %v5575
      %v5577 = vpop.f32.mrf.mxu0
      %v5578 = vadd.f32 0.0, %v5577
      %5579 = vmatmul.bf16.gmra.mxu0 %v5517
      %v5580 = vpop.f32.mrf.mxu0
      %v5581 = vadd.f32 0.0, %v5580
      %v5582 = vpop.f32.mrf.mxu0
      %v5583 = vadd.f32 0.0, %v5582
      %5584 = vmatmul.bf16.gmra.mxu0 %v5519
      %v5585 = vpop.f32.mrf.mxu0
      %v5586 = vadd.f32 0.0, %v5585
      %v5587 = vpop.f32.mrf.mxu0
      %v5588 = vadd.f32 0.0, %v5587
      %5589 = vmatmul.bf16.gmra.mxu0 %v5521
      %v5590 = vpop.f32.mrf.mxu0
      %v5591 = vadd.f32 0.0, %v5590
      %v5592 = vpop.f32.mrf.mxu0
      %v5593 = vadd.f32 0.0, %v5592
      %5594 = vmatmul.bf16.gmra.mxu0 %v5523
      %v5595 = vpop.f32.mrf.mxu0
      %v5596 = vadd.f32 0.0, %v5595
      %v5597 = vpop.f32.mrf.mxu0
      %v5598 = vadd.f32 0.0, %v5597
      %5599 = vmatmul.bf16.gmra.mxu0 %v5525
      %v5600 = vpop.f32.mrf.mxu0
      %v5601 = vadd.f32 0.0, %v5600
      %v5602 = vpop.f32.mrf.mxu0
      %v5603 = vadd.f32 0.0, %v5602
      %5604 = vmatmul.bf16.gmra.mxu0 %v5527
      %v5605 = vpop.f32.mrf.mxu0
      %v5606 = vadd.f32 0.0, %v5605
      %v5607 = vpop.f32.mrf.mxu0
      %v5608 = vadd.f32 0.0, %v5607
      %5609 = vmatmul.bf16.gmra.mxu0 %v5529
      %v5610 = vpop.f32.mrf.mxu0
      %v5611 = vadd.f32 0.0, %v5610
      %v5612 = vpop.f32.mrf.mxu0
      %v5613 = vadd.f32 0.0, %v5612
      %5614 = vmatmul.bf16.gmra.mxu0 %v5531
      %v5615 = vpop.f32.mrf.mxu0
      %v5616 = vadd.f32 0.0, %v5615
      %v5617 = vpop.f32.mrf.mxu0
      %v5618 = vadd.f32 0.0, %v5617
      %5619 = vmatmul.bf16.gmra.mxu0 %v5533
      %v5620 = vpop.f32.mrf.mxu0
      %v5621 = vadd.f32 0.0, %v5620
      %v5622 = vpop.f32.mrf.mxu0
      %v5623 = vadd.f32 0.0, %v5622
      %5624 = vmatmul.bf16.gmra.mxu0 %v5535
      %v5625 = vpop.f32.mrf.mxu0
      %v5626 = vadd.f32 0.0, %v5625
      %v5627 = vpop.f32.mrf.mxu0
      %v5628 = vadd.f32 0.0, %v5627
      %5629 = vmatmul.bf16.gmra.mxu0 %v5537
      %v5630 = vpop.f32.mrf.mxu0
      %v5631 = vadd.f32 0.0, %v5630
      %v5632 = vpop.f32.mrf.mxu0
      %v5633 = vadd.f32 0.0, %v5632
      %5634 = vmatmul.bf16.gmra.mxu0 %v5539
      %v5635 = vpop.f32.mrf.mxu0
      %v5636 = vadd.f32 0.0, %v5635
      %v5637 = vpop.f32.mrf.mxu0
      %v5638 = vadd.f32 0.0, %v5637
      %5639 = vmatmul.bf16.gmra.mxu0 %v5541
      %v5640 = vpop.f32.mrf.mxu0
      %v5641 = vadd.f32 0.0, %v5640
      %v5642 = vpop.f32.mrf.mxu0
      %v5643 = vadd.f32 0.0, %v5642
      %5644 = vmatmul.bf16.gmra.mxu0 %v5543
      %v5645 = vpop.f32.mrf.mxu0
      %v5646 = vadd.f32 0.0, %v5645
      %v5647 = vpop.f32.mrf.mxu0
      %v5648 = vadd.f32 0.0, %v5647
      %5649 = vmatmul.bf16.gmra.mxu0 %v5545
      %v5650 = vpop.f32.mrf.mxu0
      %v5651 = vadd.f32 0.0, %v5650
      %v5652 = vpop.f32.mrf.mxu0
      %v5653 = vadd.f32 0.0, %v5652
      %5654 = vmatmul.bf16.gmra.mxu0 %v5547
      %v5655 = vpop.f32.mrf.mxu0
      %v5656 = vadd.f32 0.0, %v5655
      %v5657 = vpop.f32.mrf.mxu0
      %v5658 = vadd.f32 0.0, %v5657
      %5659 = vmatmul.bf16.gmra.mxu0 %v5549
      %v5660 = vpop.f32.mrf.mxu0
      %v5661 = vadd.f32 0.0, %v5660
      %v5662 = vpop.f32.mrf.mxu0
      %v5663 = vadd.f32 0.0, %v5662
      %5664 = vmatmul.bf16.gmra.mxu0 %v5551
      %v5665 = vpop.f32.mrf.mxu0
      %v5666 = vadd.f32 0.0, %v5665
      %v5667 = vpop.f32.mrf.mxu0
      %5668 = vdwg.mxu0
      %v5669 = vadd.f32 %v5241, %v5566
      %v5670 = vadd.f32 %v5242, %v5568
      %v5671 = vadd.f32 %v5243, %v5571
      %v5672 = vadd.f32 %v5244, %v5573
      %v5673 = vadd.f32 %v5245, %v5576
      %v5674 = vadd.f32 %v5246, %v5578
      %v5675 = vadd.f32 %v5247, %v5581
      %v5676 = vadd.f32 %v5248, %v5583
      %v5677 = vadd.f32 %v5249, %v5586
      %v5678 = vadd.f32 %v5250, %v5588
      %v5679 = vadd.f32 %v5251, %v5591
      %v5680 = vadd.f32 %v5252, %v5593
      %v5681 = vadd.f32 %v5253, %v5596
      %v5682 = vadd.f32 %v5254, %v5598
      %v5683 = vadd.f32 %v5255, %v5601
      %v5684 = vadd.f32 %v5256, %v5603
      %v5685 = vadd.f32 %v5257, %v5606
      %v5686 = vadd.f32 %v5258, %v5608
      %v5687 = vadd.f32 %v5259, %v5611
      %v5688 = vadd.f32 %v5260, %v5613
      %v5689 = vadd.f32 %v5261, %v5616
      %v5690 = vadd.f32 %v5262, %v5618
      %v5691 = vadd.f32 %v5263, %v5621
      %v5692 = vadd.f32 %v5264, %v5623
      %v5693 = vadd.f32 %v5265, %v5626
      %v5694 = vadd.f32 %v5266, %v5628
      %v5695 = vadd.f32 %v5267, %v5631
      %v5696 = vadd.f32 %v5268, %v5633
      %v5697 = vadd.f32 %v5269, %v5636
      %v5698 = vadd.f32 %v5270, %v5638
      %v5699 = vadd.f32 %v5271, %v5641
      %v5700 = vadd.f32 %v5272, %v5643
      %v5701 = vadd.f32 %v5273, %v5646
      %v5702 = vadd.f32 %v5274, %v5648
      %v5703 = vadd.f32 %v5275, %v5651
      %v5704 = vadd.f32 %v5276, %v5653
      %v5705 = vadd.f32 %v5277, %v5656
      %v5706 = vadd.f32 %v5278, %v5658
      %v5707 = vadd.f32 %v5279, %v5661
      %v5708 = vadd.f32 %v5280, %v5663
      %v5709 = vadd.f32 %v5281, %v5666
      %v5710 = vsel %vm490, %v368, %v5287
      %v5712 = vrot.slane %v5710, 1
      %v5713 = vshrl.u32 %v5290, 16
      %v5715 = vrot.slane %v5713, 7
      %v5716 = vrot.slane %v5715, 1
      %v5717 = vshll.u32 %v5293, 16
      %v5719 = vsel %vm1044, %v5716, %v5717
      %v5720 = vshrl.u32 %v5293, 16
      %v5722 = vrot.slane %v5720, 7
      %v5723 = vrot.slane %v5722, 1
      %v5724 = vshll.u32 %v5296, 16
      %v5726 = vsel %vm1044, %v5723, %v5724
      %v5727 = vshrl.u32 %v5296, 16
      %v5729 = vrot.slane %v5727, 7
      %v5730 = vrot.slane %v5729, 1
      %v5731 = vshll.u32 %v5299, 16
      %v5733 = vsel %vm1044, %v5730, %v5731
      %v5734 = vshrl.u32 %v5299, 16
      %v5736 = vrot.slane %v5734, 7
      %v5737 = vrot.slane %v5736, 1
      %v5738 = vshll.u32 %v5302, 16
      %v5740 = vsel %vm1044, %v5737, %v5738
      %v5741 = vshrl.u32 %v5302, 16
      %v5743 = vrot.slane %v5741, 7
      %v5744 = vrot.slane %v5743, 1
      %v5745 = vshll.u32 %v5305, 16
      %v5747 = vsel %vm1044, %v5744, %v5745
      %v5748 = vshrl.u32 %v5305, 16
      %v5750 = vrot.slane %v5748, 7
      %v5751 = vrot.slane %v5750, 1
      %v5752 = vshll.u32 %v5308, 16
      %v5754 = vsel %vm1044, %v5751, %v5752
      %v5755 = vshrl.u32 %v5308, 16
      %v5757 = vrot.slane %v5755, 7
      %v5758 = vrot.slane %v5757, 1
      %v5759 = vshll.u32 %v5311, 16
      %v5761 = vsel %vm1044, %v5758, %v5759
      %v5762 = vshrl.u32 %v5311, 16
      %v5764 = vrot.slane %v5762, 7
      %v5765 = vrot.slane %v5764, 1
      %v5766 = vshll.u32 %v5314, 16
      %v5768 = vsel %vm1044, %v5765, %v5766
      %v5769 = vshrl.u32 %v5314, 16
      %v5771 = vrot.slane %v5769, 7
      %v5772 = vrot.slane %v5771, 1
      %v5774 = vshll.u32 %v5712, 16
      %v5776 = vsel %vm1044, %v5772, %v5774
      %5777 = vst [vmem:[#allocation1] ss:$9 sm:$0xff] %v1192
      %s5778 = scalar_lea.vmem [#allocation1], 1
      %5779 = vst [vmem:[%s5778] ss:$9 sm:$0xff] %v1200
      %s5780 = scalar_lea.vmem [#allocation1], 2
      %5781 = vst [vmem:[%s5780] ss:$9 sm:$0xff] %v1208
      %s5782 = scalar_lea.vmem [#allocation1], 3
      %5783 = vst [vmem:[%s5782] ss:$9 sm:$0xff] %v1215
      %s5784 = scalar_lea.vmem [#allocation1], 4
      %5785 = vst [vmem:[%s5784] ss:$9 sm:$0xff] %v1223
      %s5786 = scalar_lea.vmem [#allocation1], 5
      %5787 = vst [vmem:[%s5786] ss:$9 sm:$0xff] %v1231
      %s5788 = scalar_lea.vmem [#allocation1], 6
      %5789 = vst [vmem:[%s5788] ss:$9 sm:$0xff] %v1239
      %s5790 = scalar_lea.vmem [#allocation1], 7
      %5791 = vst [vmem:[%s5790] ss:$9 sm:$0xff] %v1246
      %v5792 = vld [vmem:[#allocation1] sm:$0xff]
      %5793 = vst [vmem:[#allocation1] ss:$9 sm:$0xff] %v1254
      %5794 = vst [vmem:[%s5778] ss:$9 sm:$0xff] %v1262
      %5795 = vst [vmem:[%s5780] ss:$9 sm:$0xff] %v1270
      %5796 = vst [vmem:[%s5782] ss:$9 sm:$0xff] %v1278
      %5797 = vst [vmem:[%s5784] ss:$9 sm:$0xff] %v1285
      %5798 = vst [vmem:[%s5786] ss:$9 sm:$0xff] %v1293
      %5799 = vst [vmem:[%s5788] ss:$9 sm:$0xff] %v1301
      %5800 = vst [vmem:[%s5790] ss:$9 sm:$0xff] %v1309
      %v5801 = vld [vmem:[#allocation1] sm:$0xff]
      %5802 = vst [vmem:[#allocation1] ss:$9 sm:$0xff] %v1316
      %5803 = vst [vmem:[%s5778] ss:$9 sm:$0xff] %v1324
      %5804 = vst [vmem:[%s5780] ss:$9 sm:$0xff] %v1332
      %5805 = vst [vmem:[%s5782] ss:$9 sm:$0xff] %v1340
      %5806 = vst [vmem:[%s5784] ss:$9 sm:$0xff] %v1348
      %5807 = vst [vmem:[%s5786] ss:$9 sm:$0xff] %v1355
      %5808 = vst [vmem:[%s5788] ss:$9 sm:$0xff] %v1363
      %5809 = vst [vmem:[%s5790] ss:$9 sm:$0xff] %v1371
      %v5810 = vld [vmem:[#allocation1] sm:$0xff]
      %5811 = vst [vmem:[#allocation1] ss:$9 sm:$0xff] %v1379
      %5812 = vst [vmem:[%s5778] ss:$9 sm:$0xff] %v1386
      %5813 = vst [vmem:[%s5780] ss:$9 sm:$0xff] %v1394
      %5814 = vst [vmem:[%s5782] ss:$9 sm:$0xff] %v1402
      %5815 = vst [vmem:[%s5784] ss:$9 sm:$0xff] %v1410
      %5816 = vst [vmem:[%s5786] ss:$9 sm:$0xff] %v1418
      %5817 = vst [vmem:[%s5788] ss:$9 sm:$0xff] %v1425
      %5818 = vst [vmem:[%s5790] ss:$9 sm:$0xff] %v1433
      %v5819 = vld [vmem:[#allocation1] sm:$0xff]
      %5820 = vst [vmem:[#allocation1] ss:$9 sm:$0xff] %v1441
      %5821 = vst [vmem:[%s5778] ss:$9 sm:$0xff] %v1449
      %5822 = vst [vmem:[%s5780] ss:$9 sm:$0xff] %v1456
      %5823 = vst [vmem:[%s5782] ss:$9 sm:$0xff] %v1464
      %5824 = vst [vmem:[%s5784] ss:$9 sm:$0xff] %v1472
      %5825 = vst [vmem:[%s5786] ss:$9 sm:$0xff] %v1480
      %5826 = vst [vmem:[%s5788] ss:$9 sm:$0xff] %v1488
      %5827 = vst [vmem:[%s5790] ss:$9 sm:$0xff] %v1495
      %v5828 = vld [vmem:[#allocation1] sm:$0xff]
      %5829 = vst [vmem:[#allocation1] ss:$9 sm:$0xff] %v1503
      %5830 = vst [vmem:[%s5778] ss:$9 sm:$0xff] %v1511
      %5831 = vst [vmem:[%s5780] ss:$9 sm:$0xff] %v1519
      %5832 = vst [vmem:[%s5782] ss:$9 sm:$0xff] %v1526
      %5833 = vst [vmem:[%s5784] ss:$9 sm:$0xff] %v1534
      %5834 = vst [vmem:[%s5786] ss:$9 sm:$0xff] %v1542
      %5835 = vst [vmem:[%s5788] ss:$9 sm:$0xff] %v1550
      %5836 = vst [vmem:[%s5790] ss:$9 sm:$0xff] %v1558
      %v5837 = vld [vmem:[#allocation1] sm:$0xff]
      %5838 = vst [vmem:[#allocation1] ss:$9 sm:$0xff] %v1565
      %5839 = vst [vmem:[%s5778] ss:$9 sm:$0xff] %v1573
      %5840 = vst [vmem:[%s5780] ss:$9 sm:$0xff] %v1581
      %5841 = vst [vmem:[%s5782] ss:$9 sm:$0xff] %v1589
      %5842 = vst [vmem:[%s5784] ss:$9 sm:$0xff] %v1596
      %5843 = vst [vmem:[%s5786] ss:$9 sm:$0xff] %v1604
      %5844 = vst [vmem:[%s5788] ss:$9 sm:$0xff] %v1612
      %5845 = vst [vmem:[%s5790] ss:$9 sm:$0xff] %v1620
      %v5846 = vld [vmem:[#allocation1] sm:$0xff]
      %5847 = vst [vmem:[#allocation1] ss:$9 sm:$0xff] %v1628
      %5848 = vst [vmem:[%s5778] ss:$9 sm:$0xff] %v1635
      %5849 = vst [vmem:[%s5780] ss:$9 sm:$0xff] %v1643
      %5850 = vst [vmem:[%s5782] ss:$9 sm:$0xff] %v1651
      %5851 = vst [vmem:[%s5784] ss:$9 sm:$0xff] %v1659
      %5852 = vst [vmem:[%s5786] ss:$9 sm:$0xff] %v1666
      %5853 = vst [vmem:[%s5788] ss:$9 sm:$0xff] %v1674
      %5854 = vst [vmem:[%s5790] ss:$9 sm:$0xff] %v1682
      %v5855 = vld [vmem:[#allocation1] sm:$0xff]
      %5856 = vst [vmem:[#allocation1] ss:$9 sm:$0xff] %v1690
      %5857 = vst [vmem:[%s5778] ss:$9 sm:$0xff] %v1698
      %5858 = vst [vmem:[%s5780] ss:$9 sm:$0xff] %v1705
      %5859 = vst [vmem:[%s5782] ss:$9 sm:$0xff] %v1713
      %5860 = vst [vmem:[%s5784] ss:$9 sm:$0xff] %v1721
      %5861 = vst [vmem:[%s5786] ss:$9 sm:$0xff] %v1729
      %5862 = vst [vmem:[%s5788] ss:$9 sm:$0xff] %v1736
      %5863 = vst [vmem:[%s5790] ss:$9 sm:$0xff] %v1744
      %v5864 = vld [vmem:[#allocation1] sm:$0xff]
      %5865 = vst [vmem:[#allocation1] ss:$9 sm:$0xff] %v1752
      %5866 = vst [vmem:[%s5778] ss:$9 sm:$0xff] %v1760
      %5867 = vst [vmem:[%s5780] ss:$9 sm:$0xff] %v1768
      %5868 = vst [vmem:[%s5782] ss:$9 sm:$0xff] %v1775
      %5869 = vst [vmem:[%s5784] ss:$9 sm:$0xff] %v1783
      %5870 = vst [vmem:[%s5786] ss:$9 sm:$0xff] %v1791
      %5871 = vst [vmem:[%s5788] ss:$9 sm:$0xff] %v1799
      %5872 = vst [vmem:[%s5790] ss:$9 sm:$0xff] %v1806
      %v5873 = vld [vmem:[#allocation1] sm:$0xff]
      %5874 = vst [vmem:[#allocation1] ss:$9 sm:$0xff] %v1814
      %5875 = vst [vmem:[%s5778] ss:$9 sm:$0xff] %v1822
      %5876 = vst [vmem:[%s5780] ss:$9 sm:$0xff] %v1830
      %5877 = vst [vmem:[%s5782] ss:$9 sm:$0xff] %v1838
      %5878 = vst [vmem:[%s5784] ss:$9 sm:$0xff] %v1845
      %5879 = vst [vmem:[%s5786] ss:$9 sm:$0xff] %v1853
      %5880 = vst [vmem:[%s5788] ss:$9 sm:$0xff] %v1861
      %5881 = vst [vmem:[%s5790] ss:$9 sm:$0xff] %v1869
      %v5882 = vld [vmem:[#allocation1] sm:$0xff]
      %5883 = vst [vmem:[#allocation1] ss:$9 sm:$0xff] %v1876
      %5884 = vst [vmem:[%s5778] ss:$9 sm:$0xff] %v1884
      %5885 = vst [vmem:[%s5780] ss:$9 sm:$0xff] %v1892
      %5886 = vst [vmem:[%s5782] ss:$9 sm:$0xff] %v1900
      %5887 = vst [vmem:[%s5784] ss:$9 sm:$0xff] %v1908
      %5888 = vst [vmem:[%s5786] ss:$9 sm:$0xff] %v1915
      %5889 = vst [vmem:[%s5788] ss:$9 sm:$0xff] %v1923
      %5890 = vst [vmem:[%s5790] ss:$9 sm:$0xff] %v1931
      %v5891 = vld [vmem:[#allocation1] sm:$0xff]
      %5892 = vst [vmem:[#allocation1] ss:$9 sm:$0xff] %v1939
      %5893 = vst [vmem:[%s5778] ss:$9 sm:$0xff] %v1946
      %5894 = vst [vmem:[%s5780] ss:$9 sm:$0xff] %v1954
      %5895 = vst [vmem:[%s5782] ss:$9 sm:$0xff] %v1962
      %5896 = vst [vmem:[%s5784] ss:$9 sm:$0xff] %v1970
      %5897 = vst [vmem:[%s5786] ss:$9 sm:$0xff] %v1978
      %5898 = vst [vmem:[%s5788] ss:$9 sm:$0xff] %v1985
      %5899 = vst [vmem:[%s5790] ss:$9 sm:$0xff] %v1993
      %v5900 = vld [vmem:[#allocation1] sm:$0xff]
      %5901 = vst [vmem:[#allocation1] ss:$9 sm:$0xff] %v2001
      %5902 = vst [vmem:[%s5778] ss:$9 sm:$0xff] %v2009
      %5903 = vst [vmem:[%s5780] ss:$9 sm:$0xff] %v2016
      %5904 = vst [vmem:[%s5782] ss:$9 sm:$0xff] %v2024
      %5905 = vst [vmem:[%s5784] ss:$9 sm:$0xff] %v2032
      %5906 = vst [vmem:[%s5786] ss:$9 sm:$0xff] %v2040
      %5907 = vst [vmem:[%s5788] ss:$9 sm:$0xff] %v2048
      %5908 = vst [vmem:[%s5790] ss:$9 sm:$0xff] %v2055
      %v5909 = vld [vmem:[#allocation1] sm:$0xff]
      %5910 = vst [vmem:[#allocation1] ss:$9 sm:$0xff] %v2063
      %5911 = vst [vmem:[%s5778] ss:$9 sm:$0xff] %v2071
      %5912 = vst [vmem:[%s5780] ss:$9 sm:$0xff] %v2079
      %5913 = vst [vmem:[%s5782] ss:$9 sm:$0xff] %v2086
      %5914 = vst [vmem:[%s5784] ss:$9 sm:$0xff] %v2094
      %5915 = vst [vmem:[%s5786] ss:$9 sm:$0xff] %v2102
      %5916 = vst [vmem:[%s5788] ss:$9 sm:$0xff] %v2110
      %5917 = vst [vmem:[%s5790] ss:$9 sm:$0xff] %v2118
      %v5918 = vld [vmem:[#allocation1] sm:$0xff]
      %5919 = vst [vmem:[#allocation1] ss:$9 sm:$0xff] %v2125
      %5920 = vst [vmem:[%s5778] ss:$9 sm:$0xff] %v2133
      %5921 = vst [vmem:[%s5780] ss:$9 sm:$0xff] %v2141
      %5922 = vst [vmem:[%s5782] ss:$9 sm:$0xff] %v2149
      %5923 = vst [vmem:[%s5784] ss:$9 sm:$0xff] %v2156
      %5924 = vst [vmem:[%s5786] ss:$9 sm:$0xff] %v2164
      %5925 = vst [vmem:[%s5788] ss:$9 sm:$0xff] %v2172
      %5926 = vst [vmem:[%s5790] ss:$9 sm:$0xff] %v2180
      %v5927 = vld [vmem:[#allocation1] sm:$0xff]
      %5928 = vst [vmem:[#allocation1] ss:$9 sm:$0xff] %v2188
      %5929 = vst [vmem:[%s5778] ss:$9 sm:$0xff] %v2195
      %5930 = vst [vmem:[%s5780] ss:$9 sm:$0xff] %v2203
      %5931 = vst [vmem:[%s5782] ss:$9 sm:$0xff] %v2211
      %5932 = vst [vmem:[%s5784] ss:$9 sm:$0xff] %v2219
      %5933 = vst [vmem:[%s5786] ss:$9 sm:$0xff] %v2226
      %5934 = vst [vmem:[%s5788] ss:$9 sm:$0xff] %v2234
      %5935 = vst [vmem:[%s5790] ss:$9 sm:$0xff] %v2242
      %v5936 = vld [vmem:[#allocation1] sm:$0xff]
      %5937 = vst [vmem:[#allocation1] ss:$9 sm:$0xff] %v2250
      %5938 = vst [vmem:[%s5778] ss:$9 sm:$0xff] %v2258
      %5939 = vst [vmem:[%s5780] ss:$9 sm:$0xff] %v2265
      %5940 = vst [vmem:[%s5782] ss:$9 sm:$0xff] %v2273
      %5941 = vst [vmem:[%s5784] ss:$9 sm:$0xff] %v2281
      %5942 = vst [vmem:[%s5786] ss:$9 sm:$0xff] %v2289
      %5943 = vst [vmem:[%s5788] ss:$9 sm:$0xff] %v2296
      %5944 = vst [vmem:[%s5790] ss:$9 sm:$0xff] %v2304
      %v5945 = vld [vmem:[#allocation1] sm:$0xff]
      %5946 = vst [vmem:[#allocation1] ss:$9 sm:$0xff] %v4214
      %5947 = vst [vmem:[%s5778] ss:$9 sm:$0xff] %v4221
      %5948 = vst [vmem:[%s5780] ss:$9 sm:$0xff] %v4228
      %5949 = vst [vmem:[%s5782] ss:$9 sm:$0xff] %v4235
      %5950 = vst [vmem:[%s5784] ss:$9 sm:$0xff] %v4242
      %5951 = vst [vmem:[%s5786] ss:$9 sm:$0xff] %v4249
      %5952 = vst [vmem:[%s5788] ss:$9 sm:$0xff] %v4256
      %5953 = vst [vmem:[%s5790] ss:$9 sm:$0xff] %v4263
      %v5954 = vld [vmem:[#allocation1] sm:$0xff]
      %5955 = vst [vmem:[#allocation1] ss:$9 sm:$0xff] %v4271
      %5957 = vst [vmem:[%s5778] ss:$9 sm:$0xff] %v5719
      %5959 = vst [vmem:[%s5780] ss:$9 sm:$0xff] %v5726
      %5961 = vst [vmem:[%s5782] ss:$9 sm:$0xff] %v5733
      %5963 = vst [vmem:[%s5784] ss:$9 sm:$0xff] %v5740
      %5965 = vst [vmem:[%s5786] ss:$9 sm:$0xff] %v5747
      %5967 = vst [vmem:[%s5788] ss:$9 sm:$0xff] %v5754
      %5969 = vst [vmem:[%s5790] ss:$9 sm:$0xff] %v5761
      %v5970 = vld [vmem:[#allocation1] sm:$0xff]
      %5972 = vst [vmem:[#allocation1] ss:$9 sm:$0xff] %v5768
      %5974 = vst [vmem:[%s5778] ss:$9 sm:$0xff] %v5776
      %v5975 = vld [vmem:[#allocation1] sm:$0xff]
      %v5976 = vsel %vm2657, %v5792, 0
      %v5978 = vsel %vm2657, %v5801, 0
      %v5980 = vsel %vm2657, %v5810, 0
      %v5982 = vsel %vm2657, %v5819, 0
      %v5984 = vsel %vm2657, %v5828, 0
      %v5986 = vsel %vm2657, %v5837, 0
      %v5988 = vsel %vm2657, %v5846, 0
      %v5990 = vsel %vm2657, %v5855, 0
      %v5992 = vsel %vm2657, %v5864, 0
      %v5994 = vsel %vm2657, %v5873, 0
      %v5996 = vsel %vm2657, %v5882, 0
      %v5998 = vsel %vm2657, %v5891, 0
      %v6000 = vsel %vm2657, %v5900, 0
      %v6002 = vsel %vm2657, %v5909, 0
      %v6004 = vsel %vm2657, %v5918, 0
      %v6006 = vsel %vm2657, %v5927, 0
      %v6008 = vsel %vm2657, %v5936, 0
      %v6010 = vsel %vm2657, %v5945, 0
      %v6012 = vsel %vm2657, %v5954, 0
      %v6014 = vsel %vm2657, %v5970, 0
      %v6016 = vsel %vm2657, %v5975, 0
      %v6019 = vsel %vm2700, %v376, 0
      %6021 = vmatpush.bf16.msra.mxu0 0
      %6022 = vmatpush.bf16.msra.mxu0 0
      %6023 = vmatpush.bf16.msra.mxu0 0
      %6024 = vmatpush.bf16.msra.mxu0 0
      %6025 = vmatpush.bf16.msra.mxu0 0
      %6026 = vmatpush.bf16.msra.mxu0 0
      %6027 = vmatpush.bf16.msra.mxu0 0
      %6028 = vmatpush.bf16.msra.mxu0 %v6019
      %6029 = vmatmul.bf16.gmra.mxu0 %v5976
      %v6030 = vpop.f32.mrf.mxu0
      %v6031 = vadd.f32 0.0, %v6030
      %v6032 = vpop.f32.mrf.mxu0
      %v6033 = vadd.f32 0.0, %v6032
      %6034 = vmatmul.bf16.gmra.mxu0 %v5978
      %v6035 = vpop.f32.mrf.mxu0
      %v6036 = vadd.f32 0.0, %v6035
      %v6037 = vpop.f32.mrf.mxu0
      %v6038 = vadd.f32 0.0, %v6037
      %6039 = vmatmul.bf16.gmra.mxu0 %v5980
      %v6040 = vpop.f32.mrf.mxu0
      %v6041 = vadd.f32 0.0, %v6040
      %v6042 = vpop.f32.mrf.mxu0
      %v6043 = vadd.f32 0.0, %v6042
      %6044 = vmatmul.bf16.gmra.mxu0 %v5982
      %v6045 = vpop.f32.mrf.mxu0
      %v6046 = vadd.f32 0.0, %v6045
      %v6047 = vpop.f32.mrf.mxu0
      %v6048 = vadd.f32 0.0, %v6047
      %6049 = vmatmul.bf16.gmra.mxu0 %v5984
      %v6050 = vpop.f32.mrf.mxu0
      %v6051 = vadd.f32 0.0, %v6050
      %v6052 = vpop.f32.mrf.mxu0
      %v6053 = vadd.f32 0.0, %v6052
      %6054 = vmatmul.bf16.gmra.mxu0 %v5986
      %v6055 = vpop.f32.mrf.mxu0
      %v6056 = vadd.f32 0.0, %v6055
      %v6057 = vpop.f32.mrf.mxu0
      %v6058 = vadd.f32 0.0, %v6057
      %6059 = vmatmul.bf16.gmra.mxu0 %v5988
      %v6060 = vpop.f32.mrf.mxu0
      %v6061 = vadd.f32 0.0, %v6060
      %v6062 = vpop.f32.mrf.mxu0
      %v6063 = vadd.f32 0.0, %v6062
      %6064 = vmatmul.bf16.gmra.mxu0 %v5990
      %v6065 = vpop.f32.mrf.mxu0
      %v6066 = vadd.f32 0.0, %v6065
      %v6067 = vpop.f32.mrf.mxu0
      %v6068 = vadd.f32 0.0, %v6067
      %6069 = vmatmul.bf16.gmra.mxu0 %v5992
      %v6070 = vpop.f32.mrf.mxu0
      %v6071 = vadd.f32 0.0, %v6070
      %v6072 = vpop.f32.mrf.mxu0
      %v6073 = vadd.f32 0.0, %v6072
      %6074 = vmatmul.bf16.gmra.mxu0 %v5994
      %v6075 = vpop.f32.mrf.mxu0
      %v6076 = vadd.f32 0.0, %v6075
      %v6077 = vpop.f32.mrf.mxu0
      %v6078 = vadd.f32 0.0, %v6077
      %6079 = vmatmul.bf16.gmra.mxu0 %v5996
      %v6080 = vpop.f32.mrf.mxu0
      %v6081 = vadd.f32 0.0, %v6080
      %v6082 = vpop.f32.mrf.mxu0
      %v6083 = vadd.f32 0.0, %v6082
      %6084 = vmatmul.bf16.gmra.mxu0 %v5998
      %v6085 = vpop.f32.mrf.mxu0
      %v6086 = vadd.f32 0.0, %v6085
      %v6087 = vpop.f32.mrf.mxu0
      %v6088 = vadd.f32 0.0, %v6087
      %6089 = vmatmul.bf16.gmra.mxu0 %v6000
      %v6090 = vpop.f32.mrf.mxu0
      %v6091 = vadd.f32 0.0, %v6090
      %v6092 = vpop.f32.mrf.mxu0
      %v6093 = vadd.f32 0.0, %v6092
      %6094 = vmatmul.bf16.gmra.mxu0 %v6002
      %v6095 = vpop.f32.mrf.mxu0
      %v6096 = vadd.f32 0.0, %v6095
      %v6097 = vpop.f32.mrf.mxu0
      %v6098 = vadd.f32 0.0, %v6097
      %6099 = vmatmul.bf16.gmra.mxu0 %v6004
      %v6100 = vpop.f32.mrf.mxu0
      %v6101 = vadd.f32 0.0, %v6100
      %v6102 = vpop.f32.mrf.mxu0
      %v6103 = vadd.f32 0.0, %v6102
      %6104 = vmatmul.bf16.gmra.mxu0 %v6006
      %v6105 = vpop.f32.mrf.mxu0
      %v6106 = vadd.f32 0.0, %v6105
      %v6107 = vpop.f32.mrf.mxu0
      %v6108 = vadd.f32 0.0, %v6107
      %6109 = vmatmul.bf16.gmra.mxu0 %v6008
      %v6110 = vpop.f32.mrf.mxu0
      %v6111 = vadd.f32 0.0, %v6110
      %v6112 = vpop.f32.mrf.mxu0
      %v6113 = vadd.f32 0.0, %v6112
      %6114 = vmatmul.bf16.gmra.mxu0 %v6010
      %v6115 = vpop.f32.mrf.mxu0
      %v6116 = vadd.f32 0.0, %v6115
      %v6117 = vpop.f32.mrf.mxu0
      %v6118 = vadd.f32 0.0, %v6117
      %6119 = vmatmul.bf16.gmra.mxu0 %v6012
      %v6120 = vpop.f32.mrf.mxu0
      %v6121 = vadd.f32 0.0, %v6120
      %v6122 = vpop.f32.mrf.mxu0
      %v6123 = vadd.f32 0.0, %v6122
      %6124 = vmatmul.bf16.gmra.mxu0 %v6014
      %v6125 = vpop.f32.mrf.mxu0
      %v6126 = vadd.f32 0.0, %v6125
      %v6127 = vpop.f32.mrf.mxu0
      %v6128 = vadd.f32 0.0, %v6127
      %6129 = vmatmul.bf16.gmra.mxu0 %v6016
      %v6130 = vpop.f32.mrf.mxu0
      %v6131 = vadd.f32 0.0, %v6130
      %v6132 = vpop.f32.mrf.mxu0
      %6133 = vdwg.mxu0
      %v6134 = vadd.f32 %v5669, %v6031
      %v6135 = vadd.f32 %v5670, %v6033
      %v6136 = vadd.f32 %v5671, %v6036
      %v6137 = vadd.f32 %v5672, %v6038
      %v6138 = vadd.f32 %v5673, %v6041
      %v6139 = vadd.f32 %v5674, %v6043
      %v6140 = vadd.f32 %v5675, %v6046
      %v6141 = vadd.f32 %v5676, %v6048
      %v6142 = vadd.f32 %v5677, %v6051
      %v6143 = vadd.f32 %v5678, %v6053
      %v6144 = vadd.f32 %v5679, %v6056
      %v6145 = vadd.f32 %v5680, %v6058
      %v6146 = vadd.f32 %v5681, %v6061
      %v6147 = vadd.f32 %v5682, %v6063
      %v6148 = vadd.f32 %v5683, %v6066
      %v6149 = vadd.f32 %v5684, %v6068
      %v6150 = vadd.f32 %v5685, %v6071
      %v6151 = vadd.f32 %v5686, %v6073
      %v6152 = vadd.f32 %v5687, %v6076
      %v6153 = vadd.f32 %v5688, %v6078
      %v6154 = vadd.f32 %v5689, %v6081
      %v6155 = vadd.f32 %v5690, %v6083
      %v6156 = vadd.f32 %v5691, %v6086
      %v6157 = vadd.f32 %v5692, %v6088
      %v6158 = vadd.f32 %v5693, %v6091
      %v6159 = vadd.f32 %v5694, %v6093
      %v6160 = vadd.f32 %v5695, %v6096
      %v6161 = vadd.f32 %v5696, %v6098
      %v6162 = vadd.f32 %v5697, %v6101
      %v6163 = vadd.f32 %v5698, %v6103
      %v6164 = vadd.f32 %v5699, %v6106
      %v6165 = vadd.f32 %v5700, %v6108
      %v6166 = vadd.f32 %v5701, %v6111
      %v6167 = vadd.f32 %v5702, %v6113
      %v6168 = vadd.f32 %v5703, %v6116
      %v6169 = vadd.f32 %v5704, %v6118
      %v6170 = vadd.f32 %v5705, %v6121
      %v6171 = vadd.f32 %v5706, %v6123
      %v6172 = vadd.f32 %v5707, %v6126
      %v6173 = vadd.f32 %v5708, %v6128
      %v6174 = vadd.f32 %v5709, %v6131
      %6175 = vst [vmem:[#allocation1] sm:$0xff] %v315
      %6176 = vst [vmem:[#allocation1 + $0x20] sm:$0xff] %v316
      %s6177 = scalar_lea.vmem [#allocation1], 1
      %v6178 = vld [vmem:[%s6177] ss:$4 sm:$0xff]
      %s6179 = scalar_lea.vmem [#allocation1], 2
      %v6180 = vld [vmem:[%s6179] ss:$4 sm:$0xff]
      %s6181 = scalar_lea.vmem [#allocation1], 3
      %v6182 = vld [vmem:[%s6181] ss:$4 sm:$0xff]
      %s6183 = scalar_lea.vmem [#allocation1], 32
      %v6184 = vld [vmem:[%s6183] ss:$4 sm:$0xff]
      %s6185 = scalar_lea.vmem [#allocation1], 33
      %v6186 = vld [vmem:[%s6185] ss:$4 sm:$0xff]
      %s6187 = scalar_lea.vmem [#allocation1], 34
      %v6188 = vld [vmem:[%s6187] ss:$4 sm:$0xff]
      %s6189 = scalar_lea.vmem [#allocation1], 35
      %v6190 = vld [vmem:[%s6189] ss:$4 sm:$0xff]
      %6191 = vst [vmem:[#allocation1] sm:$0xff] %v317
      %v6192 = vld [vmem:[#allocation1] ss:$4 sm:$0xff]
      %v6193 = vld [vmem:[%s6177] ss:$4 sm:$0xff]
      %6194 = vst [vmem:[#allocation1 + $0x20] sm:$0xff] %v318
      %v6195 = vld [vmem:[%s6185] ss:$4 sm:$0xff]
      %v6196 = vld [vmem:[%s6187] ss:$4 sm:$0xff]
      %v6197 = vld [vmem:[%s6189] ss:$4 sm:$0xff]
      %6198 = vst [vmem:[#allocation1] sm:$0xff] %v319
      %6199 = vst [vmem:[#allocation1 + $0x20] sm:$0xff] %v320
      %v6200 = vld [vmem:[#allocation1] ss:$4 sm:$0xff]
      %v6201 = vld [vmem:[%s6177] ss:$4 sm:$0xff]
      %v6202 = vld [vmem:[%s6179] ss:$4 sm:$0xff]
      %v6203 = vld [vmem:[%s6181] ss:$4 sm:$0xff]
      %v6204 = vld [vmem:[%s6183] ss:$4 sm:$0xff]
      %v6205 = vld [vmem:[%s6185] ss:$4 sm:$0xff]
      %6206 = vst [vmem:[#allocation1] sm:$0xff] %v321
      %6207 = vst [vmem:[#allocation1 + $0x20] sm:$0xff] %v322
      %v6208 = vld [vmem:[%s6177] ss:$4 sm:$0xff]
      %v6209 = vld [vmem:[%s6179] ss:$4 sm:$0xff]
      %v6210 = vld [vmem:[%s6181] ss:$4 sm:$0xff]
      %v6211 = vld [vmem:[%s6183] ss:$4 sm:$0xff]
      %v6212 = vld [vmem:[%s6185] ss:$4 sm:$0xff]
      %v6213 = vld [vmem:[%s6187] ss:$4 sm:$0xff]
      %v6214 = vld [vmem:[%s6189] ss:$4 sm:$0xff]
      %6215 = vst [vmem:[#allocation1] sm:$0xff] %v323
      %v6216 = vld [vmem:[#allocation1] ss:$4 sm:$0xff]
      %v6217 = vld [vmem:[%s6177] ss:$4 sm:$0xff]
      %6218 = vst [vmem:[#allocation1 + $0x20] sm:$0xff] %v324
      %v6219 = vld [vmem:[%s6185] ss:$4 sm:$0xff]
      %v6220 = vld [vmem:[%s6187] ss:$4 sm:$0xff]
      %v6221 = vld [vmem:[%s6189] ss:$4 sm:$0xff]
      %6222 = vst [vmem:[#allocation1] sm:$0xff] %v325
      %6223 = vst [vmem:[#allocation1 + $0x20] sm:$0xff] %v326
      %v6224 = vld [vmem:[#allocation1] ss:$4 sm:$0xff]
      %v6225 = vld [vmem:[%s6177] ss:$4 sm:$0xff]
      %v6226 = vld [vmem:[%s6179] ss:$4 sm:$0xff]
      %v6227 = vld [vmem:[%s6181] ss:$4 sm:$0xff]
      %v6228 = vld [vmem:[%s6183] ss:$4 sm:$0xff]
      %v6229 = vld [vmem:[%s6185] ss:$4 sm:$0xff]
      %6230 = vst [vmem:[#allocation1] sm:$0xff] %v327
      %6231 = vst [vmem:[#allocation1 + $0x20] sm:$0xff] %v328
      %v6232 = vld [vmem:[%s6177] ss:$4 sm:$0xff]
      %v6233 = vld [vmem:[%s6179] ss:$4 sm:$0xff]
      %v6234 = vld [vmem:[%s6181] ss:$4 sm:$0xff]
      %v6235 = vld [vmem:[%s6183] ss:$4 sm:$0xff]
      %v6236 = vld [vmem:[%s6185] ss:$4 sm:$0xff]
      %v6237 = vld [vmem:[%s6187] ss:$4 sm:$0xff]
      %v6238 = vld [vmem:[%s6189] ss:$4 sm:$0xff]
      %6239 = vst [vmem:[#allocation1] sm:$0xff] %v329
      %v6240 = vld [vmem:[#allocation1] ss:$4 sm:$0xff]
      %v6241 = vld [vmem:[%s6177] ss:$4 sm:$0xff]
      %6242 = vst [vmem:[#allocation1 + $0x20] sm:$0xff] %v330
      %v6243 = vld [vmem:[%s6185] ss:$4 sm:$0xff]
      %v6244 = vld [vmem:[%s6187] ss:$4 sm:$0xff]
      %v6245 = vld [vmem:[%s6189] ss:$4 sm:$0xff]
      %6246 = vst [vmem:[#allocation1] sm:$0xff] %v331
      %6247 = vst [vmem:[#allocation1 + $0x20] sm:$0xff] %v332
      %v6248 = vld [vmem:[#allocation1] ss:$4 sm:$0xff]
      %v6249 = vld [vmem:[%s6177] ss:$4 sm:$0xff]
      %v6250 = vld [vmem:[%s6179] ss:$4 sm:$0xff]
      %v6251 = vld [vmem:[%s6181] ss:$4 sm:$0xff]
      %v6252 = vld [vmem:[%s6183] ss:$4 sm:$0xff]
      %v6253 = vld [vmem:[%s6185] ss:$4 sm:$0xff]
      %6254 = vst [vmem:[#allocation1] sm:$0xff] %v333
      %6255 = vst [vmem:[#allocation1 + $0x20] sm:$0xff] %v334
      %v6256 = vld [vmem:[%s6177] ss:$4 sm:$0xff]
      %v6257 = vld [vmem:[%s6179] ss:$4 sm:$0xff]
      %v6258 = vld [vmem:[%s6181] ss:$4 sm:$0xff]
      %v6259 = vld [vmem:[%s6183] ss:$4 sm:$0xff]
      %v6260 = vld [vmem:[%s6185] ss:$4 sm:$0xff]
      %v6261 = vld [vmem:[%s6187] ss:$4 sm:$0xff]
      %v6262 = vld [vmem:[%s6189] ss:$4 sm:$0xff]
      %6263 = vst [vmem:[#allocation1] sm:$0xff] %v335
      %v6264 = vld [vmem:[#allocation1] ss:$4 sm:$0xff]
      %v6265 = vld [vmem:[%s6177] ss:$4 sm:$0xff]
      %6266 = vst [vmem:[#allocation1 + $0x20] sm:$0xff] %v336
      %v6267 = vld [vmem:[%s6185] ss:$4 sm:$0xff]
      %v6268 = vld [vmem:[%s6187] ss:$4 sm:$0xff]
      %v6269 = vld [vmem:[%s6189] ss:$4 sm:$0xff]
      %6270 = vst [vmem:[#allocation1] sm:$0xff] %v337
      %6271 = vst [vmem:[#allocation1 + $0x20] sm:$0xff] %v338
      %v6272 = vld [vmem:[#allocation1] ss:$4 sm:$0xff]
      %v6273 = vld [vmem:[%s6177] ss:$4 sm:$0xff]
      %v6274 = vld [vmem:[%s6179] ss:$4 sm:$0xff]
      %v6275 = vld [vmem:[%s6181] ss:$4 sm:$0xff]
      %v6276 = vld [vmem:[%s6183] ss:$4 sm:$0xff]
      %v6277 = vld [vmem:[%s6185] ss:$4 sm:$0xff]
      %6278 = vst [vmem:[#allocation1] sm:$0xff] %v339
      %6279 = vst [vmem:[#allocation1 + $0x20] sm:$0xff] %v340
      %v6280 = vld [vmem:[%s6177] ss:$4 sm:$0xff]
      %v6281 = vld [vmem:[%s6179] ss:$4 sm:$0xff]
      %v6282 = vld [vmem:[%s6181] ss:$4 sm:$0xff]
      %v6283 = vld [vmem:[%s6183] ss:$4 sm:$0xff]
      %v6284 = vld [vmem:[%s6185] ss:$4 sm:$0xff]
      %v6285 = vld [vmem:[%s6187] ss:$4 sm:$0xff]
      %v6286 = vld [vmem:[%s6189] ss:$4 sm:$0xff]
      %6287 = vst [vmem:[#allocation1] sm:$0xff] %v341
      %v6288 = vld [vmem:[#allocation1] ss:$4 sm:$0xff]
      %v6289 = vld [vmem:[%s6177] ss:$4 sm:$0xff]
      %6290 = vst [vmem:[#allocation1 + $0x20] sm:$0xff] %v342
      %v6291 = vld [vmem:[%s6185] ss:$4 sm:$0xff]
      %v6292 = vld [vmem:[%s6187] ss:$4 sm:$0xff]
      %v6293 = vld [vmem:[%s6189] ss:$4 sm:$0xff]
      %6294 = vst [vmem:[#allocation1] sm:$0xff] %v343
      %6295 = vst [vmem:[#allocation1 + $0x20] sm:$0xff] %v344
      %v6296 = vld [vmem:[#allocation1] ss:$4 sm:$0xff]
      %v6297 = vld [vmem:[%s6177] ss:$4 sm:$0xff]
      %v6298 = vld [vmem:[%s6179] ss:$4 sm:$0xff]
      %v6299 = vld [vmem:[%s6181] ss:$4 sm:$0xff]
      %v6300 = vld [vmem:[%s6183] ss:$4 sm:$0xff]
      %v6301 = vld [vmem:[%s6185] ss:$4 sm:$0xff]
      %6302 = vst [vmem:[#allocation1] sm:$0xff] %v345
      %6303 = vst [vmem:[#allocation1 + $0x20] sm:$0xff] %v346
      %v6304 = vld [vmem:[%s6177] ss:$4 sm:$0xff]
      %v6305 = vld [vmem:[%s6179] ss:$4 sm:$0xff]
      %v6306 = vld [vmem:[%s6181] ss:$4 sm:$0xff]
      %v6307 = vld [vmem:[%s6183] ss:$4 sm:$0xff]
      %v6308 = vld [vmem:[%s6185] ss:$4 sm:$0xff]
      %v6309 = vld [vmem:[%s6187] ss:$4 sm:$0xff]
      %v6310 = vld [vmem:[%s6189] ss:$4 sm:$0xff]
      %6311 = vst [vmem:[#allocation1] sm:$0xff] %v347
      %v6312 = vld [vmem:[#allocation1] ss:$4 sm:$0xff]
      %v6313 = vld [vmem:[%s6177] ss:$4 sm:$0xff]
      %6314 = vst [vmem:[#allocation1 + $0x20] sm:$0xff] %v348
      %v6315 = vld [vmem:[%s6185] ss:$4 sm:$0xff]
      %v6316 = vld [vmem:[%s6187] ss:$4 sm:$0xff]
      %v6317 = vld [vmem:[%s6189] ss:$4 sm:$0xff]
      %6318 = vst [vmem:[#allocation1] sm:$0xff] %v349
      %6319 = vst [vmem:[#allocation1 + $0x20] sm:$0xff] %v350
      %v6320 = vld [vmem:[#allocation1] ss:$4 sm:$0xff]
      %v6321 = vld [vmem:[%s6177] ss:$4 sm:$0xff]
      %v6322 = vld [vmem:[%s6179] ss:$4 sm:$0xff]
      %v6323 = vld [vmem:[%s6181] ss:$4 sm:$0xff]
      %v6324 = vld [vmem:[%s6183] ss:$4 sm:$0xff]
      %v6325 = vld [vmem:[%s6185] ss:$4 sm:$0xff]
      %6326 = vst [vmem:[#allocation1] sm:$0xff] %v351
      %6327 = vst [vmem:[#allocation1 + $0x20] sm:$0xff] %v352
      %v6328 = vld [vmem:[%s6177] ss:$4 sm:$0xff]
      %v6329 = vld [vmem:[%s6179] ss:$4 sm:$0xff]
      %v6330 = vld [vmem:[%s6181] ss:$4 sm:$0xff]
      %v6331 = vld [vmem:[%s6183] ss:$4 sm:$0xff]
      %v6332 = vld [vmem:[%s6185] ss:$4 sm:$0xff]
      %v6333 = vld [vmem:[%s6187] ss:$4 sm:$0xff]
      %v6334 = vld [vmem:[%s6189] ss:$4 sm:$0xff]
      %6335 = vst [vmem:[#allocation1] sm:$0xff] %v353
      %v6336 = vld [vmem:[#allocation1] ss:$4 sm:$0xff]
      %v6337 = vld [vmem:[%s6177] ss:$4 sm:$0xff]
      %6338 = vst [vmem:[#allocation1 + $0x20] sm:$0xff] %v354
      %v6339 = vld [vmem:[%s6185] ss:$4 sm:$0xff]
      %v6340 = vld [vmem:[%s6187] ss:$4 sm:$0xff]
      %v6341 = vld [vmem:[%s6189] ss:$4 sm:$0xff]
      %6342 = vst [vmem:[#allocation1] sm:$0xff] %v355
      %6343 = vst [vmem:[#allocation1 + $0x20] sm:$0xff] %v356
      %v6344 = vld [vmem:[#allocation1] ss:$4 sm:$0xff]
      %v6345 = vld [vmem:[%s6177] ss:$4 sm:$0xff]
      %v6346 = vld [vmem:[%s6179] ss:$4 sm:$0xff]
      %v6347 = vld [vmem:[%s6181] ss:$4 sm:$0xff]
      %v6348 = vld [vmem:[%s6183] ss:$4 sm:$0xff]
      %v6349 = vld [vmem:[%s6185] ss:$4 sm:$0xff]
      %6350 = vst [vmem:[#allocation1] sm:$0xff] %v357
      %6351 = vst [vmem:[#allocation1 + $0x20] sm:$0xff] %v358
      %v6352 = vld [vmem:[%s6177] ss:$4 sm:$0xff]
      %v6353 = vld [vmem:[%s6179] ss:$4 sm:$0xff]
      %v6354 = vld [vmem:[%s6181] ss:$4 sm:$0xff]
      %v6355 = vld [vmem:[%s6183] ss:$4 sm:$0xff]
      %v6356 = vld [vmem:[%s6185] ss:$4 sm:$0xff]
      %v6357 = vld [vmem:[%s6187] ss:$4 sm:$0xff]
      %v6358 = vld [vmem:[%s6189] ss:$4 sm:$0xff]
      %6359 = vst [vmem:[#allocation1] sm:$0xff] %v359
      %v6360 = vld [vmem:[#allocation1] ss:$4 sm:$0xff]
      %v6361 = vld [vmem:[%s6177] ss:$4 sm:$0xff]
      %6362 = vst [vmem:[#allocation1 + $0x20] sm:$0xff] %v360
      %v6363 = vld [vmem:[%s6185] ss:$4 sm:$0xff]
      %v6364 = vld [vmem:[%s6187] ss:$4 sm:$0xff]
      %v6365 = vld [vmem:[%s6189] ss:$4 sm:$0xff]
      %6366 = vst [vmem:[#allocation1] sm:$0xff] %v361
      %6367 = vst [vmem:[#allocation1 + $0x20] sm:$0xff] %v362
      %v6368 = vld [vmem:[#allocation1] ss:$4 sm:$0xff]
      %v6369 = vld [vmem:[%s6177] ss:$4 sm:$0xff]
      %v6370 = vld [vmem:[%s6179] ss:$4 sm:$0xff]
      %v6371 = vld [vmem:[%s6181] ss:$4 sm:$0xff]
      %v6372 = vld [vmem:[%s6183] ss:$4 sm:$0xff]
      %v6373 = vld [vmem:[%s6185] ss:$4 sm:$0xff]
      %6374 = vst [vmem:[#allocation1] sm:$0xff] %v363
      %6375 = vst [vmem:[#allocation1 + $0x20] sm:$0xff] %v364
      %v6376 = vld [vmem:[%s6177] ss:$4 sm:$0xff]
      %v6377 = vld [vmem:[%s6179] ss:$4 sm:$0xff]
      %v6378 = vld [vmem:[%s6181] ss:$4 sm:$0xff]
      %v6379 = vld [vmem:[%s6183] ss:$4 sm:$0xff]
      %v6380 = vld [vmem:[%s6185] ss:$4 sm:$0xff]
      %v6381 = vld [vmem:[%s6187] ss:$4 sm:$0xff]
      %v6382 = vld [vmem:[%s6189] ss:$4 sm:$0xff]
      %6383 = vst [vmem:[#allocation1] sm:$0xff] %v365
      %v6384 = vld [vmem:[#allocation1] ss:$4 sm:$0xff]
      %v6385 = vld [vmem:[%s6177] ss:$4 sm:$0xff]
      %6386 = vst [vmem:[#allocation1 + $0x20] sm:$0xff] %v366
      %v6387 = vld [vmem:[%s6185] ss:$4 sm:$0xff]
      %v6388 = vld [vmem:[%s6187] ss:$4 sm:$0xff]
      %v6389 = vld [vmem:[%s6189] ss:$4 sm:$0xff]
      %6390 = vst [vmem:[#allocation1] sm:$0xff] %v367
      %6391 = vst [vmem:[#allocation1 + $0x20] sm:$0xff] %v368
      %v6392 = vld [vmem:[#allocation1] ss:$4 sm:$0xff]
      %v6393 = vld [vmem:[%s6177] ss:$4 sm:$0xff]
      %v6394 = vld [vmem:[%s6179] ss:$4 sm:$0xff]
      %v6395 = vld [vmem:[%s6181] ss:$4 sm:$0xff]
      %v6396 = vld [vmem:[%s6183] ss:$4 sm:$0xff]
      %v6397 = vld [vmem:[%s6185] ss:$4 sm:$0xff]
      %6398 = vst [vmem:[#allocation1] ss:$9 sm:$0xff] %v6178
      %s6399 = scalar_lea.vmem [#allocation1], 1
      %6400 = vst [vmem:[%s6399] ss:$9 sm:$0xff] %v6180
      %s6401 = scalar_lea.vmem [#allocation1], 2
      %6402 = vst [vmem:[%s6401] ss:$9 sm:$0xff] %v6182
      %s6403 = scalar_lea.vmem [#allocation1], 3
      %6404 = vst [vmem:[%s6403] ss:$9 sm:$0xff] %v6184
      %s6405 = scalar_lea.vmem [#allocation1], 4
      %6406 = vst [vmem:[%s6405] ss:$9 sm:$0xff] %v6186
      %s6407 = scalar_lea.vmem [#allocation1], 5
      %6408 = vst [vmem:[%s6407] ss:$9 sm:$0xff] %v6188
      %s6409 = scalar_lea.vmem [#allocation1], 6
      %6410 = vst [vmem:[%s6409] ss:$9 sm:$0xff] %v6190
      %s6411 = scalar_lea.vmem [#allocation1], 7
      %6412 = vst [vmem:[%s6411] ss:$9 sm:$0xff] %v6192
      %v6413 = vld [vmem:[#allocation1] sm:$0xff]
      %6414 = vst [vmem:[#allocation1] ss:$9 sm:$0xff] %v6193
      %6415 = vst [vmem:[%s6399] ss:$9 sm:$0xff] %v6195
      %6416 = vst [vmem:[%s6401] ss:$9 sm:$0xff] %v6196
      %6417 = vst [vmem:[%s6403] ss:$9 sm:$0xff] %v6197
      %6418 = vst [vmem:[%s6405] ss:$9 sm:$0xff] %v6200
      %6419 = vst [vmem:[%s6407] ss:$9 sm:$0xff] %v6201
      %6420 = vst [vmem:[%s6409] ss:$9 sm:$0xff] %v6202
      %6421 = vst [vmem:[%s6411] ss:$9 sm:$0xff] %v6203
      %v6422 = vld [vmem:[#allocation1] sm:$0xff]
      %6423 = vst [vmem:[#allocation1] ss:$9 sm:$0xff] %v6204
      %6424 = vst [vmem:[%s6399] ss:$9 sm:$0xff] %v6205
      %6425 = vst [vmem:[%s6401] ss:$9 sm:$0xff] %v6208
      %6426 = vst [vmem:[%s6403] ss:$9 sm:$0xff] %v6209
      %6427 = vst [vmem:[%s6405] ss:$9 sm:$0xff] %v6210
      %6428 = vst [vmem:[%s6407] ss:$9 sm:$0xff] %v6211
      %6429 = vst [vmem:[%s6409] ss:$9 sm:$0xff] %v6212
      %6430 = vst [vmem:[%s6411] ss:$9 sm:$0xff] %v6213
      %v6431 = vld [vmem:[#allocation1] sm:$0xff]
      %6432 = vst [vmem:[#allocation1] ss:$9 sm:$0xff] %v6214
      %6433 = vst [vmem:[%s6399] ss:$9 sm:$0xff] %v6216
      %6434 = vst [vmem:[%s6401] ss:$9 sm:$0xff] %v6217
      %6435 = vst [vmem:[%s6403] ss:$9 sm:$0xff] %v6219
      %6436 = vst [vmem:[%s6405] ss:$9 sm:$0xff] %v6220
      %6437 = vst [vmem:[%s6407] ss:$9 sm:$0xff] %v6221
      %6438 = vst [vmem:[%s6409] ss:$9 sm:$0xff] %v6224
      %6439 = vst [vmem:[%s6411] ss:$9 sm:$0xff] %v6225
      %v6440 = vld [vmem:[#allocation1] sm:$0xff]
      %6441 = vst [vmem:[#allocation1] ss:$9 sm:$0xff] %v6226
      %6442 = vst [vmem:[%s6399] ss:$9 sm:$0xff] %v6227
      %6443 = vst [vmem:[%s6401] ss:$9 sm:$0xff] %v6228
      %6444 = vst [vmem:[%s6403] ss:$9 sm:$0xff] %v6229
      %6445 = vst [vmem:[%s6405] ss:$9 sm:$0xff] %v6232
      %6446 = vst [vmem:[%s6407] ss:$9 sm:$0xff] %v6233
      %6447 = vst [vmem:[%s6409] ss:$9 sm:$0xff] %v6234
      %6448 = vst [vmem:[%s6411] ss:$9 sm:$0xff] %v6235
      %v6449 = vld [vmem:[#allocation1] sm:$0xff]
      %6450 = vst [vmem:[#allocation1] ss:$9 sm:$0xff] %v6236
      %6451 = vst [vmem:[%s6399] ss:$9 sm:$0xff] %v6237
      %6452 = vst [vmem:[%s6401] ss:$9 sm:$0xff] %v6238
      %6453 = vst [vmem:[%s6403] ss:$9 sm:$0xff] %v6240
      %6454 = vst [vmem:[%s6405] ss:$9 sm:$0xff] %v6241
      %6455 = vst [vmem:[%s6407] ss:$9 sm:$0xff] %v6243
      %6456 = vst [vmem:[%s6409] ss:$9 sm:$0xff] %v6244
      %6457 = vst [vmem:[%s6411] ss:$9 sm:$0xff] %v6245
      %v6458 = vld [vmem:[#allocation1] sm:$0xff]
      %6459 = vst [vmem:[#allocation1] ss:$9 sm:$0xff] %v6248
      %6460 = vst [vmem:[%s6399] ss:$9 sm:$0xff] %v6249
      %6461 = vst [vmem:[%s6401] ss:$9 sm:$0xff] %v6250
      %6462 = vst [vmem:[%s6403] ss:$9 sm:$0xff] %v6251
      %6463 = vst [vmem:[%s6405] ss:$9 sm:$0xff] %v6252
      %6464 = vst [vmem:[%s6407] ss:$9 sm:$0xff] %v6253
      %6465 = vst [vmem:[%s6409] ss:$9 sm:$0xff] %v6256
      %6466 = vst [vmem:[%s6411] ss:$9 sm:$0xff] %v6257
      %v6467 = vld [vmem:[#allocation1] sm:$0xff]
      %6468 = vst [vmem:[#allocation1] ss:$9 sm:$0xff] %v6258
      %6469 = vst [vmem:[%s6399] ss:$9 sm:$0xff] %v6259
      %6470 = vst [vmem:[%s6401] ss:$9 sm:$0xff] %v6260
      %6471 = vst [vmem:[%s6403] ss:$9 sm:$0xff] %v6261
      %6472 = vst [vmem:[%s6405] ss:$9 sm:$0xff] %v6262
      %6473 = vst [vmem:[%s6407] ss:$9 sm:$0xff] %v6264
      %6474 = vst [vmem:[%s6409] ss:$9 sm:$0xff] %v6265
      %6475 = vst [vmem:[%s6411] ss:$9 sm:$0xff] %v6267
      %v6476 = vld [vmem:[#allocation1] sm:$0xff]
      %6477 = vst [vmem:[#allocation1] ss:$9 sm:$0xff] %v6268
      %6478 = vst [vmem:[%s6399] ss:$9 sm:$0xff] %v6269
      %6479 = vst [vmem:[%s6401] ss:$9 sm:$0xff] %v6272
      %6480 = vst [vmem:[%s6403] ss:$9 sm:$0xff] %v6273
      %6481 = vst [vmem:[%s6405] ss:$9 sm:$0xff] %v6274
      %6482 = vst [vmem:[%s6407] ss:$9 sm:$0xff] %v6275
      %6483 = vst [vmem:[%s6409] ss:$9 sm:$0xff] %v6276
      %6484 = vst [vmem:[%s6411] ss:$9 sm:$0xff] %v6277
      %v6485 = vld [vmem:[#allocation1] sm:$0xff]
      %6486 = vst [vmem:[#allocation1] ss:$9 sm:$0xff] %v6280
      %6487 = vst [vmem:[%s6399] ss:$9 sm:$0xff] %v6281
      %6488 = vst [vmem:[%s6401] ss:$9 sm:$0xff] %v6282
      %6489 = vst [vmem:[%s6403] ss:$9 sm:$0xff] %v6283
      %6490 = vst [vmem:[%s6405] ss:$9 sm:$0xff] %v6284
      %6491 = vst [vmem:[%s6407] ss:$9 sm:$0xff] %v6285
      %6492 = vst [vmem:[%s6409] ss:$9 sm:$0xff] %v6286
      %6493 = vst [vmem:[%s6411] ss:$9 sm:$0xff] %v6288
      %v6494 = vld [vmem:[#allocation1] sm:$0xff]
      %6495 = vst [vmem:[#allocation1] ss:$9 sm:$0xff] %v6289
      %6496 = vst [vmem:[%s6399] ss:$9 sm:$0xff] %v6291
      %6497 = vst [vmem:[%s6401] ss:$9 sm:$0xff] %v6292
      %6498 = vst [vmem:[%s6403] ss:$9 sm:$0xff] %v6293
      %6499 = vst [vmem:[%s6405] ss:$9 sm:$0xff] %v6296
      %6500 = vst [vmem:[%s6407] ss:$9 sm:$0xff] %v6297
      %6501 = vst [vmem:[%s6409] ss:$9 sm:$0xff] %v6298
      %6502 = vst [vmem:[%s6411] ss:$9 sm:$0xff] %v6299
      %v6503 = vld [vmem:[#allocation1] sm:$0xff]
      %6504 = vst [vmem:[#allocation1] ss:$9 sm:$0xff] %v6300
      %6505 = vst [vmem:[%s6399] ss:$9 sm:$0xff] %v6301
      %6506 = vst [vmem:[%s6401] ss:$9 sm:$0xff] %v6304
      %6507 = vst [vmem:[%s6403] ss:$9 sm:$0xff] %v6305
      %6508 = vst [vmem:[%s6405] ss:$9 sm:$0xff] %v6306
      %6509 = vst [vmem:[%s6407] ss:$9 sm:$0xff] %v6307
      %6510 = vst [vmem:[%s6409] ss:$9 sm:$0xff] %v6308
      %6511 = vst [vmem:[%s6411] ss:$9 sm:$0xff] %v6309
      %v6512 = vld [vmem:[#allocation1] sm:$0xff]
      %6513 = vst [vmem:[#allocation1] ss:$9 sm:$0xff] %v6310
      %6514 = vst [vmem:[%s6399] ss:$9 sm:$0xff] %v6312
      %6515 = vst [vmem:[%s6401] ss:$9 sm:$0xff] %v6313
      %6516 = vst [vmem:[%s6403] ss:$9 sm:$0xff] %v6315
      %6517 = vst [vmem:[%s6405] ss:$9 sm:$0xff] %v6316
      %6518 = vst [vmem:[%s6407] ss:$9 sm:$0xff] %v6317
      %6519 = vst [vmem:[%s6409] ss:$9 sm:$0xff] %v6320
      %6520 = vst [vmem:[%s6411] ss:$9 sm:$0xff] %v6321
      %v6521 = vld [vmem:[#allocation1] sm:$0xff]
      %6522 = vst [vmem:[#allocation1] ss:$9 sm:$0xff] %v6322
      %6523 = vst [vmem:[%s6399] ss:$9 sm:$0xff] %v6323
      %6524 = vst [vmem:[%s6401] ss:$9 sm:$0xff] %v6324
      %6525 = vst [vmem:[%s6403] ss:$9 sm:$0xff] %v6325
      %6526 = vst [vmem:[%s6405] ss:$9 sm:$0xff] %v6328
      %6527 = vst [vmem:[%s6407] ss:$9 sm:$0xff] %v6329
      %6528 = vst [vmem:[%s6409] ss:$9 sm:$0xff] %v6330
      %6529 = vst [vmem:[%s6411] ss:$9 sm:$0xff] %v6331
      %v6530 = vld [vmem:[#allocation1] sm:$0xff]
      %6531 = vst [vmem:[#allocation1] ss:$9 sm:$0xff] %v6332
      %6532 = vst [vmem:[%s6399] ss:$9 sm:$0xff] %v6333
      %6533 = vst [vmem:[%s6401] ss:$9 sm:$0xff] %v6334
      %6534 = vst [vmem:[%s6403] ss:$9 sm:$0xff] %v6336
      %6535 = vst [vmem:[%s6405] ss:$9 sm:$0xff] %v6337
      %6536 = vst [vmem:[%s6407] ss:$9 sm:$0xff] %v6339
      %6537 = vst [vmem:[%s6409] ss:$9 sm:$0xff] %v6340
      %6538 = vst [vmem:[%s6411] ss:$9 sm:$0xff] %v6341
      %v6539 = vld [vmem:[#allocation1] sm:$0xff]
      %6540 = vst [vmem:[#allocation1] ss:$9 sm:$0xff] %v6344
      %6541 = vst [vmem:[%s6399] ss:$9 sm:$0xff] %v6345
      %6542 = vst [vmem:[%s6401] ss:$9 sm:$0xff] %v6346
      %6543 = vst [vmem:[%s6403] ss:$9 sm:$0xff] %v6347
      %6544 = vst [vmem:[%s6405] ss:$9 sm:$0xff] %v6348
      %6545 = vst [vmem:[%s6407] ss:$9 sm:$0xff] %v6349
      %6546 = vst [vmem:[%s6409] ss:$9 sm:$0xff] %v6352
      %6547 = vst [vmem:[%s6411] ss:$9 sm:$0xff] %v6353
      %v6548 = vld [vmem:[#allocation1] sm:$0xff]
      %6549 = vst [vmem:[#allocation1] ss:$9 sm:$0xff] %v6354
      %6550 = vst [vmem:[%s6399] ss:$9 sm:$0xff] %v6355
      %6551 = vst [vmem:[%s6401] ss:$9 sm:$0xff] %v6356
      %6552 = vst [vmem:[%s6403] ss:$9 sm:$0xff] %v6357
      %6553 = vst [vmem:[%s6405] ss:$9 sm:$0xff] %v6358
      %6554 = vst [vmem:[%s6407] ss:$9 sm:$0xff] %v6360
      %6555 = vst [vmem:[%s6409] ss:$9 sm:$0xff] %v6361
      %6556 = vst [vmem:[%s6411] ss:$9 sm:$0xff] %v6363
      %v6557 = vld [vmem:[#allocation1] sm:$0xff]
      %6558 = vst [vmem:[#allocation1] ss:$9 sm:$0xff] %v6364
      %6559 = vst [vmem:[%s6399] ss:$9 sm:$0xff] %v6365
      %6560 = vst [vmem:[%s6401] ss:$9 sm:$0xff] %v6368
      %6561 = vst [vmem:[%s6403] ss:$9 sm:$0xff] %v6369
      %6562 = vst [vmem:[%s6405] ss:$9 sm:$0xff] %v6370
      %6563 = vst [vmem:[%s6407] ss:$9 sm:$0xff] %v6371
      %6564 = vst [vmem:[%s6409] ss:$9 sm:$0xff] %v6372
      %6565 = vst [vmem:[%s6411] ss:$9 sm:$0xff] %v6373
      %v6566 = vld [vmem:[#allocation1] sm:$0xff]
      %6567 = vst [vmem:[#allocation1] ss:$9 sm:$0xff] %v6376
      %6568 = vst [vmem:[%s6399] ss:$9 sm:$0xff] %v6377
      %6569 = vst [vmem:[%s6401] ss:$9 sm:$0xff] %v6378
      %6570 = vst [vmem:[%s6403] ss:$9 sm:$0xff] %v6379
      %6571 = vst [vmem:[%s6405] ss:$9 sm:$0xff] %v6380
      %6572 = vst [vmem:[%s6407] ss:$9 sm:$0xff] %v6381
      %6573 = vst [vmem:[%s6409] ss:$9 sm:$0xff] %v6382
      %6574 = vst [vmem:[%s6411] ss:$9 sm:$0xff] %v6384
      %v6575 = vld [vmem:[#allocation1] sm:$0xff]
      %6576 = vst [vmem:[#allocation1] ss:$9 sm:$0xff] %v6385
      %6577 = vst [vmem:[%s6399] ss:$9 sm:$0xff] %v6387
      %6578 = vst [vmem:[%s6401] ss:$9 sm:$0xff] %v6388
      %6579 = vst [vmem:[%s6403] ss:$9 sm:$0xff] %v6389
      %6580 = vst [vmem:[%s6405] ss:$9 sm:$0xff] %v6392
      %6581 = vst [vmem:[%s6407] ss:$9 sm:$0xff] %v6393
      %6582 = vst [vmem:[%s6409] ss:$9 sm:$0xff] %v6394
      %6583 = vst [vmem:[%s6411] ss:$9 sm:$0xff] %v6395
      %v6584 = vld [vmem:[#allocation1] sm:$0xff]
      %6585 = vst [vmem:[#allocation1] ss:$9 sm:$0xff] %v6396
      %6586 = vst [vmem:[%s6399] ss:$9 sm:$0xff] %v6397
      %v6587 = vld [vmem:[#allocation1] sm:$0xff]
      %v6588 = vsel %vm2657, %v6413, 0
      %v6590 = vsel %vm2657, %v6422, 0
      %v6592 = vsel %vm2657, %v6431, 0
      %v6594 = vsel %vm2657, %v6440, 0
      %v6596 = vsel %vm2657, %v6449, 0
      %v6598 = vsel %vm2657, %v6458, 0
      %v6600 = vsel %vm2657, %v6467, 0
      %v6602 = vsel %vm2657, %v6476, 0
      %v6604 = vsel %vm2657, %v6485, 0
      %v6606 = vsel %vm2657, %v6494, 0
      %v6608 = vsel %vm2657, %v6503, 0
      %v6610 = vsel %vm2657, %v6512, 0
      %v6612 = vsel %vm2657, %v6521, 0
      %v6614 = vsel %vm2657, %v6530, 0
      %v6616 = vsel %vm2657, %v6539, 0
      %v6618 = vsel %vm2657, %v6548, 0
      %v6620 = vsel %vm2657, %v6557, 0
      %v6622 = vsel %vm2657, %v6566, 0
      %v6624 = vsel %vm2657, %v6575, 0
      %v6626 = vsel %vm2657, %v6584, 0
      %v6628 = vsel %vm2657, %v6587, 0
      %v6631 = vsel %vm2700, %v377, 0
      %6633 = vmatpush.bf16.msra.mxu0 0
      %6634 = vmatpush.bf16.msra.mxu0 0
      %6635 = vmatpush.bf16.msra.mxu0 0
      %6636 = vmatpush.bf16.msra.mxu0 0
      %6637 = vmatpush.bf16.msra.mxu0 0
      %6638 = vmatpush.bf16.msra.mxu0 0
      %6639 = vmatpush.bf16.msra.mxu0 0
      %6640 = vmatpush.bf16.msra.mxu0 %v6631
      %6641 = vmatmul.bf16.gmra.mxu0 %v6588
      %v6642 = vpop.f32.mrf.mxu0
      %v6643 = vadd.f32 0.0, %v6642
      %v6644 = vpop.f32.mrf.mxu0
      %v6645 = vadd.f32 0.0, %v6644
      %6646 = vmatmul.bf16.gmra.mxu0 %v6590
      %v6647 = vpop.f32.mrf.mxu0
      %v6648 = vadd.f32 0.0, %v6647
      %v6649 = vpop.f32.mrf.mxu0
      %v6650 = vadd.f32 0.0, %v6649
      %6651 = vmatmul.bf16.gmra.mxu0 %v6592
      %v6652 = vpop.f32.mrf.mxu0
      %v6653 = vadd.f32 0.0, %v6652
      %v6654 = vpop.f32.mrf.mxu0
      %v6655 = vadd.f32 0.0, %v6654
      %6656 = vmatmul.bf16.gmra.mxu0 %v6594
      %v6657 = vpop.f32.mrf.mxu0
      %v6658 = vadd.f32 0.0, %v6657
      %v6659 = vpop.f32.mrf.mxu0
      %v6660 = vadd.f32 0.0, %v6659
      %6661 = vmatmul.bf16.gmra.mxu0 %v6596
      %v6662 = vpop.f32.mrf.mxu0
      %v6663 = vadd.f32 0.0, %v6662
      %v6664 = vpop.f32.mrf.mxu0
      %v6665 = vadd.f32 0.0, %v6664
      %6666 = vmatmul.bf16.gmra.mxu0 %v6598
      %v6667 = vpop.f32.mrf.mxu0
      %v6668 = vadd.f32 0.0, %v6667
      %v6669 = vpop.f32.mrf.mxu0
      %v6670 = vadd.f32 0.0, %v6669
      %6671 = vmatmul.bf16.gmra.mxu0 %v6600
      %v6672 = vpop.f32.mrf.mxu0
      %v6673 = vadd.f32 0.0, %v6672
      %v6674 = vpop.f32.mrf.mxu0
      %v6675 = vadd.f32 0.0, %v6674
      %6676 = vmatmul.bf16.gmra.mxu0 %v6602
      %v6677 = vpop.f32.mrf.mxu0
      %v6678 = vadd.f32 0.0, %v6677
      %v6679 = vpop.f32.mrf.mxu0
      %v6680 = vadd.f32 0.0, %v6679
      %6681 = vmatmul.bf16.gmra.mxu0 %v6604
      %v6682 = vpop.f32.mrf.mxu0
      %v6683 = vadd.f32 0.0, %v6682
      %v6684 = vpop.f32.mrf.mxu0
      %v6685 = vadd.f32 0.0, %v6684
      %6686 = vmatmul.bf16.gmra.mxu0 %v6606
      %v6687 = vpop.f32.mrf.mxu0
      %v6688 = vadd.f32 0.0, %v6687
      %v6689 = vpop.f32.mrf.mxu0
      %v6690 = vadd.f32 0.0, %v6689
      %6691 = vmatmul.bf16.gmra.mxu0 %v6608
      %v6692 = vpop.f32.mrf.mxu0
      %v6693 = vadd.f32 0.0, %v6692
      %v6694 = vpop.f32.mrf.mxu0
      %v6695 = vadd.f32 0.0, %v6694
      %6696 = vmatmul.bf16.gmra.mxu0 %v6610
      %v6697 = vpop.f32.mrf.mxu0
      %v6698 = vadd.f32 0.0, %v6697
      %v6699 = vpop.f32.mrf.mxu0
      %v6700 = vadd.f32 0.0, %v6699
      %6701 = vmatmul.bf16.gmra.mxu0 %v6612
      %v6702 = vpop.f32.mrf.mxu0
      %v6703 = vadd.f32 0.0, %v6702
      %v6704 = vpop.f32.mrf.mxu0
      %v6705 = vadd.f32 0.0, %v6704
      %6706 = vmatmul.bf16.gmra.mxu0 %v6614
      %v6707 = vpop.f32.mrf.mxu0
      %v6708 = vadd.f32 0.0, %v6707
      %v6709 = vpop.f32.mrf.mxu0
      %v6710 = vadd.f32 0.0, %v6709
      %6711 = vmatmul.bf16.gmra.mxu0 %v6616
      %v6712 = vpop.f32.mrf.mxu0
      %v6713 = vadd.f32 0.0, %v6712
      %v6714 = vpop.f32.mrf.mxu0
      %v6715 = vadd.f32 0.0, %v6714
      %6716 = vmatmul.bf16.gmra.mxu0 %v6618
      %v6717 = vpop.f32.mrf.mxu0
      %v6718 = vadd.f32 0.0, %v6717
      %v6719 = vpop.f32.mrf.mxu0
      %v6720 = vadd.f32 0.0, %v6719
      %6721 = vmatmul.bf16.gmra.mxu0 %v6620
      %v6722 = vpop.f32.mrf.mxu0
      %v6723 = vadd.f32 0.0, %v6722
      %v6724 = vpop.f32.mrf.mxu0
      %v6725 = vadd.f32 0.0, %v6724
      %6726 = vmatmul.bf16.gmra.mxu0 %v6622
      %v6727 = vpop.f32.mrf.mxu0
      %v6728 = vadd.f32 0.0, %v6727
      %v6729 = vpop.f32.mrf.mxu0
      %v6730 = vadd.f32 0.0, %v6729
      %6731 = vmatmul.bf16.gmra.mxu0 %v6624
      %v6732 = vpop.f32.mrf.mxu0
      %v6733 = vadd.f32 0.0, %v6732
      %v6734 = vpop.f32.mrf.mxu0
      %v6735 = vadd.f32 0.0, %v6734
      %6736 = vmatmul.bf16.gmra.mxu0 %v6626
      %v6737 = vpop.f32.mrf.mxu0
      %v6738 = vadd.f32 0.0, %v6737
      %v6739 = vpop.f32.mrf.mxu0
      %v6740 = vadd.f32 0.0, %v6739
      %6741 = vmatmul.bf16.gmra.mxu0 %v6628
      %v6742 = vpop.f32.mrf.mxu0
      %v6743 = vadd.f32 0.0, %v6742
      %v6744 = vpop.f32.mrf.mxu0
      %6745 = vdwg.mxu0
      %v6746 = vadd.f32 %v6134, %v6643
      %v6747 = vadd.f32 %v6135, %v6645
      %v6748 = vadd.f32 %v6136, %v6648
      %v6749 = vadd.f32 %v6137, %v6650
      %v6750 = vadd.f32 %v6138, %v6653
      %v6751 = vadd.f32 %v6139, %v6655
      %v6752 = vadd.f32 %v6140, %v6658
      %v6753 = vadd.f32 %v6141, %v6660
      %v6754 = vadd.f32 %v6142, %v6663
      %v6755 = vadd.f32 %v6143, %v6665
      %v6756 = vadd.f32 %v6144, %v6668
      %v6757 = vadd.f32 %v6145, %v6670
      %v6758 = vadd.f32 %v6146, %v6673
      %v6759 = vadd.f32 %v6147, %v6675
      %v6760 = vadd.f32 %v6148, %v6678
      %v6761 = vadd.f32 %v6149, %v6680
      %v6762 = vadd.f32 %v6150, %v6683
      %v6763 = vadd.f32 %v6151, %v6685
      %v6764 = vadd.f32 %v6152, %v6688
      %v6765 = vadd.f32 %v6153, %v6690
      %v6766 = vadd.f32 %v6154, %v6693
      %v6767 = vadd.f32 %v6155, %v6695
      %v6768 = vadd.f32 %v6156, %v6698
      %v6769 = vadd.f32 %v6157, %v6700
      %v6770 = vadd.f32 %v6158, %v6703
      %v6771 = vadd.f32 %v6159, %v6705
      %v6772 = vadd.f32 %v6160, %v6708
      %v6773 = vadd.f32 %v6161, %v6710
      %v6774 = vadd.f32 %v6162, %v6713
      %v6775 = vadd.f32 %v6163, %v6715
      %v6776 = vadd.f32 %v6164, %v6718
      %v6777 = vadd.f32 %v6165, %v6720
      %v6778 = vadd.f32 %v6166, %v6723
      %v6779 = vadd.f32 %v6167, %v6725
      %v6780 = vadd.f32 %v6168, %v6728
      %v6781 = vadd.f32 %v6169, %v6730
      %v6782 = vadd.f32 %v6170, %v6733
      %v6783 = vadd.f32 %v6171, %v6735
      %v6784 = vadd.f32 %v6172, %v6738
      %v6785 = vadd.f32 %v6173, %v6740
      %v6786 = vadd.f32 %v6174, %v6743
      %v6787 = vld [vmem:[%s2] sm:$0x1]
      %v6789 = vperm.slane %v6787, 0
      %v6791 = vmul.f32 %v6746, %v6789
      %v6792 = vmul.f32 %v6747, %v6789
      %v6793 = vmul.f32 %v6748, %v6789
      %v6794 = vmul.f32 %v6749, %v6789
      %v6795 = vmul.f32 %v6750, %v6789
      %v6796 = vmul.f32 %v6751, %v6789
      %v6797 = vmul.f32 %v6752, %v6789
      %v6798 = vmul.f32 %v6753, %v6789
      %v6799 = vmul.f32 %v6754, %v6789
      %v6800 = vmul.f32 %v6755, %v6789
      %v6801 = vmul.f32 %v6756, %v6789
      %v6802 = vmul.f32 %v6757, %v6789
      %v6803 = vmul.f32 %v6758, %v6789
      %v6804 = vmul.f32 %v6759, %v6789
      %v6805 = vmul.f32 %v6760, %v6789
      %v6806 = vmul.f32 %v6761, %v6789
      %v6807 = vmul.f32 %v6762, %v6789
      %v6808 = vmul.f32 %v6763, %v6789
      %v6809 = vmul.f32 %v6764, %v6789
      %v6810 = vmul.f32 %v6765, %v6789
      %v6811 = vmul.f32 %v6766, %v6789
      %v6812 = vmul.f32 %v6767, %v6789
      %v6813 = vmul.f32 %v6768, %v6789
      %v6814 = vmul.f32 %v6769, %v6789
      %v6815 = vmul.f32 %v6770, %v6789
      %v6816 = vmul.f32 %v6771, %v6789
      %v6817 = vmul.f32 %v6772, %v6789
      %v6818 = vmul.f32 %v6773, %v6789
      %v6819 = vmul.f32 %v6774, %v6789
      %v6820 = vmul.f32 %v6775, %v6789
      %v6821 = vmul.f32 %v6776, %v6789
      %v6822 = vmul.f32 %v6777, %v6789
      %v6823 = vmul.f32 %v6778, %v6789
      %v6824 = vmul.f32 %v6779, %v6789
      %v6825 = vmul.f32 %v6780, %v6789
      %v6826 = vmul.f32 %v6781, %v6789
      %v6827 = vmul.f32 %v6782, %v6789
      %v6828 = vmul.f32 %v6783, %v6789
      %v6829 = vmul.f32 %v6784, %v6789
      %v6830 = vmul.f32 %v6785, %v6789
      %v6831 = vmul.f32 %v6786, %v6789
      %v6832 = vld [vmem:[%s3] sm:$0x1]
      %v6834 = vperm.slane %v6832, 0
      %v6836 = vadd.f32 %v6791, %v6834
      %v6837 = vadd.f32 %v6792, %v6834
      %v6838 = vadd.f32 %v6793, %v6834
      %v6839 = vadd.f32 %v6794, %v6834
      %v6840 = vadd.f32 %v6795, %v6834
      %v6841 = vadd.f32 %v6796, %v6834
      %v6842 = vadd.f32 %v6797, %v6834
      %v6843 = vadd.f32 %v6798, %v6834
      %v6844 = vadd.f32 %v6799, %v6834
      %v6845 = vadd.f32 %v6800, %v6834
      %v6846 = vadd.f32 %v6801, %v6834
      %v6847 = vadd.f32 %v6802, %v6834
      %v6848 = vadd.f32 %v6803, %v6834
      %v6849 = vadd.f32 %v6804, %v6834
      %v6850 = vadd.f32 %v6805, %v6834
      %v6851 = vadd.f32 %v6806, %v6834
      %v6852 = vadd.f32 %v6807, %v6834
      %v6853 = vadd.f32 %v6808, %v6834
      %v6854 = vadd.f32 %v6809, %v6834
      %v6855 = vadd.f32 %v6810, %v6834
      %v6856 = vadd.f32 %v6811, %v6834
      %v6857 = vadd.f32 %v6812, %v6834
      %v6858 = vadd.f32 %v6813, %v6834
      %v6859 = vadd.f32 %v6814, %v6834
      %v6860 = vadd.f32 %v6815, %v6834
      %v6861 = vadd.f32 %v6816, %v6834
      %v6862 = vadd.f32 %v6817, %v6834
      %v6863 = vadd.f32 %v6818, %v6834
      %v6864 = vadd.f32 %v6819, %v6834
      %v6865 = vadd.f32 %v6820, %v6834
      %v6866 = vadd.f32 %v6821, %v6834
      %v6867 = vadd.f32 %v6822, %v6834
      %v6868 = vadd.f32 %v6823, %v6834
      %v6869 = vadd.f32 %v6824, %v6834
      %v6870 = vadd.f32 %v6825, %v6834
      %v6871 = vadd.f32 %v6826, %v6834
      %v6872 = vadd.f32 %v6827, %v6834
      %v6873 = vadd.f32 %v6828, %v6834
      %v6874 = vadd.f32 %v6829, %v6834
      %v6875 = vadd.f32 %v6830, %v6834
      %v6876 = vadd.f32 %v6831, %v6834
      %v6877 = vmax.f32 %v6836, 0.0
      %v6878 = vmax.f32 %v6837, 0.0
      %v6879 = vmax.f32 %v6838, 0.0
      %v6880 = vmax.f32 %v6839, 0.0
      %v6881 = vmax.f32 %v6840, 0.0
      %v6882 = vmax.f32 %v6841, 0.0
      %v6883 = vmax.f32 %v6842, 0.0
      %v6884 = vmax.f32 %v6843, 0.0
      %v6885 = vmax.f32 %v6844, 0.0
      %v6886 = vmax.f32 %v6845, 0.0
      %v6887 = vmax.f32 %v6846, 0.0
      %v6888 = vmax.f32 %v6847, 0.0
      %v6889 = vmax.f32 %v6848, 0.0
      %v6890 = vmax.f32 %v6849, 0.0
      %v6891 = vmax.f32 %v6850, 0.0
      %v6892 = vmax.f32 %v6851, 0.0
      %v6893 = vmax.f32 %v6852, 0.0
      %v6894 = vmax.f32 %v6853, 0.0
      %v6895 = vmax.f32 %v6854, 0.0
      %v6896 = vmax.f32 %v6855, 0.0
      %v6897 = vmax.f32 %v6856, 0.0
      %v6898 = vmax.f32 %v6857, 0.0
      %v6899 = vmax.f32 %v6858, 0.0
      %v6900 = vmax.f32 %v6859, 0.0
      %v6901 = vmax.f32 %v6860, 0.0
      %v6902 = vmax.f32 %v6861, 0.0
      %v6903 = vmax.f32 %v6862, 0.0
      %v6904 = vmax.f32 %v6863, 0.0
      %v6905 = vmax.f32 %v6864, 0.0
      %v6906 = vmax.f32 %v6865, 0.0
      %v6907 = vmax.f32 %v6866, 0.0
      %v6908 = vmax.f32 %v6867, 0.0
      %v6909 = vmax.f32 %v6868, 0.0
      %v6910 = vmax.f32 %v6869, 0.0
      %v6911 = vmax.f32 %v6870, 0.0
      %v6912 = vmax.f32 %v6871, 0.0
      %v6913 = vmax.f32 %v6872, 0.0
      %v6914 = vmax.f32 %v6873, 0.0
      %v6915 = vmax.f32 %v6874, 0.0
      %v6916 = vmax.f32 %v6875, 0.0
      %v6917 = vmax.f32 %v6876, 0.0
      %v6959 = vrot.slane %v6877, 2
      %v6960 = vrot.slane %v6877, 4
      %v6961 = vrot.slane %v6877, 6
      %v6962 = vrot.slane %v6878, 2
      %v6963 = vrot.slane %v6878, 4
      %v6964 = vrot.slane %v6878, 6
      %v6965 = vrot.slane %v6879, 2
      %v6966 = vrot.slane %v6879, 4
      %v6967 = vrot.slane %v6879, 6
      %v6968 = vrot.slane %v6880, 2
      %v6969 = vrot.slane %v6880, 4
      %v6970 = vrot.slane %v6880, 6
      %v6971 = vrot.slane %v6881, 2
      %v6972 = vrot.slane %v6881, 4
      %v6973 = vrot.slane %v6881, 6
      %v6974 = vrot.slane %v6882, 2
      %v6975 = vrot.slane %v6882, 4
      %v6976 = vrot.slane %v6882, 6
      %v6977 = vrot.slane %v6883, 2
      %v6978 = vrot.slane %v6883, 4
      %v6979 = vrot.slane %v6883, 6
      %v6980 = vrot.slane %v6884, 2
      %v6981 = vrot.slane %v6884, 4
      %v6982 = vrot.slane %v6884, 6
      %v6983 = vrot.slane %v6885, 2
      %v6984 = vrot.slane %v6885, 4
      %v6985 = vrot.slane %v6885, 6
      %v6986 = vrot.slane %v6886, 2
      %v6987 = vrot.slane %v6886, 4
      %v6988 = vrot.slane %v6886, 6
      %v6989 = vrot.slane %v6887, 2
      %v6990 = vrot.slane %v6887, 4
      %v6991 = vrot.slane %v6887, 6
      %v6992 = vrot.slane %v6888, 2
      %v6993 = vrot.slane %v6888, 4
      %v6994 = vrot.slane %v6888, 6
      %v6995 = vrot.slane %v6889, 2
      %v6996 = vrot.slane %v6889, 4
      %v6997 = vrot.slane %v6889, 6
      %v6998 = vrot.slane %v6890, 2
      %v6999 = vrot.slane %v6890, 4
      %v7000 = vrot.slane %v6890, 6
      %v7001 = vrot.slane %v6891, 2
      %v7002 = vrot.slane %v6891, 4
      %v7003 = vrot.slane %v6891, 6
      %v7004 = vrot.slane %v6892, 2
      %v7005 = vrot.slane %v6892, 4
      %v7006 = vrot.slane %v6892, 6
      %v7007 = vrot.slane %v6893, 2
      %v7008 = vrot.slane %v6893, 4
      %v7009 = vrot.slane %v6893, 6
      %v7010 = vrot.slane %v6894, 2
      %v7011 = vrot.slane %v6894, 4
      %v7012 = vrot.slane %v6894, 6
      %v7013 = vrot.slane %v6895, 2
      %v7014 = vrot.slane %v6895, 4
      %v7015 = vrot.slane %v6895, 6
      %v7016 = vrot.slane %v6896, 2
      %v7017 = vrot.slane %v6896, 4
      %v7018 = vrot.slane %v6896, 6
      %v7019 = vrot.slane %v6897, 2
      %v7020 = vrot.slane %v6897, 4
      %v7021 = vrot.slane %v6897, 6
      %v7022 = vrot.slane %v6898, 2
      %v7023 = vrot.slane %v6898, 4
      %v7024 = vrot.slane %v6898, 6
      %v7025 = vrot.slane %v6899, 2
      %v7026 = vrot.slane %v6899, 4
      %v7027 = vrot.slane %v6899, 6
      %v7028 = vrot.slane %v6900, 2
      %v7029 = vrot.slane %v6900, 4
      %v7030 = vrot.slane %v6900, 6
      %v7031 = vrot.slane %v6901, 2
      %v7032 = vrot.slane %v6901, 4
      %v7033 = vrot.slane %v6901, 6
      %v7034 = vrot.slane %v6902, 2
      %v7035 = vrot.slane %v6902, 4
      %v7036 = vrot.slane %v6902, 6
      %v7037 = vrot.slane %v6903, 2
      %v7038 = vrot.slane %v6903, 4
      %v7039 = vrot.slane %v6903, 6
      %v7040 = vrot.slane %v6904, 2
      %v7041 = vrot.slane %v6904, 4
      %v7042 = vrot.slane %v6904, 6
      %v7043 = vrot.slane %v6905, 2
      %v7044 = vrot.slane %v6905, 4
      %v7045 = vrot.slane %v6905, 6
      %v7046 = vrot.slane %v6906, 2
      %v7047 = vrot.slane %v6906, 4
      %v7048 = vrot.slane %v6906, 6
      %v7049 = vrot.slane %v6907, 2
      %v7050 = vrot.slane %v6907, 4
      %v7051 = vrot.slane %v6907, 6
      %v7052 = vrot.slane %v6908, 2
      %v7053 = vrot.slane %v6908, 4
      %v7054 = vrot.slane %v6908, 6
      %v7055 = vrot.slane %v6909, 2
      %v7056 = vrot.slane %v6909, 4
      %v7057 = vrot.slane %v6909, 6
      %v7058 = vrot.slane %v6910, 2
      %v7059 = vrot.slane %v6910, 4
      %v7060 = vrot.slane %v6910, 6
      %v7061 = vrot.slane %v6911, 2
      %v7062 = vrot.slane %v6911, 4
      %v7063 = vrot.slane %v6911, 6
      %v7064 = vrot.slane %v6912, 2
      %v7065 = vrot.slane %v6912, 4
      %v7066 = vrot.slane %v6912, 6
      %v7067 = vrot.slane %v6913, 2
      %v7068 = vrot.slane %v6913, 4
      %v7069 = vrot.slane %v6913, 6
      %v7070 = vrot.slane %v6914, 2
      %v7071 = vrot.slane %v6914, 4
      %v7072 = vrot.slane %v6914, 6
      %v7073 = vrot.slane %v6915, 2
      %v7074 = vrot.slane %v6915, 4
      %v7075 = vrot.slane %v6915, 6
      %v7076 = vrot.slane %v6916, 2
      %v7077 = vrot.slane %v6916, 4
      %v7078 = vrot.slane %v6916, 6
      %v7079 = vrot.slane %v6917, 2
      %s7080 = ssub.s32 %s305, 1
      %v7081 = vstv %s7080
      %v7082 = vadd.s32 %v7081, 1
      %v7083 = vadd.s32 %v7081, 2
      %v7084 = vadd.s32 %v7081, 3
      %v7085 = vadd.s32 %v7081, 4
      %v7086 = vadd.s32 %v7081, 5
      %v7087 = vadd.s32 %v7081, 6
      %v7088 = vadd.s32 %v7081, 7
      %v7089 = vadd.s32 %v7081, 8
      %v7090 = vadd.s32 %v7081, 9
      %v7091 = vadd.s32 %v7081, 10
      %v7092 = vadd.s32 %v7081, 11
      %v7093 = vadd.s32 %v7081, 12
      %v7094 = vadd.s32 %v7081, 13
      %v7095 = vadd.s32 %v7081, 14
      %v7096 = vadd.s32 %v7081, 15
      %v7097 = vadd.s32 %v7081, 16
      %v7098 = vadd.s32 %v7081, 17
      %v7099 = vlaneseq
      %v7100 = vshrl.u32 %v7099, 7
      %v7101 = vadd.s32 %v7100, 8
      %v7102 = vadd.s32 %v7100, 16
      %v7103 = vsub.s32 %v7100, 1
      %v7104 = vsub.s32 %v7101, 1
      %v7105 = vsub.s32 %v7102, 1
      %vm7106 = vcmp.ge.s32.totalorder %v7081, 0
      %vm7107 = vcmp.ge.s32.totalorder %v7082, 0
      %vm7108 = vcmp.ge.s32.totalorder %v7083, 0
      %vm7109 = vcmp.ge.s32.totalorder %v7084, 0
      %vm7110 = vcmp.ge.s32.totalorder %v7085, 0
      %vm7111 = vcmp.ge.s32.totalorder %v7086, 0
      %vm7112 = vcmp.ge.s32.totalorder %v7087, 0
      %vm7113 = vcmp.ge.s32.totalorder %v7088, 0
      %vm7114 = vcmp.ge.s32.totalorder %v7089, 0
      %vm7115 = vcmp.ge.s32.totalorder %v7090, 0
      %vm7116 = vcmp.ge.s32.totalorder %v7091, 0
      %vm7117 = vcmp.ge.s32.totalorder %v7092, 0
      %vm7118 = vcmp.ge.s32.totalorder %v7093, 0
      %vm7119 = vcmp.ge.s32.totalorder %v7094, 0
      %vm7120 = vcmp.ge.s32.totalorder %v7095, 0
      %vm7121 = vcmp.ge.s32.totalorder %v7096, 0
      %vm7122 = vcmp.ge.s32.totalorder %v7097, 0
      %vm7123 = vcmp.ge.s32.totalorder %v7098, 0
      %vm7124 = vcmp.lt.s32.totalorder %v7081, 16
      %vm7125 = vcmp.lt.s32.totalorder %v7082, 16
      %vm7126 = vcmp.lt.s32.totalorder %v7083, 16
      %vm7127 = vcmp.lt.s32.totalorder %v7084, 16
      %vm7128 = vcmp.lt.s32.totalorder %v7085, 16
      %vm7129 = vcmp.lt.s32.totalorder %v7086, 16
      %vm7130 = vcmp.lt.s32.totalorder %v7087, 16
      %vm7131 = vcmp.lt.s32.totalorder %v7088, 16
      %vm7132 = vcmp.lt.s32.totalorder %v7089, 16
      %vm7133 = vcmp.lt.s32.totalorder %v7090, 16
      %vm7134 = vcmp.lt.s32.totalorder %v7091, 16
      %vm7135 = vcmp.lt.s32.totalorder %v7092, 16
      %vm7136 = vcmp.lt.s32.totalorder %v7093, 16
      %vm7137 = vcmp.lt.s32.totalorder %v7094, 16
      %vm7138 = vcmp.lt.s32.totalorder %v7095, 16
      %vm7139 = vcmp.lt.s32.totalorder %v7096, 16
      %vm7140 = vcmp.lt.s32.totalorder %v7097, 16
      %vm7141 = vcmp.lt.s32.totalorder %v7098, 16
      %vm7142 = vmand %vm7106, %vm7124
      %vm7143 = vmand %vm7107, %vm7125
      %vm7144 = vmand %vm7108, %vm7126
      %vm7145 = vmand %vm7109, %vm7127
      %vm7146 = vmand %vm7110, %vm7128
      %vm7147 = vmand %vm7111, %vm7129
      %vm7148 = vmand %vm7112, %vm7130
      %vm7149 = vmand %vm7113, %vm7131
      %vm7150 = vmand %vm7114, %vm7132
      %vm7151 = vmand %vm7115, %vm7133
      %vm7152 = vmand %vm7116, %vm7134
      %vm7153 = vmand %vm7117, %vm7135
      %vm7154 = vmand %vm7118, %vm7136
      %vm7155 = vmand %vm7119, %vm7137
      %vm7156 = vmand %vm7120, %vm7138
      %vm7157 = vmand %vm7121, %vm7139
      %vm7158 = vmand %vm7122, %vm7140
      %vm7159 = vmand %vm7123, %vm7141
      %vm7160 = vcmp.ge.s32.totalorder %v7103, 0
      %vm7161 = vcmp.ge.s32.totalorder %v7104, 0
      %vm7162 = vcmp.ge.s32.totalorder %v7105, 0
      %vm7163 = vmand %vm7142, %vm7160
      %vm7164 = vmand %vm7142, %vm7161
      %vm7165 = vmand %vm7142, %vm7162
      %vm7166 = vmand %vm7143, %vm7160
      %vm7167 = vmand %vm7143, %vm7161
      %vm7168 = vmand %vm7143, %vm7162
      %vm7169 = vmand %vm7144, %vm7160
      %vm7170 = vmand %vm7144, %vm7161
      %vm7171 = vmand %vm7144, %vm7162
      %vm7172 = vmand %vm7145, %vm7160
      %vm7173 = vmand %vm7145, %vm7161
      %vm7174 = vmand %vm7145, %vm7162
      %vm7175 = vmand %vm7146, %vm7160
      %vm7176 = vmand %vm7146, %vm7161
      %vm7177 = vmand %vm7146, %vm7162
      %vm7178 = vmand %vm7147, %vm7160
      %vm7179 = vmand %vm7147, %vm7161
      %vm7180 = vmand %vm7147, %vm7162
      %vm7181 = vmand %vm7148, %vm7160
      %vm7182 = vmand %vm7148, %vm7161
      %vm7183 = vmand %vm7148, %vm7162
      %vm7184 = vmand %vm7149, %vm7160
      %vm7185 = vmand %vm7149, %vm7161
      %vm7186 = vmand %vm7149, %vm7162
      %vm7187 = vmand %vm7150, %vm7160
      %vm7188 = vmand %vm7150, %vm7161
      %vm7189 = vmand %vm7150, %vm7162
      %vm7190 = vmand %vm7151, %vm7160
      %vm7191 = vmand %vm7151, %vm7161
      %vm7192 = vmand %vm7151, %vm7162
      %vm7193 = vmand %vm7152, %vm7160
      %vm7194 = vmand %vm7152, %vm7161
      %vm7195 = vmand %vm7152, %vm7162
      %vm7196 = vmand %vm7153, %vm7160
      %vm7197 = vmand %vm7153, %vm7161
      %vm7198 = vmand %vm7153, %vm7162
      %vm7199 = vmand %vm7154, %vm7160
      %vm7200 = vmand %vm7154, %vm7161
      %vm7201 = vmand %vm7154, %vm7162
      %vm7202 = vmand %vm7155, %vm7160
      %vm7203 = vmand %vm7155, %vm7161
      %vm7204 = vmand %vm7155, %vm7162
      %vm7205 = vmand %vm7156, %vm7160
      %vm7206 = vmand %vm7156, %vm7161
      %vm7207 = vmand %vm7156, %vm7162
      %vm7208 = vmand %vm7157, %vm7160
      %vm7209 = vmand %vm7157, %vm7161
      %vm7210 = vmand %vm7157, %vm7162
      %vm7211 = vmand %vm7158, %vm7160
      %vm7212 = vmand %vm7158, %vm7161
      %vm7213 = vmand %vm7158, %vm7162
      %vm7214 = vmand %vm7159, %vm7160
      %vm7215 = vmand %vm7159, %vm7161
      %vm7216 = vmand %vm7159, %vm7162
      %vm7217 = vcmp.lt.s32.totalorder %v7103, 16
      %vm7218 = vcmp.lt.s32.totalorder %v7104, 16
      %vm7219 = vcmp.lt.s32.totalorder %v7105, 16
      %vm7220 = vmand %vm7163, %vm7217
      %vm7221 = vmand %vm7164, %vm7218
      %vm7222 = vmand %vm7165, %vm7219
      %vm7223 = vmand %vm7166, %vm7217
      %vm7224 = vmand %vm7167, %vm7218
      %vm7225 = vmand %vm7168, %vm7219
      %vm7226 = vmand %vm7169, %vm7217
      %vm7227 = vmand %vm7170, %vm7218
      %vm7228 = vmand %vm7171, %vm7219
      %vm7229 = vmand %vm7172, %vm7217
      %vm7230 = vmand %vm7173, %vm7218
      %vm7231 = vmand %vm7174, %vm7219
      %vm7232 = vmand %vm7175, %vm7217
      %vm7233 = vmand %vm7176, %vm7218
      %vm7234 = vmand %vm7177, %vm7219
      %vm7235 = vmand %vm7178, %vm7217
      %vm7236 = vmand %vm7179, %vm7218
      %vm7237 = vmand %vm7180, %vm7219
      %vm7238 = vmand %vm7181, %vm7217
      %vm7239 = vmand %vm7182, %vm7218
      %vm7240 = vmand %vm7183, %vm7219
      %vm7241 = vmand %vm7184, %vm7217
      %vm7242 = vmand %vm7185, %vm7218
      %vm7243 = vmand %vm7186, %vm7219
      %vm7244 = vmand %vm7187, %vm7217
      %vm7245 = vmand %vm7188, %vm7218
      %vm7246 = vmand %vm7189, %vm7219
      %vm7247 = vmand %vm7190, %vm7217
      %vm7248 = vmand %vm7191, %vm7218
      %vm7249 = vmand %vm7192, %vm7219
      %vm7250 = vmand %vm7193, %vm7217
      %vm7251 = vmand %vm7194, %vm7218
      %vm7252 = vmand %vm7195, %vm7219
      %vm7253 = vmand %vm7196, %vm7217
      %vm7254 = vmand %vm7197, %vm7218
      %vm7255 = vmand %vm7198, %vm7219
      %vm7256 = vmand %vm7199, %vm7217
      %vm7257 = vmand %vm7200, %vm7218
      %vm7258 = vmand %vm7201, %vm7219
      %vm7259 = vmand %vm7202, %vm7217
      %vm7260 = vmand %vm7203, %vm7218
      %vm7261 = vmand %vm7204, %vm7219
      %vm7262 = vmand %vm7205, %vm7217
      %vm7263 = vmand %vm7206, %vm7218
      %vm7264 = vmand %vm7207, %vm7219
      %vm7265 = vmand %vm7208, %vm7217
      %vm7266 = vmand %vm7209, %vm7218
      %vm7267 = vmand %vm7210, %vm7219
      %vm7268 = vmand %vm7211, %vm7217
      %vm7269 = vmand %vm7212, %vm7218
      %vm7270 = vmand %vm7213, %vm7219
      %vm7271 = vmand %vm7214, %vm7217
      %vm7272 = vmand %vm7215, %vm7218
      %vm7273 = vmand %vm7216, %vm7219
      %v7274 = vsel %vm7220, 1, 0
      %v7275 = vsel %vm7221, 1, 0
      %v7276 = vsel %vm7222, 1, 0
      %v7277 = vsel %vm7223, 1, 0
      %v7278 = vsel %vm7224, 1, 0
      %v7279 = vsel %vm7225, 1, 0
      %v7280 = vsel %vm7226, 1, 0
      %v7281 = vsel %vm7227, 1, 0
      %v7282 = vsel %vm7228, 1, 0
      %v7283 = vsel %vm7229, 1, 0
      %v7284 = vsel %vm7230, 1, 0
      %v7285 = vsel %vm7231, 1, 0
      %v7286 = vsel %vm7232, 1, 0
      %v7287 = vsel %vm7233, 1, 0
      %v7288 = vsel %vm7234, 1, 0
      %v7289 = vsel %vm7235, 1, 0
      %v7290 = vsel %vm7236, 1, 0
      %v7291 = vsel %vm7237, 1, 0
      %v7292 = vsel %vm7238, 1, 0
      %v7293 = vsel %vm7239, 1, 0
      %v7294 = vsel %vm7240, 1, 0
      %v7295 = vsel %vm7241, 1, 0
      %v7296 = vsel %vm7242, 1, 0
      %v7297 = vsel %vm7243, 1, 0
      %v7298 = vsel %vm7244, 1, 0
      %v7299 = vsel %vm7245, 1, 0
      %v7300 = vsel %vm7246, 1, 0
      %v7301 = vsel %vm7247, 1, 0
      %v7302 = vsel %vm7248, 1, 0
      %v7303 = vsel %vm7249, 1, 0
      %v7304 = vsel %vm7250, 1, 0
      %v7305 = vsel %vm7251, 1, 0
      %v7306 = vsel %vm7252, 1, 0
      %v7307 = vsel %vm7253, 1, 0
      %v7308 = vsel %vm7254, 1, 0
      %v7309 = vsel %vm7255, 1, 0
      %v7310 = vsel %vm7256, 1, 0
      %v7311 = vsel %vm7257, 1, 0
      %v7312 = vsel %vm7258, 1, 0
      %v7313 = vsel %vm7259, 1, 0
      %v7314 = vsel %vm7260, 1, 0
      %v7315 = vsel %vm7261, 1, 0
      %v7316 = vsel %vm7262, 1, 0
      %v7317 = vsel %vm7263, 1, 0
      %v7318 = vsel %vm7264, 1, 0
      %v7319 = vsel %vm7265, 1, 0
      %v7320 = vsel %vm7266, 1, 0
      %v7321 = vsel %vm7267, 1, 0
      %v7322 = vsel %vm7268, 1, 0
      %v7323 = vsel %vm7269, 1, 0
      %v7324 = vsel %vm7270, 1, 0
      %v7325 = vsel %vm7271, 1, 0
      %v7326 = vsel %vm7272, 1, 0
      %v7327 = vsel %vm7273, 1, 0
      %vm7328 = vcmp.eq.s32.totalorder %v7274, 1
      %vm7329 = vcmp.eq.s32.totalorder %v7275, 1
      %vm7330 = vcmp.eq.s32.totalorder %v7276, 1
      %vm7331 = vcmp.eq.s32.totalorder %v7277, 1
      %vm7332 = vcmp.eq.s32.totalorder %v7278, 1
      %vm7333 = vcmp.eq.s32.totalorder %v7279, 1
      %vm7334 = vcmp.eq.s32.totalorder %v7280, 1
      %vm7335 = vcmp.eq.s32.totalorder %v7281, 1
      %vm7336 = vcmp.eq.s32.totalorder %v7282, 1
      %vm7337 = vcmp.eq.s32.totalorder %v7283, 1
      %vm7338 = vcmp.eq.s32.totalorder %v7284, 1
      %vm7339 = vcmp.eq.s32.totalorder %v7285, 1
      %vm7340 = vcmp.eq.s32.totalorder %v7286, 1
      %vm7341 = vcmp.eq.s32.totalorder %v7287, 1
      %vm7342 = vcmp.eq.s32.totalorder %v7288, 1
      %vm7343 = vcmp.eq.s32.totalorder %v7289, 1
      %vm7344 = vcmp.eq.s32.totalorder %v7290, 1
      %vm7345 = vcmp.eq.s32.totalorder %v7291, 1
      %vm7346 = vcmp.eq.s32.totalorder %v7292, 1
      %vm7347 = vcmp.eq.s32.totalorder %v7293, 1
      %vm7348 = vcmp.eq.s32.totalorder %v7294, 1
      %vm7349 = vcmp.eq.s32.totalorder %v7295, 1
      %vm7350 = vcmp.eq.s32.totalorder %v7296, 1
      %vm7351 = vcmp.eq.s32.totalorder %v7297, 1
      %vm7352 = vcmp.eq.s32.totalorder %v7298, 1
      %vm7353 = vcmp.eq.s32.totalorder %v7299, 1
      %vm7354 = vcmp.eq.s32.totalorder %v7300, 1
      %vm7355 = vcmp.eq.s32.totalorder %v7301, 1
      %vm7356 = vcmp.eq.s32.totalorder %v7302, 1
      %vm7357 = vcmp.eq.s32.totalorder %v7303, 1
      %vm7358 = vcmp.eq.s32.totalorder %v7304, 1
      %vm7359 = vcmp.eq.s32.totalorder %v7305, 1
      %vm7360 = vcmp.eq.s32.totalorder %v7306, 1
      %vm7361 = vcmp.eq.s32.totalorder %v7307, 1
      %vm7362 = vcmp.eq.s32.totalorder %v7308, 1
      %vm7363 = vcmp.eq.s32.totalorder %v7309, 1
      %vm7364 = vcmp.eq.s32.totalorder %v7310, 1
      %vm7365 = vcmp.eq.s32.totalorder %v7311, 1
      %vm7366 = vcmp.eq.s32.totalorder %v7312, 1
      %vm7367 = vcmp.eq.s32.totalorder %v7313, 1
      %vm7368 = vcmp.eq.s32.totalorder %v7314, 1
      %vm7369 = vcmp.eq.s32.totalorder %v7315, 1
      %vm7370 = vcmp.eq.s32.totalorder %v7316, 1
      %vm7371 = vcmp.eq.s32.totalorder %v7317, 1
      %vm7372 = vcmp.eq.s32.totalorder %v7318, 1
      %vm7373 = vcmp.eq.s32.totalorder %v7319, 1
      %vm7374 = vcmp.eq.s32.totalorder %v7320, 1
      %vm7375 = vcmp.eq.s32.totalorder %v7321, 1
      %vm7376 = vcmp.eq.s32.totalorder %v7322, 1
      %vm7377 = vcmp.eq.s32.totalorder %v7323, 1
      %vm7378 = vcmp.eq.s32.totalorder %v7324, 1
      %vm7379 = vcmp.eq.s32.totalorder %v7325, 1
      %vm7380 = vcmp.eq.s32.totalorder %v7326, 1
      %vm7381 = vcmp.eq.s32.totalorder %v7327, 1
      %7382 = vst [vmem:[#allocation1] ss:$4 sm:$0xff] %v6877
      %s7383 = scalar_lea.vmem [#allocation1], 1
      %7384 = vst [vmem:[%s7383] ss:$4 sm:$0xff] %v6959
      %s7385 = scalar_lea.vmem [#allocation1], 2
      %7386 = vst [vmem:[%s7385] ss:$4 sm:$0xff] %v6960
      %s7387 = scalar_lea.vmem [#allocation1], 3
      %7388 = vst [vmem:[%s7387] ss:$4 sm:$0xff] %v6961
      %s7389 = scalar_lea.vmem [#allocation1], 32
      %7390 = vst [vmem:[%s7389] ss:$4 sm:$0xff] %v6878
      %s7391 = scalar_lea.vmem [#allocation1], 33
      %7392 = vst [vmem:[%s7391] ss:$4 sm:$0xff] %v6962
      %s7393 = scalar_lea.vmem [#allocation1], 34
      %7394 = vst [vmem:[%s7393] ss:$4 sm:$0xff] %v6963
      %s7395 = scalar_lea.vmem [#allocation1], 35
      %7396 = vst [vmem:[%s7395] ss:$4 sm:$0xff] %v6964
      %v7397 = vld.sshfl [vmem:[#allocation1] sm:$0xff pattern:$0x73625140]
      %v7398 = vld.sshfl [vmem:[#allocation1 + $0x20] sm:$0xff pattern:$0x73625140]
      %7399 = vst [vmem:[#allocation1] ss:$4 sm:$0xff] %v6879
      %v7400 = vld.sshfl [vmem:[#allocation1] sm:$0xff pattern:$0x73625140]
      %7401 = vst [vmem:[%s7389] ss:$4 sm:$0xff] %v6965
      %7402 = vst [vmem:[%s7391] ss:$4 sm:$0xff] %v6966
      %7403 = vst [vmem:[%s7393] ss:$4 sm:$0xff] %v6967
      %7404 = vst [vmem:[%s7395] ss:$4 sm:$0xff] %v6880
      %v7405 = vld.sshfl [vmem:[#allocation1 + $0x20] sm:$0xff pattern:$0x73625140]
      %7406 = vst [vmem:[#allocation1] ss:$4 sm:$0xff] %v6968
      %7407 = vst [vmem:[%s7383] ss:$4 sm:$0xff] %v6969
      %7408 = vst [vmem:[%s7385] ss:$4 sm:$0xff] %v6970
      %7409 = vst [vmem:[%s7387] ss:$4 sm:$0xff] %v6881
      %7410 = vst [vmem:[%s7389] ss:$4 sm:$0xff] %v6971
      %v7411 = vld.sshfl [vmem:[#allocation1] sm:$0xff pattern:$0x73625140]
      %v7412 = vld.sshfl [vmem:[#allocation1 + $0x20] sm:$0xff pattern:$0x73625140]
      %7413 = vst [vmem:[#allocation1] ss:$4 sm:$0xff] %v6972
      %7414 = vst [vmem:[%s7383] ss:$4 sm:$0xff] %v6973
      %7415 = vst [vmem:[%s7385] ss:$4 sm:$0xff] %v6882
      %7416 = vst [vmem:[%s7387] ss:$4 sm:$0xff] %v6974
      %7417 = vst [vmem:[%s7389] ss:$4 sm:$0xff] %v6975
      %7418 = vst [vmem:[%s7391] ss:$4 sm:$0xff] %v6976
      %7419 = vst [vmem:[%s7393] ss:$4 sm:$0xff] %v6883
      %7420 = vst [vmem:[%s7395] ss:$4 sm:$0xff] %v6977
      %v7421 = vld.sshfl [vmem:[#allocation1] sm:$0xff pattern:$0x73625140]
      %v7422 = vld.sshfl [vmem:[#allocation1 + $0x20] sm:$0xff pattern:$0x73625140]
      %7423 = vst [vmem:[#allocation1] ss:$4 sm:$0xff] %v6978
      %v7424 = vld.sshfl [vmem:[#allocation1] sm:$0xff pattern:$0x73625140]
      %7425 = vst [vmem:[%s7389] ss:$4 sm:$0xff] %v6979
      %7426 = vst [vmem:[%s7391] ss:$4 sm:$0xff] %v6884
      %7427 = vst [vmem:[%s7393] ss:$4 sm:$0xff] %v6980
      %7428 = vst [vmem:[%s7395] ss:$4 sm:$0xff] %v6981
      %v7429 = vld.sshfl [vmem:[#allocation1 + $0x20] sm:$0xff pattern:$0x73625140]
      %7430 = vst [vmem:[#allocation1] ss:$4 sm:$0xff] %v6982
      %7431 = vst [vmem:[%s7383] ss:$4 sm:$0xff] %v6885
      %7432 = vst [vmem:[%s7385] ss:$4 sm:$0xff] %v6983
      %7433 = vst [vmem:[%s7387] ss:$4 sm:$0xff] %v6984
      %7434 = vst [vmem:[%s7389] ss:$4 sm:$0xff] %v6985
      %v7435 = vld.sshfl [vmem:[#allocation1] sm:$0xff pattern:$0x73625140]
      %v7436 = vld.sshfl [vmem:[#allocation1 + $0x20] sm:$0xff pattern:$0x73625140]
      %7437 = vst [vmem:[#allocation1] ss:$4 sm:$0xff] %v6886
      %7438 = vst [vmem:[%s7383] ss:$4 sm:$0xff] %v6986
      %7439 = vst [vmem:[%s7385] ss:$4 sm:$0xff] %v6987
      %7440 = vst [vmem:[%s7387] ss:$4 sm:$0xff] %v6988
      %7441 = vst [vmem:[%s7389] ss:$4 sm:$0xff] %v6887
      %7442 = vst [vmem:[%s7391] ss:$4 sm:$0xff] %v6989
      %7443 = vst [vmem:[%s7393] ss:$4 sm:$0xff] %v6990
      %7444 = vst [vmem:[%s7395] ss:$4 sm:$0xff] %v6991
      %v7445 = vld.sshfl [vmem:[#allocation1] sm:$0xff pattern:$0x73625140]
      %v7446 = vld.sshfl [vmem:[#allocation1 + $0x20] sm:$0xff pattern:$0x73625140]
      %7447 = vst [vmem:[#allocation1] ss:$4 sm:$0xff] %v6888
      %v7448 = vld.sshfl [vmem:[#allocation1] sm:$0xff pattern:$0x73625140]
      %7449 = vst [vmem:[%s7389] ss:$4 sm:$0xff] %v6992
      %7450 = vst [vmem:[%s7391] ss:$4 sm:$0xff] %v6993
      %7451 = vst [vmem:[%s7393] ss:$4 sm:$0xff] %v6994
      %7452 = vst [vmem:[%s7395] ss:$4 sm:$0xff] %v6889
      %v7453 = vld.sshfl [vmem:[#allocation1 + $0x20] sm:$0xff pattern:$0x73625140]
      %7454 = vst [vmem:[#allocation1] ss:$4 sm:$0xff] %v6995
      %7455 = vst [vmem:[%s7383] ss:$4 sm:$0xff] %v6996
      %7456 = vst [vmem:[%s7385] ss:$4 sm:$0xff] %v6997
      %7457 = vst [vmem:[%s7387] ss:$4 sm:$0xff] %v6890
      %7458 = vst [vmem:[%s7389] ss:$4 sm:$0xff] %v6998
      %v7459 = vld.sshfl [vmem:[#allocation1] sm:$0xff pattern:$0x73625140]
      %v7460 = vld.sshfl [vmem:[#allocation1 + $0x20] sm:$0xff pattern:$0x73625140]
      %7461 = vst [vmem:[#allocation1] ss:$4 sm:$0xff] %v6999
      %7462 = vst [vmem:[%s7383] ss:$4 sm:$0xff] %v7000
      %7463 = vst [vmem:[%s7385] ss:$4 sm:$0xff] %v6891
      %7464 = vst [vmem:[%s7387] ss:$4 sm:$0xff] %v7001
      %7465 = vst [vmem:[%s7389] ss:$4 sm:$0xff] %v7002
      %7466 = vst [vmem:[%s7391] ss:$4 sm:$0xff] %v7003
      %7467 = vst [vmem:[%s7393] ss:$4 sm:$0xff] %v6892
      %7468 = vst [vmem:[%s7395] ss:$4 sm:$0xff] %v7004
      %v7469 = vld.sshfl [vmem:[#allocation1] sm:$0xff pattern:$0x73625140]
      %v7470 = vld.sshfl [vmem:[#allocation1 + $0x20] sm:$0xff pattern:$0x73625140]
      %7471 = vst [vmem:[#allocation1] ss:$4 sm:$0xff] %v7005
      %v7472 = vld.sshfl [vmem:[#allocation1] sm:$0xff pattern:$0x73625140]
      %7473 = vst [vmem:[%s7389] ss:$4 sm:$0xff] %v7006
      %7474 = vst [vmem:[%s7391] ss:$4 sm:$0xff] %v6893
      %7475 = vst [vmem:[%s7393] ss:$4 sm:$0xff] %v7007
      %7476 = vst [vmem:[%s7395] ss:$4 sm:$0xff] %v7008
      %v7477 = vld.sshfl [vmem:[#allocation1 + $0x20] sm:$0xff pattern:$0x73625140]
      %7478 = vst [vmem:[#allocation1] ss:$4 sm:$0xff] %v7009
      %7479 = vst [vmem:[%s7383] ss:$4 sm:$0xff] %v6894
      %7480 = vst [vmem:[%s7385] ss:$4 sm:$0xff] %v7010
      %7481 = vst [vmem:[%s7387] ss:$4 sm:$0xff] %v7011
      %7482 = vst [vmem:[%s7389] ss:$4 sm:$0xff] %v7012
      %v7483 = vld.sshfl [vmem:[#allocation1] sm:$0xff pattern:$0x73625140]
      %v7484 = vld.sshfl [vmem:[#allocation1 + $0x20] sm:$0xff pattern:$0x73625140]
      %7485 = vst [vmem:[#allocation1] ss:$4 sm:$0xff] %v6895
      %7486 = vst [vmem:[%s7383] ss:$4 sm:$0xff] %v7013
      %7487 = vst [vmem:[%s7385] ss:$4 sm:$0xff] %v7014
      %7488 = vst [vmem:[%s7387] ss:$4 sm:$0xff] %v7015
      %7489 = vst [vmem:[%s7389] ss:$4 sm:$0xff] %v6896
      %7490 = vst [vmem:[%s7391] ss:$4 sm:$0xff] %v7016
      %7491 = vst [vmem:[%s7393] ss:$4 sm:$0xff] %v7017
      %7492 = vst [vmem:[%s7395] ss:$4 sm:$0xff] %v7018
      %v7493 = vld.sshfl [vmem:[#allocation1] sm:$0xff pattern:$0x73625140]
      %v7494 = vld.sshfl [vmem:[#allocation1 + $0x20] sm:$0xff pattern:$0x73625140]
      %7495 = vst [vmem:[#allocation1] ss:$4 sm:$0xff] %v6897
      %v7496 = vld.sshfl [vmem:[#allocation1] sm:$0xff pattern:$0x73625140]
      %7497 = vst [vmem:[%s7389] ss:$4 sm:$0xff] %v7019
      %7498 = vst [vmem:[%s7391] ss:$4 sm:$0xff] %v7020
      %7499 = vst [vmem:[%s7393] ss:$4 sm:$0xff] %v7021
      %7500 = vst [vmem:[%s7395] ss:$4 sm:$0xff] %v6898
      %v7501 = vld.sshfl [vmem:[#allocation1 + $0x20] sm:$0xff pattern:$0x73625140]
      %7502 = vst [vmem:[#allocation1] ss:$4 sm:$0xff] %v7022
      %7503 = vst [vmem:[%s7383] ss:$4 sm:$0xff] %v7023
      %7504 = vst [vmem:[%s7385] ss:$4 sm:$0xff] %v7024
      %7505 = vst [vmem:[%s7387] ss:$4 sm:$0xff] %v6899
      %7506 = vst [vmem:[%s7389] ss:$4 sm:$0xff] %v7025
      %v7507 = vld.sshfl [vmem:[#allocation1] sm:$0xff pattern:$0x73625140]
      %v7508 = vld.sshfl [vmem:[#allocation1 + $0x20] sm:$0xff pattern:$0x73625140]
      %7509 = vst [vmem:[#allocation1] ss:$4 sm:$0xff] %v7026
      %7510 = vst [vmem:[%s7383] ss:$4 sm:$0xff] %v7027
      %7511 = vst [vmem:[%s7385] ss:$4 sm:$0xff] %v6900
      %7512 = vst [vmem:[%s7387] ss:$4 sm:$0xff] %v7028
      %7513 = vst [vmem:[%s7389] ss:$4 sm:$0xff] %v7029
      %7514 = vst [vmem:[%s7391] ss:$4 sm:$0xff] %v7030
      %7515 = vst [vmem:[%s7393] ss:$4 sm:$0xff] %v6901
      %7516 = vst [vmem:[%s7395] ss:$4 sm:$0xff] %v7031
      %v7517 = vld.sshfl [vmem:[#allocation1] sm:$0xff pattern:$0x73625140]
      %v7518 = vld.sshfl [vmem:[#allocation1 + $0x20] sm:$0xff pattern:$0x73625140]
      %7519 = vst [vmem:[#allocation1] ss:$4 sm:$0xff] %v7032
      %v7520 = vld.sshfl [vmem:[#allocation1] sm:$0xff pattern:$0x73625140]
      %7521 = vst [vmem:[%s7389] ss:$4 sm:$0xff] %v7033
      %7522 = vst [vmem:[%s7391] ss:$4 sm:$0xff] %v6902
      %7523 = vst [vmem:[%s7393] ss:$4 sm:$0xff] %v7034
      %7524 = vst [vmem:[%s7395] ss:$4 sm:$0xff] %v7035
      %v7525 = vld.sshfl [vmem:[#allocation1 + $0x20] sm:$0xff pattern:$0x73625140]
      %7526 = vst [vmem:[#allocation1] ss:$4 sm:$0xff] %v7036
      %7527 = vst [vmem:[%s7383] ss:$4 sm:$0xff] %v6903
      %7528 = vst [vmem:[%s7385] ss:$4 sm:$0xff] %v7037
      %7529 = vst [vmem:[%s7387] ss:$4 sm:$0xff] %v7038
      %7530 = vst [vmem:[%s7389] ss:$4 sm:$0xff] %v7039
      %v7531 = vld.sshfl [vmem:[#allocation1] sm:$0xff pattern:$0x73625140]
      %v7532 = vld.sshfl [vmem:[#allocation1 + $0x20] sm:$0xff pattern:$0x73625140]
      %7533 = vst [vmem:[#allocation1] ss:$4 sm:$0xff] %v6904
      %7534 = vst [vmem:[%s7383] ss:$4 sm:$0xff] %v7040
      %7535 = vst [vmem:[%s7385] ss:$4 sm:$0xff] %v7041
      %7536 = vst [vmem:[%s7387] ss:$4 sm:$0xff] %v7042
      %7537 = vst [vmem:[%s7389] ss:$4 sm:$0xff] %v6905
      %7538 = vst [vmem:[%s7391] ss:$4 sm:$0xff] %v7043
      %7539 = vst [vmem:[%s7393] ss:$4 sm:$0xff] %v7044
      %7540 = vst [vmem:[%s7395] ss:$4 sm:$0xff] %v7045
      %v7541 = vld.sshfl [vmem:[#allocation1] sm:$0xff pattern:$0x73625140]
      %v7542 = vld.sshfl [vmem:[#allocation1 + $0x20] sm:$0xff pattern:$0x73625140]
      %7543 = vst [vmem:[#allocation1] ss:$4 sm:$0xff] %v6906
      %v7544 = vld.sshfl [vmem:[#allocation1] sm:$0xff pattern:$0x73625140]
      %7545 = vst [vmem:[%s7389] ss:$4 sm:$0xff] %v7046
      %7546 = vst [vmem:[%s7391] ss:$4 sm:$0xff] %v7047
      %7547 = vst [vmem:[%s7393] ss:$4 sm:$0xff] %v7048
      %7548 = vst [vmem:[%s7395] ss:$4 sm:$0xff] %v6907
      %v7549 = vld.sshfl [vmem:[#allocation1 + $0x20] sm:$0xff pattern:$0x73625140]
      %7550 = vst [vmem:[#allocation1] ss:$4 sm:$0xff] %v7049
      %7551 = vst [vmem:[%s7383] ss:$4 sm:$0xff] %v7050
      %7552 = vst [vmem:[%s7385] ss:$4 sm:$0xff] %v7051
      %7553 = vst [vmem:[%s7387] ss:$4 sm:$0xff] %v6908
      %7554 = vst [vmem:[%s7389] ss:$4 sm:$0xff] %v7052
      %v7555 = vld.sshfl [vmem:[#allocation1] sm:$0xff pattern:$0x73625140]
      %v7556 = vld.sshfl [vmem:[#allocation1 + $0x20] sm:$0xff pattern:$0x73625140]
      %7557 = vst [vmem:[#allocation1] ss:$4 sm:$0xff] %v7053
      %7558 = vst [vmem:[%s7383] ss:$4 sm:$0xff] %v7054
      %7559 = vst [vmem:[%s7385] ss:$4 sm:$0xff] %v6909
      %7560 = vst [vmem:[%s7387] ss:$4 sm:$0xff] %v7055
      %7561 = vst [vmem:[%s7389] ss:$4 sm:$0xff] %v7056
      %7562 = vst [vmem:[%s7391] ss:$4 sm:$0xff] %v7057
      %7563 = vst [vmem:[%s7393] ss:$4 sm:$0xff] %v6910
      %7564 = vst [vmem:[%s7395] ss:$4 sm:$0xff] %v7058
      %v7565 = vld.sshfl [vmem:[#allocation1] sm:$0xff pattern:$0x73625140]
      %v7566 = vld.sshfl [vmem:[#allocation1 + $0x20] sm:$0xff pattern:$0x73625140]
      %7567 = vst [vmem:[#allocation1] ss:$4 sm:$0xff] %v7059
      %v7568 = vld.sshfl [vmem:[#allocation1] sm:$0xff pattern:$0x73625140]
      %7569 = vst [vmem:[%s7389] ss:$4 sm:$0xff] %v7060
      %7570 = vst [vmem:[%s7391] ss:$4 sm:$0xff] %v6911
      %7571 = vst [vmem:[%s7393] ss:$4 sm:$0xff] %v7061
      %7572 = vst [vmem:[%s7395] ss:$4 sm:$0xff] %v7062
      %v7573 = vld.sshfl [vmem:[#allocation1 + $0x20] sm:$0xff pattern:$0x73625140]
      %7574 = vst [vmem:[#allocation1] ss:$4 sm:$0xff] %v7063
      %7575 = vst [vmem:[%s7383] ss:$4 sm:$0xff] %v6912
      %7576 = vst [vmem:[%s7385] ss:$4 sm:$0xff] %v7064
      %7577 = vst [vmem:[%s7387] ss:$4 sm:$0xff] %v7065
      %7578 = vst [vmem:[%s7389] ss:$4 sm:$0xff] %v7066
      %v7579 = vld.sshfl [vmem:[#allocation1] sm:$0xff pattern:$0x73625140]
      %v7580 = vld.sshfl [vmem:[#allocation1 + $0x20] sm:$0xff pattern:$0x73625140]
      %7581 = vst [vmem:[#allocation1] ss:$4 sm:$0xff] %v6913
      %7582 = vst [vmem:[%s7383] ss:$4 sm:$0xff] %v7067
      %7583 = vst [vmem:[%s7385] ss:$4 sm:$0xff] %v7068
      %7584 = vst [vmem:[%s7387] ss:$4 sm:$0xff] %v7069
      %7585 = vst [vmem:[%s7389] ss:$4 sm:$0xff] %v6914
      %7586 = vst [vmem:[%s7391] ss:$4 sm:$0xff] %v7070
      %7587 = vst [vmem:[%s7393] ss:$4 sm:$0xff] %v7071
      %7588 = vst [vmem:[%s7395] ss:$4 sm:$0xff] %v7072
      %v7589 = vld.sshfl [vmem:[#allocation1] sm:$0xff pattern:$0x73625140]
      %v7590 = vld.sshfl [vmem:[#allocation1 + $0x20] sm:$0xff pattern:$0x73625140]
      %7591 = vst [vmem:[#allocation1] ss:$4 sm:$0xff] %v6915
      %v7592 = vld.sshfl [vmem:[#allocation1] sm:$0xff pattern:$0x73625140]
      %7593 = vst [vmem:[%s7389] ss:$4 sm:$0xff] %v7073
      %7594 = vst [vmem:[%s7391] ss:$4 sm:$0xff] %v7074
      %7595 = vst [vmem:[%s7393] ss:$4 sm:$0xff] %v7075
      %7596 = vst [vmem:[%s7395] ss:$4 sm:$0xff] %v6916
      %v7597 = vld.sshfl [vmem:[#allocation1 + $0x20] sm:$0xff pattern:$0x73625140]
      %7598 = vst [vmem:[#allocation1] ss:$4 sm:$0xff] %v7076
      %7599 = vst [vmem:[%s7383] ss:$4 sm:$0xff] %v7077
      %7600 = vst [vmem:[%s7385] ss:$4 sm:$0xff] %v7078
      %7601 = vst [vmem:[%s7387] ss:$4 sm:$0xff] %v6917
      %7602 = vst [vmem:[%s7389] ss:$4 sm:$0xff] %v7079
      %v7603 = vld.sshfl [vmem:[#allocation1] sm:$0xff pattern:$0x73625140]
      %v7604 = vld.sshfl [vmem:[#allocation1 + $0x20] sm:$0xff pattern:$0x73625140]
      %v7659 = vsel %vm7328, %v7397, 0.0
      %v7660 = vsel %vm7329, %v7398, 0.0
      %v7661 = vsel %vm7330, %v7400, 0.0
      %v7662 = vsel %vm7331, %v7405, 0.0
      %v7663 = vsel %vm7332, %v7411, 0.0
      %v7664 = vsel %vm7333, %v7412, 0.0
      %v7665 = vsel %vm7334, %v7421, 0.0
      %v7666 = vsel %vm7335, %v7422, 0.0
      %v7667 = vsel %vm7336, %v7424, 0.0
      %v7668 = vsel %vm7337, %v7429, 0.0
      %v7669 = vsel %vm7338, %v7435, 0.0
      %v7670 = vsel %vm7339, %v7436, 0.0
      %v7671 = vsel %vm7340, %v7445, 0.0
      %v7672 = vsel %vm7341, %v7446, 0.0
      %v7673 = vsel %vm7342, %v7448, 0.0
      %v7674 = vsel %vm7343, %v7453, 0.0
      %v7675 = vsel %vm7344, %v7459, 0.0
      %v7676 = vsel %vm7345, %v7460, 0.0
      %v7677 = vsel %vm7346, %v7469, 0.0
      %v7678 = vsel %vm7347, %v7470, 0.0
      %v7679 = vsel %vm7348, %v7472, 0.0
      %v7680 = vsel %vm7349, %v7477, 0.0
      %v7681 = vsel %vm7350, %v7483, 0.0
      %v7682 = vsel %vm7351, %v7484, 0.0
      %v7683 = vsel %vm7352, %v7493, 0.0
      %v7684 = vsel %vm7353, %v7494, 0.0
      %v7685 = vsel %vm7354, %v7496, 0.0
      %v7686 = vsel %vm7355, %v7501, 0.0
      %v7687 = vsel %vm7356, %v7507, 0.0
      %v7688 = vsel %vm7357, %v7508, 0.0
      %v7689 = vsel %vm7358, %v7517, 0.0
      %v7690 = vsel %vm7359, %v7518, 0.0
      %v7691 = vsel %vm7360, %v7520, 0.0
      %v7692 = vsel %vm7361, %v7525, 0.0
      %v7693 = vsel %vm7362, %v7531, 0.0
      %v7694 = vsel %vm7363, %v7532, 0.0
      %v7695 = vsel %vm7364, %v7541, 0.0
      %v7696 = vsel %vm7365, %v7542, 0.0
      %v7697 = vsel %vm7366, %v7544, 0.0
      %v7698 = vsel %vm7367, %v7549, 0.0
      %v7699 = vsel %vm7368, %v7555, 0.0
      %v7700 = vsel %vm7369, %v7556, 0.0
      %v7701 = vsel %vm7370, %v7565, 0.0
      %v7702 = vsel %vm7371, %v7566, 0.0
      %v7703 = vsel %vm7372, %v7568, 0.0
      %v7704 = vsel %vm7373, %v7573, 0.0
      %v7705 = vsel %vm7374, %v7579, 0.0
      %v7706 = vsel %vm7375, %v7580, 0.0
      %v7707 = vsel %vm7376, %v7589, 0.0
      %v7708 = vsel %vm7377, %v7590, 0.0
      %v7709 = vsel %vm7378, %v7592, 0.0
      %v7710 = vsel %vm7379, %v7597, 0.0
      %v7711 = vsel %vm7380, %v7603, 0.0
      %v7712 = vsel %vm7381, %v7604, 0.0
      %v7713 = vpack.c.bf16 %v7659, %v7659
      %v7714 = vpack.c.bf16 %v7660, %v7660
      %v7715 = vpack.c.bf16 %v7661, %v7661
      %v7716 = vpack.c.bf16 %v7662, %v7662
      %v7717 = vpack.c.bf16 %v7663, %v7663
      %v7718 = vpack.c.bf16 %v7664, %v7664
      %v7719 = vpack.c.bf16 %v7665, %v7665
      %v7720 = vpack.c.bf16 %v7666, %v7666
      %v7721 = vpack.c.bf16 %v7667, %v7667
      %v7722 = vpack.c.bf16 %v7668, %v7668
      %v7723 = vpack.c.bf16 %v7669, %v7669
      %v7724 = vpack.c.bf16 %v7670, %v7670
      %v7725 = vpack.c.bf16 %v7671, %v7671
      %v7726 = vpack.c.bf16 %v7672, %v7672
      %v7727 = vpack.c.bf16 %v7673, %v7673
      %v7728 = vpack.c.bf16 %v7674, %v7674
      %v7729 = vpack.c.bf16 %v7675, %v7675
      %v7730 = vpack.c.bf16 %v7676, %v7676
      %v7731 = vpack.c.bf16 %v7677, %v7677
      %v7732 = vpack.c.bf16 %v7678, %v7678
      %v7733 = vpack.c.bf16 %v7679, %v7679
      %v7734 = vpack.c.bf16 %v7680, %v7680
      %v7735 = vpack.c.bf16 %v7681, %v7681
      %v7736 = vpack.c.bf16 %v7682, %v7682
      %v7737 = vpack.c.bf16 %v7683, %v7683
      %v7738 = vpack.c.bf16 %v7684, %v7684
      %v7739 = vpack.c.bf16 %v7685, %v7685
      %v7740 = vpack.c.bf16 %v7686, %v7686
      %v7741 = vpack.c.bf16 %v7687, %v7687
      %v7742 = vpack.c.bf16 %v7688, %v7688
      %v7743 = vpack.c.bf16 %v7689, %v7689
      %v7744 = vpack.c.bf16 %v7690, %v7690
      %v7745 = vpack.c.bf16 %v7691, %v7691
      %v7746 = vpack.c.bf16 %v7692, %v7692
      %v7747 = vpack.c.bf16 %v7693, %v7693
      %v7748 = vpack.c.bf16 %v7694, %v7694
      %v7749 = vpack.c.bf16 %v7695, %v7695
      %v7750 = vpack.c.bf16 %v7696, %v7696
      %v7751 = vpack.c.bf16 %v7697, %v7697
      %v7752 = vpack.c.bf16 %v7698, %v7698
      %v7753 = vpack.c.bf16 %v7699, %v7699
      %v7754 = vpack.c.bf16 %v7700, %v7700
      %v7755 = vpack.c.bf16 %v7701, %v7701
      %v7756 = vpack.c.bf16 %v7702, %v7702
      %v7757 = vpack.c.bf16 %v7703, %v7703
      %v7758 = vpack.c.bf16 %v7704, %v7704
      %v7759 = vpack.c.bf16 %v7705, %v7705
      %v7760 = vpack.c.bf16 %v7706, %v7706
      %v7761 = vpack.c.bf16 %v7707, %v7707
      %v7762 = vpack.c.bf16 %v7708, %v7708
      %v7763 = vpack.c.bf16 %v7709, %v7709
      %v7764 = vpack.c.bf16 %v7710, %v7710
      %v7765 = vpack.c.bf16 %v7711, %v7711
      %v7766 = vpack.c.bf16 %v7712, %v7712
      %v7767 = vld [vmem:[%s4] sm:$0xf]
      %v7768 = vld [vmem:[%s4 + $0x4] sm:$0xf]
      %v7769 = vld [vmem:[%s4 + $0x8] sm:$0xf]
      %v7770 = vld [vmem:[%s4 + $0xc] sm:$0xf]
      %v7771 = vld [vmem:[%s4 + $0x10] sm:$0xf]
      %v7772 = vld [vmem:[%s4 + $0x14] sm:$0xf]
      %v7773 = vld [vmem:[%s4 + $0x18] sm:$0xf]
      %v7774 = vld [vmem:[%s4 + $0x1c] sm:$0xf]
      %v7775 = vld [vmem:[%s4 + $0x20] sm:$0xf]
      %vm7776 = vsmask.f32 3328
      %vm7777 = vsmask.f32 7440
      %vm7778 = vmor %vm7776, %vm7777
      %v7780 = vshrl.u32 %v7713, 16
      %v7782 = vrot.slane %v7780, 4
      %v7783 = vshll.u32 %v7713, 16
      %v7785 = vrot.slane %v7783, 5
      %v7786 = vor.u32 %v7782, %v7785
      %v7787 = vrot.slane %v7786, 4
      %v7789 = vshll.u32 %v7714, 16
      %v7791 = vrot.slane %v7789, 5
      %v7792 = vsel %vm7778, %v7787, %v7791
      %v7793 = vshrl.u32 %v7714, 16
      %v7795 = vrot.slane %v7793, 4
      %v7796 = vor.u32 %v7795, %v7791
      %v7797 = vrot.slane %v7796, 4
      %v7799 = vshll.u32 %v7715, 16
      %v7801 = vrot.slane %v7799, 5
      %v7802 = vsel %vm7778, %v7797, %v7801
      %v7804 = vshrl.u32 %v7716, 16
      %v7806 = vrot.slane %v7804, 4
      %v7807 = vshll.u32 %v7716, 16
      %v7809 = vrot.slane %v7807, 5
      %v7810 = vor.u32 %v7806, %v7809
      %v7811 = vrot.slane %v7810, 4
      %v7813 = vshll.u32 %v7717, 16
      %v7815 = vrot.slane %v7813, 5
      %v7816 = vsel %vm7778, %v7811, %v7815
      %v7817 = vshrl.u32 %v7717, 16
      %v7819 = vrot.slane %v7817, 4
      %v7820 = vor.u32 %v7819, %v7815
      %v7821 = vrot.slane %v7820, 4
      %v7823 = vshll.u32 %v7718, 16
      %v7825 = vrot.slane %v7823, 5
      %v7826 = vsel %vm7778, %v7821, %v7825
      %v7828 = vshrl.u32 %v7719, 16
      %v7830 = vrot.slane %v7828, 4
      %v7831 = vshll.u32 %v7719, 16
      %v7833 = vrot.slane %v7831, 5
      %v7834 = vor.u32 %v7830, %v7833
      %v7835 = vrot.slane %v7834, 4
      %v7837 = vshll.u32 %v7720, 16
      %v7839 = vrot.slane %v7837, 5
      %v7840 = vsel %vm7778, %v7835, %v7839
      %v7841 = vshrl.u32 %v7720, 16
      %v7843 = vrot.slane %v7841, 4
      %v7844 = vor.u32 %v7843, %v7839
      %v7845 = vrot.slane %v7844, 4
      %v7847 = vshll.u32 %v7721, 16
      %v7849 = vrot.slane %v7847, 5
      %v7850 = vsel %vm7778, %v7845, %v7849
      %v7852 = vshrl.u32 %v7722, 16
      %v7854 = vrot.slane %v7852, 4
      %v7855 = vshll.u32 %v7722, 16
      %v7857 = vrot.slane %v7855, 5
      %v7858 = vor.u32 %v7854, %v7857
      %v7859 = vrot.slane %v7858, 4
      %v7861 = vshll.u32 %v7723, 16
      %v7863 = vrot.slane %v7861, 5
      %v7864 = vsel %vm7778, %v7859, %v7863
      %v7865 = vshrl.u32 %v7723, 16
      %v7867 = vrot.slane %v7865, 4
      %v7868 = vor.u32 %v7867, %v7863
      %v7869 = vrot.slane %v7868, 4
      %v7871 = vshll.u32 %v7724, 16
      %v7873 = vrot.slane %v7871, 5
      %v7874 = vsel %vm7778, %v7869, %v7873
      %v7876 = vshrl.u32 %v7725, 16
      %v7878 = vrot.slane %v7876, 4
      %v7879 = vshll.u32 %v7725, 16
      %v7881 = vrot.slane %v7879, 5
      %v7882 = vor.u32 %v7878, %v7881
      %v7883 = vrot.slane %v7882, 4
      %v7885 = vshll.u32 %v7726, 16
      %v7887 = vrot.slane %v7885, 5
      %v7888 = vsel %vm7778, %v7883, %v7887
      %v7889 = vshrl.u32 %v7726, 16
      %v7891 = vrot.slane %v7889, 4
      %v7892 = vor.u32 %v7891, %v7887
      %v7893 = vrot.slane %v7892, 4
      %v7895 = vshll.u32 %v7727, 16
      %v7897 = vrot.slane %v7895, 5
      %v7898 = vsel %vm7778, %v7893, %v7897
      %v7900 = vshrl.u32 %v7728, 16
      %v7902 = vrot.slane %v7900, 4
      %v7903 = vshll.u32 %v7728, 16
      %v7905 = vrot.slane %v7903, 5
      %v7906 = vor.u32 %v7902, %v7905
      %v7907 = vrot.slane %v7906, 4
      %v7909 = vshll.u32 %v7729, 16
      %v7911 = vrot.slane %v7909, 5
      %v7912 = vsel %vm7778, %v7907, %v7911
      %v7913 = vshrl.u32 %v7729, 16
      %v7915 = vrot.slane %v7913, 4
      %v7916 = vor.u32 %v7915, %v7911
      %v7917 = vrot.slane %v7916, 4
      %v7919 = vshll.u32 %v7730, 16
      %v7921 = vrot.slane %v7919, 5
      %v7922 = vsel %vm7778, %v7917, %v7921
      %v7924 = vshrl.u32 %v7731, 16
      %v7926 = vrot.slane %v7924, 4
      %v7927 = vshll.u32 %v7731, 16
      %v7929 = vrot.slane %v7927, 5
      %v7930 = vor.u32 %v7926, %v7929
      %v7931 = vrot.slane %v7930, 4
      %v7933 = vshll.u32 %v7732, 16
      %v7935 = vrot.slane %v7933, 5
      %v7936 = vsel %vm7778, %v7931, %v7935
      %v7937 = vshrl.u32 %v7732, 16
      %v7939 = vrot.slane %v7937, 4
      %v7940 = vor.u32 %v7939, %v7935
      %v7941 = vrot.slane %v7940, 4
      %v7943 = vshll.u32 %v7733, 16
      %v7945 = vrot.slane %v7943, 5
      %v7946 = vsel %vm7778, %v7941, %v7945
      %v7948 = vshrl.u32 %v7734, 16
      %v7950 = vrot.slane %v7948, 4
      %v7951 = vshll.u32 %v7734, 16
      %v7953 = vrot.slane %v7951, 5
      %v7954 = vor.u32 %v7950, %v7953
      %v7955 = vrot.slane %v7954, 4
      %v7957 = vshll.u32 %v7735, 16
      %v7959 = vrot.slane %v7957, 5
      %v7960 = vsel %vm7778, %v7955, %v7959
      %v7961 = vshrl.u32 %v7735, 16
      %v7963 = vrot.slane %v7961, 4
      %v7964 = vor.u32 %v7963, %v7959
      %v7965 = vrot.slane %v7964, 4
      %v7967 = vshll.u32 %v7736, 16
      %v7969 = vrot.slane %v7967, 5
      %v7970 = vsel %vm7778, %v7965, %v7969
      %v7972 = vshrl.u32 %v7737, 16
      %v7974 = vrot.slane %v7972, 4
      %v7975 = vshll.u32 %v7737, 16
      %v7977 = vrot.slane %v7975, 5
      %v7978 = vor.u32 %v7974, %v7977
      %v7979 = vrot.slane %v7978, 4
      %v7981 = vshll.u32 %v7738, 16
      %v7983 = vrot.slane %v7981, 5
      %v7984 = vsel %vm7778, %v7979, %v7983
      %v7985 = vshrl.u32 %v7738, 16
      %v7987 = vrot.slane %v7985, 4
      %v7988 = vor.u32 %v7987, %v7983
      %v7989 = vrot.slane %v7988, 4
      %v7991 = vshll.u32 %v7739, 16
      %v7993 = vrot.slane %v7991, 5
      %v7994 = vsel %vm7778, %v7989, %v7993
      %v7996 = vshrl.u32 %v7740, 16
      %v7998 = vrot.slane %v7996, 4
      %v7999 = vshll.u32 %v7740, 16
      %v8001 = vrot.slane %v7999, 5
      %v8002 = vor.u32 %v7998, %v8001
      %v8003 = vrot.slane %v8002, 4
      %v8005 = vshll.u32 %v7741, 16
      %v8007 = vrot.slane %v8005, 5
      %v8008 = vsel %vm7778, %v8003, %v8007
      %v8009 = vshrl.u32 %v7741, 16
      %v8011 = vrot.slane %v8009, 4
      %v8012 = vor.u32 %v8011, %v8007
      %v8013 = vrot.slane %v8012, 4
      %v8015 = vshll.u32 %v7742, 16
      %v8017 = vrot.slane %v8015, 5
      %v8018 = vsel %vm7778, %v8013, %v8017
      %v8020 = vshrl.u32 %v7743, 16
      %v8022 = vrot.slane %v8020, 4
      %v8023 = vshll.u32 %v7743, 16
      %v8025 = vrot.slane %v8023, 5
      %v8026 = vor.u32 %v8022, %v8025
      %v8027 = vrot.slane %v8026, 4
      %v8029 = vshll.u32 %v7744, 16
      %v8031 = vrot.slane %v8029, 5
      %v8032 = vsel %vm7778, %v8027, %v8031
      %v8033 = vshrl.u32 %v7744, 16
      %v8035 = vrot.slane %v8033, 4
      %v8036 = vor.u32 %v8035, %v8031
      %v8037 = vrot.slane %v8036, 4
      %v8039 = vshll.u32 %v7745, 16
      %v8041 = vrot.slane %v8039, 5
      %v8042 = vsel %vm7778, %v8037, %v8041
      %v8044 = vshrl.u32 %v7746, 16
      %v8046 = vrot.slane %v8044, 4
      %v8047 = vshll.u32 %v7746, 16
      %v8049 = vrot.slane %v8047, 5
      %v8050 = vor.u32 %v8046, %v8049
      %v8051 = vrot.slane %v8050, 4
      %v8053 = vshll.u32 %v7747, 16
      %v8055 = vrot.slane %v8053, 5
      %v8056 = vsel %vm7778, %v8051, %v8055
      %v8057 = vshrl.u32 %v7747, 16
      %v8059 = vrot.slane %v8057, 4
      %v8060 = vor.u32 %v8059, %v8055
      %v8061 = vrot.slane %v8060, 4
      %v8063 = vshll.u32 %v7748, 16
      %v8065 = vrot.slane %v8063, 5
      %v8066 = vsel %vm7778, %v8061, %v8065
      %v8068 = vshrl.u32 %v7749, 16
      %v8070 = vrot.slane %v8068, 4
      %v8071 = vshll.u32 %v7749, 16
      %v8073 = vrot.slane %v8071, 5
      %v8074 = vor.u32 %v8070, %v8073
      %v8075 = vrot.slane %v8074, 4
      %v8077 = vshll.u32 %v7750, 16
      %v8079 = vrot.slane %v8077, 5
      %v8080 = vsel %vm7778, %v8075, %v8079
      %v8081 = vshrl.u32 %v7750, 16
      %v8083 = vrot.slane %v8081, 4
      %v8084 = vor.u32 %v8083, %v8079
      %v8085 = vrot.slane %v8084, 4
      %v8087 = vshll.u32 %v7751, 16
      %v8089 = vrot.slane %v8087, 5
      %v8090 = vsel %vm7778, %v8085, %v8089
      %v8092 = vshrl.u32 %v7752, 16
      %v8094 = vrot.slane %v8092, 4
      %v8095 = vshll.u32 %v7752, 16
      %v8097 = vrot.slane %v8095, 5
      %v8098 = vor.u32 %v8094, %v8097
      %v8099 = vrot.slane %v8098, 4
      %v8101 = vshll.u32 %v7753, 16
      %v8103 = vrot.slane %v8101, 5
      %v8104 = vsel %vm7778, %v8099, %v8103
      %v8105 = vshrl.u32 %v7753, 16
      %v8107 = vrot.slane %v8105, 4
      %v8108 = vor.u32 %v8107, %v8103
      %v8109 = vrot.slane %v8108, 4
      %v8111 = vshll.u32 %v7754, 16
      %v8113 = vrot.slane %v8111, 5
      %v8114 = vsel %vm7778, %v8109, %v8113
      %v8116 = vshrl.u32 %v7755, 16
      %v8118 = vrot.slane %v8116, 4
      %v8119 = vshll.u32 %v7755, 16
      %v8121 = vrot.slane %v8119, 5
      %v8122 = vor.u32 %v8118, %v8121
      %v8123 = vrot.slane %v8122, 4
      %v8125 = vshll.u32 %v7756, 16
      %v8127 = vrot.slane %v8125, 5
      %v8128 = vsel %vm7778, %v8123, %v8127
      %v8129 = vshrl.u32 %v7756, 16
      %v8131 = vrot.slane %v8129, 4
      %v8132 = vor.u32 %v8131, %v8127
      %v8133 = vrot.slane %v8132, 4
      %v8135 = vshll.u32 %v7757, 16
      %v8137 = vrot.slane %v8135, 5
      %v8138 = vsel %vm7778, %v8133, %v8137
      %v8140 = vshrl.u32 %v7758, 16
      %v8142 = vrot.slane %v8140, 4
      %v8143 = vshll.u32 %v7758, 16
      %v8145 = vrot.slane %v8143, 5
      %v8146 = vor.u32 %v8142, %v8145
      %v8147 = vrot.slane %v8146, 4
      %v8149 = vshll.u32 %v7759, 16
      %v8151 = vrot.slane %v8149, 5
      %v8152 = vsel %vm7778, %v8147, %v8151
      %v8153 = vshrl.u32 %v7759, 16
      %v8155 = vrot.slane %v8153, 4
      %v8156 = vor.u32 %v8155, %v8151
      %v8157 = vrot.slane %v8156, 4
      %v8159 = vshll.u32 %v7760, 16
      %v8161 = vrot.slane %v8159, 5
      %v8162 = vsel %vm7778, %v8157, %v8161
      %v8163 = vunpack.c.l.b16 %v7792
      %v8164 = vunpack.c.l.b16 %v7802
      %v8165 = vunpack.c.l.b16 %v7816
      %v8166 = vunpack.c.l.b16 %v7826
      %v8167 = vunpack.c.l.b16 %v7840
      %v8168 = vunpack.c.l.b16 %v7850
      %v8169 = vunpack.c.l.b16 %v7864
      %v8170 = vunpack.c.l.b16 %v7874
      %v8171 = vunpack.c.l.b16 %v7888
      %v8172 = vunpack.c.l.b16 %v7898
      %v8173 = vunpack.c.l.b16 %v7912
      %v8174 = vunpack.c.l.b16 %v7922
      %v8175 = vunpack.c.l.b16 %v7936
      %v8176 = vunpack.c.l.b16 %v7946
      %v8177 = vunpack.c.l.b16 %v7960
      %v8178 = vunpack.c.l.b16 %v7970
      %v8179 = vunpack.c.l.b16 %v7984
      %v8180 = vunpack.c.l.b16 %v7994
      %v8181 = vunpack.c.l.b16 %v8008
      %v8182 = vunpack.c.l.b16 %v8018
      %v8183 = vunpack.c.l.b16 %v8032
      %v8184 = vunpack.c.l.b16 %v8042
      %v8185 = vunpack.c.l.b16 %v8056
      %v8186 = vunpack.c.l.b16 %v8066
      %v8187 = vunpack.c.l.b16 %v8080
      %v8188 = vunpack.c.l.b16 %v8090
      %v8189 = vunpack.c.l.b16 %v8104
      %v8190 = vunpack.c.l.b16 %v8114
      %v8191 = vunpack.c.l.b16 %v8128
      %v8192 = vunpack.c.l.b16 %v8138
      %v8193 = vunpack.c.l.b16 %v8152
      %v8194 = vunpack.c.l.b16 %v8162
      %v8195 = vpack.c.b16 %v8164, %v8163
      %v8196 = vpack.c.b16 %v8166, %v8165
      %v8197 = vpack.c.b16 %v8168, %v8167
      %v8198 = vpack.c.b16 %v8170, %v8169
      %v8199 = vpack.c.b16 %v8172, %v8171
      %v8200 = vpack.c.b16 %v8174, %v8173
      %v8201 = vpack.c.b16 %v8176, %v8175
      %v8202 = vpack.c.b16 %v8178, %v8177
      %v8203 = vpack.c.b16 %v8180, %v8179
      %v8204 = vpack.c.b16 %v8182, %v8181
      %v8205 = vpack.c.b16 %v8184, %v8183
      %v8206 = vpack.c.b16 %v8186, %v8185
      %v8207 = vpack.c.b16 %v8188, %v8187
      %v8208 = vpack.c.b16 %v8190, %v8189
      %v8209 = vpack.c.b16 %v8192, %v8191
      %v8210 = vpack.c.b16 %v8194, %v8193
      %vm8211 = vcmask 64512
      %v8213 = vsel %vm8211, %v8195, 0
      %v8216 = vsel %vm8211, %v8196, 0
      %v8219 = vsel %vm8211, %v8197, 0
      %v8222 = vsel %vm8211, %v8198, 0
      %v8225 = vsel %vm8211, %v8199, 0
      %v8228 = vsel %vm8211, %v8200, 0
      %v8231 = vsel %vm8211, %v8201, 0
      %v8234 = vsel %vm8211, %v8202, 0
      %v8237 = vsel %vm8211, %v8203, 0
      %v8240 = vsel %vm8211, %v8204, 0
      %v8243 = vsel %vm8211, %v8205, 0
      %v8246 = vsel %vm8211, %v8206, 0
      %v8249 = vsel %vm8211, %v8207, 0
      %v8252 = vsel %vm8211, %v8208, 0
      %v8255 = vsel %vm8211, %v8209, 0
      %v8258 = vsel %vm8211, %v8210, 0
      %vm8260 = vcmask 1043456
      %v8262 = vsel %vm8260, %v7768, 0
      %8264 = vmatpush.bf16.msra.mxu0 0
      %8265 = vmatpush.bf16.msra.mxu0 0
      %8266 = vmatpush.bf16.msra.mxu0 0
      %8267 = vmatpush.bf16.msra.mxu0 0
      %8268 = vmatpush.bf16.msra.mxu0 0
      %8269 = vmatpush.bf16.msra.mxu0 0
      %8270 = vmatpush.bf16.msra.mxu0 0
      %8271 = vmatpush.bf16.msra.mxu0 %v8262
      %8272 = vmatmul.bf16.gmra.mxu0 %v8213
      %v8273 = vpop.f32.mrf.mxu0
      %v8274 = vadd.f32 0.0, %v8273
      %v8275 = vpop.f32.mrf.mxu0
      %v8276 = vadd.f32 0.0, %v8275
      %8277 = vmatmul.bf16.gmra.mxu0 %v8216
      %v8278 = vpop.f32.mrf.mxu0
      %v8279 = vadd.f32 0.0, %v8278
      %v8280 = vpop.f32.mrf.mxu0
      %v8281 = vadd.f32 0.0, %v8280
      %8282 = vmatmul.bf16.gmra.mxu0 %v8219
      %v8283 = vpop.f32.mrf.mxu0
      %v8284 = vadd.f32 0.0, %v8283
      %v8285 = vpop.f32.mrf.mxu0
      %v8286 = vadd.f32 0.0, %v8285
      %8287 = vmatmul.bf16.gmra.mxu0 %v8222
      %v8288 = vpop.f32.mrf.mxu0
      %v8289 = vadd.f32 0.0, %v8288
      %v8290 = vpop.f32.mrf.mxu0
      %v8291 = vadd.f32 0.0, %v8290
      %8292 = vmatmul.bf16.gmra.mxu0 %v8225
      %v8293 = vpop.f32.mrf.mxu0
      %v8294 = vadd.f32 0.0, %v8293
      %v8295 = vpop.f32.mrf.mxu0
      %v8296 = vadd.f32 0.0, %v8295
      %8297 = vmatmul.bf16.gmra.mxu0 %v8228
      %v8298 = vpop.f32.mrf.mxu0
      %v8299 = vadd.f32 0.0, %v8298
      %v8300 = vpop.f32.mrf.mxu0
      %v8301 = vadd.f32 0.0, %v8300
      %8302 = vmatmul.bf16.gmra.mxu0 %v8231
      %v8303 = vpop.f32.mrf.mxu0
      %v8304 = vadd.f32 0.0, %v8303
      %v8305 = vpop.f32.mrf.mxu0
      %v8306 = vadd.f32 0.0, %v8305
      %8307 = vmatmul.bf16.gmra.mxu0 %v8234
      %v8308 = vpop.f32.mrf.mxu0
      %v8309 = vadd.f32 0.0, %v8308
      %v8310 = vpop.f32.mrf.mxu0
      %v8311 = vadd.f32 0.0, %v8310
      %8312 = vmatmul.bf16.gmra.mxu0 %v8237
      %v8313 = vpop.f32.mrf.mxu0
      %v8314 = vadd.f32 0.0, %v8313
      %v8315 = vpop.f32.mrf.mxu0
      %v8316 = vadd.f32 0.0, %v8315
      %8317 = vmatmul.bf16.gmra.mxu0 %v8240
      %v8318 = vpop.f32.mrf.mxu0
      %v8319 = vadd.f32 0.0, %v8318
      %v8320 = vpop.f32.mrf.mxu0
      %v8321 = vadd.f32 0.0, %v8320
      %8322 = vmatmul.bf16.gmra.mxu0 %v8243
      %v8323 = vpop.f32.mrf.mxu0
      %v8324 = vadd.f32 0.0, %v8323
      %v8325 = vpop.f32.mrf.mxu0
      %v8326 = vadd.f32 0.0, %v8325
      %8327 = vmatmul.bf16.gmra.mxu0 %v8246
      %v8328 = vpop.f32.mrf.mxu0
      %v8329 = vadd.f32 0.0, %v8328
      %v8330 = vpop.f32.mrf.mxu0
      %v8331 = vadd.f32 0.0, %v8330
      %8332 = vmatmul.bf16.gmra.mxu0 %v8249
      %v8333 = vpop.f32.mrf.mxu0
      %v8334 = vadd.f32 0.0, %v8333
      %v8335 = vpop.f32.mrf.mxu0
      %v8336 = vadd.f32 0.0, %v8335
      %8337 = vmatmul.bf16.gmra.mxu0 %v8252
      %v8338 = vpop.f32.mrf.mxu0
      %v8339 = vadd.f32 0.0, %v8338
      %v8340 = vpop.f32.mrf.mxu0
      %v8341 = vadd.f32 0.0, %v8340
      %8342 = vmatmul.bf16.gmra.mxu0 %v8255
      %v8343 = vpop.f32.mrf.mxu0
      %v8344 = vadd.f32 0.0, %v8343
      %v8345 = vpop.f32.mrf.mxu0
      %v8346 = vadd.f32 0.0, %v8345
      %8347 = vmatmul.bf16.gmra.mxu0 %v8258
      %v8348 = vpop.f32.mrf.mxu0
      %v8349 = vadd.f32 0.0, %v8348
      %v8350 = vpop.f32.mrf.mxu0
      %v8351 = vadd.f32 0.0, %v8350
      %8352 = vdwg.mxu0
      %v8385 = vunpack.c.l.b16 %v7713
      %v8386 = vunpack.c.l.b16 %v7714
      %v8387 = vunpack.c.l.b16 %v7716
      %v8388 = vunpack.c.l.b16 %v7717
      %v8389 = vunpack.c.l.b16 %v7719
      %v8390 = vunpack.c.l.b16 %v7720
      %v8391 = vunpack.c.l.b16 %v7722
      %v8392 = vunpack.c.l.b16 %v7723
      %v8393 = vunpack.c.l.b16 %v7725
      %v8394 = vunpack.c.l.b16 %v7726
      %v8395 = vunpack.c.l.b16 %v7728
      %v8396 = vunpack.c.l.b16 %v7729
      %v8397 = vunpack.c.l.b16 %v7731
      %v8398 = vunpack.c.l.b16 %v7732
      %v8399 = vunpack.c.l.b16 %v7734
      %v8400 = vunpack.c.l.b16 %v7735
      %v8401 = vunpack.c.l.b16 %v7737
      %v8402 = vunpack.c.l.b16 %v7738
      %v8403 = vunpack.c.l.b16 %v7740
      %v8404 = vunpack.c.l.b16 %v7741
      %v8405 = vunpack.c.l.b16 %v7743
      %v8406 = vunpack.c.l.b16 %v7744
      %v8407 = vunpack.c.l.b16 %v7746
      %v8408 = vunpack.c.l.b16 %v7747
      %v8409 = vunpack.c.l.b16 %v7749
      %v8410 = vunpack.c.l.b16 %v7750
      %v8411 = vunpack.c.l.b16 %v7752
      %v8412 = vunpack.c.l.b16 %v7753
      %v8413 = vunpack.c.l.b16 %v7755
      %v8414 = vunpack.c.l.b16 %v7756
      %v8415 = vunpack.c.l.b16 %v7758
      %v8416 = vunpack.c.l.b16 %v7759
      %v8417 = vpack.c.b16 %v8386, %v8385
      %v8418 = vpack.c.b16 %v8388, %v8387
      %v8419 = vpack.c.b16 %v8390, %v8389
      %v8420 = vpack.c.b16 %v8392, %v8391
      %v8421 = vpack.c.b16 %v8394, %v8393
      %v8422 = vpack.c.b16 %v8396, %v8395
      %v8423 = vpack.c.b16 %v8398, %v8397
      %v8424 = vpack.c.b16 %v8400, %v8399
      %v8425 = vpack.c.b16 %v8402, %v8401
      %v8426 = vpack.c.b16 %v8404, %v8403
      %v8427 = vpack.c.b16 %v8406, %v8405
      %v8428 = vpack.c.b16 %v8408, %v8407
      %v8429 = vpack.c.b16 %v8410, %v8409
      %v8430 = vpack.c.b16 %v8412, %v8411
      %v8431 = vpack.c.b16 %v8414, %v8413
      %v8432 = vpack.c.b16 %v8416, %v8415
      %v8434 = vsel %vm8211, %v8417, 0
      %v8437 = vsel %vm8211, %v8418, 0
      %v8440 = vsel %vm8211, %v8419, 0
      %v8443 = vsel %vm8211, %v8420, 0
      %v8446 = vsel %vm8211, %v8421, 0
      %v8449 = vsel %vm8211, %v8422, 0
      %v8452 = vsel %vm8211, %v8423, 0
      %v8455 = vsel %vm8211, %v8424, 0
      %v8458 = vsel %vm8211, %v8425, 0
      %v8461 = vsel %vm8211, %v8426, 0
      %v8464 = vsel %vm8211, %v8427, 0
      %v8467 = vsel %vm8211, %v8428, 0
      %v8470 = vsel %vm8211, %v8429, 0
      %v8473 = vsel %vm8211, %v8430, 0
      %v8476 = vsel %vm8211, %v8431, 0
      %v8479 = vsel %vm8211, %v8432, 0
      %v8482 = vsel %vm8260, %v7767, 0
      %8484 = vmatpush.bf16.msra.mxu0 0
      %8485 = vmatpush.bf16.msra.mxu0 0
      %8486 = vmatpush.bf16.msra.mxu0 0
      %8487 = vmatpush.bf16.msra.mxu0 0
      %8488 = vmatpush.bf16.msra.mxu0 0
      %8489 = vmatpush.bf16.msra.mxu0 0
      %8490 = vmatpush.bf16.msra.mxu0 0
      %8491 = vmatpush.bf16.msra.mxu0 %v8482
      %8492 = vmatmul.bf16.gmra.mxu0 %v8434
      %v8493 = vpop.f32.mrf.mxu0
      %v8494 = vadd.f32 %v8274, %v8493
      %v8495 = vpop.f32.mrf.mxu0
      %v8496 = vadd.f32 %v8276, %v8495
      %8497 = vmatmul.bf16.gmra.mxu0 %v8437
      %v8498 = vpop.f32.mrf.mxu0
      %v8499 = vadd.f32 %v8279, %v8498
      %v8500 = vpop.f32.mrf.mxu0
      %v8501 = vadd.f32 %v8281, %v8500
      %8502 = vmatmul.bf16.gmra.mxu0 %v8440
      %v8503 = vpop.f32.mrf.mxu0
      %v8504 = vadd.f32 %v8284, %v8503
      %v8505 = vpop.f32.mrf.mxu0
      %v8506 = vadd.f32 %v8286, %v8505
      %8507 = vmatmul.bf16.gmra.mxu0 %v8443
      %v8508 = vpop.f32.mrf.mxu0
      %v8509 = vadd.f32 %v8289, %v8508
      %v8510 = vpop.f32.mrf.mxu0
      %v8511 = vadd.f32 %v8291, %v8510
      %8512 = vmatmul.bf16.gmra.mxu0 %v8446
      %v8513 = vpop.f32.mrf.mxu0
      %v8514 = vadd.f32 %v8294, %v8513
      %v8515 = vpop.f32.mrf.mxu0
      %v8516 = vadd.f32 %v8296, %v8515
      %8517 = vmatmul.bf16.gmra.mxu0 %v8449
      %v8518 = vpop.f32.mrf.mxu0
      %v8519 = vadd.f32 %v8299, %v8518
      %v8520 = vpop.f32.mrf.mxu0
      %v8521 = vadd.f32 %v8301, %v8520
      %8522 = vmatmul.bf16.gmra.mxu0 %v8452
      %v8523 = vpop.f32.mrf.mxu0
      %v8524 = vadd.f32 %v8304, %v8523
      %v8525 = vpop.f32.mrf.mxu0
      %v8526 = vadd.f32 %v8306, %v8525
      %8527 = vmatmul.bf16.gmra.mxu0 %v8455
      %v8528 = vpop.f32.mrf.mxu0
      %v8529 = vadd.f32 %v8309, %v8528
      %v8530 = vpop.f32.mrf.mxu0
      %v8531 = vadd.f32 %v8311, %v8530
      %8532 = vmatmul.bf16.gmra.mxu0 %v8458
      %v8533 = vpop.f32.mrf.mxu0
      %v8534 = vadd.f32 %v8314, %v8533
      %v8535 = vpop.f32.mrf.mxu0
      %v8536 = vadd.f32 %v8316, %v8535
      %8537 = vmatmul.bf16.gmra.mxu0 %v8461
      %v8538 = vpop.f32.mrf.mxu0
      %v8539 = vadd.f32 %v8319, %v8538
      %v8540 = vpop.f32.mrf.mxu0
      %v8541 = vadd.f32 %v8321, %v8540
      %8542 = vmatmul.bf16.gmra.mxu0 %v8464
      %v8543 = vpop.f32.mrf.mxu0
      %v8544 = vadd.f32 %v8324, %v8543
      %v8545 = vpop.f32.mrf.mxu0
      %v8546 = vadd.f32 %v8326, %v8545
      %8547 = vmatmul.bf16.gmra.mxu0 %v8467
      %v8548 = vpop.f32.mrf.mxu0
      %v8549 = vadd.f32 %v8329, %v8548
      %v8550 = vpop.f32.mrf.mxu0
      %v8551 = vadd.f32 %v8331, %v8550
      %8552 = vmatmul.bf16.gmra.mxu0 %v8470
      %v8553 = vpop.f32.mrf.mxu0
      %v8554 = vadd.f32 %v8334, %v8553
      %v8555 = vpop.f32.mrf.mxu0
      %v8556 = vadd.f32 %v8336, %v8555
      %8557 = vmatmul.bf16.gmra.mxu0 %v8473
      %v8558 = vpop.f32.mrf.mxu0
      %v8559 = vadd.f32 %v8339, %v8558
      %v8560 = vpop.f32.mrf.mxu0
      %v8561 = vadd.f32 %v8341, %v8560
      %8562 = vmatmul.bf16.gmra.mxu0 %v8476
      %v8563 = vpop.f32.mrf.mxu0
      %v8564 = vadd.f32 %v8344, %v8563
      %v8565 = vpop.f32.mrf.mxu0
      %v8566 = vadd.f32 %v8346, %v8565
      %8567 = vmatmul.bf16.gmra.mxu0 %v8479
      %v8568 = vpop.f32.mrf.mxu0
      %v8569 = vadd.f32 %v8349, %v8568
      %v8570 = vpop.f32.mrf.mxu0
      %v8571 = vadd.f32 %v8351, %v8570
      %8572 = vdwg.mxu0
      %vm8589 = vcmask 1042432
      %vm8590 = vcmask 1046532
      %vm8591 = vmor %vm8589, %vm8590
      %v8592 = vrot.slane %v7713, 5
      %v8593 = vrot.slane %v8592, 4
      %v8594 = vrot.slane %v7714, 5
      %v8595 = vsel %vm8591, %v8593, %v8594
      %v8596 = vrot.slane %v8594, 4
      %v8597 = vrot.slane %v7715, 5
      %v8598 = vsel %vm8591, %v8596, %v8597
      %v8599 = vrot.slane %v7716, 5
      %v8600 = vrot.slane %v8599, 4
      %v8601 = vrot.slane %v7717, 5
      %v8602 = vsel %vm8591, %v8600, %v8601
      %v8603 = vrot.slane %v8601, 4
      %v8604 = vrot.slane %v7718, 5
      %v8605 = vsel %vm8591, %v8603, %v8604
      %v8606 = vrot.slane %v7719, 5
      %v8607 = vrot.slane %v8606, 4
      %v8608 = vrot.slane %v7720, 5
      %v8609 = vsel %vm8591, %v8607, %v8608
      %v8610 = vrot.slane %v8608, 4
      %v8611 = vrot.slane %v7721, 5
      %v8612 = vsel %vm8591, %v8610, %v8611
      %v8613 = vrot.slane %v7722, 5
      %v8614 = vrot.slane %v8613, 4
      %v8615 = vrot.slane %v7723, 5
      %v8616 = vsel %vm8591, %v8614, %v8615
      %v8617 = vrot.slane %v8615, 4
      %v8618 = vrot.slane %v7724, 5
      %v8619 = vsel %vm8591, %v8617, %v8618
      %v8620 = vrot.slane %v7725, 5
      %v8621 = vrot.slane %v8620, 4
      %v8622 = vrot.slane %v7726, 5
      %v8623 = vsel %vm8591, %v8621, %v8622
      %v8624 = vrot.slane %v8622, 4
      %v8625 = vrot.slane %v7727, 5
      %v8626 = vsel %vm8591, %v8624, %v8625
      %v8627 = vrot.slane %v7728, 5
      %v8628 = vrot.slane %v8627, 4
      %v8629 = vrot.slane %v7729, 5
      %v8630 = vsel %vm8591, %v8628, %v8629
      %v8631 = vrot.slane %v8629, 4
      %v8632 = vrot.slane %v7730, 5
      %v8633 = vsel %vm8591, %v8631, %v8632
      %v8634 = vrot.slane %v7731, 5
      %v8635 = vrot.slane %v8634, 4
      %v8636 = vrot.slane %v7732, 5
      %v8637 = vsel %vm8591, %v8635, %v8636
      %v8638 = vrot.slane %v8636, 4
      %v8639 = vrot.slane %v7733, 5
      %v8640 = vsel %vm8591, %v8638, %v8639
      %v8641 = vrot.slane %v7734, 5
      %v8642 = vrot.slane %v8641, 4
      %v8643 = vrot.slane %v7735, 5
      %v8644 = vsel %vm8591, %v8642, %v8643
      %v8645 = vrot.slane %v8643, 4
      %v8646 = vrot.slane %v7736, 5
      %v8647 = vsel %vm8591, %v8645, %v8646
      %v8648 = vrot.slane %v7737, 5
      %v8649 = vrot.slane %v8648, 4
      %v8650 = vrot.slane %v7738, 5
      %v8651 = vsel %vm8591, %v8649, %v8650
      %v8652 = vrot.slane %v8650, 4
      %v8653 = vrot.slane %v7739, 5
      %v8654 = vsel %vm8591, %v8652, %v8653
      %v8655 = vrot.slane %v7740, 5
      %v8656 = vrot.slane %v8655, 4
      %v8657 = vrot.slane %v7741, 5
      %v8658 = vsel %vm8591, %v8656, %v8657
      %v8659 = vrot.slane %v8657, 4
      %v8660 = vrot.slane %v7742, 5
      %v8661 = vsel %vm8591, %v8659, %v8660
      %v8662 = vrot.slane %v7743, 5
      %v8663 = vrot.slane %v8662, 4
      %v8664 = vrot.slane %v7744, 5
      %v8665 = vsel %vm8591, %v8663, %v8664
      %v8666 = vrot.slane %v8664, 4
      %v8667 = vrot.slane %v7745, 5
      %v8668 = vsel %vm8591, %v8666, %v8667
      %v8669 = vrot.slane %v7746, 5
      %v8670 = vrot.slane %v8669, 4
      %v8671 = vrot.slane %v7747, 5
      %v8672 = vsel %vm8591, %v8670, %v8671
      %v8673 = vrot.slane %v8671, 4
      %v8674 = vrot.slane %v7748, 5
      %v8675 = vsel %vm8591, %v8673, %v8674
      %v8676 = vrot.slane %v7749, 5
      %v8677 = vrot.slane %v8676, 4
      %v8678 = vrot.slane %v7750, 5
      %v8679 = vsel %vm8591, %v8677, %v8678
      %v8680 = vrot.slane %v8678, 4
      %v8681 = vrot.slane %v7751, 5
      %v8682 = vsel %vm8591, %v8680, %v8681
      %v8683 = vrot.slane %v7752, 5
      %v8684 = vrot.slane %v8683, 4
      %v8685 = vrot.slane %v7753, 5
      %v8686 = vsel %vm8591, %v8684, %v8685
      %v8687 = vrot.slane %v8685, 4
      %v8688 = vrot.slane %v7754, 5
      %v8689 = vsel %vm8591, %v8687, %v8688
      %v8690 = vrot.slane %v7755, 5
      %v8691 = vrot.slane %v8690, 4
      %v8692 = vrot.slane %v7756, 5
      %v8693 = vsel %vm8591, %v8691, %v8692
      %v8694 = vrot.slane %v8692, 4
      %v8695 = vrot.slane %v7757, 5
      %v8696 = vsel %vm8591, %v8694, %v8695
      %v8697 = vrot.slane %v7758, 5
      %v8698 = vrot.slane %v8697, 4
      %v8699 = vrot.slane %v7759, 5
      %v8700 = vsel %vm8591, %v8698, %v8699
      %v8701 = vrot.slane %v8699, 4
      %v8702 = vrot.slane %v7760, 5
      %v8703 = vsel %vm8591, %v8701, %v8702
      %v8704 = vunpack.c.l.b16 %v8595
      %v8705 = vunpack.c.l.b16 %v8598
      %v8706 = vunpack.c.l.b16 %v8602
      %v8707 = vunpack.c.l.b16 %v8605
      %v8708 = vunpack.c.l.b16 %v8609
      %v8709 = vunpack.c.l.b16 %v8612
      %v8710 = vunpack.c.l.b16 %v8616
      %v8711 = vunpack.c.l.b16 %v8619
      %v8712 = vunpack.c.l.b16 %v8623
      %v8713 = vunpack.c.l.b16 %v8626
      %v8714 = vunpack.c.l.b16 %v8630
      %v8715 = vunpack.c.l.b16 %v8633
      %v8716 = vunpack.c.l.b16 %v8637
      %v8717 = vunpack.c.l.b16 %v8640
      %v8718 = vunpack.c.l.b16 %v8644
      %v8719 = vunpack.c.l.b16 %v8647
      %v8720 = vunpack.c.l.b16 %v8651
      %v8721 = vunpack.c.l.b16 %v8654
      %v8722 = vunpack.c.l.b16 %v8658
      %v8723 = vunpack.c.l.b16 %v8661
      %v8724 = vunpack.c.l.b16 %v8665
      %v8725 = vunpack.c.l.b16 %v8668
      %v8726 = vunpack.c.l.b16 %v8672
      %v8727 = vunpack.c.l.b16 %v8675
      %v8728 = vunpack.c.l.b16 %v8679
      %v8729 = vunpack.c.l.b16 %v8682
      %v8730 = vunpack.c.l.b16 %v8686
      %v8731 = vunpack.c.l.b16 %v8689
      %v8732 = vunpack.c.l.b16 %v8693
      %v8733 = vunpack.c.l.b16 %v8696
      %v8734 = vunpack.c.l.b16 %v8700
      %v8735 = vunpack.c.l.b16 %v8703
      %v8736 = vpack.c.b16 %v8705, %v8704
      %v8737 = vpack.c.b16 %v8707, %v8706
      %v8738 = vpack.c.b16 %v8709, %v8708
      %v8739 = vpack.c.b16 %v8711, %v8710
      %v8740 = vpack.c.b16 %v8713, %v8712
      %v8741 = vpack.c.b16 %v8715, %v8714
      %v8742 = vpack.c.b16 %v8717, %v8716
      %v8743 = vpack.c.b16 %v8719, %v8718
      %v8744 = vpack.c.b16 %v8721, %v8720
      %v8745 = vpack.c.b16 %v8723, %v8722
      %v8746 = vpack.c.b16 %v8725, %v8724
      %v8747 = vpack.c.b16 %v8727, %v8726
      %v8748 = vpack.c.b16 %v8729, %v8728
      %v8749 = vpack.c.b16 %v8731, %v8730
      %v8750 = vpack.c.b16 %v8733, %v8732
      %v8751 = vpack.c.b16 %v8735, %v8734
      %v8753 = vsel %vm8211, %v8736, 0
      %v8756 = vsel %vm8211, %v8737, 0
      %v8759 = vsel %vm8211, %v8738, 0
      %v8762 = vsel %vm8211, %v8739, 0
      %v8765 = vsel %vm8211, %v8740, 0
      %v8768 = vsel %vm8211, %v8741, 0
      %v8771 = vsel %vm8211, %v8742, 0
      %v8774 = vsel %vm8211, %v8743, 0
      %v8777 = vsel %vm8211, %v8744, 0
      %v8780 = vsel %vm8211, %v8745, 0
      %v8783 = vsel %vm8211, %v8746, 0
      %v8786 = vsel %vm8211, %v8747, 0
      %v8789 = vsel %vm8211, %v8748, 0
      %v8792 = vsel %vm8211, %v8749, 0
      %v8795 = vsel %vm8211, %v8750, 0
      %v8798 = vsel %vm8211, %v8751, 0
      %v8801 = vsel %vm8260, %v7769, 0
      %8803 = vmatpush.bf16.msra.mxu0 0
      %8804 = vmatpush.bf16.msra.mxu0 0
      %8805 = vmatpush.bf16.msra.mxu0 0
      %8806 = vmatpush.bf16.msra.mxu0 0
      %8807 = vmatpush.bf16.msra.mxu0 0
      %8808 = vmatpush.bf16.msra.mxu0 0
      %8809 = vmatpush.bf16.msra.mxu0 0
      %8810 = vmatpush.bf16.msra.mxu0 %v8801
      %8811 = vmatmul.bf16.gmra.mxu0 %v8753
      %v8812 = vpop.f32.mrf.mxu0
      %v8813 = vadd.f32 0.0, %v8812
      %v8814 = vpop.f32.mrf.mxu0
      %v8815 = vadd.f32 0.0, %v8814
      %8816 = vmatmul.bf16.gmra.mxu0 %v8756
      %v8817 = vpop.f32.mrf.mxu0
      %v8818 = vadd.f32 0.0, %v8817
      %v8819 = vpop.f32.mrf.mxu0
      %v8820 = vadd.f32 0.0, %v8819
      %8821 = vmatmul.bf16.gmra.mxu0 %v8759
      %v8822 = vpop.f32.mrf.mxu0
      %v8823 = vadd.f32 0.0, %v8822
      %v8824 = vpop.f32.mrf.mxu0
      %v8825 = vadd.f32 0.0, %v8824
      %8826 = vmatmul.bf16.gmra.mxu0 %v8762
      %v8827 = vpop.f32.mrf.mxu0
      %v8828 = vadd.f32 0.0, %v8827
      %v8829 = vpop.f32.mrf.mxu0
      %v8830 = vadd.f32 0.0, %v8829
      %8831 = vmatmul.bf16.gmra.mxu0 %v8765
      %v8832 = vpop.f32.mrf.mxu0
      %v8833 = vadd.f32 0.0, %v8832
      %v8834 = vpop.f32.mrf.mxu0
      %v8835 = vadd.f32 0.0, %v8834
      %8836 = vmatmul.bf16.gmra.mxu0 %v8768
      %v8837 = vpop.f32.mrf.mxu0
      %v8838 = vadd.f32 0.0, %v8837
      %v8839 = vpop.f32.mrf.mxu0
      %v8840 = vadd.f32 0.0, %v8839
      %8841 = vmatmul.bf16.gmra.mxu0 %v8771
      %v8842 = vpop.f32.mrf.mxu0
      %v8843 = vadd.f32 0.0, %v8842
      %v8844 = vpop.f32.mrf.mxu0
      %v8845 = vadd.f32 0.0, %v8844
      %8846 = vmatmul.bf16.gmra.mxu0 %v8774
      %v8847 = vpop.f32.mrf.mxu0
      %v8848 = vadd.f32 0.0, %v8847
      %v8849 = vpop.f32.mrf.mxu0
      %v8850 = vadd.f32 0.0, %v8849
      %8851 = vmatmul.bf16.gmra.mxu0 %v8777
      %v8852 = vpop.f32.mrf.mxu0
      %v8853 = vadd.f32 0.0, %v8852
      %v8854 = vpop.f32.mrf.mxu0
      %v8855 = vadd.f32 0.0, %v8854
      %8856 = vmatmul.bf16.gmra.mxu0 %v8780
      %v8857 = vpop.f32.mrf.mxu0
      %v8858 = vadd.f32 0.0, %v8857
      %v8859 = vpop.f32.mrf.mxu0
      %v8860 = vadd.f32 0.0, %v8859
      %8861 = vmatmul.bf16.gmra.mxu0 %v8783
      %v8862 = vpop.f32.mrf.mxu0
      %v8863 = vadd.f32 0.0, %v8862
      %v8864 = vpop.f32.mrf.mxu0
      %v8865 = vadd.f32 0.0, %v8864
      %8866 = vmatmul.bf16.gmra.mxu0 %v8786
      %v8867 = vpop.f32.mrf.mxu0
      %v8868 = vadd.f32 0.0, %v8867
      %v8869 = vpop.f32.mrf.mxu0
      %v8870 = vadd.f32 0.0, %v8869
      %8871 = vmatmul.bf16.gmra.mxu0 %v8789
      %v8872 = vpop.f32.mrf.mxu0
      %v8873 = vadd.f32 0.0, %v8872
      %v8874 = vpop.f32.mrf.mxu0
      %v8875 = vadd.f32 0.0, %v8874
      %8876 = vmatmul.bf16.gmra.mxu0 %v8792
      %v8877 = vpop.f32.mrf.mxu0
      %v8878 = vadd.f32 0.0, %v8877
      %v8879 = vpop.f32.mrf.mxu0
      %v8880 = vadd.f32 0.0, %v8879
      %8881 = vmatmul.bf16.gmra.mxu0 %v8795
      %v8882 = vpop.f32.mrf.mxu0
      %v8883 = vadd.f32 0.0, %v8882
      %v8884 = vpop.f32.mrf.mxu0
      %v8885 = vadd.f32 0.0, %v8884
      %8886 = vmatmul.bf16.gmra.mxu0 %v8798
      %v8887 = vpop.f32.mrf.mxu0
      %v8888 = vadd.f32 0.0, %v8887
      %v8889 = vpop.f32.mrf.mxu0
      %v8890 = vadd.f32 0.0, %v8889
      %8891 = vdwg.mxu0
      %v8892 = vadd.f32 %v8494, %v8813
      %v8893 = vadd.f32 %v8496, %v8815
      %v8894 = vadd.f32 %v8499, %v8818
      %v8895 = vadd.f32 %v8501, %v8820
      %v8896 = vadd.f32 %v8504, %v8823
      %v8897 = vadd.f32 %v8506, %v8825
      %v8898 = vadd.f32 %v8509, %v8828
      %v8899 = vadd.f32 %v8511, %v8830
      %v8900 = vadd.f32 %v8514, %v8833
      %v8901 = vadd.f32 %v8516, %v8835
      %v8902 = vadd.f32 %v8519, %v8838
      %v8903 = vadd.f32 %v8521, %v8840
      %v8904 = vadd.f32 %v8524, %v8843
      %v8905 = vadd.f32 %v8526, %v8845
      %v8906 = vadd.f32 %v8529, %v8848
      %v8907 = vadd.f32 %v8531, %v8850
      %v8908 = vadd.f32 %v8534, %v8853
      %v8909 = vadd.f32 %v8536, %v8855
      %v8910 = vadd.f32 %v8539, %v8858
      %v8911 = vadd.f32 %v8541, %v8860
      %v8912 = vadd.f32 %v8544, %v8863
      %v8913 = vadd.f32 %v8546, %v8865
      %v8914 = vadd.f32 %v8549, %v8868
      %v8915 = vadd.f32 %v8551, %v8870
      %v8916 = vadd.f32 %v8554, %v8873
      %v8917 = vadd.f32 %v8556, %v8875
      %v8918 = vadd.f32 %v8559, %v8878
      %v8919 = vadd.f32 %v8561, %v8880
      %v8920 = vadd.f32 %v8564, %v8883
      %v8921 = vadd.f32 %v8566, %v8885
      %v8922 = vadd.f32 %v8569, %v8888
      %v8923 = vadd.f32 %v8571, %v8890
      %v8926 = vunpack.c.l.b16 %v7761
      %v8927 = vunpack.c.l.b16 %v7762
      %v8928 = vpack.c.b16 %v8927, %v8926
      %v8930 = vsel %vm8211, %v8928, 0
      %v8933 = vsel %vm8260, %v7770, 0
      %8935 = vmatpush.bf16.msra.mxu0 0
      %8936 = vmatpush.bf16.msra.mxu0 0
      %8937 = vmatpush.bf16.msra.mxu0 0
      %8938 = vmatpush.bf16.msra.mxu0 0
      %8939 = vmatpush.bf16.msra.mxu0 0
      %8940 = vmatpush.bf16.msra.mxu0 0
      %8941 = vmatpush.bf16.msra.mxu0 0
      %8942 = vmatpush.bf16.msra.mxu0 %v8933
      %8943 = vmatmul.bf16.gmra.mxu0 %v8437
      %v8944 = vpop.f32.mrf.mxu0
      %v8945 = vadd.f32 0.0, %v8944
      %v8946 = vpop.f32.mrf.mxu0
      %v8947 = vadd.f32 0.0, %v8946
      %8948 = vmatmul.bf16.gmra.mxu0 %v8440
      %v8949 = vpop.f32.mrf.mxu0
      %v8950 = vadd.f32 0.0, %v8949
      %v8951 = vpop.f32.mrf.mxu0
      %v8952 = vadd.f32 0.0, %v8951
      %8953 = vmatmul.bf16.gmra.mxu0 %v8443
      %v8954 = vpop.f32.mrf.mxu0
      %v8955 = vadd.f32 0.0, %v8954
      %v8956 = vpop.f32.mrf.mxu0
      %v8957 = vadd.f32 0.0, %v8956
      %8958 = vmatmul.bf16.gmra.mxu0 %v8446
      %v8959 = vpop.f32.mrf.mxu0
      %v8960 = vadd.f32 0.0, %v8959
      %v8961 = vpop.f32.mrf.mxu0
      %v8962 = vadd.f32 0.0, %v8961
      %8963 = vmatmul.bf16.gmra.mxu0 %v8449
      %v8964 = vpop.f32.mrf.mxu0
      %v8965 = vadd.f32 0.0, %v8964
      %v8966 = vpop.f32.mrf.mxu0
      %v8967 = vadd.f32 0.0, %v8966
      %8968 = vmatmul.bf16.gmra.mxu0 %v8452
      %v8969 = vpop.f32.mrf.mxu0
      %v8970 = vadd.f32 0.0, %v8969
      %v8971 = vpop.f32.mrf.mxu0
      %v8972 = vadd.f32 0.0, %v8971
      %8973 = vmatmul.bf16.gmra.mxu0 %v8455
      %v8974 = vpop.f32.mrf.mxu0
      %v8975 = vadd.f32 0.0, %v8974
      %v8976 = vpop.f32.mrf.mxu0
      %v8977 = vadd.f32 0.0, %v8976
      %8978 = vmatmul.bf16.gmra.mxu0 %v8458
      %v8979 = vpop.f32.mrf.mxu0
      %v8980 = vadd.f32 0.0, %v8979
      %v8981 = vpop.f32.mrf.mxu0
      %v8982 = vadd.f32 0.0, %v8981
      %8983 = vmatmul.bf16.gmra.mxu0 %v8461
      %v8984 = vpop.f32.mrf.mxu0
      %v8985 = vadd.f32 0.0, %v8984
      %v8986 = vpop.f32.mrf.mxu0
      %v8987 = vadd.f32 0.0, %v8986
      %8988 = vmatmul.bf16.gmra.mxu0 %v8464
      %v8989 = vpop.f32.mrf.mxu0
      %v8990 = vadd.f32 0.0, %v8989
      %v8991 = vpop.f32.mrf.mxu0
      %v8992 = vadd.f32 0.0, %v8991
      %8993 = vmatmul.bf16.gmra.mxu0 %v8467
      %v8994 = vpop.f32.mrf.mxu0
      %v8995 = vadd.f32 0.0, %v8994
      %v8996 = vpop.f32.mrf.mxu0
      %v8997 = vadd.f32 0.0, %v8996
      %8998 = vmatmul.bf16.gmra.mxu0 %v8470
      %v8999 = vpop.f32.mrf.mxu0
      %v9000 = vadd.f32 0.0, %v8999
      %v9001 = vpop.f32.mrf.mxu0
      %v9002 = vadd.f32 0.0, %v9001
      %9003 = vmatmul.bf16.gmra.mxu0 %v8473
      %v9004 = vpop.f32.mrf.mxu0
      %v9005 = vadd.f32 0.0, %v9004
      %v9006 = vpop.f32.mrf.mxu0
      %v9007 = vadd.f32 0.0, %v9006
      %9008 = vmatmul.bf16.gmra.mxu0 %v8476
      %v9009 = vpop.f32.mrf.mxu0
      %v9010 = vadd.f32 0.0, %v9009
      %v9011 = vpop.f32.mrf.mxu0
      %v9012 = vadd.f32 0.0, %v9011
      %9013 = vmatmul.bf16.gmra.mxu0 %v8479
      %v9014 = vpop.f32.mrf.mxu0
      %v9015 = vadd.f32 0.0, %v9014
      %v9016 = vpop.f32.mrf.mxu0
      %v9017 = vadd.f32 0.0, %v9016
      %9018 = vmatmul.bf16.gmra.mxu0 %v8930
      %v9019 = vpop.f32.mrf.mxu0
      %v9020 = vadd.f32 0.0, %v9019
      %v9021 = vpop.f32.mrf.mxu0
      %v9022 = vadd.f32 0.0, %v9021
      %9023 = vdwg.mxu0
      %v9024 = vadd.f32 %v8892, %v8945
      %v9025 = vadd.f32 %v8893, %v8947
      %v9026 = vadd.f32 %v8894, %v8950
      %v9027 = vadd.f32 %v8895, %v8952
      %v9028 = vadd.f32 %v8896, %v8955
      %v9029 = vadd.f32 %v8897, %v8957
      %v9030 = vadd.f32 %v8898, %v8960
      %v9031 = vadd.f32 %v8899, %v8962
      %v9032 = vadd.f32 %v8900, %v8965
      %v9033 = vadd.f32 %v8901, %v8967
      %v9034 = vadd.f32 %v8902, %v8970
      %v9035 = vadd.f32 %v8903, %v8972
      %v9036 = vadd.f32 %v8904, %v8975
      %v9037 = vadd.f32 %v8905, %v8977
      %v9038 = vadd.f32 %v8906, %v8980
      %v9039 = vadd.f32 %v8907, %v8982
      %v9040 = vadd.f32 %v8908, %v8985
      %v9041 = vadd.f32 %v8909, %v8987
      %v9042 = vadd.f32 %v8910, %v8990
      %v9043 = vadd.f32 %v8911, %v8992
      %v9044 = vadd.f32 %v8912, %v8995
      %v9045 = vadd.f32 %v8913, %v8997
      %v9046 = vadd.f32 %v8914, %v9000
      %v9047 = vadd.f32 %v8915, %v9002
      %v9048 = vadd.f32 %v8916, %v9005
      %v9049 = vadd.f32 %v8917, %v9007
      %v9050 = vadd.f32 %v8918, %v9010
      %v9051 = vadd.f32 %v8919, %v9012
      %v9052 = vadd.f32 %v8920, %v9015
      %v9053 = vadd.f32 %v8921, %v9017
      %v9054 = vadd.f32 %v8922, %v9020
      %v9055 = vadd.f32 %v8923, %v9022
      %v9057 = vshrl.u32 %v7761, 16
      %v9059 = vrot.slane %v9057, 4
      %v9060 = vshll.u32 %v7761, 16
      %v9062 = vrot.slane %v9060, 5
      %v9063 = vor.u32 %v9059, %v9062
      %v9064 = vrot.slane %v9063, 4
      %v9066 = vshll.u32 %v7762, 16
      %v9068 = vrot.slane %v9066, 5
      %v9069 = vsel %vm7778, %v9064, %v9068
      %v9070 = vshrl.u32 %v7762, 16
      %v9072 = vrot.slane %v9070, 4
      %v9073 = vor.u32 %v9072, %v9068
      %v9074 = vrot.slane %v9073, 4
      %v9076 = vshll.u32 %v7763, 16
      %v9078 = vrot.slane %v9076, 5
      %v9079 = vsel %vm7778, %v9074, %v9078
      %v9080 = vunpack.c.l.b16 %v9069
      %v9081 = vunpack.c.l.b16 %v9079
      %v9082 = vpack.c.b16 %v9081, %v9080
      %v9084 = vsel %vm8211, %v9082, 0
      %v9087 = vsel %vm8260, %v7771, 0
      %9089 = vmatpush.bf16.msra.mxu0 0
      %9090 = vmatpush.bf16.msra.mxu0 0
      %9091 = vmatpush.bf16.msra.mxu0 0
      %9092 = vmatpush.bf16.msra.mxu0 0
      %9093 = vmatpush.bf16.msra.mxu0 0
      %9094 = vmatpush.bf16.msra.mxu0 0
      %9095 = vmatpush.bf16.msra.mxu0 0
      %9096 = vmatpush.bf16.msra.mxu0 %v9087
      %9097 = vmatmul.bf16.gmra.mxu0 %v8216
      %v9098 = vpop.f32.mrf.mxu0
      %v9099 = vadd.f32 0.0, %v9098
      %v9100 = vpop.f32.mrf.mxu0
      %v9101 = vadd.f32 0.0, %v9100
      %9102 = vmatmul.bf16.gmra.mxu0 %v8219
      %v9103 = vpop.f32.mrf.mxu0
      %v9104 = vadd.f32 0.0, %v9103
      %v9105 = vpop.f32.mrf.mxu0
      %v9106 = vadd.f32 0.0, %v9105
      %9107 = vmatmul.bf16.gmra.mxu0 %v8222
      %v9108 = vpop.f32.mrf.mxu0
      %v9109 = vadd.f32 0.0, %v9108
      %v9110 = vpop.f32.mrf.mxu0
      %v9111 = vadd.f32 0.0, %v9110
      %9112 = vmatmul.bf16.gmra.mxu0 %v8225
      %v9113 = vpop.f32.mrf.mxu0
      %v9114 = vadd.f32 0.0, %v9113
      %v9115 = vpop.f32.mrf.mxu0
      %v9116 = vadd.f32 0.0, %v9115
      %9117 = vmatmul.bf16.gmra.mxu0 %v8228
      %v9118 = vpop.f32.mrf.mxu0
      %v9119 = vadd.f32 0.0, %v9118
      %v9120 = vpop.f32.mrf.mxu0
      %v9121 = vadd.f32 0.0, %v9120
      %9122 = vmatmul.bf16.gmra.mxu0 %v8231
      %v9123 = vpop.f32.mrf.mxu0
      %v9124 = vadd.f32 0.0, %v9123
      %v9125 = vpop.f32.mrf.mxu0
      %v9126 = vadd.f32 0.0, %v9125
      %9127 = vmatmul.bf16.gmra.mxu0 %v8234
      %v9128 = vpop.f32.mrf.mxu0
      %v9129 = vadd.f32 0.0, %v9128
      %v9130 = vpop.f32.mrf.mxu0
      %v9131 = vadd.f32 0.0, %v9130
      %9132 = vmatmul.bf16.gmra.mxu0 %v8237
      %v9133 = vpop.f32.mrf.mxu0
      %v9134 = vadd.f32 0.0, %v9133
      %v9135 = vpop.f32.mrf.mxu0
      %v9136 = vadd.f32 0.0, %v9135
      %9137 = vmatmul.bf16.gmra.mxu0 %v8240
      %v9138 = vpop.f32.mrf.mxu0
      %v9139 = vadd.f32 0.0, %v9138
      %v9140 = vpop.f32.mrf.mxu0
      %v9141 = vadd.f32 0.0, %v9140
      %9142 = vmatmul.bf16.gmra.mxu0 %v8243
      %v9143 = vpop.f32.mrf.mxu0
      %v9144 = vadd.f32 0.0, %v9143
      %v9145 = vpop.f32.mrf.mxu0
      %v9146 = vadd.f32 0.0, %v9145
      %9147 = vmatmul.bf16.gmra.mxu0 %v8246
      %v9148 = vpop.f32.mrf.mxu0
      %v9149 = vadd.f32 0.0, %v9148
      %v9150 = vpop.f32.mrf.mxu0
      %v9151 = vadd.f32 0.0, %v9150
      %9152 = vmatmul.bf16.gmra.mxu0 %v8249
      %v9153 = vpop.f32.mrf.mxu0
      %v9154 = vadd.f32 0.0, %v9153
      %v9155 = vpop.f32.mrf.mxu0
      %v9156 = vadd.f32 0.0, %v9155
      %9157 = vmatmul.bf16.gmra.mxu0 %v8252
      %v9158 = vpop.f32.mrf.mxu0
      %v9159 = vadd.f32 0.0, %v9158
      %v9160 = vpop.f32.mrf.mxu0
      %v9161 = vadd.f32 0.0, %v9160
      %9162 = vmatmul.bf16.gmra.mxu0 %v8255
      %v9163 = vpop.f32.mrf.mxu0
      %v9164 = vadd.f32 0.0, %v9163
      %v9165 = vpop.f32.mrf.mxu0
      %v9166 = vadd.f32 0.0, %v9165
      %9167 = vmatmul.bf16.gmra.mxu0 %v8258
      %v9168 = vpop.f32.mrf.mxu0
      %v9169 = vadd.f32 0.0, %v9168
      %v9170 = vpop.f32.mrf.mxu0
      %v9171 = vadd.f32 0.0, %v9170
      %9172 = vmatmul.bf16.gmra.mxu0 %v9084
      %v9173 = vpop.f32.mrf.mxu0
      %v9174 = vadd.f32 0.0, %v9173
      %v9175 = vpop.f32.mrf.mxu0
      %v9176 = vadd.f32 0.0, %v9175
      %9177 = vdwg.mxu0
      %v9178 = vadd.f32 %v9024, %v9099
      %v9179 = vadd.f32 %v9025, %v9101
      %v9180 = vadd.f32 %v9026, %v9104
      %v9181 = vadd.f32 %v9027, %v9106
      %v9182 = vadd.f32 %v9028, %v9109
      %v9183 = vadd.f32 %v9029, %v9111
      %v9184 = vadd.f32 %v9030, %v9114
      %v9185 = vadd.f32 %v9031, %v9116
      %v9186 = vadd.f32 %v9032, %v9119
      %v9187 = vadd.f32 %v9033, %v9121
      %v9188 = vadd.f32 %v9034, %v9124
      %v9189 = vadd.f32 %v9035, %v9126
      %v9190 = vadd.f32 %v9036, %v9129
      %v9191 = vadd.f32 %v9037, %v9131
      %v9192 = vadd.f32 %v9038, %v9134
      %v9193 = vadd.f32 %v9039, %v9136
      %v9194 = vadd.f32 %v9040, %v9139
      %v9195 = vadd.f32 %v9041, %v9141
      %v9196 = vadd.f32 %v9042, %v9144
      %v9197 = vadd.f32 %v9043, %v9146
      %v9198 = vadd.f32 %v9044, %v9149
      %v9199 = vadd.f32 %v9045, %v9151
      %v9200 = vadd.f32 %v9046, %v9154
      %v9201 = vadd.f32 %v9047, %v9156
      %v9202 = vadd.f32 %v9048, %v9159
      %v9203 = vadd.f32 %v9049, %v9161
      %v9204 = vadd.f32 %v9050, %v9164
      %v9205 = vadd.f32 %v9051, %v9166
      %v9206 = vadd.f32 %v9052, %v9169
      %v9207 = vadd.f32 %v9053, %v9171
      %v9208 = vadd.f32 %v9054, %v9174
      %v9209 = vadd.f32 %v9055, %v9176
      %v9211 = vrot.slane %v7761, 5
      %v9212 = vrot.slane %v9211, 4
      %v9213 = vrot.slane %v7762, 5
      %v9214 = vsel %vm8591, %v9212, %v9213
      %v9215 = vrot.slane %v9213, 4
      %v9216 = vrot.slane %v7763, 5
      %v9217 = vsel %vm8591, %v9215, %v9216
      %v9218 = vunpack.c.l.b16 %v9214
      %v9219 = vunpack.c.l.b16 %v9217
      %v9220 = vpack.c.b16 %v9219, %v9218
      %v9222 = vsel %vm8211, %v9220, 0
      %v9225 = vsel %vm8260, %v7772, 0
      %9227 = vmatpush.bf16.msra.mxu0 0
      %9228 = vmatpush.bf16.msra.mxu0 0
      %9229 = vmatpush.bf16.msra.mxu0 0
      %9230 = vmatpush.bf16.msra.mxu0 0
      %9231 = vmatpush.bf16.msra.mxu0 0
      %9232 = vmatpush.bf16.msra.mxu0 0
      %9233 = vmatpush.bf16.msra.mxu0 0
      %9234 = vmatpush.bf16.msra.mxu0 %v9225
      %9235 = vmatmul.bf16.gmra.mxu0 %v8756
      %v9236 = vpop.f32.mrf.mxu0
      %v9237 = vadd.f32 0.0, %v9236
      %v9238 = vpop.f32.mrf.mxu0
      %v9239 = vadd.f32 0.0, %v9238
      %9240 = vmatmul.bf16.gmra.mxu0 %v8759
      %v9241 = vpop.f32.mrf.mxu0
      %v9242 = vadd.f32 0.0, %v9241
      %v9243 = vpop.f32.mrf.mxu0
      %v9244 = vadd.f32 0.0, %v9243
      %9245 = vmatmul.bf16.gmra.mxu0 %v8762
      %v9246 = vpop.f32.mrf.mxu0
      %v9247 = vadd.f32 0.0, %v9246
      %v9248 = vpop.f32.mrf.mxu0
      %v9249 = vadd.f32 0.0, %v9248
      %9250 = vmatmul.bf16.gmra.mxu0 %v8765
      %v9251 = vpop.f32.mrf.mxu0
      %v9252 = vadd.f32 0.0, %v9251
      %v9253 = vpop.f32.mrf.mxu0
      %v9254 = vadd.f32 0.0, %v9253
      %9255 = vmatmul.bf16.gmra.mxu0 %v8768
      %v9256 = vpop.f32.mrf.mxu0
      %v9257 = vadd.f32 0.0, %v9256
      %v9258 = vpop.f32.mrf.mxu0
      %v9259 = vadd.f32 0.0, %v9258
      %9260 = vmatmul.bf16.gmra.mxu0 %v8771
      %v9261 = vpop.f32.mrf.mxu0
      %v9262 = vadd.f32 0.0, %v9261
      %v9263 = vpop.f32.mrf.mxu0
      %v9264 = vadd.f32 0.0, %v9263
      %9265 = vmatmul.bf16.gmra.mxu0 %v8774
      %v9266 = vpop.f32.mrf.mxu0
      %v9267 = vadd.f32 0.0, %v9266
      %v9268 = vpop.f32.mrf.mxu0
      %v9269 = vadd.f32 0.0, %v9268
      %9270 = vmatmul.bf16.gmra.mxu0 %v8777
      %v9271 = vpop.f32.mrf.mxu0
      %v9272 = vadd.f32 0.0, %v9271
      %v9273 = vpop.f32.mrf.mxu0
      %v9274 = vadd.f32 0.0, %v9273
      %9275 = vmatmul.bf16.gmra.mxu0 %v8780
      %v9276 = vpop.f32.mrf.mxu0
      %v9277 = vadd.f32 0.0, %v9276
      %v9278 = vpop.f32.mrf.mxu0
      %v9279 = vadd.f32 0.0, %v9278
      %9280 = vmatmul.bf16.gmra.mxu0 %v8783
      %v9281 = vpop.f32.mrf.mxu0
      %v9282 = vadd.f32 0.0, %v9281
      %v9283 = vpop.f32.mrf.mxu0
      %v9284 = vadd.f32 0.0, %v9283
      %9285 = vmatmul.bf16.gmra.mxu0 %v8786
      %v9286 = vpop.f32.mrf.mxu0
      %v9287 = vadd.f32 0.0, %v9286
      %v9288 = vpop.f32.mrf.mxu0
      %v9289 = vadd.f32 0.0, %v9288
      %9290 = vmatmul.bf16.gmra.mxu0 %v8789
      %v9291 = vpop.f32.mrf.mxu0
      %v9292 = vadd.f32 0.0, %v9291
      %v9293 = vpop.f32.mrf.mxu0
      %v9294 = vadd.f32 0.0, %v9293
      %9295 = vmatmul.bf16.gmra.mxu0 %v8792
      %v9296 = vpop.f32.mrf.mxu0
      %v9297 = vadd.f32 0.0, %v9296
      %v9298 = vpop.f32.mrf.mxu0
      %v9299 = vadd.f32 0.0, %v9298
      %9300 = vmatmul.bf16.gmra.mxu0 %v8795
      %v9301 = vpop.f32.mrf.mxu0
      %v9302 = vadd.f32 0.0, %v9301
      %v9303 = vpop.f32.mrf.mxu0
      %v9304 = vadd.f32 0.0, %v9303
      %9305 = vmatmul.bf16.gmra.mxu0 %v8798
      %v9306 = vpop.f32.mrf.mxu0
      %v9307 = vadd.f32 0.0, %v9306
      %v9308 = vpop.f32.mrf.mxu0
      %v9309 = vadd.f32 0.0, %v9308
      %9310 = vmatmul.bf16.gmra.mxu0 %v9222
      %v9311 = vpop.f32.mrf.mxu0
      %v9312 = vadd.f32 0.0, %v9311
      %v9313 = vpop.f32.mrf.mxu0
      %v9314 = vadd.f32 0.0, %v9313
      %9315 = vdwg.mxu0
      %v9316 = vadd.f32 %v9178, %v9237
      %v9317 = vadd.f32 %v9179, %v9239
      %v9318 = vadd.f32 %v9180, %v9242
      %v9319 = vadd.f32 %v9181, %v9244
      %v9320 = vadd.f32 %v9182, %v9247
      %v9321 = vadd.f32 %v9183, %v9249
      %v9322 = vadd.f32 %v9184, %v9252
      %v9323 = vadd.f32 %v9185, %v9254
      %v9324 = vadd.f32 %v9186, %v9257
      %v9325 = vadd.f32 %v9187, %v9259
      %v9326 = vadd.f32 %v9188, %v9262
      %v9327 = vadd.f32 %v9189, %v9264
      %v9328 = vadd.f32 %v9190, %v9267
      %v9329 = vadd.f32 %v9191, %v9269
      %v9330 = vadd.f32 %v9192, %v9272
      %v9331 = vadd.f32 %v9193, %v9274
      %v9332 = vadd.f32 %v9194, %v9277
      %v9333 = vadd.f32 %v9195, %v9279
      %v9334 = vadd.f32 %v9196, %v9282
      %v9335 = vadd.f32 %v9197, %v9284
      %v9336 = vadd.f32 %v9198, %v9287
      %v9337 = vadd.f32 %v9199, %v9289
      %v9338 = vadd.f32 %v9200, %v9292
      %v9339 = vadd.f32 %v9201, %v9294
      %v9340 = vadd.f32 %v9202, %v9297
      %v9341 = vadd.f32 %v9203, %v9299
      %v9342 = vadd.f32 %v9204, %v9302
      %v9343 = vadd.f32 %v9205, %v9304
      %v9344 = vadd.f32 %v9206, %v9307
      %v9345 = vadd.f32 %v9207, %v9309
      %v9346 = vadd.f32 %v9208, %v9312
      %v9347 = vadd.f32 %v9209, %v9314
      %v9350 = vunpack.c.l.b16 %v7764
      %v9351 = vunpack.c.l.b16 %v7765
      %v9352 = vpack.c.b16 %v9351, %v9350
      %v9354 = vsel %vm8211, %v9352, 0
      %v9357 = vsel %vm8260, %v7773, 0
      %9359 = vmatpush.bf16.msra.mxu0 0
      %9360 = vmatpush.bf16.msra.mxu0 0
      %9361 = vmatpush.bf16.msra.mxu0 0
      %9362 = vmatpush.bf16.msra.mxu0 0
      %9363 = vmatpush.bf16.msra.mxu0 0
      %9364 = vmatpush.bf16.msra.mxu0 0
      %9365 = vmatpush.bf16.msra.mxu0 0
      %9366 = vmatpush.bf16.msra.mxu0 %v9357
      %9367 = vmatmul.bf16.gmra.mxu0 %v8440
      %v9368 = vpop.f32.mrf.mxu0
      %v9369 = vadd.f32 0.0, %v9368
      %v9370 = vpop.f32.mrf.mxu0
      %v9371 = vadd.f32 0.0, %v9370
      %9372 = vmatmul.bf16.gmra.mxu0 %v8443
      %v9373 = vpop.f32.mrf.mxu0
      %v9374 = vadd.f32 0.0, %v9373
      %v9375 = vpop.f32.mrf.mxu0
      %v9376 = vadd.f32 0.0, %v9375
      %9377 = vmatmul.bf16.gmra.mxu0 %v8446
      %v9378 = vpop.f32.mrf.mxu0
      %v9379 = vadd.f32 0.0, %v9378
      %v9380 = vpop.f32.mrf.mxu0
      %v9381 = vadd.f32 0.0, %v9380
      %9382 = vmatmul.bf16.gmra.mxu0 %v8449
      %v9383 = vpop.f32.mrf.mxu0
      %v9384 = vadd.f32 0.0, %v9383
      %v9385 = vpop.f32.mrf.mxu0
      %v9386 = vadd.f32 0.0, %v9385
      %9387 = vmatmul.bf16.gmra.mxu0 %v8452
      %v9388 = vpop.f32.mrf.mxu0
      %v9389 = vadd.f32 0.0, %v9388
      %v9390 = vpop.f32.mrf.mxu0
      %v9391 = vadd.f32 0.0, %v9390
      %9392 = vmatmul.bf16.gmra.mxu0 %v8455
      %v9393 = vpop.f32.mrf.mxu0
      %v9394 = vadd.f32 0.0, %v9393
      %v9395 = vpop.f32.mrf.mxu0
      %v9396 = vadd.f32 0.0, %v9395
      %9397 = vmatmul.bf16.gmra.mxu0 %v8458
      %v9398 = vpop.f32.mrf.mxu0
      %v9399 = vadd.f32 0.0, %v9398
      %v9400 = vpop.f32.mrf.mxu0
      %v9401 = vadd.f32 0.0, %v9400
      %9402 = vmatmul.bf16.gmra.mxu0 %v8461
      %v9403 = vpop.f32.mrf.mxu0
      %v9404 = vadd.f32 0.0, %v9403
      %v9405 = vpop.f32.mrf.mxu0
      %v9406 = vadd.f32 0.0, %v9405
      %9407 = vmatmul.bf16.gmra.mxu0 %v8464
      %v9408 = vpop.f32.mrf.mxu0
      %v9409 = vadd.f32 0.0, %v9408
      %v9410 = vpop.f32.mrf.mxu0
      %v9411 = vadd.f32 0.0, %v9410
      %9412 = vmatmul.bf16.gmra.mxu0 %v8467
      %v9413 = vpop.f32.mrf.mxu0
      %v9414 = vadd.f32 0.0, %v9413
      %v9415 = vpop.f32.mrf.mxu0
      %v9416 = vadd.f32 0.0, %v9415
      %9417 = vmatmul.bf16.gmra.mxu0 %v8470
      %v9418 = vpop.f32.mrf.mxu0
      %v9419 = vadd.f32 0.0, %v9418
      %v9420 = vpop.f32.mrf.mxu0
      %v9421 = vadd.f32 0.0, %v9420
      %9422 = vmatmul.bf16.gmra.mxu0 %v8473
      %v9423 = vpop.f32.mrf.mxu0
      %v9424 = vadd.f32 0.0, %v9423
      %v9425 = vpop.f32.mrf.mxu0
      %v9426 = vadd.f32 0.0, %v9425
      %9427 = vmatmul.bf16.gmra.mxu0 %v8476
      %v9428 = vpop.f32.mrf.mxu0
      %v9429 = vadd.f32 0.0, %v9428
      %v9430 = vpop.f32.mrf.mxu0
      %v9431 = vadd.f32 0.0, %v9430
      %9432 = vmatmul.bf16.gmra.mxu0 %v8479
      %v9433 = vpop.f32.mrf.mxu0
      %v9434 = vadd.f32 0.0, %v9433
      %v9435 = vpop.f32.mrf.mxu0
      %v9436 = vadd.f32 0.0, %v9435
      %9437 = vmatmul.bf16.gmra.mxu0 %v8930
      %v9438 = vpop.f32.mrf.mxu0
      %v9439 = vadd.f32 0.0, %v9438
      %v9440 = vpop.f32.mrf.mxu0
      %v9441 = vadd.f32 0.0, %v9440
      %9442 = vmatmul.bf16.gmra.mxu0 %v9354
      %v9443 = vpop.f32.mrf.mxu0
      %v9444 = vadd.f32 0.0, %v9443
      %v9445 = vpop.f32.mrf.mxu0
      %v9446 = vadd.f32 0.0, %v9445
      %9447 = vdwg.mxu0
      %v9448 = vadd.f32 %v9316, %v9369
      %v9449 = vadd.f32 %v9317, %v9371
      %v9450 = vadd.f32 %v9318, %v9374
      %v9451 = vadd.f32 %v9319, %v9376
      %v9452 = vadd.f32 %v9320, %v9379
      %v9453 = vadd.f32 %v9321, %v9381
      %v9454 = vadd.f32 %v9322, %v9384
      %v9455 = vadd.f32 %v9323, %v9386
      %v9456 = vadd.f32 %v9324, %v9389
      %v9457 = vadd.f32 %v9325, %v9391
      %v9458 = vadd.f32 %v9326, %v9394
      %v9459 = vadd.f32 %v9327, %v9396
      %v9460 = vadd.f32 %v9328, %v9399
      %v9461 = vadd.f32 %v9329, %v9401
      %v9462 = vadd.f32 %v9330, %v9404
      %v9463 = vadd.f32 %v9331, %v9406
      %v9464 = vadd.f32 %v9332, %v9409
      %v9465 = vadd.f32 %v9333, %v9411
      %v9466 = vadd.f32 %v9334, %v9414
      %v9467 = vadd.f32 %v9335, %v9416
      %v9468 = vadd.f32 %v9336, %v9419
      %v9469 = vadd.f32 %v9337, %v9421
      %v9470 = vadd.f32 %v9338, %v9424
      %v9471 = vadd.f32 %v9339, %v9426
      %v9472 = vadd.f32 %v9340, %v9429
      %v9473 = vadd.f32 %v9341, %v9431
      %v9474 = vadd.f32 %v9342, %v9434
      %v9475 = vadd.f32 %v9343, %v9436
      %v9476 = vadd.f32 %v9344, %v9439
      %v9477 = vadd.f32 %v9345, %v9441
      %v9478 = vadd.f32 %v9346, %v9444
      %v9479 = vadd.f32 %v9347, %v9446
      %v9481 = vshrl.u32 %v7764, 16
      %v9483 = vrot.slane %v9481, 4
      %v9484 = vshll.u32 %v7764, 16
      %v9486 = vrot.slane %v9484, 5
      %v9487 = vor.u32 %v9483, %v9486
      %v9488 = vrot.slane %v9487, 4
      %v9490 = vshll.u32 %v7765, 16
      %v9492 = vrot.slane %v9490, 5
      %v9493 = vsel %vm7778, %v9488, %v9492
      %v9494 = vshrl.u32 %v7765, 16
      %v9496 = vrot.slane %v9494, 4
      %v9497 = vor.u32 %v9496, %v9492
      %v9498 = vrot.slane %v9497, 4
      %v9500 = vshll.u32 %v7766, 16
      %v9502 = vrot.slane %v9500, 5
      %v9503 = vsel %vm7778, %v9498, %v9502
      %v9504 = vunpack.c.l.b16 %v9493
      %v9505 = vunpack.c.l.b16 %v9503
      %v9506 = vpack.c.b16 %v9505, %v9504
      %v9508 = vsel %vm8211, %v9506, 0
      %v9511 = vsel %vm8260, %v7774, 0
      %9513 = vmatpush.bf16.msra.mxu0 0
      %9514 = vmatpush.bf16.msra.mxu0 0
      %9515 = vmatpush.bf16.msra.mxu0 0
      %9516 = vmatpush.bf16.msra.mxu0 0
      %9517 = vmatpush.bf16.msra.mxu0 0
      %9518 = vmatpush.bf16.msra.mxu0 0
      %9519 = vmatpush.bf16.msra.mxu0 0
      %9520 = vmatpush.bf16.msra.mxu0 %v9511
      %9521 = vmatmul.bf16.gmra.mxu0 %v8219
      %v9522 = vpop.f32.mrf.mxu0
      %v9523 = vadd.f32 0.0, %v9522
      %v9524 = vpop.f32.mrf.mxu0
      %v9525 = vadd.f32 0.0, %v9524
      %9526 = vmatmul.bf16.gmra.mxu0 %v8222
      %v9527 = vpop.f32.mrf.mxu0
      %v9528 = vadd.f32 0.0, %v9527
      %v9529 = vpop.f32.mrf.mxu0
      %v9530 = vadd.f32 0.0, %v9529
      %9531 = vmatmul.bf16.gmra.mxu0 %v8225
      %v9532 = vpop.f32.mrf.mxu0
      %v9533 = vadd.f32 0.0, %v9532
      %v9534 = vpop.f32.mrf.mxu0
      %v9535 = vadd.f32 0.0, %v9534
      %9536 = vmatmul.bf16.gmra.mxu0 %v8228
      %v9537 = vpop.f32.mrf.mxu0
      %v9538 = vadd.f32 0.0, %v9537
      %v9539 = vpop.f32.mrf.mxu0
      %v9540 = vadd.f32 0.0, %v9539
      %9541 = vmatmul.bf16.gmra.mxu0 %v8231
      %v9542 = vpop.f32.mrf.mxu0
      %v9543 = vadd.f32 0.0, %v9542
      %v9544 = vpop.f32.mrf.mxu0
      %v9545 = vadd.f32 0.0, %v9544
      %9546 = vmatmul.bf16.gmra.mxu0 %v8234
      %v9547 = vpop.f32.mrf.mxu0
      %v9548 = vadd.f32 0.0, %v9547
      %v9549 = vpop.f32.mrf.mxu0
      %v9550 = vadd.f32 0.0, %v9549
      %9551 = vmatmul.bf16.gmra.mxu0 %v8237
      %v9552 = vpop.f32.mrf.mxu0
      %v9553 = vadd.f32 0.0, %v9552
      %v9554 = vpop.f32.mrf.mxu0
      %v9555 = vadd.f32 0.0, %v9554
      %9556 = vmatmul.bf16.gmra.mxu0 %v8240
      %v9557 = vpop.f32.mrf.mxu0
      %v9558 = vadd.f32 0.0, %v9557
      %v9559 = vpop.f32.mrf.mxu0
      %v9560 = vadd.f32 0.0, %v9559
      %9561 = vmatmul.bf16.gmra.mxu0 %v8243
      %v9562 = vpop.f32.mrf.mxu0
      %v9563 = vadd.f32 0.0, %v9562
      %v9564 = vpop.f32.mrf.mxu0
      %v9565 = vadd.f32 0.0, %v9564
      %9566 = vmatmul.bf16.gmra.mxu0 %v8246
      %v9567 = vpop.f32.mrf.mxu0
      %v9568 = vadd.f32 0.0, %v9567
      %v9569 = vpop.f32.mrf.mxu0
      %v9570 = vadd.f32 0.0, %v9569
      %9571 = vmatmul.bf16.gmra.mxu0 %v8249
      %v9572 = vpop.f32.mrf.mxu0
      %v9573 = vadd.f32 0.0, %v9572
      %v9574 = vpop.f32.mrf.mxu0
      %v9575 = vadd.f32 0.0, %v9574
      %9576 = vmatmul.bf16.gmra.mxu0 %v8252
      %v9577 = vpop.f32.mrf.mxu0
      %v9578 = vadd.f32 0.0, %v9577
      %v9579 = vpop.f32.mrf.mxu0
      %v9580 = vadd.f32 0.0, %v9579
      %9581 = vmatmul.bf16.gmra.mxu0 %v8255
      %v9582 = vpop.f32.mrf.mxu0
      %v9583 = vadd.f32 0.0, %v9582
      %v9584 = vpop.f32.mrf.mxu0
      %v9585 = vadd.f32 0.0, %v9584
      %9586 = vmatmul.bf16.gmra.mxu0 %v8258
      %v9587 = vpop.f32.mrf.mxu0
      %v9588 = vadd.f32 0.0, %v9587
      %v9589 = vpop.f32.mrf.mxu0
      %v9590 = vadd.f32 0.0, %v9589
      %9591 = vmatmul.bf16.gmra.mxu0 %v9084
      %v9592 = vpop.f32.mrf.mxu0
      %v9593 = vadd.f32 0.0, %v9592
      %v9594 = vpop.f32.mrf.mxu0
      %v9595 = vadd.f32 0.0, %v9594
      %9596 = vmatmul.bf16.gmra.mxu0 %v9508
      %v9597 = vpop.f32.mrf.mxu0
      %v9598 = vadd.f32 0.0, %v9597
      %v9599 = vpop.f32.mrf.mxu0
      %v9600 = vadd.f32 0.0, %v9599
      %9601 = vdwg.mxu0
      %v9602 = vadd.f32 %v9448, %v9523
      %v9603 = vadd.f32 %v9449, %v9525
      %v9604 = vadd.f32 %v9450, %v9528
      %v9605 = vadd.f32 %v9451, %v9530
      %v9606 = vadd.f32 %v9452, %v9533
      %v9607 = vadd.f32 %v9453, %v9535
      %v9608 = vadd.f32 %v9454, %v9538
      %v9609 = vadd.f32 %v9455, %v9540
      %v9610 = vadd.f32 %v9456, %v9543
      %v9611 = vadd.f32 %v9457, %v9545
      %v9612 = vadd.f32 %v9458, %v9548
      %v9613 = vadd.f32 %v9459, %v9550
      %v9614 = vadd.f32 %v9460, %v9553
      %v9615 = vadd.f32 %v9461, %v9555
      %v9616 = vadd.f32 %v9462, %v9558
      %v9617 = vadd.f32 %v9463, %v9560
      %v9618 = vadd.f32 %v9464, %v9563
      %v9619 = vadd.f32 %v9465, %v9565
      %v9620 = vadd.f32 %v9466, %v9568
      %v9621 = vadd.f32 %v9467, %v9570
      %v9622 = vadd.f32 %v9468, %v9573
      %v9623 = vadd.f32 %v9469, %v9575
      %v9624 = vadd.f32 %v9470, %v9578
      %v9625 = vadd.f32 %v9471, %v9580
      %v9626 = vadd.f32 %v9472, %v9583
      %v9627 = vadd.f32 %v9473, %v9585
      %v9628 = vadd.f32 %v9474, %v9588
      %v9629 = vadd.f32 %v9475, %v9590
      %v9630 = vadd.f32 %v9476, %v9593
      %v9631 = vadd.f32 %v9477, %v9595
      %v9632 = vadd.f32 %v9478, %v9598
      %v9633 = vadd.f32 %v9479, %v9600
      %v9635 = vrot.slane %v7764, 5
      %v9636 = vrot.slane %v9635, 4
      %v9637 = vrot.slane %v7765, 5
      %v9638 = vsel %vm8591, %v9636, %v9637
      %v9639 = vrot.slane %v9637, 4
      %v9640 = vrot.slane %v7766, 5
      %v9641 = vsel %vm8591, %v9639, %v9640
      %v9642 = vunpack.c.l.b16 %v9638
      %v9643 = vunpack.c.l.b16 %v9641
      %v9644 = vpack.c.b16 %v9643, %v9642
      %v9646 = vsel %vm8211, %v9644, 0
      %v9649 = vsel %vm8260, %v7775, 0
      %9651 = vmatpush.bf16.msra.mxu0 0
      %9652 = vmatpush.bf16.msra.mxu0 0
      %9653 = vmatpush.bf16.msra.mxu0 0
      %9654 = vmatpush.bf16.msra.mxu0 0
      %9655 = vmatpush.bf16.msra.mxu0 0
      %9656 = vmatpush.bf16.msra.mxu0 0
      %9657 = vmatpush.bf16.msra.mxu0 0
      %9658 = vmatpush.bf16.msra.mxu0 %v9649
      %9659 = vmatmul.bf16.gmra.mxu0 %v8759
      %v9660 = vpop.f32.mrf.mxu0
      %v9661 = vadd.f32 0.0, %v9660
      %v9662 = vpop.f32.mrf.mxu0
      %v9663 = vadd.f32 0.0, %v9662
      %9664 = vmatmul.bf16.gmra.mxu0 %v8762
      %v9665 = vpop.f32.mrf.mxu0
      %v9666 = vadd.f32 0.0, %v9665
      %v9667 = vpop.f32.mrf.mxu0
      %v9668 = vadd.f32 0.0, %v9667
      %9669 = vmatmul.bf16.gmra.mxu0 %v8765
      %v9670 = vpop.f32.mrf.mxu0
      %v9671 = vadd.f32 0.0, %v9670
      %v9672 = vpop.f32.mrf.mxu0
      %v9673 = vadd.f32 0.0, %v9672
      %9674 = vmatmul.bf16.gmra.mxu0 %v8768
      %v9675 = vpop.f32.mrf.mxu0
      %v9676 = vadd.f32 0.0, %v9675
      %v9677 = vpop.f32.mrf.mxu0
      %v9678 = vadd.f32 0.0, %v9677
      %9679 = vmatmul.bf16.gmra.mxu0 %v8771
      %v9680 = vpop.f32.mrf.mxu0
      %v9681 = vadd.f32 0.0, %v9680
      %v9682 = vpop.f32.mrf.mxu0
      %v9683 = vadd.f32 0.0, %v9682
      %9684 = vmatmul.bf16.gmra.mxu0 %v8774
      %v9685 = vpop.f32.mrf.mxu0
      %v9686 = vadd.f32 0.0, %v9685
      %v9687 = vpop.f32.mrf.mxu0
      %v9688 = vadd.f32 0.0, %v9687
      %9689 = vmatmul.bf16.gmra.mxu0 %v8777
      %v9690 = vpop.f32.mrf.mxu0
      %v9691 = vadd.f32 0.0, %v9690
      %v9692 = vpop.f32.mrf.mxu0
      %v9693 = vadd.f32 0.0, %v9692
      %9694 = vmatmul.bf16.gmra.mxu0 %v8780
      %v9695 = vpop.f32.mrf.mxu0
      %v9696 = vadd.f32 0.0, %v9695
      %v9697 = vpop.f32.mrf.mxu0
      %v9698 = vadd.f32 0.0, %v9697
      %9699 = vmatmul.bf16.gmra.mxu0 %v8783
      %v9700 = vpop.f32.mrf.mxu0
      %v9701 = vadd.f32 0.0, %v9700
      %v9702 = vpop.f32.mrf.mxu0
      %v9703 = vadd.f32 0.0, %v9702
      %9704 = vmatmul.bf16.gmra.mxu0 %v8786
      %v9705 = vpop.f32.mrf.mxu0
      %v9706 = vadd.f32 0.0, %v9705
      %v9707 = vpop.f32.mrf.mxu0
      %v9708 = vadd.f32 0.0, %v9707
      %9709 = vmatmul.bf16.gmra.mxu0 %v8789
      %v9710 = vpop.f32.mrf.mxu0
      %v9711 = vadd.f32 0.0, %v9710
      %v9712 = vpop.f32.mrf.mxu0
      %v9713 = vadd.f32 0.0, %v9712
      %9714 = vmatmul.bf16.gmra.mxu0 %v8792
      %v9715 = vpop.f32.mrf.mxu0
      %v9716 = vadd.f32 0.0, %v9715
      %v9717 = vpop.f32.mrf.mxu0
      %v9718 = vadd.f32 0.0, %v9717
      %9719 = vmatmul.bf16.gmra.mxu0 %v8795
      %v9720 = vpop.f32.mrf.mxu0
      %v9721 = vadd.f32 0.0, %v9720
      %v9722 = vpop.f32.mrf.mxu0
      %v9723 = vadd.f32 0.0, %v9722
      %9724 = vmatmul.bf16.gmra.mxu0 %v8798
      %v9725 = vpop.f32.mrf.mxu0
      %v9726 = vadd.f32 0.0, %v9725
      %v9727 = vpop.f32.mrf.mxu0
      %v9728 = vadd.f32 0.0, %v9727
      %9729 = vmatmul.bf16.gmra.mxu0 %v9222
      %v9730 = vpop.f32.mrf.mxu0
      %v9731 = vadd.f32 0.0, %v9730
      %v9732 = vpop.f32.mrf.mxu0
      %v9733 = vadd.f32 0.0, %v9732
      %9734 = vmatmul.bf16.gmra.mxu0 %v9646
      %v9735 = vpop.f32.mrf.mxu0
      %v9736 = vadd.f32 0.0, %v9735
      %v9737 = vpop.f32.mrf.mxu0
      %v9738 = vadd.f32 0.0, %v9737
      %9739 = vdwg.mxu0
      %v9740 = vadd.f32 %v9602, %v9661
      %v9741 = vadd.f32 %v9603, %v9663
      %v9742 = vadd.f32 %v9604, %v9666
      %v9743 = vadd.f32 %v9605, %v9668
      %v9744 = vadd.f32 %v9606, %v9671
      %v9745 = vadd.f32 %v9607, %v9673
      %v9746 = vadd.f32 %v9608, %v9676
      %v9747 = vadd.f32 %v9609, %v9678
      %v9748 = vadd.f32 %v9610, %v9681
      %v9749 = vadd.f32 %v9611, %v9683
      %v9750 = vadd.f32 %v9612, %v9686
      %v9751 = vadd.f32 %v9613, %v9688
      %v9752 = vadd.f32 %v9614, %v9691
      %v9753 = vadd.f32 %v9615, %v9693
      %v9754 = vadd.f32 %v9616, %v9696
      %v9755 = vadd.f32 %v9617, %v9698
      %v9756 = vadd.f32 %v9618, %v9701
      %v9757 = vadd.f32 %v9619, %v9703
      %v9758 = vadd.f32 %v9620, %v9706
      %v9759 = vadd.f32 %v9621, %v9708
      %v9760 = vadd.f32 %v9622, %v9711
      %v9761 = vadd.f32 %v9623, %v9713
      %v9762 = vadd.f32 %v9624, %v9716
      %v9763 = vadd.f32 %v9625, %v9718
      %v9764 = vadd.f32 %v9626, %v9721
      %v9765 = vadd.f32 %v9627, %v9723
      %v9766 = vadd.f32 %v9628, %v9726
      %v9767 = vadd.f32 %v9629, %v9728
      %v9768 = vadd.f32 %v9630, %v9731
      %v9769 = vadd.f32 %v9631, %v9733
      %v9770 = vadd.f32 %v9632, %v9736
      %v9771 = vadd.f32 %v9633, %v9738
      %v9772 = vld [vmem:[%s5] sm:$0x1]
      %v9774 = vperm.slane %v9772, 0
      %v9776 = vmul.f32 %v9740, %v9774
      %v9777 = vmul.f32 %v9741, %v9774
      %v9778 = vmul.f32 %v9742, %v9774
      %v9779 = vmul.f32 %v9743, %v9774
      %v9780 = vmul.f32 %v9744, %v9774
      %v9781 = vmul.f32 %v9745, %v9774
      %v9782 = vmul.f32 %v9746, %v9774
      %v9783 = vmul.f32 %v9747, %v9774
      %v9784 = vmul.f32 %v9748, %v9774
      %v9785 = vmul.f32 %v9749, %v9774
      %v9786 = vmul.f32 %v9750, %v9774
      %v9787 = vmul.f32 %v9751, %v9774
      %v9788 = vmul.f32 %v9752, %v9774
      %v9789 = vmul.f32 %v9753, %v9774
      %v9790 = vmul.f32 %v9754, %v9774
      %v9791 = vmul.f32 %v9755, %v9774
      %v9792 = vmul.f32 %v9756, %v9774
      %v9793 = vmul.f32 %v9757, %v9774
      %v9794 = vmul.f32 %v9758, %v9774
      %v9795 = vmul.f32 %v9759, %v9774
      %v9796 = vmul.f32 %v9760, %v9774
      %v9797 = vmul.f32 %v9761, %v9774
      %v9798 = vmul.f32 %v9762, %v9774
      %v9799 = vmul.f32 %v9763, %v9774
      %v9800 = vmul.f32 %v9764, %v9774
      %v9801 = vmul.f32 %v9765, %v9774
      %v9802 = vmul.f32 %v9766, %v9774
      %v9803 = vmul.f32 %v9767, %v9774
      %v9804 = vmul.f32 %v9768, %v9774
      %v9805 = vmul.f32 %v9769, %v9774
      %v9806 = vmul.f32 %v9770, %v9774
      %v9807 = vmul.f32 %v9771, %v9774
      %v9808 = vld [vmem:[%s6] sm:$0x1]
      %v9810 = vperm.slane %v9808, 0
      %v9812 = vadd.f32 %v9776, %v9810
      %v9813 = vadd.f32 %v9777, %v9810
      %v9814 = vadd.f32 %v9778, %v9810
      %v9815 = vadd.f32 %v9779, %v9810
      %v9816 = vadd.f32 %v9780, %v9810
      %v9817 = vadd.f32 %v9781, %v9810
      %v9818 = vadd.f32 %v9782, %v9810
      %v9819 = vadd.f32 %v9783, %v9810
      %v9820 = vadd.f32 %v9784, %v9810
      %v9821 = vadd.f32 %v9785, %v9810
      %v9822 = vadd.f32 %v9786, %v9810
      %v9823 = vadd.f32 %v9787, %v9810
      %v9824 = vadd.f32 %v9788, %v9810
      %v9825 = vadd.f32 %v9789, %v9810
      %v9826 = vadd.f32 %v9790, %v9810
      %v9827 = vadd.f32 %v9791, %v9810
      %v9828 = vadd.f32 %v9792, %v9810
      %v9829 = vadd.f32 %v9793, %v9810
      %v9830 = vadd.f32 %v9794, %v9810
      %v9831 = vadd.f32 %v9795, %v9810
      %v9832 = vadd.f32 %v9796, %v9810
      %v9833 = vadd.f32 %v9797, %v9810
      %v9834 = vadd.f32 %v9798, %v9810
      %v9835 = vadd.f32 %v9799, %v9810
      %v9836 = vadd.f32 %v9800, %v9810
      %v9837 = vadd.f32 %v9801, %v9810
      %v9838 = vadd.f32 %v9802, %v9810
      %v9839 = vadd.f32 %v9803, %v9810
      %v9840 = vadd.f32 %v9804, %v9810
      %v9841 = vadd.f32 %v9805, %v9810
      %v9842 = vadd.f32 %v9806, %v9810
      %v9843 = vadd.f32 %v9807, %v9810
      %v9844 = vmax.f32 %v9812, 0.0
      %v9845 = vmax.f32 %v9813, 0.0
      %v9846 = vmax.f32 %v9814, 0.0
      %v9847 = vmax.f32 %v9815, 0.0
      %v9848 = vmax.f32 %v9816, 0.0
      %v9849 = vmax.f32 %v9817, 0.0
      %v9850 = vmax.f32 %v9818, 0.0
      %v9851 = vmax.f32 %v9819, 0.0
      %v9852 = vmax.f32 %v9820, 0.0
      %v9853 = vmax.f32 %v9821, 0.0
      %v9854 = vmax.f32 %v9822, 0.0
      %v9855 = vmax.f32 %v9823, 0.0
      %v9856 = vmax.f32 %v9824, 0.0
      %v9857 = vmax.f32 %v9825, 0.0
      %v9858 = vmax.f32 %v9826, 0.0
      %v9859 = vmax.f32 %v9827, 0.0
      %v9860 = vmax.f32 %v9828, 0.0
      %v9861 = vmax.f32 %v9829, 0.0
      %v9862 = vmax.f32 %v9830, 0.0
      %v9863 = vmax.f32 %v9831, 0.0
      %v9864 = vmax.f32 %v9832, 0.0
      %v9865 = vmax.f32 %v9833, 0.0
      %v9866 = vmax.f32 %v9834, 0.0
      %v9867 = vmax.f32 %v9835, 0.0
      %v9868 = vmax.f32 %v9836, 0.0
      %v9869 = vmax.f32 %v9837, 0.0
      %v9870 = vmax.f32 %v9838, 0.0
      %v9871 = vmax.f32 %v9839, 0.0
      %v9872 = vmax.f32 %v9840, 0.0
      %v9873 = vmax.f32 %v9841, 0.0
      %v9874 = vmax.f32 %v9842, 0.0
      %v9875 = vmax.f32 %v9843, 0.0
      %9876 = vst.msk [vmem:[%s302] sm:$0xff] %vm8211, %v9844
      %9877 = vst.msk [vmem:[%s302 + $0x8] sm:$0xff] %vm8211, %v9845
      %9878 = vst.msk [vmem:[%s302 + $0x10] sm:$0xff] %vm8211, %v9846
      %9879 = vst.msk [vmem:[%s302 + $0x18] sm:$0xff] %vm8211, %v9847
      %9880 = vst.msk [vmem:[%s302 + $0x20] sm:$0xff] %vm8211, %v9848
      %9881 = vst.msk [vmem:[%s302 + $0x28] sm:$0xff] %vm8211, %v9849
      %9882 = vst.msk [vmem:[%s302 + $0x30] sm:$0xff] %vm8211, %v9850
      %9883 = vst.msk [vmem:[%s302 + $0x38] sm:$0xff] %vm8211, %v9851
      %9884 = vst.msk [vmem:[%s302 + $0x40] sm:$0xff] %vm8211, %v9852
      %9885 = vst.msk [vmem:[%s302 + $0x48] sm:$0xff] %vm8211, %v9853
      %9886 = vst.msk [vmem:[%s302 + $0x50] sm:$0xff] %vm8211, %v9854
      %9887 = vst.msk [vmem:[%s302 + $0x58] sm:$0xff] %vm8211, %v9855
      %9888 = vst.msk [vmem:[%s302 + $0x60] sm:$0xff] %vm8211, %v9856
      %9889 = vst.msk [vmem:[%s302 + $0x68] sm:$0xff] %vm8211, %v9857
      %9890 = vst.msk [vmem:[%s302 + $0x70] sm:$0xff] %vm8211, %v9858
      %9891 = vst.msk [vmem:[%s302 + $0x78] sm:$0xff] %vm8211, %v9859
      %9892 = vst.msk [vmem:[%s302 + $0x80] sm:$0xff] %vm8211, %v9860
      %9893 = vst.msk [vmem:[%s302 + $0x88] sm:$0xff] %vm8211, %v9861
      %9894 = vst.msk [vmem:[%s302 + $0x90] sm:$0xff] %vm8211, %v9862
      %9895 = vst.msk [vmem:[%s302 + $0x98] sm:$0xff] %vm8211, %v9863
      %9896 = vst.msk [vmem:[%s302 + $0xa0] sm:$0xff] %vm8211, %v9864
      %9897 = vst.msk [vmem:[%s302 + $0xa8] sm:$0xff] %vm8211, %v9865
      %9898 = vst.msk [vmem:[%s302 + $0xb0] sm:$0xff] %vm8211, %v9866
      %9899 = vst.msk [vmem:[%s302 + $0xb8] sm:$0xff] %vm8211, %v9867
      %9900 = vst.msk [vmem:[%s302 + $0xc0] sm:$0xff] %vm8211, %v9868
      %9901 = vst.msk [vmem:[%s302 + $0xc8] sm:$0xff] %vm8211, %v9869
      %9902 = vst.msk [vmem:[%s302 + $0xd0] sm:$0xff] %vm8211, %v9870
      %9903 = vst.msk [vmem:[%s302 + $0xd8] sm:$0xff] %vm8211, %v9871
      %9904 = vst.msk [vmem:[%s302 + $0xe0] sm:$0xff] %vm8211, %v9872
      %9905 = vst.msk [vmem:[%s302 + $0xe8] sm:$0xff] %vm8211, %v9873
      %9906 = vst.msk [vmem:[%s302 + $0xf0] sm:$0xff] %vm8211, %v9874
      %9907 = vst.msk [vmem:[%s302 + $0xf8] sm:$0xff] %vm8211, %v9875
      %s9908 = smul.u32 16, %s23
      %p9909 = scmp.lt.s32.totalorder %s22, 1
      %s9910 = scalar_select %p9909, %s22, 1
      %p9911 = scmp.lt.s32.totalorder %s9908, 15
      %s9912 = scalar_select %p9911, %s9908, 15
      %s9913 = smul.addr %s9912, 2
      %s9914 = smul.addr %s9910, 32
      %s9915 = sadd.s32 %s9913, %s9914
      %s9916 = smul.addr %s9915, 8
      %s9917 = scalar_lea.vmem %s7, %s9916
      // Predicated region
      $region49: #{double_conv_forward.1} parent=47 // pred_check
        %p9918 = pneg %p202
      $region50: #{double_conv_forward.1} parent=47 // pred_check_branch
        %9920 = sbr.rel (%p9918) target = $region52
      $region51: #{double_conv_forward.1} parent=47 // pred_region
        %s9921 = smul.u32 16, %s23
      $region52: #{double_conv_forward.1} parent=47 // pred_fallthru
        _
    $region48: #{double_conv_forward.1} parent=5 // pred_fallthru
      _
    %p9922 = scmp.le.s32.totalorder 2, %s13
    // Predicated region
    $region53: #{double_conv_forward.1} parent=5 // pred_check
      %p9923 = pneg %p9922
    $region54: #{double_conv_forward.1} parent=5 // pred_check_branch
      %9925 = sbr.rel (%p9923) target = $region56
    $region55: #{double_conv_forward.1} parent=5 // pred_region
      %s9926 = ssub.s32 %s13, 2
      // Predicated region
      $region57: #{double_conv_forward.1} parent=55 // pred_check
        %p9927 = pneg %p208
      $region58: #{double_conv_forward.1} parent=55 // pred_check_branch
        %9929 = sbr.rel (%p9927) target = $region60
      $region59: #{double_conv_forward.1} parent=55 // pred_region
        %s9930 = smul.u32 16, %s25
        %p9931 = scmp.lt.s32.totalorder %s24, 1
        %s9932 = scalar_select %p9931, %s24, 1
        %p9933 = scmp.lt.s32.totalorder %s9930, 15
        %s9934 = scalar_select %p9933, %s9930, 15
        %s9935 = smul.addr %s9934, 2
        %s9936 = smul.addr %s9932, 32
        %s9937 = sadd.s32 %s9935, %s9936
        %s9938 = smul.addr %s9937, 8
        %s9939 = scalar_lea.vmem %s7, %s9938
      $region60: #{double_conv_forward.1} parent=55 // pred_fallthru
        _
    $region56: #{double_conv_forward.1} parent=5 // pred_fallthru
      _
  $region6: #{double_conv_forward.1} parent=0 // loop_footer
    %s17 = sadd.s32 1, %s13
  $region7: #{double_conv_forward.1} parent=0 // loop_footer_branch
    %12 = sbr.rel target = $region3
  $region8: #{double_conv_forward.1} parent=0 // loop_exit
    _

</llo_original>
